<compile_context>
chip_gen: v7x
topology: tpu7x:2x2x1
jax: 0.10.0
libtpu: 0.0.40
codegen_flags: <defaults>
</compile_context>

<pallas_src>
import jax
import jax.numpy as jnp
from jax.experimental import pallas as pl
from jax.experimental.pallas import tpu as pltpu

# ---- small, deterministic synthetic sizes (module hardcodes feature_size=12,
# input_size=1; hidden reduced from 512 -> 128 for a quick run) ----
FEATURE_SIZE = 12      # sequence length (batch_first LSTM time axis)
INPUT_SIZE = 1         # per-step feature size
HIDDEN_SIZE = 128      # LSTM hidden size (reduced from 512)
BATCH = 8
EPS = 1e-5             # LayerNorm default eps


# --------------------------- fused Pallas kernel -----------------------------

def fused_lstm_model_kernel(
    x_ref,        # (TB, T)       input, squeezed (input_size == 1), f32
    ln1_g_ref,    # (1, T)        norm_1 gamma
    ln1_b_ref,    # (1, T)        norm_1 beta
    wih1_ref,     # (1, 4H)       lstm_1 W_ih row (input_size == 1), f32
    whh1_ref,     # (H, 4H)       lstm_1 W_hh^T, bf16
    b1_ref,       # (1, 4H)       lstm_1 b_ih + b_hh, f32
    w2_ref,       # (2H, 4H)      lstm_2 fused [W_ih^T ; W_hh^T], bf16
    b2_ref,       # (1, 4H)       lstm_2 b_ih + b_hh, f32
    fc1_w_ref,    # (T*H, H)      fc_1 W^T, bf16
    fc1_b_ref,    # (1, H)
    ln2_g_ref,    # (1, H)
    ln2_b_ref,    # (1, H)
    fc2_w_ref,    # (1, H)        fc_2 weight row
    fc2_b_ref,    # (1, 1)
    o_ref,        # (TB, 1)       output
    xproj_ref,    # (TB, T*4H)    VMEM scratch: hoisted layer-1 input projection
):
    TB, T = x_ref.shape
    H = whh1_ref.shape[0]
    G = 4 * H

    # ---- norm_1: LayerNorm over feature_size*input_size (= T) per sample ----
    x = x_ref[...].astype(jnp.float32)                           # (TB, T)
    mean = jnp.mean(x, axis=-1, keepdims=True)
    var = jnp.mean((x - mean) ** 2, axis=-1, keepdims=True)
    xn = (x - mean) * jax.lax.rsqrt(var + EPS)
    xn = xn * ln1_g_ref[...] + ln1_b_ref[...]                    # (TB, T)

    # Hoisted broadcasts (JAX does not CSE broadcast_in_dim inside the unroll).
    wih1b = jnp.broadcast_to(wih1_ref[...].astype(jnp.float32), (TB, G))
    b1b = jnp.broadcast_to(b1_ref[...].astype(jnp.float32), (TB, G))
    b2b = jnp.broadcast_to(b2_ref[...].astype(jnp.float32), (TB, G))

    # ---- layer-1 input projection hoisted OFF the recurrence critical path ----
    # input_size == 1 -> a VPU broadcast multiply, written to a lane-dense slab
    # (static, 128-multiple offsets => unmasked stores).
    for t in range(T):
        xproj_ref[:, t * G:(t + 1) * G] = xn[:, t:t + 1] * wih1b + b1b

    def lstm_cell(gates, c):
        # PyTorch gate order: i, f, g, o.
        # sigmoid(x) == 0.5*tanh(0.5*x)+0.5 : exact, and one EUP push per gate.
        i_g = 0.5 * jnp.tanh(0.5 * gates[:, 0:H]) + 0.5
        f_g = 0.5 * jnp.tanh(0.5 * gates[:, H:2 * H]) + 0.5
        g_g = jnp.tanh(gates[:, 2 * H:3 * H])
        o_g = 0.5 * jnp.tanh(0.5 * gates[:, 3 * H:4 * H]) + 0.5
        c_new = f_g * c + i_g * g_g
        h_new = o_g * jnp.tanh(c_new)
        return h_new, c_new

    zeros = jnp.zeros((TB, H), jnp.float32)
    h1, c1, h2, c2 = zeros, zeros, zeros, zeros
    acc = zeros                                                  # fc_1 accumulator

    # Fully unrolled recurrence (T = 12, static).  Layer-1 step t+1 and layer-2
    # step t depend only on h1[t], so the scheduler overlaps their MXU/EUP work.
    # Matmul operands are bf16 (RHS streamed from VMEM per dot), accumulation f32.
    for t in range(T):
        g1 = (jnp.dot(h1.astype(jnp.bfloat16), whh1_ref[...],
                      preferred_element_type=jnp.float32)
              + xproj_ref[:, t * G:(t + 1) * G])
        h1, c1 = lstm_cell(g1, c1)

        # Fused layer-2 gates: [h1 | h2] @ [W_ih^T ; W_hh^T]  -> one MXU pass.
        h12 = jnp.concatenate([h1, h2], axis=-1).astype(jnp.bfloat16)
        g2 = jnp.dot(h12, w2_ref[...], preferred_element_type=jnp.float32) + b2b
        h2, c2 = lstm_cell(g2, c2)

        # fc_1 folded into the recurrence: partial product for step t depends only
        # on h2[t], so the K=T*H GEMM hides under the recurrence's idle MXU slots.
        acc = acc + jnp.dot(h2.astype(jnp.bfloat16),
                            fc1_w_ref[t * H:(t + 1) * H, :],
                            preferred_element_type=jnp.float32)
        # TODO(synk): on v7x the 12 partials could stay in the MRB (single pop via
        # explicit matmul_push_rhs/acc_lhs/pop) instead of per-step f32 adds.

    # ---- fc_1 bias -> norm_2 -> relu -> fc_2 ----
    h = acc + fc1_b_ref[...]
    m = jnp.mean(h, axis=-1, keepdims=True)
    v = jnp.mean((h - m) ** 2, axis=-1, keepdims=True)
    hn = (h - m) * jax.lax.rsqrt(v + EPS)
    hn = hn * ln2_g_ref[...] + ln2_b_ref[...]
    hn = jnp.maximum(hn, 0.0)
    # fc_2 has N=1: VPU multiply + lane reduction instead of a 1-column MXU op.
    out = jnp.sum(hn * fc2_w_ref[...], axis=-1, keepdims=True) + fc2_b_ref[...]
    o_ref[...] = out.astype(o_ref.dtype)


# --------------------------- wrapper / model ----------------------------------

def forward(params, x):
    """Pallas implementation of LSTM_MODEL.forward. x: (B, feature_size, input_size)."""
    B = x.shape[0]
    T, H = FEATURE_SIZE, HIDDEN_SIZE
    G = 4 * H
    # Batch tile: at larger batch pad/tile to 128 (v5e) / 256 (v6e, v7x) rows so the
    # MXU height is filled and the grid axis shards across v7x's two TensorCores.
    TILE_B = B

    x2d = x.reshape(B, T).astype(jnp.float32)                    # input_size == 1
    b1 = (params["b_ih1"] + params["b_hh1"]).reshape(1, G)
    b2 = (params["b_ih2"] + params["b_hh2"]).reshape(1, G)
    # bf16 matmul operands (accumulated in f32 inside the kernel).
    whh1 = params["w_hh1"].T.astype(jnp.bfloat16)                # (H, 4H)
    w2 = jnp.concatenate([params["w_ih2"].T, params["w_hh2"].T],
                         axis=0).astype(jnp.bfloat16)            # (2H, 4H) fused
    fc1_w = params["fc1_w"].T.astype(jnp.bfloat16)               # (T*H, H)

    full = lambda i: (0, 0)   # weights: constant block index -> no re-DMA per tile
    return pl.pallas_call(
        fused_lstm_model_kernel,
        out_shape=jax.ShapeDtypeStruct((B, 1), x.dtype),
        grid_spec=pltpu.PrefetchScalarGridSpec(
            num_scalar_prefetch=0,
            grid=(B // TILE_B,),
            in_specs=[
                pl.BlockSpec((TILE_B, T), lambda i: (i, 0)),     # x
                pl.BlockSpec((1, T), full),                      # ln1_g
                pl.BlockSpec((1, T), full),                      # ln1_b
                pl.BlockSpec((1, G), full),                      # w_ih1 row
                pl.BlockSpec((H, G), full),                      # w_hh1^T (bf16)
                pl.BlockSpec((1, G), full),                      # b1
                pl.BlockSpec((2 * H, G), full),                  # fused w2 (bf16)
                pl.BlockSpec((1, G), full),                      # b2
                pl.BlockSpec((T * H, H), full),                  # fc1_w^T (bf16)
                pl.BlockSpec((1, H), full),                      # fc1_b
                pl.BlockSpec((1, H), full),                      # ln2_g
                pl.BlockSpec((1, H), full),                      # ln2_b
                pl.BlockSpec((1, H), full),                      # fc2_w
                pl.BlockSpec((1, 1), full),                      # fc2_b
            ],
            out_specs=pl.BlockSpec((TILE_B, 1), lambda i: (i, 0)),
            scratch_shapes=[pltpu.VMEM((TILE_B, T * G), jnp.float32)],
        ),
        compiler_params=pltpu.CompilerParams(
            dimension_semantics=("parallel",),
            # Headroom for the real H=512 (bf16 weights ~12.3 MiB) on v5e/v7x.
            vmem_limit_bytes=64 << 20,
        ),
    )(
        x2d,
        params["ln1_g"].reshape(1, T),
        params["ln1_b"].reshape(1, T),
        params["w_ih1"].reshape(1, G),                           # (4H,1) -> (1,4H) row
        whh1, b1, w2, b2, fc1_w,
        params["fc1_b"].reshape(1, H),
        params["ln2_g"].reshape(1, H),
        params["ln2_b"].reshape(1, H),
        params["fc2_w"].reshape(1, H),
        params["fc2_b"].reshape(1, 1),
    )


def init_params(key):
    H, I, T = HIDDEN_SIZE, INPUT_SIZE, FEATURE_SIZE
    ks = jax.random.split(key, 12)

    def u(k, shape, scale):
        return jax.random.uniform(k, shape, jnp.float32, -scale, scale)

    s_h = 1.0 / jnp.sqrt(H)
    s_f = 1.0 / jnp.sqrt(T * H)
    return dict(
        ln1_g=jnp.ones((T, I), jnp.float32), ln1_b=jnp.zeros((T, I), jnp.float32),
        w_ih1=u(ks[0], (4 * H, I), s_h), w_hh1=u(ks[1], (4 * H, H), s_h),
        b_ih1=u(ks[2], (4 * H,), s_h), b_hh1=u(ks[3], (4 * H,), s_h),
        w_ih2=u(ks[4], (4 * H, H), s_h), w_hh2=u(ks[5], (4 * H, H), s_h),
        b_ih2=u(ks[6], (4 * H,), s_h), b_hh2=u(ks[7], (4 * H,), s_h),
        fc1_w=u(ks[8], (H, T * H), s_f), fc1_b=u(ks[9], (H,), s_f),
        ln2_g=jnp.ones((H,), jnp.float32), ln2_b=jnp.zeros((H,), jnp.float32),
        fc2_w=u(ks[10], (1, H), s_h), fc2_b=u(ks[11], (1,), s_h),
    )


# --------------------------- pure-JAX reference -------------------------------

def _lstm_ref(x, w_ih, w_hh, b_ih, b_hh):
    B = x.shape[0]
    H = w_hh.shape[1]

    def step(carry, xt):
        h, c = carry
        g = xt @ w_ih.T + h @ w_hh.T + b_ih + b_hh
        i, f, gg, o = jnp.split(g, 4, axis=-1)
        i, f, o = jax.nn.sigmoid(i), jax.nn.sigmoid(f), jax.nn.sigmoid(o)
        c = f * c + i * jnp.tanh(gg)
        h = o * jnp.tanh(c)
        return (h, c), h

    zeros = jnp.zeros((B, H), jnp.float32)
    _, ys = jax.lax.scan(step, (zeros, zeros), jnp.transpose(x, (1, 0, 2)))
    return jnp.transpose(ys, (1, 0, 2))


def forward_ref(params, x):
    mean = x.mean(axis=(1, 2), keepdims=True)
    var = ((x - mean) ** 2).mean(axis=(1, 2), keepdims=True)
    xn = (x - mean) / jnp.sqrt(var + EPS) * params["ln1_g"][None] + params["ln1_b"][None]
    y1 = _lstm_ref(xn, params["w_ih1"], params["w_hh1"], params["b_ih1"], params["b_hh1"])
    y2 = _lstm_ref(y1, params["w_ih2"], params["w_hh2"], params["b_ih2"], params["b_hh2"])
    flat = y2.reshape(y2.shape[0], -1)
    h = flat @ params["fc1_w"].T + params["fc1_b"]
    m = h.mean(-1, keepdims=True)
    v = ((h - m) ** 2).mean(-1, keepdims=True)
    h = (h - m) / jnp.sqrt(v + EPS) * params["ln2_g"] + params["ln2_b"]
    h = jnp.maximum(h, 0.0)
    return h @ params["fc2_w"].T + params["fc2_b"]


# TODO(synk): self.dropout_1 is defined but never used in forward(); omitted.

if __name__ == "__main__":
    key = jax.random.PRNGKey(0)
    k_p, k_x = jax.random.split(key)
    params = init_params(k_p)
    x = jax.random.normal(k_x, (BATCH, FEATURE_SIZE, INPUT_SIZE), jnp.float32)

    out = jax.jit(forward)(params, x)
    out = jax.block_until_ready(out)

    ref = forward_ref(params, x)
    assert out.shape == (BATCH, 1), out.shape
    # Tolerance relaxed vs. the f32-only version: matmul operands are bf16
    # (f32 accumulation), which introduces ~1e-3-level absolute error through the
    # 12-step recurrence + fc_1.
    assert jnp.allclose(out, ref, rtol=2e-2, atol=2e-2), (out, ref)

    print("KERNEL_OK")
</pallas_src>

<mosaic_0001>
module attributes {stable_mosaic.version = 11 : i64} {
  func.func @fused_lstm_model_kernel(%arg0: i32, %arg1: memref<8x12xf32, #tpu.memory_space<vmem>>, %arg2: memref<1x12xf32, #tpu.memory_space<vmem>>, %arg3: memref<1x12xf32, #tpu.memory_space<vmem>>, %arg4: memref<1x512xf32, #tpu.memory_space<vmem>>, %arg5: memref<128x512xbf16, #tpu.memory_space<vmem>>, %arg6: memref<1x512xf32, #tpu.memory_space<vmem>>, %arg7: memref<256x512xbf16, #tpu.memory_space<vmem>>, %arg8: memref<1x512xf32, #tpu.memory_space<vmem>>, %arg9: memref<1536x128xbf16, #tpu.memory_space<vmem>>, %arg10: memref<1x128xf32, #tpu.memory_space<vmem>>, %arg11: memref<1x128xf32, #tpu.memory_space<vmem>>, %arg12: memref<1x128xf32, #tpu.memory_space<vmem>>, %arg13: memref<1x128xf32, #tpu.memory_space<vmem>>, %arg14: memref<1x1xf32, #tpu.memory_space<vmem>>, %arg15: memref<8x1xf32, #tpu.memory_space<vmem>>, %arg16: memref<8x6144xf32, #tpu.memory_space<vmem>>) attributes {dimension_semantics = [#tpu.dimension_semantics<parallel>], iteration_bounds = array<i64: 1>, scalar_prefetch = 0 : i64, scratch_operands = 1 : i64, tpu.core_type = #tpu.core_type<tc>, window_params = [{transform_indices = @transform_0, window_bounds = array<i64: 8, 12>}, {pipeline_mode = #tpu.pipeline_mode<synchronous>, transform_indices = @transform_1, window_bounds = array<i64: 1, 12>}, {pipeline_mode = #tpu.pipeline_mode<synchronous>, transform_indices = @transform_2, window_bounds = array<i64: 1, 12>}, {pipeline_mode = #tpu.pipeline_mode<synchronous>, transform_indices = @transform_3, window_bounds = array<i64: 1, 512>}, {pipeline_mode = #tpu.pipeline_mode<synchronous>, transform_indices = @transform_4, window_bounds = array<i64: 128, 512>}, {pipeline_mode = #tpu.pipeline_mode<synchronous>, transform_indices = @transform_5, window_bounds = array<i64: 1, 512>}, {pipeline_mode = #tpu.pipeline_mode<synchronous>, transform_indices = @transform_6, window_bounds = array<i64: 256, 512>}, {pipeline_mode = #tpu.pipeline_mode<synchronous>, transform_indices = @transform_7, window_bounds = array<i64: 1, 512>}, {pipeline_mode = #tpu.pipeline_mode<synchronous>, transform_indices = @transform_8, window_bounds = array<i64: 1536, 128>}, {pipeline_mode = #tpu.pipeline_mode<synchronous>, transform_indices = @transform_9, window_bounds = array<i64: 1, 128>}, {pipeline_mode = #tpu.pipeline_mode<synchronous>, transform_indices = @transform_10, window_bounds = array<i64: 1, 128>}, {pipeline_mode = #tpu.pipeline_mode<synchronous>, transform_indices = @transform_11, window_bounds = array<i64: 1, 128>}, {pipeline_mode = #tpu.pipeline_mode<synchronous>, transform_indices = @transform_12, window_bounds = array<i64: 1, 128>}, {pipeline_mode = #tpu.pipeline_mode<synchronous>, transform_indices = @transform_13, window_bounds = array<i64: 1, 1>}, {transform_indices = @transform_14, window_bounds = array<i64: 8, 1>}]} {
    %c0 = arith.constant 0 : index
    %c0_0 = arith.constant 0 : index
    %0 = vector.load %arg1[%c0, %c0_0] : memref<8x12xf32, #tpu.memory_space<vmem>>, vector<8x12xf32>
    %cst = arith.constant dense<0.000000e+00> : vector<8xf32>
    %1 = vector.multi_reduction <add>, %0, %cst [1] : vector<8x12xf32> to vector<8xf32>
    %2 = vector.shape_cast %1 : vector<8xf32> to vector<8x1xf32>
    %cst_1 = arith.constant 1.200000e+01 : f32
    %3 = vector.broadcast %cst_1 : f32 to vector<8x1xf32>
    %4 = arith.divf %2, %3 : vector<8x1xf32>
    %5 = vector.broadcast %4 : vector<8x1xf32> to vector<8x12xf32>
    %6 = arith.subf %0, %5 : vector<8x12xf32>
    %7 = arith.mulf %6, %6 : vector<8x12xf32>
    %cst_2 = arith.constant dense<0.000000e+00> : vector<8xf32>
    %8 = vector.multi_reduction <add>, %7, %cst_2 [1] : vector<8x12xf32> to vector<8xf32>
    %9 = vector.shape_cast %8 : vector<8xf32> to vector<8x1xf32>
    %cst_3 = arith.constant 1.200000e+01 : f32
    %10 = vector.broadcast %cst_3 : f32 to vector<8x1xf32>
    %11 = arith.divf %9, %10 : vector<8x1xf32>
    %12 = vector.broadcast %4 : vector<8x1xf32> to vector<8x12xf32>
    %13 = arith.subf %0, %12 : vector<8x12xf32>
    %cst_4 = arith.constant 9.99999974E-6 : f32
    %14 = vector.broadcast %cst_4 : f32 to vector<8x1xf32>
    %15 = arith.addf %11, %14 : vector<8x1xf32>
    %16 = math.rsqrt %15 : vector<8x1xf32>
    %17 = vector.broadcast %16 : vector<8x1xf32> to vector<8x12xf32>
    %18 = arith.mulf %13, %17 : vector<8x12xf32>
    %c0_5 = arith.constant 0 : index
    %c0_6 = arith.constant 0 : index
    %19 = vector.load %arg2[%c0_5, %c0_6] : memref<1x12xf32, #tpu.memory_space<vmem>>, vector<1x12xf32>
    %20 = vector.broadcast %19 : vector<1x12xf32> to vector<8x12xf32>
    %21 = arith.mulf %18, %20 : vector<8x12xf32>
    %c0_7 = arith.constant 0 : index
    %c0_8 = arith.constant 0 : index
    %22 = vector.load %arg3[%c0_7, %c0_8] : memref<1x12xf32, #tpu.memory_space<vmem>>, vector<1x12xf32>
    %23 = vector.broadcast %22 : vector<1x12xf32> to vector<8x12xf32>
    %24 = arith.addf %21, %23 : vector<8x12xf32>
    %c0_9 = arith.constant 0 : index
    %c0_10 = arith.constant 0 : index
    %25 = vector.load %arg4[%c0_9, %c0_10] : memref<1x512xf32, #tpu.memory_space<vmem>>, vector<1x512xf32>
    %26 = vector.shape_cast %25 : vector<1x512xf32> to vector<1x512xf32>
    %27 = vector.broadcast %26 : vector<1x512xf32> to vector<8x512xf32>
    %c0_11 = arith.constant 0 : index
    %c0_12 = arith.constant 0 : index
    %28 = vector.load %arg6[%c0_11, %c0_12] : memref<1x512xf32, #tpu.memory_space<vmem>>, vector<1x512xf32>
    %29 = vector.shape_cast %28 : vector<1x512xf32> to vector<1x512xf32>
    %30 = vector.broadcast %29 : vector<1x512xf32> to vector<8x512xf32>
    %c0_13 = arith.constant 0 : index
    %c0_14 = arith.constant 0 : index
    %31 = vector.load %arg8[%c0_13, %c0_14] : memref<1x512xf32, #tpu.memory_space<vmem>>, vector<1x512xf32>
    %32 = vector.shape_cast %31 : vector<1x512xf32> to vector<1x512xf32>
    %33 = vector.broadcast %32 : vector<1x512xf32> to vector<8x512xf32>
    %34 = vector.extract_strided_slice %24 {offsets = [0, 0], sizes = [8, 1], strides = [1, 1]} : vector<8x12xf32> to vector<8x1xf32>
    %35 = vector.broadcast %34 : vector<8x1xf32> to vector<8x512xf32>
    %36 = arith.mulf %35, %27 : vector<8x512xf32>
    %37 = arith.addf %36, %30 : vector<8x512xf32>
    %c0_15 = arith.constant 0 : index
    %c0_16 = arith.constant 0 : index
    %38 = vector.load %arg16[%c0_15, %c0_16] : memref<8x6144xf32, #tpu.memory_space<vmem>>, vector<8x512xf32>
    tpu.vector_store %arg16[%c0_15, %c0_16], %37 {strides = array<i32>} : memref<8x6144xf32, #tpu.memory_space<vmem>>, vector<8x512xf32>,
    %39 = vector.extract_strided_slice %24 {offsets = [0, 1], sizes = [8, 1], strides = [1, 1]} : vector<8x12xf32> to vector<8x1xf32>
    %40 = vector.broadcast %39 : vector<8x1xf32> to vector<8x512xf32>
    %41 = arith.mulf %40, %27 : vector<8x512xf32>
    %42 = arith.addf %41, %30 : vector<8x512xf32>
    %c0_17 = arith.constant 0 : index
    %c512 = arith.constant 512 : index
    %43 = vector.load %arg16[%c0_17, %c512] : memref<8x6144xf32, #tpu.memory_space<vmem>>, vector<8x512xf32>
    tpu.vector_store %arg16[%c0_17, %c512], %42 {strides = array<i32>} : memref<8x6144xf32, #tpu.memory_space<vmem>>, vector<8x512xf32>,
    %44 = vector.extract_strided_slice %24 {offsets = [0, 2], sizes = [8, 1], strides = [1, 1]} : vector<8x12xf32> to vector<8x1xf32>
    %45 = vector.broadcast %44 : vector<8x1xf32> to vector<8x512xf32>
    %46 = arith.mulf %45, %27 : vector<8x512xf32>
    %47 = arith.addf %46, %30 : vector<8x512xf32>
    %c0_18 = arith.constant 0 : index
    %c1024 = arith.constant 1024 : index
    %48 = vector.load %arg16[%c0_18, %c1024] : memref<8x6144xf32, #tpu.memory_space<vmem>>, vector<8x512xf32>
    tpu.vector_store %arg16[%c0_18, %c1024], %47 {strides = array<i32>} : memref<8x6144xf32, #tpu.memory_space<vmem>>, vector<8x512xf32>,
    %49 = vector.extract_strided_slice %24 {offsets = [0, 3], sizes = [8, 1], strides = [1, 1]} : vector<8x12xf32> to vector<8x1xf32>
    %50 = vector.broadcast %49 : vector<8x1xf32> to vector<8x512xf32>
    %51 = arith.mulf %50, %27 : vector<8x512xf32>
    %52 = arith.addf %51, %30 : vector<8x512xf32>
    %c0_19 = arith.constant 0 : index
    %c1536 = arith.constant 1536 : index
    %53 = vector.load %arg16[%c0_19, %c1536] : memref<8x6144xf32, #tpu.memory_space<vmem>>, vector<8x512xf32>
    tpu.vector_store %arg16[%c0_19, %c1536], %52 {strides = array<i32>} : memref<8x6144xf32, #tpu.memory_space<vmem>>, vector<8x512xf32>,
    %54 = vector.extract_strided_slice %24 {offsets = [0, 4], sizes = [8, 1], strides = [1, 1]} : vector<8x12xf32> to vector<8x1xf32>
    %55 = vector.broadcast %54 : vector<8x1xf32> to vector<8x512xf32>
    %56 = arith.mulf %55, %27 : vector<8x512xf32>
    %57 = arith.addf %56, %30 : vector<8x512xf32>
    %c0_20 = arith.constant 0 : index
    %c2048 = arith.constant 2048 : index
    %58 = vector.load %arg16[%c0_20, %c2048] : memref<8x6144xf32, #tpu.memory_space<vmem>>, vector<8x512xf32>
    tpu.vector_store %arg16[%c0_20, %c2048], %57 {strides = array<i32>} : memref<8x6144xf32, #tpu.memory_space<vmem>>, vector<8x512xf32>,
    %59 = vector.extract_strided_slice %24 {offsets = [0, 5], sizes = [8, 1], strides = [1, 1]} : vector<8x12xf32> to vector<8x1xf32>
    %60 = vector.broadcast %59 : vector<8x1xf32> to vector<8x512xf32>
    %61 = arith.mulf %60, %27 : vector<8x512xf32>
    %62 = arith.addf %61, %30 : vector<8x512xf32>
    %c0_21 = arith.constant 0 : index
    %c2560 = arith.constant 2560 : index
    %63 = vector.load %arg16[%c0_21, %c2560] : memref<8x6144xf32, #tpu.memory_space<vmem>>, vector<8x512xf32>
    tpu.vector_store %arg16[%c0_21, %c2560], %62 {strides = array<i32>} : memref<8x6144xf32, #tpu.memory_space<vmem>>, vector<8x512xf32>,
    %64 = vector.extract_strided_slice %24 {offsets = [0, 6], sizes = [8, 1], strides = [1, 1]} : vector<8x12xf32> to vector<8x1xf32>
    %65 = vector.broadcast %64 : vector<8x1xf32> to vector<8x512xf32>
    %66 = arith.mulf %65, %27 : vector<8x512xf32>
    %67 = arith.addf %66, %30 : vector<8x512xf32>
    %c0_22 = arith.constant 0 : index
    %c3072 = arith.constant 3072 : index
    %68 = vector.load %arg16[%c0_22, %c3072] : memref<8x6144xf32, #tpu.memory_space<vmem>>, vector<8x512xf32>
    tpu.vector_store %arg16[%c0_22, %c3072], %67 {strides = array<i32>} : memref<8x6144xf32, #tpu.memory_space<vmem>>, vector<8x512xf32>,
    %69 = vector.extract_strided_slice %24 {offsets = [0, 7], sizes = [8, 1], strides = [1, 1]} : vector<8x12xf32> to vector<8x1xf32>
    %70 = vector.broadcast %69 : vector<8x1xf32> to vector<8x512xf32>
    %71 = arith.mulf %70, %27 : vector<8x512xf32>
    %72 = arith.addf %71, %30 : vector<8x512xf32>
    %c0_23 = arith.constant 0 : index
    %c3584 = arith.constant 3584 : index
    %73 = vector.load %arg16[%c0_23, %c3584] : memref<8x6144xf32, #tpu.memory_space<vmem>>, vector<8x512xf32>
    tpu.vector_store %arg16[%c0_23, %c3584], %72 {strides = array<i32>} : memref<8x6144xf32, #tpu.memory_space<vmem>>, vector<8x512xf32>,
    %74 = vector.extract_strided_slice %24 {offsets = [0, 8], sizes = [8, 1], strides = [1, 1]} : vector<8x12xf32> to vector<8x1xf32>
    %75 = vector.broadcast %74 : vector<8x1xf32> to vector<8x512xf32>
    %76 = arith.mulf %75, %27 : vector<8x512xf32>
    %77 = arith.addf %76, %30 : vector<8x512xf32>
    %c0_24 = arith.constant 0 : index
    %c4096 = arith.constant 4096 : index
    %78 = vector.load %arg16[%c0_24, %c4096] : memref<8x6144xf32, #tpu.memory_space<vmem>>, vector<8x512xf32>
    tpu.vector_store %arg16[%c0_24, %c4096], %77 {strides = array<i32>} : memref<8x6144xf32, #tpu.memory_space<vmem>>, vector<8x512xf32>,
    %79 = vector.extract_strided_slice %24 {offsets = [0, 9], sizes = [8, 1], strides = [1, 1]} : vector<8x12xf32> to vector<8x1xf32>
    %80 = vector.broadcast %79 : vector<8x1xf32> to vector<8x512xf32>
    %81 = arith.mulf %80, %27 : vector<8x512xf32>
    %82 = arith.addf %81, %30 : vector<8x512xf32>
    %c0_25 = arith.constant 0 : index
    %c4608 = arith.constant 4608 : index
    %83 = vector.load %arg16[%c0_25, %c4608] : memref<8x6144xf32, #tpu.memory_space<vmem>>, vector<8x512xf32>
    tpu.vector_store %arg16[%c0_25, %c4608], %82 {strides = array<i32>} : memref<8x6144xf32, #tpu.memory_space<vmem>>, vector<8x512xf32>,
    %84 = vector.extract_strided_slice %24 {offsets = [0, 10], sizes = [8, 1], strides = [1, 1]} : vector<8x12xf32> to vector<8x1xf32>
    %85 = vector.broadcast %84 : vector<8x1xf32> to vector<8x512xf32>
    %86 = arith.mulf %85, %27 : vector<8x512xf32>
    %87 = arith.addf %86, %30 : vector<8x512xf32>
    %c0_26 = arith.constant 0 : index
    %c5120 = arith.constant 5120 : index
    %88 = vector.load %arg16[%c0_26, %c5120] : memref<8x6144xf32, #tpu.memory_space<vmem>>, vector<8x512xf32>
    tpu.vector_store %arg16[%c0_26, %c5120], %87 {strides = array<i32>} : memref<8x6144xf32, #tpu.memory_space<vmem>>, vector<8x512xf32>,
    %89 = vector.extract_strided_slice %24 {offsets = [0, 11], sizes = [8, 1], strides = [1, 1]} : vector<8x12xf32> to vector<8x1xf32>
    %90 = vector.broadcast %89 : vector<8x1xf32> to vector<8x512xf32>
    %91 = arith.mulf %90, %27 : vector<8x512xf32>
    %92 = arith.addf %91, %30 : vector<8x512xf32>
    %c0_27 = arith.constant 0 : index
    %c5632 = arith.constant 5632 : index
    %93 = vector.load %arg16[%c0_27, %c5632] : memref<8x6144xf32, #tpu.memory_space<vmem>>, vector<8x512xf32>
    tpu.vector_store %arg16[%c0_27, %c5632], %92 {strides = array<i32>} : memref<8x6144xf32, #tpu.memory_space<vmem>>, vector<8x512xf32>,
    %cst_28 = arith.constant 0.000000e+00 : f32
    %94 = vector.broadcast %cst_28 : f32 to vector<8x128xf32>
    %95 = arith.truncf %94 : vector<8x128xf32> to vector<8x128xbf16>
    %c0_29 = arith.constant 0 : index
    %c0_30 = arith.constant 0 : index
    %96 = vector.load %arg5[%c0_29, %c0_30] : memref<128x512xbf16, #tpu.memory_space<vmem>>, vector<128x512xbf16>
    %cst_31 = arith.constant dense<0.000000e+00> : vector<8x512xf32>
    %97 = tpu.matmul %95, %96, %cst_31 {dimension_numbers = #tpu.dot_dimension_numbers<[1], [0], [0], [1], [0, 0, 1, 1], [], []>} : vector<8x128xbf16>, vector<128x512xbf16>, vector<8x512xf32> -> vector<8x512xf32>
    %c0_32 = arith.constant 0 : index
    %c0_33 = arith.constant 0 : index
    %98 = vector.load %arg16[%c0_32, %c0_33] : memref<8x6144xf32, #tpu.memory_space<vmem>>, vector<8x512xf32>
    %99 = arith.addf %97, %98 : vector<8x512xf32>
    %100 = vector.extract_strided_slice %99 {offsets = [0, 0], sizes = [8, 128], strides = [1, 1]} : vector<8x512xf32> to vector<8x128xf32>
    %cst_34 = arith.constant 5.000000e-01 : f32
    %101 = vector.broadcast %cst_34 : f32 to vector<8x128xf32>
    %102 = arith.mulf %101, %100 : vector<8x128xf32>
    %103 = math.tanh %102 : vector<8x128xf32>
    %cst_35 = arith.constant 5.000000e-01 : f32
    %104 = vector.broadcast %cst_35 : f32 to vector<8x128xf32>
    %105 = arith.mulf %104, %103 : vector<8x128xf32>
    %cst_36 = arith.constant 5.000000e-01 : f32
    %106 = vector.broadcast %cst_36 : f32 to vector<8x128xf32>
    %107 = arith.addf %105, %106 : vector<8x128xf32>
    %108 = vector.extract_strided_slice %99 {offsets = [0, 128], sizes = [8, 128], strides = [1, 1]} : vector<8x512xf32> to vector<8x128xf32>
    %cst_37 = arith.constant 5.000000e-01 : f32
    %109 = vector.broadcast %cst_37 : f32 to vector<8x128xf32>
    %110 = arith.mulf %109, %108 : vector<8x128xf32>
    %111 = math.tanh %110 : vector<8x128xf32>
    %cst_38 = arith.constant 5.000000e-01 : f32
    %112 = vector.broadcast %cst_38 : f32 to vector<8x128xf32>
    %113 = arith.mulf %112, %111 : vector<8x128xf32>
    %cst_39 = arith.constant 5.000000e-01 : f32
    %114 = vector.broadcast %cst_39 : f32 to vector<8x128xf32>
    %115 = arith.addf %113, %114 : vector<8x128xf32>
    %116 = vector.extract_strided_slice %99 {offsets = [0, 256], sizes = [8, 128], strides = [1, 1]} : vector<8x512xf32> to vector<8x128xf32>
    %117 = math.tanh %116 : vector<8x128xf32>
    %118 = vector.extract_strided_slice %99 {offsets = [0, 384], sizes = [8, 128], strides = [1, 1]} : vector<8x512xf32> to vector<8x128xf32>
    %cst_40 = arith.constant 5.000000e-01 : f32
    %119 = vector.broadcast %cst_40 : f32 to vector<8x128xf32>
    %120 = arith.mulf %119, %118 : vector<8x128xf32>
    %121 = math.tanh %120 : vector<8x128xf32>
    %cst_41 = arith.constant 5.000000e-01 : f32
    %122 = vector.broadcast %cst_41 : f32 to vector<8x128xf32>
    %123 = arith.mulf %122, %121 : vector<8x128xf32>
    %cst_42 = arith.constant 5.000000e-01 : f32
    %124 = vector.broadcast %cst_42 : f32 to vector<8x128xf32>
    %125 = arith.addf %123, %124 : vector<8x128xf32>
    %126 = arith.mulf %115, %94 : vector<8x128xf32>
    %127 = arith.mulf %107, %117 : vector<8x128xf32>
    %128 = arith.addf %126, %127 : vector<8x128xf32>
    %129 = math.tanh %128 : vector<8x128xf32>
    %130 = arith.mulf %125, %129 : vector<8x128xf32>
    %131 = tpu.concatenate %130, %94 in 1 : vector<8x128xf32>, vector<8x128xf32> -> vector<8x256xf32>
    %132 = arith.truncf %131 : vector<8x256xf32> to vector<8x256xbf16>
    %c0_43 = arith.constant 0 : index
    %c0_44 = arith.constant 0 : index
    %133 = vector.load %arg7[%c0_43, %c0_44] : memref<256x512xbf16, #tpu.memory_space<vmem>>, vector<256x512xbf16>
    %cst_45 = arith.constant dense<0.000000e+00> : vector<8x512xf32>
    %134 = tpu.matmul %132, %133, %cst_45 {dimension_numbers = #tpu.dot_dimension_numbers<[1], [0], [0], [1], [0, 0, 1, 1], [], []>} : vector<8x256xbf16>, vector<256x512xbf16>, vector<8x512xf32> -> vector<8x512xf32>
    %135 = arith.addf %134, %33 : vector<8x512xf32>
    %136 = vector.extract_strided_slice %135 {offsets = [0, 0], sizes = [8, 128], strides = [1, 1]} : vector<8x512xf32> to vector<8x128xf32>
    %cst_46 = arith.constant 5.000000e-01 : f32
    %137 = vector.broadcast %cst_46 : f32 to vector<8x128xf32>
    %138 = arith.mulf %137, %136 : vector<8x128xf32>
    %139 = math.tanh %138 : vector<8x128xf32>
    %cst_47 = arith.constant 5.000000e-01 : f32
    %140 = vector.broadcast %cst_47 : f32 to vector<8x128xf32>
    %141 = arith.mulf %140, %139 : vector<8x128xf32>
    %cst_48 = arith.constant 5.000000e-01 : f32
    %142 = vector.broadcast %cst_48 : f32 to vector<8x128xf32>
    %143 = arith.addf %141, %142 : vector<8x128xf32>
    %144 = vector.extract_strided_slice %135 {offsets = [0, 128], sizes = [8, 128], strides = [1, 1]} : vector<8x512xf32> to vector<8x128xf32>
    %cst_49 = arith.constant 5.000000e-01 : f32
    %145 = vector.broadcast %cst_49 : f32 to vector<8x128xf32>
    %146 = arith.mulf %145, %144 : vector<8x128xf32>
    %147 = math.tanh %146 : vector<8x128xf32>
    %cst_50 = arith.constant 5.000000e-01 : f32
    %148 = vector.broadcast %cst_50 : f32 to vector<8x128xf32>
    %149 = arith.mulf %148, %147 : vector<8x128xf32>
    %cst_51 = arith.constant 5.000000e-01 : f32
    %150 = vector.broadcast %cst_51 : f32 to vector<8x128xf32>
    %151 = arith.addf %149, %150 : vector<8x128xf32>
    %152 = vector.extract_strided_slice %135 {offsets = [0, 256], sizes = [8, 128], strides = [1, 1]} : vector<8x512xf32> to vector<8x128xf32>
    %153 = math.tanh %152 : vector<8x128xf32>
    %154 = vector.extract_strided_slice %135 {offsets = [0, 384], sizes = [8, 128], strides = [1, 1]} : vector<8x512xf32> to vector<8x128xf32>
    %cst_52 = arith.constant 5.000000e-01 : f32
    %155 = vector.broadcast %cst_52 : f32 to vector<8x128xf32>
    %156 = arith.mulf %155, %154 : vector<8x128xf32>
    %157 = math.tanh %156 : vector<8x128xf32>
    %cst_53 = arith.constant 5.000000e-01 : f32
    %158 = vector.broadcast %cst_53 : f32 to vector<8x128xf32>
    %159 = arith.mulf %158, %157 : vector<8x128xf32>
    %cst_54 = arith.constant 5.000000e-01 : f32
    %160 = vector.broadcast %cst_54 : f32 to vector<8x128xf32>
    %161 = arith.addf %159, %160 : vector<8x128xf32>
    %162 = arith.mulf %151, %94 : vector<8x128xf32>
    %163 = arith.mulf %143, %153 : vector<8x128xf32>
    %164 = arith.addf %162, %163 : vector<8x128xf32>
    %165 = math.tanh %164 : vector<8x128xf32>
    %166 = arith.mulf %161, %165 : vector<8x128xf32>
    %167 = arith.truncf %166 : vector<8x128xf32> to vector<8x128xbf16>
    %c0_55 = arith.constant 0 : index
    %c0_56 = arith.constant 0 : index
    %168 = vector.load %arg9[%c0_55, %c0_56] : memref<1536x128xbf16, #tpu.memory_space<vmem>>, vector<128x128xbf16>
    %cst_57 = arith.constant dense<0.000000e+00> : vector<8x128xf32>
    %169 = tpu.matmul %167, %168, %cst_57 {dimension_numbers = #tpu.dot_dimension_numbers<[1], [0], [0], [1], [0, 0, 1, 1], [], []>} : vector<8x128xbf16>, vector<128x128xbf16>, vector<8x128xf32> -> vector<8x128xf32>
    %170 = arith.addf %94, %169 : vector<8x128xf32>
    %171 = arith.truncf %130 : vector<8x128xf32> to vector<8x128xbf16>
    %c0_58 = arith.constant 0 : index
    %c0_59 = arith.constant 0 : index
    %172 = vector.load %arg5[%c0_58, %c0_59] : memref<128x512xbf16, #tpu.memory_space<vmem>>, vector<128x512xbf16>
    %cst_60 = arith.constant dense<0.000000e+00> : vector<8x512xf32>
    %173 = tpu.matmul %171, %172, %cst_60 {dimension_numbers = #tpu.dot_dimension_numbers<[1], [0], [0], [1], [0, 0, 1, 1], [], []>} : vector<8x128xbf16>, vector<128x512xbf16>, vector<8x512xf32> -> vector<8x512xf32>
    %c0_61 = arith.constant 0 : index
    %c512_62 = arith.constant 512 : index
    %174 = vector.load %arg16[%c0_61, %c512_62] : memref<8x6144xf32, #tpu.memory_space<vmem>>, vector<8x512xf32>
    %175 = arith.addf %173, %174 : vector<8x512xf32>
    %176 = vector.extract_strided_slice %175 {offsets = [0, 0], sizes = [8, 128], strides = [1, 1]} : vector<8x512xf32> to vector<8x128xf32>
    %cst_63 = arith.constant 5.000000e-01 : f32
    %177 = vector.broadcast %cst_63 : f32 to vector<8x128xf32>
    %178 = arith.mulf %177, %176 : vector<8x128xf32>
    %179 = math.tanh %178 : vector<8x128xf32>
    %cst_64 = arith.constant 5.000000e-01 : f32
    %180 = vector.broadcast %cst_64 : f32 to vector<8x128xf32>
    %181 = arith.mulf %180, %179 : vector<8x128xf32>
    %cst_65 = arith.constant 5.000000e-01 : f32
    %182 = vector.broadcast %cst_65 : f32 to vector<8x128xf32>
    %183 = arith.addf %181, %182 : vector<8x128xf32>
    %184 = vector.extract_strided_slice %175 {offsets = [0, 128], sizes = [8, 128], strides = [1, 1]} : vector<8x512xf32> to vector<8x128xf32>
    %cst_66 = arith.constant 5.000000e-01 : f32
    %185 = vector.broadcast %cst_66 : f32 to vector<8x128xf32>
    %186 = arith.mulf %185, %184 : vector<8x128xf32>
    %187 = math.tanh %186 : vector<8x128xf32>
    %cst_67 = arith.constant 5.000000e-01 : f32
    %188 = vector.broadcast %cst_67 : f32 to vector<8x128xf32>
    %189 = arith.mulf %188, %187 : vector<8x128xf32>
    %cst_68 = arith.constant 5.000000e-01 : f32
    %190 = vector.broadcast %cst_68 : f32 to vector<8x128xf32>
    %191 = arith.addf %189, %190 : vector<8x128xf32>
    %192 = vector.extract_strided_slice %175 {offsets = [0, 256], sizes = [8, 128], strides = [1, 1]} : vector<8x512xf32> to vector<8x128xf32>
    %193 = math.tanh %192 : vector<8x128xf32>
    %194 = vector.extract_strided_slice %175 {offsets = [0, 384], sizes = [8, 128], strides = [1, 1]} : vector<8x512xf32> to vector<8x128xf32>
    %cst_69 = arith.constant 5.000000e-01 : f32
    %195 = vector.broadcast %cst_69 : f32 to vector<8x128xf32>
    %196 = arith.mulf %195, %194 : vector<8x128xf32>
    %197 = math.tanh %196 : vector<8x128xf32>
    %cst_70 = arith.constant 5.000000e-01 : f32
    %198 = vector.broadcast %cst_70 : f32 to vector<8x128xf32>
    %199 = arith.mulf %198, %197 : vector<8x128xf32>
    %cst_71 = arith.constant 5.000000e-01 : f32
    %200 = vector.broadcast %cst_71 : f32 to vector<8x128xf32>
    %201 = arith.addf %199, %200 : vector<8x128xf32>
    %202 = arith.mulf %191, %128 : vector<8x128xf32>
    %203 = arith.mulf %183, %193 : vector<8x128xf32>
    %204 = arith.addf %202, %203 : vector<8x128xf32>
    %205 = math.tanh %204 : vector<8x128xf32>
    %206 = arith.mulf %201, %205 : vector<8x128xf32>
    %207 = tpu.concatenate %206, %166 in 1 : vector<8x128xf32>, vector<8x128xf32> -> vector<8x256xf32>
    %208 = arith.truncf %207 : vector<8x256xf32> to vector<8x256xbf16>
    %c0_72 = arith.constant 0 : index
    %c0_73 = arith.constant 0 : index
    %209 = vector.load %arg7[%c0_72, %c0_73] : memref<256x512xbf16, #tpu.memory_space<vmem>>, vector<256x512xbf16>
    %cst_74 = arith.constant dense<0.000000e+00> : vector<8x512xf32>
    %210 = tpu.matmul %208, %209, %cst_74 {dimension_numbers = #tpu.dot_dimension_numbers<[1], [0], [0], [1], [0, 0, 1, 1], [], []>} : vector<8x256xbf16>, vector<256x512xbf16>, vector<8x512xf32> -> vector<8x512xf32>
    %211 = arith.addf %210, %33 : vector<8x512xf32>
    %212 = vector.extract_strided_slice %211 {offsets = [0, 0], sizes = [8, 128], strides = [1, 1]} : vector<8x512xf32> to vector<8x128xf32>
    %cst_75 = arith.constant 5.000000e-01 : f32
    %213 = vector.broadcast %cst_75 : f32 to vector<8x128xf32>
    %214 = arith.mulf %213, %212 : vector<8x128xf32>
    %215 = math.tanh %214 : vector<8x128xf32>
    %cst_76 = arith.constant 5.000000e-01 : f32
    %216 = vector.broadcast %cst_76 : f32 to vector<8x128xf32>
    %217 = arith.mulf %216, %215 : vector<8x128xf32>
    %cst_77 = arith.constant 5.000000e-01 : f32
    %218 = vector.broadcast %cst_77 : f32 to vector<8x128xf32>
    %219 = arith.addf %217, %218 : vector<8x128xf32>
    %220 = vector.extract_strided_slice %211 {offsets = [0, 128], sizes = [8, 128], strides = [1, 1]} : vector<8x512xf32> to vector<8x128xf32>
    %cst_78 = arith.constant 5.000000e-01 : f32
    %221 = vector.broadcast %cst_78 : f32 to vector<8x128xf32>
    %222 = arith.mulf %221, %220 : vector<8x128xf32>
    %223 = math.tanh %222 : vector<8x128xf32>
    %cst_79 = arith.constant 5.000000e-01 : f32
    %224 = vector.broadcast %cst_79 : f32 to vector<8x128xf32>
    %225 = arith.mulf %224, %223 : vector<8x128xf32>
    %cst_80 = arith.constant 5.000000e-01 : f32
    %226 = vector.broadcast %cst_80 : f32 to vector<8x128xf32>
    %227 = arith.addf %225, %226 : vector<8x128xf32>
    %228 = vector.extract_strided_slice %211 {offsets = [0, 256], sizes = [8, 128], strides = [1, 1]} : vector<8x512xf32> to vector<8x128xf32>
    %229 = math.tanh %228 : vector<8x128xf32>
    %230 = vector.extract_strided_slice %211 {offsets = [0, 384], sizes = [8, 128], strides = [1, 1]} : vector<8x512xf32> to vector<8x128xf32>
    %cst_81 = arith.constant 5.000000e-01 : f32
    %231 = vector.broadcast %cst_81 : f32 to vector<8x128xf32>
    %232 = arith.mulf %231, %230 : vector<8x128xf32>
    %233 = math.tanh %232 : vector<8x128xf32>
    %cst_82 = arith.constant 5.000000e-01 : f32
    %234 = vector.broadcast %cst_82 : f32 to vector<8x128xf32>
    %235 = arith.mulf %234, %233 : vector<8x128xf32>
    %cst_83 = arith.constant 5.000000e-01 : f32
    %236 = vector.broadcast %cst_83 : f32 to vector<8x128xf32>
    %237 = arith.addf %235, %236 : vector<8x128xf32>
    %238 = arith.mulf %227, %164 : vector<8x128xf32>
    %239 = arith.mulf %219, %229 : vector<8x128xf32>
    %240 = arith.addf %238, %239 : vector<8x128xf32>
    %241 = math.tanh %240 : vector<8x128xf32>
    %242 = arith.mulf %237, %241 : vector<8x128xf32>
    %243 = arith.truncf %242 : vector<8x128xf32> to vector<8x128xbf16>
    %c128 = arith.constant 128 : index
    %c0_84 = arith.constant 0 : index
    %244 = vector.load %arg9[%c128, %c0_84] : memref<1536x128xbf16, #tpu.memory_space<vmem>>, vector<128x128xbf16>
    %cst_85 = arith.constant dense<0.000000e+00> : vector<8x128xf32>
    %245 = tpu.matmul %243, %244, %cst_85 {dimension_numbers = #tpu.dot_dimension_numbers<[1], [0], [0], [1], [0, 0, 1, 1], [], []>} : vector<8x128xbf16>, vector<128x128xbf16>, vector<8x128xf32> -> vector<8x128xf32>
    %246 = arith.addf %170, %245 : vector<8x128xf32>
    %247 = arith.truncf %206 : vector<8x128xf32> to vector<8x128xbf16>
    %c0_86 = arith.constant 0 : index
    %c0_87 = arith.constant 0 : index
    %248 = vector.load %arg5[%c0_86, %c0_87] : memref<128x512xbf16, #tpu.memory_space<vmem>>, vector<128x512xbf16>
    %cst_88 = arith.constant dense<0.000000e+00> : vector<8x512xf32>
    %249 = tpu.matmul %247, %248, %cst_88 {dimension_numbers = #tpu.dot_dimension_numbers<[1], [0], [0], [1], [0, 0, 1, 1], [], []>} : vector<8x128xbf16>, vector<128x512xbf16>, vector<8x512xf32> -> vector<8x512xf32>
    %c0_89 = arith.constant 0 : index
    %c1024_90 = arith.constant 1024 : index
    %250 = vector.load %arg16[%c0_89, %c1024_90] : memref<8x6144xf32, #tpu.memory_space<vmem>>, vector<8x512xf32>
    %251 = arith.addf %249, %250 : vector<8x512xf32>
    %252 = vector.extract_strided_slice %251 {offsets = [0, 0], sizes = [8, 128], strides = [1, 1]} : vector<8x512xf32> to vector<8x128xf32>
    %cst_91 = arith.constant 5.000000e-01 : f32
    %253 = vector.broadcast %cst_91 : f32 to vector<8x128xf32>
    %254 = arith.mulf %253, %252 : vector<8x128xf32>
    %255 = math.tanh %254 : vector<8x128xf32>
    %cst_92 = arith.constant 5.000000e-01 : f32
    %256 = vector.broadcast %cst_92 : f32 to vector<8x128xf32>
    %257 = arith.mulf %256, %255 : vector<8x128xf32>
    %cst_93 = arith.constant 5.000000e-01 : f32
    %258 = vector.broadcast %cst_93 : f32 to vector<8x128xf32>
    %259 = arith.addf %257, %258 : vector<8x128xf32>
    %260 = vector.extract_strided_slice %251 {offsets = [0, 128], sizes = [8, 128], strides = [1, 1]} : vector<8x512xf32> to vector<8x128xf32>
    %cst_94 = arith.constant 5.000000e-01 : f32
    %261 = vector.broadcast %cst_94 : f32 to vector<8x128xf32>
    %262 = arith.mulf %261, %260 : vector<8x128xf32>
    %263 = math.tanh %262 : vector<8x128xf32>
    %cst_95 = arith.constant 5.000000e-01 : f32
    %264 = vector.broadcast %cst_95 : f32 to vector<8x128xf32>
    %265 = arith.mulf %264, %263 : vector<8x128xf32>
    %cst_96 = arith.constant 5.000000e-01 : f32
    %266 = vector.broadcast %cst_96 : f32 to vector<8x128xf32>
    %267 = arith.addf %265, %266 : vector<8x128xf32>
    %268 = vector.extract_strided_slice %251 {offsets = [0, 256], sizes = [8, 128], strides = [1, 1]} : vector<8x512xf32> to vector<8x128xf32>
    %269 = math.tanh %268 : vector<8x128xf32>
    %270 = vector.extract_strided_slice %251 {offsets = [0, 384], sizes = [8, 128], strides = [1, 1]} : vector<8x512xf32> to vector<8x128xf32>
    %cst_97 = arith.constant 5.000000e-01 : f32
    %271 = vector.broadcast %cst_97 : f32 to vector<8x128xf32>
    %272 = arith.mulf %271, %270 : vector<8x128xf32>
    %273 = math.tanh %272 : vector<8x128xf32>
    %cst_98 = arith.constant 5.000000e-01 : f32
    %274 = vector.broadcast %cst_98 : f32 to vector<8x128xf32>
    %275 = arith.mulf %274, %273 : vector<8x128xf32>
    %cst_99 = arith.constant 5.000000e-01 : f32
    %276 = vector.broadcast %cst_99 : f32 to vector<8x128xf32>
    %277 = arith.addf %275, %276 : vector<8x128xf32>
    %278 = arith.mulf %267, %204 : vector<8x128xf32>
    %279 = arith.mulf %259, %269 : vector<8x128xf32>
    %280 = arith.addf %278, %279 : vector<8x128xf32>
    %281 = math.tanh %280 : vector<8x128xf32>
    %282 = arith.mulf %277, %281 : vector<8x128xf32>
    %283 = tpu.concatenate %282, %242 in 1 : vector<8x128xf32>, vector<8x128xf32> -> vector<8x256xf32>
    %284 = arith.truncf %283 : vector<8x256xf32> to vector<8x256xbf16>
    %c0_100 = arith.constant 0 : index
    %c0_101 = arith.constant 0 : index
    %285 = vector.load %arg7[%c0_100, %c0_101] : memref<256x512xbf16, #tpu.memory_space<vmem>>, vector<256x512xbf16>
    %cst_102 = arith.constant dense<0.000000e+00> : vector<8x512xf32>
    %286 = tpu.matmul %284, %285, %cst_102 {dimension_numbers = #tpu.dot_dimension_numbers<[1], [0], [0], [1], [0, 0, 1, 1], [], []>} : vector<8x256xbf16>, vector<256x512xbf16>, vector<8x512xf32> -> vector<8x512xf32>
    %287 = arith.addf %286, %33 : vector<8x512xf32>
    %288 = vector.extract_strided_slice %287 {offsets = [0, 0], sizes = [8, 128], strides = [1, 1]} : vector<8x512xf32> to vector<8x128xf32>
    %cst_103 = arith.constant 5.000000e-01 : f32
    %289 = vector.broadcast %cst_103 : f32 to vector<8x128xf32>
    %290 = arith.mulf %289, %288 : vector<8x128xf32>
    %291 = math.tanh %290 : vector<8x128xf32>
    %cst_104 = arith.constant 5.000000e-01 : f32
    %292 = vector.broadcast %cst_104 : f32 to vector<8x128xf32>
    %293 = arith.mulf %292, %291 : vector<8x128xf32>
    %cst_105 = arith.constant 5.000000e-01 : f32
    %294 = vector.broadcast %cst_105 : f32 to vector<8x128xf32>
    %295 = arith.addf %293, %294 : vector<8x128xf32>
    %296 = vector.extract_strided_slice %287 {offsets = [0, 128], sizes = [8, 128], strides = [1, 1]} : vector<8x512xf32> to vector<8x128xf32>
    %cst_106 = arith.constant 5.000000e-01 : f32
    %297 = vector.broadcast %cst_106 : f32 to vector<8x128xf32>
    %298 = arith.mulf %297, %296 : vector<8x128xf32>
    %299 = math.tanh %298 : vector<8x128xf32>
    %cst_107 = arith.constant 5.000000e-01 : f32
    %300 = vector.broadcast %cst_107 : f32 to vector<8x128xf32>
    %301 = arith.mulf %300, %299 : vector<8x128xf32>
    %cst_108 = arith.constant 5.000000e-01 : f32
    %302 = vector.broadcast %cst_108 : f32 to vector<8x128xf32>
    %303 = arith.addf %301, %302 : vector<8x128xf32>
    %304 = vector.extract_strided_slice %287 {offsets = [0, 256], sizes = [8, 128], strides = [1, 1]} : vector<8x512xf32> to vector<8x128xf32>
    %305 = math.tanh %304 : vector<8x128xf32>
    %306 = vector.extract_strided_slice %287 {offsets = [0, 384], sizes = [8, 128], strides = [1, 1]} : vector<8x512xf32> to vector<8x128xf32>
    %cst_109 = arith.constant 5.000000e-01 : f32
    %307 = vector.broadcast %cst_109 : f32 to vector<8x128xf32>
    %308 = arith.mulf %307, %306 : vector<8x128xf32>
    %309 = math.tanh %308 : vector<8x128xf32>
    %cst_110 = arith.constant 5.000000e-01 : f32
    %310 = vector.broadcast %cst_110 : f32 to vector<8x128xf32>
    %311 = arith.mulf %310, %309 : vector<8x128xf32>
    %cst_111 = arith.constant 5.000000e-01 : f32
    %312 = vector.broadcast %cst_111 : f32 to vector<8x128xf32>
    %313 = arith.addf %311, %312 : vector<8x128xf32>
    %314 = arith.mulf %303, %240 : vector<8x128xf32>
    %315 = arith.mulf %295, %305 : vector<8x128xf32>
    %316 = arith.addf %314, %315 : vector<8x128xf32>
    %317 = math.tanh %316 : vector<8x128xf32>
    %318 = arith.mulf %313, %317 : vector<8x128xf32>
    %319 = arith.truncf %318 : vector<8x128xf32> to vector<8x128xbf16>
    %c256 = arith.constant 256 : index
    %c0_112 = arith.constant 0 : index
    %320 = vector.load %arg9[%c256, %c0_112] : memref<1536x128xbf16, #tpu.memory_space<vmem>>, vector<128x128xbf16>
    %cst_113 = arith.constant dense<0.000000e+00> : vector<8x128xf32>
    %321 = tpu.matmul %319, %320, %cst_113 {dimension_numbers = #tpu.dot_dimension_numbers<[1], [0], [0], [1], [0, 0, 1, 1], [], []>} : vector<8x128xbf16>, vector<128x128xbf16>, vector<8x128xf32> -> vector<8x128xf32>
    %322 = arith.addf %246, %321 : vector<8x128xf32>
    %323 = arith.truncf %282 : vector<8x128xf32> to vector<8x128xbf16>
    %c0_114 = arith.constant 0 : index
    %c0_115 = arith.constant 0 : index
    %324 = vector.load %arg5[%c0_114, %c0_115] : memref<128x512xbf16, #tpu.memory_space<vmem>>, vector<128x512xbf16>
    %cst_116 = arith.constant dense<0.000000e+00> : vector<8x512xf32>
    %325 = tpu.matmul %323, %324, %cst_116 {dimension_numbers = #tpu.dot_dimension_numbers<[1], [0], [0], [1], [0, 0, 1, 1], [], []>} : vector<8x128xbf16>, vector<128x512xbf16>, vector<8x512xf32> -> vector<8x512xf32>
    %c0_117 = arith.constant 0 : index
    %c1536_118 = arith.constant 1536 : index
    %326 = vector.load %arg16[%c0_117, %c1536_118] : memref<8x6144xf32, #tpu.memory_space<vmem>>, vector<8x512xf32>
    %327 = arith.addf %325, %326 : vector<8x512xf32>
    %328 = vector.extract_strided_slice %327 {offsets = [0, 0], sizes = [8, 128], strides = [1, 1]} : vector<8x512xf32> to vector<8x128xf32>
    %cst_119 = arith.constant 5.000000e-01 : f32
    %329 = vector.broadcast %cst_119 : f32 to vector<8x128xf32>
    %330 = arith.mulf %329, %328 : vector<8x128xf32>
    %331 = math.tanh %330 : vector<8x128xf32>
    %cst_120 = arith.constant 5.000000e-01 : f32
    %332 = vector.broadcast %cst_120 : f32 to vector<8x128xf32>
    %333 = arith.mulf %332, %331 : vector<8x128xf32>
    %cst_121 = arith.constant 5.000000e-01 : f32
    %334 = vector.broadcast %cst_121 : f32 to vector<8x128xf32>
    %335 = arith.addf %333, %334 : vector<8x128xf32>
    %336 = vector.extract_strided_slice %327 {offsets = [0, 128], sizes = [8, 128], strides = [1, 1]} : vector<8x512xf32> to vector<8x128xf32>
    %cst_122 = arith.constant 5.000000e-01 : f32
    %337 = vector.broadcast %cst_122 : f32 to vector<8x128xf32>
    %338 = arith.mulf %337, %336 : vector<8x128xf32>
    %339 = math.tanh %338 : vector<8x128xf32>
    %cst_123 = arith.constant 5.000000e-01 : f32
    %340 = vector.broadcast %cst_123 : f32 to vector<8x128xf32>
    %341 = arith.mulf %340, %339 : vector<8x128xf32>
    %cst_124 = arith.constant 5.000000e-01 : f32
    %342 = vector.broadcast %cst_124 : f32 to vector<8x128xf32>
    %343 = arith.addf %341, %342 : vector<8x128xf32>
    %344 = vector.extract_strided_slice %327 {offsets = [0, 256], sizes = [8, 128], strides = [1, 1]} : vector<8x512xf32> to vector<8x128xf32>
    %345 = math.tanh %344 : vector<8x128xf32>
    %346 = vector.extract_strided_slice %327 {offsets = [0, 384], sizes = [8, 128], strides = [1, 1]} : vector<8x512xf32> to vector<8x128xf32>
    %cst_125 = arith.constant 5.000000e-01 : f32
    %347 = vector.broadcast %cst_125 : f32 to vector<8x128xf32>
    %348 = arith.mulf %347, %346 : vector<8x128xf32>
    %349 = math.tanh %348 : vector<8x128xf32>
    %cst_126 = arith.constant 5.000000e-01 : f32
    %350 = vector.broadcast %cst_126 : f32 to vector<8x128xf32>
    %351 = arith.mulf %350, %349 : vector<8x128xf32>
    %cst_127 = arith.constant 5.000000e-01 : f32
    %352 = vector.broadcast %cst_127 : f32 to vector<8x128xf32>
    %353 = arith.addf %351, %352 : vector<8x128xf32>
    %354 = arith.mulf %343, %280 : vector<8x128xf32>
    %355 = arith.mulf %335, %345 : vector<8x128xf32>
    %356 = arith.addf %354, %355 : vector<8x128xf32>
    %357 = math.tanh %356 : vector<8x128xf32>
    %358 = arith.mulf %353, %357 : vector<8x128xf32>
    %359 = tpu.concatenate %358, %318 in 1 : vector<8x128xf32>, vector<8x128xf32> -> vector<8x256xf32>
    %360 = arith.truncf %359 : vector<8x256xf32> to vector<8x256xbf16>
    %c0_128 = arith.constant 0 : index
    %c0_129 = arith.constant 0 : index
    %361 = vector.load %arg7[%c0_128, %c0_129] : memref<256x512xbf16, #tpu.memory_space<vmem>>, vector<256x512xbf16>
    %cst_130 = arith.constant dense<0.000000e+00> : vector<8x512xf32>
    %362 = tpu.matmul %360, %361, %cst_130 {dimension_numbers = #tpu.dot_dimension_numbers<[1], [0], [0], [1], [0, 0, 1, 1], [], []>} : vector<8x256xbf16>, vector<256x512xbf16>, vector<8x512xf32> -> vector<8x512xf32>
    %363 = arith.addf %362, %33 : vector<8x512xf32>
    %364 = vector.extract_strided_slice %363 {offsets = [0, 0], sizes = [8, 128], strides = [1, 1]} : vector<8x512xf32> to vector<8x128xf32>
    %cst_131 = arith.constant 5.000000e-01 : f32
    %365 = vector.broadcast %cst_131 : f32 to vector<8x128xf32>
    %366 = arith.mulf %365, %364 : vector<8x128xf32>
    %367 = math.tanh %366 : vector<8x128xf32>
    %cst_132 = arith.constant 5.000000e-01 : f32
    %368 = vector.broadcast %cst_132 : f32 to vector<8x128xf32>
    %369 = arith.mulf %368, %367 : vector<8x128xf32>
    %cst_133 = arith.constant 5.000000e-01 : f32
    %370 = vector.broadcast %cst_133 : f32 to vector<8x128xf32>
    %371 = arith.addf %369, %370 : vector<8x128xf32>
    %372 = vector.extract_strided_slice %363 {offsets = [0, 128], sizes = [8, 128], strides = [1, 1]} : vector<8x512xf32> to vector<8x128xf32>
    %cst_134 = arith.constant 5.000000e-01 : f32
    %373 = vector.broadcast %cst_134 : f32 to vector<8x128xf32>
    %374 = arith.mulf %373, %372 : vector<8x128xf32>
    %375 = math.tanh %374 : vector<8x128xf32>
    %cst_135 = arith.constant 5.000000e-01 : f32
    %376 = vector.broadcast %cst_135 : f32 to vector<8x128xf32>
    %377 = arith.mulf %376, %375 : vector<8x128xf32>
    %cst_136 = arith.constant 5.000000e-01 : f32
    %378 = vector.broadcast %cst_136 : f32 to vector<8x128xf32>
    %379 = arith.addf %377, %378 : vector<8x128xf32>
    %380 = vector.extract_strided_slice %363 {offsets = [0, 256], sizes = [8, 128], strides = [1, 1]} : vector<8x512xf32> to vector<8x128xf32>
    %381 = math.tanh %380 : vector<8x128xf32>
    %382 = vector.extract_strided_slice %363 {offsets = [0, 384], sizes = [8, 128], strides = [1, 1]} : vector<8x512xf32> to vector<8x128xf32>
    %cst_137 = arith.constant 5.000000e-01 : f32
    %383 = vector.broadcast %cst_137 : f32 to vector<8x128xf32>
    %384 = arith.mulf %383, %382 : vector<8x128xf32>
    %385 = math.tanh %384 : vector<8x128xf32>
    %cst_138 = arith.constant 5.000000e-01 : f32
    %386 = vector.broadcast %cst_138 : f32 to vector<8x128xf32>
    %387 = arith.mulf %386, %385 : vector<8x128xf32>
    %cst_139 = arith.constant 5.000000e-01 : f32
    %388 = vector.broadcast %cst_139 : f32 to vector<8x128xf32>
    %389 = arith.addf %387, %388 : vector<8x128xf32>
    %390 = arith.mulf %379, %316 : vector<8x128xf32>
    %391 = arith.mulf %371, %381 : vector<8x128xf32>
    %392 = arith.addf %390, %391 : vector<8x128xf32>
    %393 = math.tanh %392 : vector<8x128xf32>
    %394 = arith.mulf %389, %393 : vector<8x128xf32>
    %395 = arith.truncf %394 : vector<8x128xf32> to vector<8x128xbf16>
    %c384 = arith.constant 384 : index
    %c0_140 = arith.constant 0 : index
    %396 = vector.load %arg9[%c384, %c0_140] : memref<1536x128xbf16, #tpu.memory_space<vmem>>, vector<128x128xbf16>
    %cst_141 = arith.constant dense<0.000000e+00> : vector<8x128xf32>
    %397 = tpu.matmul %395, %396, %cst_141 {dimension_numbers = #tpu.dot_dimension_numbers<[1], [0], [0], [1], [0, 0, 1, 1], [], []>} : vector<8x128xbf16>, vector<128x128xbf16>, vector<8x128xf32> -> vector<8x128xf32>
    %398 = arith.addf %322, %397 : vector<8x128xf32>
    %399 = arith.truncf %358 : vector<8x128xf32> to vector<8x128xbf16>
    %c0_142 = arith.constant 0 : index
    %c0_143 = arith.constant 0 : index
    %400 = vector.load %arg5[%c0_142, %c0_143] : memref<128x512xbf16, #tpu.memory_space<vmem>>, vector<128x512xbf16>
    %cst_144 = arith.constant dense<0.000000e+00> : vector<8x512xf32>
    %401 = tpu.matmul %399, %400, %cst_144 {dimension_numbers = #tpu.dot_dimension_numbers<[1], [0], [0], [1], [0, 0, 1, 1], [], []>} : vector<8x128xbf16>, vector<128x512xbf16>, vector<8x512xf32> -> vector<8x512xf32>
    %c0_145 = arith.constant 0 : index
    %c2048_146 = arith.constant 2048 : index
    %402 = vector.load %arg16[%c0_145, %c2048_146] : memref<8x6144xf32, #tpu.memory_space<vmem>>, vector<8x512xf32>
    %403 = arith.addf %401, %402 : vector<8x512xf32>
    %404 = vector.extract_strided_slice %403 {offsets = [0, 0], sizes = [8, 128], strides = [1, 1]} : vector<8x512xf32> to vector<8x128xf32>
    %cst_147 = arith.constant 5.000000e-01 : f32
    %405 = vector.broadcast %cst_147 : f32 to vector<8x128xf32>
    %406 = arith.mulf %405, %404 : vector<8x128xf32>
    %407 = math.tanh %406 : vector<8x128xf32>
    %cst_148 = arith.constant 5.000000e-01 : f32
    %408 = vector.broadcast %cst_148 : f32 to vector<8x128xf32>
    %409 = arith.mulf %408, %407 : vector<8x128xf32>
    %cst_149 = arith.constant 5.000000e-01 : f32
    %410 = vector.broadcast %cst_149 : f32 to vector<8x128xf32>
    %411 = arith.addf %409, %410 : vector<8x128xf32>
    %412 = vector.extract_strided_slice %403 {offsets = [0, 128], sizes = [8, 128], strides = [1, 1]} : vector<8x512xf32> to vector<8x128xf32>
    %cst_150 = arith.constant 5.000000e-01 : f32
    %413 = vector.broadcast %cst_150 : f32 to vector<8x128xf32>
    %414 = arith.mulf %413, %412 : vector<8x128xf32>
    %415 = math.tanh %414 : vector<8x128xf32>
    %cst_151 = arith.constant 5.000000e-01 : f32
    %416 = vector.broadcast %cst_151 : f32 to vector<8x128xf32>
    %417 = arith.mulf %416, %415 : vector<8x128xf32>
    %cst_152 = arith.constant 5.000000e-01 : f32
    %418 = vector.broadcast %cst_152 : f32 to vector<8x128xf32>
    %419 = arith.addf %417, %418 : vector<8x128xf32>
    %420 = vector.extract_strided_slice %403 {offsets = [0, 256], sizes = [8, 128], strides = [1, 1]} : vector<8x512xf32> to vector<8x128xf32>
    %421 = math.tanh %420 : vector<8x128xf32>
    %422 = vector.extract_strided_slice %403 {offsets = [0, 384], sizes = [8, 128], strides = [1, 1]} : vector<8x512xf32> to vector<8x128xf32>
    %cst_153 = arith.constant 5.000000e-01 : f32
    %423 = vector.broadcast %cst_153 : f32 to vector<8x128xf32>
    %424 = arith.mulf %423, %422 : vector<8x128xf32>
    %425 = math.tanh %424 : vector<8x128xf32>
    %cst_154 = arith.constant 5.000000e-01 : f32
    %426 = vector.broadcast %cst_154 : f32 to vector<8x128xf32>
    %427 = arith.mulf %426, %425 : vector<8x128xf32>
    %cst_155 = arith.constant 5.000000e-01 : f32
    %428 = vector.broadcast %cst_155 : f32 to vector<8x128xf32>
    %429 = arith.addf %427, %428 : vector<8x128xf32>
    %430 = arith.mulf %419, %356 : vector<8x128xf32>
    %431 = arith.mulf %411, %421 : vector<8x128xf32>
    %432 = arith.addf %430, %431 : vector<8x128xf32>
    %433 = math.tanh %432 : vector<8x128xf32>
    %434 = arith.mulf %429, %433 : vector<8x128xf32>
    %435 = tpu.concatenate %434, %394 in 1 : vector<8x128xf32>, vector<8x128xf32> -> vector<8x256xf32>
    %436 = arith.truncf %435 : vector<8x256xf32> to vector<8x256xbf16>
    %c0_156 = arith.constant 0 : index
    %c0_157 = arith.constant 0 : index
    %437 = vector.load %arg7[%c0_156, %c0_157] : memref<256x512xbf16, #tpu.memory_space<vmem>>, vector<256x512xbf16>
    %cst_158 = arith.constant dense<0.000000e+00> : vector<8x512xf32>
    %438 = tpu.matmul %436, %437, %cst_158 {dimension_numbers = #tpu.dot_dimension_numbers<[1], [0], [0], [1], [0, 0, 1, 1], [], []>} : vector<8x256xbf16>, vector<256x512xbf16>, vector<8x512xf32> -> vector<8x512xf32>
    %439 = arith.addf %438, %33 : vector<8x512xf32>
    %440 = vector.extract_strided_slice %439 {offsets = [0, 0], sizes = [8, 128], strides = [1, 1]} : vector<8x512xf32> to vector<8x128xf32>
    %cst_159 = arith.constant 5.000000e-01 : f32
    %441 = vector.broadcast %cst_159 : f32 to vector<8x128xf32>
    %442 = arith.mulf %441, %440 : vector<8x128xf32>
    %443 = math.tanh %442 : vector<8x128xf32>
    %cst_160 = arith.constant 5.000000e-01 : f32
    %444 = vector.broadcast %cst_160 : f32 to vector<8x128xf32>
    %445 = arith.mulf %444, %443 : vector<8x128xf32>
    %cst_161 = arith.constant 5.000000e-01 : f32
    %446 = vector.broadcast %cst_161 : f32 to vector<8x128xf32>
    %447 = arith.addf %445, %446 : vector<8x128xf32>
    %448 = vector.extract_strided_slice %439 {offsets = [0, 128], sizes = [8, 128], strides = [1, 1]} : vector<8x512xf32> to vector<8x128xf32>
    %cst_162 = arith.constant 5.000000e-01 : f32
    %449 = vector.broadcast %cst_162 : f32 to vector<8x128xf32>
    %450 = arith.mulf %449, %448 : vector<8x128xf32>
    %451 = math.tanh %450 : vector<8x128xf32>
    %cst_163 = arith.constant 5.000000e-01 : f32
    %452 = vector.broadcast %cst_163 : f32 to vector<8x128xf32>
    %453 = arith.mulf %452, %451 : vector<8x128xf32>
    %cst_164 = arith.constant 5.000000e-01 : f32
    %454 = vector.broadcast %cst_164 : f32 to vector<8x128xf32>
    %455 = arith.addf %453, %454 : vector<8x128xf32>
    %456 = vector.extract_strided_slice %439 {offsets = [0, 256], sizes = [8, 128], strides = [1, 1]} : vector<8x512xf32> to vector<8x128xf32>
    %457 = math.tanh %456 : vector<8x128xf32>
    %458 = vector.extract_strided_slice %439 {offsets = [0, 384], sizes = [8, 128], strides = [1, 1]} : vector<8x512xf32> to vector<8x128xf32>
    %cst_165 = arith.constant 5.000000e-01 : f32
    %459 = vector.broadcast %cst_165 : f32 to vector<8x128xf32>
    %460 = arith.mulf %459, %458 : vector<8x128xf32>
    %461 = math.tanh %460 : vector<8x128xf32>
    %cst_166 = arith.constant 5.000000e-01 : f32
    %462 = vector.broadcast %cst_166 : f32 to vector<8x128xf32>
    %463 = arith.mulf %462, %461 : vector<8x128xf32>
    %cst_167 = arith.constant 5.000000e-01 : f32
    %464 = vector.broadcast %cst_167 : f32 to vector<8x128xf32>
    %465 = arith.addf %463, %464 : vector<8x128xf32>
    %466 = arith.mulf %455, %392 : vector<8x128xf32>
    %467 = arith.mulf %447, %457 : vector<8x128xf32>
    %468 = arith.addf %466, %467 : vector<8x128xf32>
    %469 = math.tanh %468 : vector<8x128xf32>
    %470 = arith.mulf %465, %469 : vector<8x128xf32>
    %471 = arith.truncf %470 : vector<8x128xf32> to vector<8x128xbf16>
    %c512_168 = arith.constant 512 : index
    %c0_169 = arith.constant 0 : index
    %472 = vector.load %arg9[%c512_168, %c0_169] : memref<1536x128xbf16, #tpu.memory_space<vmem>>, vector<128x128xbf16>
    %cst_170 = arith.constant dense<0.000000e+00> : vector<8x128xf32>
    %473 = tpu.matmul %471, %472, %cst_170 {dimension_numbers = #tpu.dot_dimension_numbers<[1], [0], [0], [1], [0, 0, 1, 1], [], []>} : vector<8x128xbf16>, vector<128x128xbf16>, vector<8x128xf32> -> vector<8x128xf32>
    %474 = arith.addf %398, %473 : vector<8x128xf32>
    %475 = arith.truncf %434 : vector<8x128xf32> to vector<8x128xbf16>
    %c0_171 = arith.constant 0 : index
    %c0_172 = arith.constant 0 : index
    %476 = vector.load %arg5[%c0_171, %c0_172] : memref<128x512xbf16, #tpu.memory_space<vmem>>, vector<128x512xbf16>
    %cst_173 = arith.constant dense<0.000000e+00> : vector<8x512xf32>
    %477 = tpu.matmul %475, %476, %cst_173 {dimension_numbers = #tpu.dot_dimension_numbers<[1], [0], [0], [1], [0, 0, 1, 1], [], []>} : vector<8x128xbf16>, vector<128x512xbf16>, vector<8x512xf32> -> vector<8x512xf32>
    %c0_174 = arith.constant 0 : index
    %c2560_175 = arith.constant 2560 : index
    %478 = vector.load %arg16[%c0_174, %c2560_175] : memref<8x6144xf32, #tpu.memory_space<vmem>>, vector<8x512xf32>
    %479 = arith.addf %477, %478 : vector<8x512xf32>
    %480 = vector.extract_strided_slice %479 {offsets = [0, 0], sizes = [8, 128], strides = [1, 1]} : vector<8x512xf32> to vector<8x128xf32>
    %cst_176 = arith.constant 5.000000e-01 : f32
    %481 = vector.broadcast %cst_176 : f32 to vector<8x128xf32>
    %482 = arith.mulf %481, %480 : vector<8x128xf32>
    %483 = math.tanh %482 : vector<8x128xf32>
    %cst_177 = arith.constant 5.000000e-01 : f32
    %484 = vector.broadcast %cst_177 : f32 to vector<8x128xf32>
    %485 = arith.mulf %484, %483 : vector<8x128xf32>
    %cst_178 = arith.constant 5.000000e-01 : f32
    %486 = vector.broadcast %cst_178 : f32 to vector<8x128xf32>
    %487 = arith.addf %485, %486 : vector<8x128xf32>
    %488 = vector.extract_strided_slice %479 {offsets = [0, 128], sizes = [8, 128], strides = [1, 1]} : vector<8x512xf32> to vector<8x128xf32>
    %cst_179 = arith.constant 5.000000e-01 : f32
    %489 = vector.broadcast %cst_179 : f32 to vector<8x128xf32>
    %490 = arith.mulf %489, %488 : vector<8x128xf32>
    %491 = math.tanh %490 : vector<8x128xf32>
    %cst_180 = arith.constant 5.000000e-01 : f32
    %492 = vector.broadcast %cst_180 : f32 to vector<8x128xf32>
    %493 = arith.mulf %492, %491 : vector<8x128xf32>
    %cst_181 = arith.constant 5.000000e-01 : f32
    %494 = vector.broadcast %cst_181 : f32 to vector<8x128xf32>
    %495 = arith.addf %493, %494 : vector<8x128xf32>
    %496 = vector.extract_strided_slice %479 {offsets = [0, 256], sizes = [8, 128], strides = [1, 1]} : vector<8x512xf32> to vector<8x128xf32>
    %497 = math.tanh %496 : vector<8x128xf32>
    %498 = vector.extract_strided_slice %479 {offsets = [0, 384], sizes = [8, 128], strides = [1, 1]} : vector<8x512xf32> to vector<8x128xf32>
    %cst_182 = arith.constant 5.000000e-01 : f32
    %499 = vector.broadcast %cst_182 : f32 to vector<8x128xf32>
    %500 = arith.mulf %499, %498 : vector<8x128xf32>
    %501 = math.tanh %500 : vector<8x128xf32>
    %cst_183 = arith.constant 5.000000e-01 : f32
    %502 = vector.broadcast %cst_183 : f32 to vector<8x128xf32>
    %503 = arith.mulf %502, %501 : vector<8x128xf32>
    %cst_184 = arith.constant 5.000000e-01 : f32
    %504 = vector.broadcast %cst_184 : f32 to vector<8x128xf32>
    %505 = arith.addf %503, %504 : vector<8x128xf32>
    %506 = arith.mulf %495, %432 : vector<8x128xf32>
    %507 = arith.mulf %487, %497 : vector<8x128xf32>
    %508 = arith.addf %506, %507 : vector<8x128xf32>
    %509 = math.tanh %508 : vector<8x128xf32>
    %510 = arith.mulf %505, %509 : vector<8x128xf32>
    %511 = tpu.concatenate %510, %470 in 1 : vector<8x128xf32>, vector<8x128xf32> -> vector<8x256xf32>
    %512 = arith.truncf %511 : vector<8x256xf32> to vector<8x256xbf16>
    %c0_185 = arith.constant 0 : index
    %c0_186 = arith.constant 0 : index
    %513 = vector.load %arg7[%c0_185, %c0_186] : memref<256x512xbf16, #tpu.memory_space<vmem>>, vector<256x512xbf16>
    %cst_187 = arith.constant dense<0.000000e+00> : vector<8x512xf32>
    %514 = tpu.matmul %512, %513, %cst_187 {dimension_numbers = #tpu.dot_dimension_numbers<[1], [0], [0], [1], [0, 0, 1, 1], [], []>} : vector<8x256xbf16>, vector<256x512xbf16>, vector<8x512xf32> -> vector<8x512xf32>
    %515 = arith.addf %514, %33 : vector<8x512xf32>
    %516 = vector.extract_strided_slice %515 {offsets = [0, 0], sizes = [8, 128], strides = [1, 1]} : vector<8x512xf32> to vector<8x128xf32>
    %cst_188 = arith.constant 5.000000e-01 : f32
    %517 = vector.broadcast %cst_188 : f32 to vector<8x128xf32>
    %518 = arith.mulf %517, %516 : vector<8x128xf32>
    %519 = math.tanh %518 : vector<8x128xf32>
    %cst_189 = arith.constant 5.000000e-01 : f32
    %520 = vector.broadcast %cst_189 : f32 to vector<8x128xf32>
    %521 = arith.mulf %520, %519 : vector<8x128xf32>
    %cst_190 = arith.constant 5.000000e-01 : f32
    %522 = vector.broadcast %cst_190 : f32 to vector<8x128xf32>
    %523 = arith.addf %521, %522 : vector<8x128xf32>
    %524 = vector.extract_strided_slice %515 {offsets = [0, 128], sizes = [8, 128], strides = [1, 1]} : vector<8x512xf32> to vector<8x128xf32>
    %cst_191 = arith.constant 5.000000e-01 : f32
    %525 = vector.broadcast %cst_191 : f32 to vector<8x128xf32>
    %526 = arith.mulf %525, %524 : vector<8x128xf32>
    %527 = math.tanh %526 : vector<8x128xf32>
    %cst_192 = arith.constant 5.000000e-01 : f32
    %528 = vector.broadcast %cst_192 : f32 to vector<8x128xf32>
    %529 = arith.mulf %528, %527 : vector<8x128xf32>
    %cst_193 = arith.constant 5.000000e-01 : f32
    %530 = vector.broadcast %cst_193 : f32 to vector<8x128xf32>
    %531 = arith.addf %529, %530 : vector<8x128xf32>
    %532 = vector.extract_strided_slice %515 {offsets = [0, 256], sizes = [8, 128], strides = [1, 1]} : vector<8x512xf32> to vector<8x128xf32>
    %533 = math.tanh %532 : vector<8x128xf32>
    %534 = vector.extract_strided_slice %515 {offsets = [0, 384], sizes = [8, 128], strides = [1, 1]} : vector<8x512xf32> to vector<8x128xf32>
    %cst_194 = arith.constant 5.000000e-01 : f32
    %535 = vector.broadcast %cst_194 : f32 to vector<8x128xf32>
    %536 = arith.mulf %535, %534 : vector<8x128xf32>
    %537 = math.tanh %536 : vector<8x128xf32>
    %cst_195 = arith.constant 5.000000e-01 : f32
    %538 = vector.broadcast %cst_195 : f32 to vector<8x128xf32>
    %539 = arith.mulf %538, %537 : vector<8x128xf32>
    %cst_196 = arith.constant 5.000000e-01 : f32
    %540 = vector.broadcast %cst_196 : f32 to vector<8x128xf32>
    %541 = arith.addf %539, %540 : vector<8x128xf32>
    %542 = arith.mulf %531, %468 : vector<8x128xf32>
    %543 = arith.mulf %523, %533 : vector<8x128xf32>
    %544 = arith.addf %542, %543 : vector<8x128xf32>
    %545 = math.tanh %544 : vector<8x128xf32>
    %546 = arith.mulf %541, %545 : vector<8x128xf32>
    %547 = arith.truncf %546 : vector<8x128xf32> to vector<8x128xbf16>
    %c640 = arith.constant 640 : index
    %c0_197 = arith.constant 0 : index
    %548 = vector.load %arg9[%c640, %c0_197] : memref<1536x128xbf16, #tpu.memory_space<vmem>>, vector<128x128xbf16>
    %cst_198 = arith.constant dense<0.000000e+00> : vector<8x128xf32>
    %549 = tpu.matmul %547, %548, %cst_198 {dimension_numbers = #tpu.dot_dimension_numbers<[1], [0], [0], [1], [0, 0, 1, 1], [], []>} : vector<8x128xbf16>, vector<128x128xbf16>, vector<8x128xf32> -> vector<8x128xf32>
    %550 = arith.addf %474, %549 : vector<8x128xf32>
    %551 = arith.truncf %510 : vector<8x128xf32> to vector<8x128xbf16>
    %c0_199 = arith.constant 0 : index
    %c0_200 = arith.constant 0 : index
    %552 = vector.load %arg5[%c0_199, %c0_200] : memref<128x512xbf16, #tpu.memory_space<vmem>>, vector<128x512xbf16>
    %cst_201 = arith.constant dense<0.000000e+00> : vector<8x512xf32>
    %553 = tpu.matmul %551, %552, %cst_201 {dimension_numbers = #tpu.dot_dimension_numbers<[1], [0], [0], [1], [0, 0, 1, 1], [], []>} : vector<8x128xbf16>, vector<128x512xbf16>, vector<8x512xf32> -> vector<8x512xf32>
    %c0_202 = arith.constant 0 : index
    %c3072_203 = arith.constant 3072 : index
    %554 = vector.load %arg16[%c0_202, %c3072_203] : memref<8x6144xf32, #tpu.memory_space<vmem>>, vector<8x512xf32>
    %555 = arith.addf %553, %554 : vector<8x512xf32>
    %556 = vector.extract_strided_slice %555 {offsets = [0, 0], sizes = [8, 128], strides = [1, 1]} : vector<8x512xf32> to vector<8x128xf32>
    %cst_204 = arith.constant 5.000000e-01 : f32
    %557 = vector.broadcast %cst_204 : f32 to vector<8x128xf32>
    %558 = arith.mulf %557, %556 : vector<8x128xf32>
    %559 = math.tanh %558 : vector<8x128xf32>
    %cst_205 = arith.constant 5.000000e-01 : f32
    %560 = vector.broadcast %cst_205 : f32 to vector<8x128xf32>
    %561 = arith.mulf %560, %559 : vector<8x128xf32>
    %cst_206 = arith.constant 5.000000e-01 : f32
    %562 = vector.broadcast %cst_206 : f32 to vector<8x128xf32>
    %563 = arith.addf %561, %562 : vector<8x128xf32>
    %564 = vector.extract_strided_slice %555 {offsets = [0, 128], sizes = [8, 128], strides = [1, 1]} : vector<8x512xf32> to vector<8x128xf32>
    %cst_207 = arith.constant 5.000000e-01 : f32
    %565 = vector.broadcast %cst_207 : f32 to vector<8x128xf32>
    %566 = arith.mulf %565, %564 : vector<8x128xf32>
    %567 = math.tanh %566 : vector<8x128xf32>
    %cst_208 = arith.constant 5.000000e-01 : f32
    %568 = vector.broadcast %cst_208 : f32 to vector<8x128xf32>
    %569 = arith.mulf %568, %567 : vector<8x128xf32>
    %cst_209 = arith.constant 5.000000e-01 : f32
    %570 = vector.broadcast %cst_209 : f32 to vector<8x128xf32>
    %571 = arith.addf %569, %570 : vector<8x128xf32>
    %572 = vector.extract_strided_slice %555 {offsets = [0, 256], sizes = [8, 128], strides = [1, 1]} : vector<8x512xf32> to vector<8x128xf32>
    %573 = math.tanh %572 : vector<8x128xf32>
    %574 = vector.extract_strided_slice %555 {offsets = [0, 384], sizes = [8, 128], strides = [1, 1]} : vector<8x512xf32> to vector<8x128xf32>
    %cst_210 = arith.constant 5.000000e-01 : f32
    %575 = vector.broadcast %cst_210 : f32 to vector<8x128xf32>
    %576 = arith.mulf %575, %574 : vector<8x128xf32>
    %577 = math.tanh %576 : vector<8x128xf32>
    %cst_211 = arith.constant 5.000000e-01 : f32
    %578 = vector.broadcast %cst_211 : f32 to vector<8x128xf32>
    %579 = arith.mulf %578, %577 : vector<8x128xf32>
    %cst_212 = arith.constant 5.000000e-01 : f32
    %580 = vector.broadcast %cst_212 : f32 to vector<8x128xf32>
    %581 = arith.addf %579, %580 : vector<8x128xf32>
    %582 = arith.mulf %571, %508 : vector<8x128xf32>
    %583 = arith.mulf %563, %573 : vector<8x128xf32>
    %584 = arith.addf %582, %583 : vector<8x128xf32>
    %585 = math.tanh %584 : vector<8x128xf32>
    %586 = arith.mulf %581, %585 : vector<8x128xf32>
    %587 = tpu.concatenate %586, %546 in 1 : vector<8x128xf32>, vector<8x128xf32> -> vector<8x256xf32>
    %588 = arith.truncf %587 : vector<8x256xf32> to vector<8x256xbf16>
    %c0_213 = arith.constant 0 : index
    %c0_214 = arith.constant 0 : index
    %589 = vector.load %arg7[%c0_213, %c0_214] : memref<256x512xbf16, #tpu.memory_space<vmem>>, vector<256x512xbf16>
    %cst_215 = arith.constant dense<0.000000e+00> : vector<8x512xf32>
    %590 = tpu.matmul %588, %589, %cst_215 {dimension_numbers = #tpu.dot_dimension_numbers<[1], [0], [0], [1], [0, 0, 1, 1], [], []>} : vector<8x256xbf16>, vector<256x512xbf16>, vector<8x512xf32> -> vector<8x512xf32>
    %591 = arith.addf %590, %33 : vector<8x512xf32>
    %592 = vector.extract_strided_slice %591 {offsets = [0, 0], sizes = [8, 128], strides = [1, 1]} : vector<8x512xf32> to vector<8x128xf32>
    %cst_216 = arith.constant 5.000000e-01 : f32
    %593 = vector.broadcast %cst_216 : f32 to vector<8x128xf32>
    %594 = arith.mulf %593, %592 : vector<8x128xf32>
    %595 = math.tanh %594 : vector<8x128xf32>
    %cst_217 = arith.constant 5.000000e-01 : f32
    %596 = vector.broadcast %cst_217 : f32 to vector<8x128xf32>
    %597 = arith.mulf %596, %595 : vector<8x128xf32>
    %cst_218 = arith.constant 5.000000e-01 : f32
    %598 = vector.broadcast %cst_218 : f32 to vector<8x128xf32>
    %599 = arith.addf %597, %598 : vector<8x128xf32>
    %600 = vector.extract_strided_slice %591 {offsets = [0, 128], sizes = [8, 128], strides = [1, 1]} : vector<8x512xf32> to vector<8x128xf32>
    %cst_219 = arith.constant 5.000000e-01 : f32
    %601 = vector.broadcast %cst_219 : f32 to vector<8x128xf32>
    %602 = arith.mulf %601, %600 : vector<8x128xf32>
    %603 = math.tanh %602 : vector<8x128xf32>
    %cst_220 = arith.constant 5.000000e-01 : f32
    %604 = vector.broadcast %cst_220 : f32 to vector<8x128xf32>
    %605 = arith.mulf %604, %603 : vector<8x128xf32>
    %cst_221 = arith.constant 5.000000e-01 : f32
    %606 = vector.broadcast %cst_221 : f32 to vector<8x128xf32>
    %607 = arith.addf %605, %606 : vector<8x128xf32>
    %608 = vector.extract_strided_slice %591 {offsets = [0, 256], sizes = [8, 128], strides = [1, 1]} : vector<8x512xf32> to vector<8x128xf32>
    %609 = math.tanh %608 : vector<8x128xf32>
    %610 = vector.extract_strided_slice %591 {offsets = [0, 384], sizes = [8, 128], strides = [1, 1]} : vector<8x512xf32> to vector<8x128xf32>
    %cst_222 = arith.constant 5.000000e-01 : f32
    %611 = vector.broadcast %cst_222 : f32 to vector<8x128xf32>
    %612 = arith.mulf %611, %610 : vector<8x128xf32>
    %613 = math.tanh %612 : vector<8x128xf32>
    %cst_223 = arith.constant 5.000000e-01 : f32
    %614 = vector.broadcast %cst_223 : f32 to vector<8x128xf32>
    %615 = arith.mulf %614, %613 : vector<8x128xf32>
    %cst_224 = arith.constant 5.000000e-01 : f32
    %616 = vector.broadcast %cst_224 : f32 to vector<8x128xf32>
    %617 = arith.addf %615, %616 : vector<8x128xf32>
    %618 = arith.mulf %607, %544 : vector<8x128xf32>
    %619 = arith.mulf %599, %609 : vector<8x128xf32>
    %620 = arith.addf %618, %619 : vector<8x128xf32>
    %621 = math.tanh %620 : vector<8x128xf32>
    %622 = arith.mulf %617, %621 : vector<8x128xf32>
    %623 = arith.truncf %622 : vector<8x128xf32> to vector<8x128xbf16>
    %c768 = arith.constant 768 : index
    %c0_225 = arith.constant 0 : index
    %624 = vector.load %arg9[%c768, %c0_225] : memref<1536x128xbf16, #tpu.memory_space<vmem>>, vector<128x128xbf16>
    %cst_226 = arith.constant dense<0.000000e+00> : vector<8x128xf32>
    %625 = tpu.matmul %623, %624, %cst_226 {dimension_numbers = #tpu.dot_dimension_numbers<[1], [0], [0], [1], [0, 0, 1, 1], [], []>} : vector<8x128xbf16>, vector<128x128xbf16>, vector<8x128xf32> -> vector<8x128xf32>
    %626 = arith.addf %550, %625 : vector<8x128xf32>
    %627 = arith.truncf %586 : vector<8x128xf32> to vector<8x128xbf16>
    %c0_227 = arith.constant 0 : index
    %c0_228 = arith.constant 0 : index
    %628 = vector.load %arg5[%c0_227, %c0_228] : memref<128x512xbf16, #tpu.memory_space<vmem>>, vector<128x512xbf16>
    %cst_229 = arith.constant dense<0.000000e+00> : vector<8x512xf32>
    %629 = tpu.matmul %627, %628, %cst_229 {dimension_numbers = #tpu.dot_dimension_numbers<[1], [0], [0], [1], [0, 0, 1, 1], [], []>} : vector<8x128xbf16>, vector<128x512xbf16>, vector<8x512xf32> -> vector<8x512xf32>
    %c0_230 = arith.constant 0 : index
    %c3584_231 = arith.constant 3584 : index
    %630 = vector.load %arg16[%c0_230, %c3584_231] : memref<8x6144xf32, #tpu.memory_space<vmem>>, vector<8x512xf32>
    %631 = arith.addf %629, %630 : vector<8x512xf32>
    %632 = vector.extract_strided_slice %631 {offsets = [0, 0], sizes = [8, 128], strides = [1, 1]} : vector<8x512xf32> to vector<8x128xf32>
    %cst_232 = arith.constant 5.000000e-01 : f32
    %633 = vector.broadcast %cst_232 : f32 to vector<8x128xf32>
    %634 = arith.mulf %633, %632 : vector<8x128xf32>
    %635 = math.tanh %634 : vector<8x128xf32>
    %cst_233 = arith.constant 5.000000e-01 : f32
    %636 = vector.broadcast %cst_233 : f32 to vector<8x128xf32>
    %637 = arith.mulf %636, %635 : vector<8x128xf32>
    %cst_234 = arith.constant 5.000000e-01 : f32
    %638 = vector.broadcast %cst_234 : f32 to vector<8x128xf32>
    %639 = arith.addf %637, %638 : vector<8x128xf32>
    %640 = vector.extract_strided_slice %631 {offsets = [0, 128], sizes = [8, 128], strides = [1, 1]} : vector<8x512xf32> to vector<8x128xf32>
    %cst_235 = arith.constant 5.000000e-01 : f32
    %641 = vector.broadcast %cst_235 : f32 to vector<8x128xf32>
    %642 = arith.mulf %641, %640 : vector<8x128xf32>
    %643 = math.tanh %642 : vector<8x128xf32>
    %cst_236 = arith.constant 5.000000e-01 : f32
    %644 = vector.broadcast %cst_236 : f32 to vector<8x128xf32>
    %645 = arith.mulf %644, %643 : vector<8x128xf32>
    %cst_237 = arith.constant 5.000000e-01 : f32
    %646 = vector.broadcast %cst_237 : f32 to vector<8x128xf32>
    %647 = arith.addf %645, %646 : vector<8x128xf32>
    %648 = vector.extract_strided_slice %631 {offsets = [0, 256], sizes = [8, 128], strides = [1, 1]} : vector<8x512xf32> to vector<8x128xf32>
    %649 = math.tanh %648 : vector<8x128xf32>
    %650 = vector.extract_strided_slice %631 {offsets = [0, 384], sizes = [8, 128], strides = [1, 1]} : vector<8x512xf32> to vector<8x128xf32>
    %cst_238 = arith.constant 5.000000e-01 : f32
    %651 = vector.broadcast %cst_238 : f32 to vector<8x128xf32>
    %652 = arith.mulf %651, %650 : vector<8x128xf32>
    %653 = math.tanh %652 : vector<8x128xf32>
    %cst_239 = arith.constant 5.000000e-01 : f32
    %654 = vector.broadcast %cst_239 : f32 to vector<8x128xf32>
    %655 = arith.mulf %654, %653 : vector<8x128xf32>
    %cst_240 = arith.constant 5.000000e-01 : f32
    %656 = vector.broadcast %cst_240 : f32 to vector<8x128xf32>
    %657 = arith.addf %655, %656 : vector<8x128xf32>
    %658 = arith.mulf %647, %584 : vector<8x128xf32>
    %659 = arith.mulf %639, %649 : vector<8x128xf32>
    %660 = arith.addf %658, %659 : vector<8x128xf32>
    %661 = math.tanh %660 : vector<8x128xf32>
    %662 = arith.mulf %657, %661 : vector<8x128xf32>
    %663 = tpu.concatenate %662, %622 in 1 : vector<8x128xf32>, vector<8x128xf32> -> vector<8x256xf32>
    %664 = arith.truncf %663 : vector<8x256xf32> to vector<8x256xbf16>
    %c0_241 = arith.constant 0 : index
    %c0_242 = arith.constant 0 : index
    %665 = vector.load %arg7[%c0_241, %c0_242] : memref<256x512xbf16, #tpu.memory_space<vmem>>, vector<256x512xbf16>
    %cst_243 = arith.constant dense<0.000000e+00> : vector<8x512xf32>
    %666 = tpu.matmul %664, %665, %cst_243 {dimension_numbers = #tpu.dot_dimension_numbers<[1], [0], [0], [1], [0, 0, 1, 1], [], []>} : vector<8x256xbf16>, vector<256x512xbf16>, vector<8x512xf32> -> vector<8x512xf32>
    %667 = arith.addf %666, %33 : vector<8x512xf32>
    %668 = vector.extract_strided_slice %667 {offsets = [0, 0], sizes = [8, 128], strides = [1, 1]} : vector<8x512xf32> to vector<8x128xf32>
    %cst_244 = arith.constant 5.000000e-01 : f32
    %669 = vector.broadcast %cst_244 : f32 to vector<8x128xf32>
    %670 = arith.mulf %669, %668 : vector<8x128xf32>
    %671 = math.tanh %670 : vector<8x128xf32>
    %cst_245 = arith.constant 5.000000e-01 : f32
    %672 = vector.broadcast %cst_245 : f32 to vector<8x128xf32>
    %673 = arith.mulf %672, %671 : vector<8x128xf32>
    %cst_246 = arith.constant 5.000000e-01 : f32
    %674 = vector.broadcast %cst_246 : f32 to vector<8x128xf32>
    %675 = arith.addf %673, %674 : vector<8x128xf32>
    %676 = vector.extract_strided_slice %667 {offsets = [0, 128], sizes = [8, 128], strides = [1, 1]} : vector<8x512xf32> to vector<8x128xf32>
    %cst_247 = arith.constant 5.000000e-01 : f32
    %677 = vector.broadcast %cst_247 : f32 to vector<8x128xf32>
    %678 = arith.mulf %677, %676 : vector<8x128xf32>
    %679 = math.tanh %678 : vector<8x128xf32>
    %cst_248 = arith.constant 5.000000e-01 : f32
    %680 = vector.broadcast %cst_248 : f32 to vector<8x128xf32>
    %681 = arith.mulf %680, %679 : vector<8x128xf32>
    %cst_249 = arith.constant 5.000000e-01 : f32
    %682 = vector.broadcast %cst_249 : f32 to vector<8x128xf32>
    %683 = arith.addf %681, %682 : vector<8x128xf32>
    %684 = vector.extract_strided_slice %667 {offsets = [0, 256], sizes = [8, 128], strides = [1, 1]} : vector<8x512xf32> to vector<8x128xf32>
    %685 = math.tanh %684 : vector<8x128xf32>
    %686 = vector.extract_strided_slice %667 {offsets = [0, 384], sizes = [8, 128], strides = [1, 1]} : vector<8x512xf32> to vector<8x128xf32>
    %cst_250 = arith.constant 5.000000e-01 : f32
    %687 = vector.broadcast %cst_250 : f32 to vector<8x128xf32>
    %688 = arith.mulf %687, %686 : vector<8x128xf32>
    %689 = math.tanh %688 : vector<8x128xf32>
    %cst_251 = arith.constant 5.000000e-01 : f32
    %690 = vector.broadcast %cst_251 : f32 to vector<8x128xf32>
    %691 = arith.mulf %690, %689 : vector<8x128xf32>
    %cst_252 = arith.constant 5.000000e-01 : f32
    %692 = vector.broadcast %cst_252 : f32 to vector<8x128xf32>
    %693 = arith.addf %691, %692 : vector<8x128xf32>
    %694 = arith.mulf %683, %620 : vector<8x128xf32>
    %695 = arith.mulf %675, %685 : vector<8x128xf32>
    %696 = arith.addf %694, %695 : vector<8x128xf32>
    %697 = math.tanh %696 : vector<8x128xf32>
    %698 = arith.mulf %693, %697 : vector<8x128xf32>
    %699 = arith.truncf %698 : vector<8x128xf32> to vector<8x128xbf16>
    %c896 = arith.constant 896 : index
    %c0_253 = arith.constant 0 : index
    %700 = vector.load %arg9[%c896, %c0_253] : memref<1536x128xbf16, #tpu.memory_space<vmem>>, vector<128x128xbf16>
    %cst_254 = arith.constant dense<0.000000e+00> : vector<8x128xf32>
    %701 = tpu.matmul %699, %700, %cst_254 {dimension_numbers = #tpu.dot_dimension_numbers<[1], [0], [0], [1], [0, 0, 1, 1], [], []>} : vector<8x128xbf16>, vector<128x128xbf16>, vector<8x128xf32> -> vector<8x128xf32>
    %702 = arith.addf %626, %701 : vector<8x128xf32>
    %703 = arith.truncf %662 : vector<8x128xf32> to vector<8x128xbf16>
    %c0_255 = arith.constant 0 : index
    %c0_256 = arith.constant 0 : index
    %704 = vector.load %arg5[%c0_255, %c0_256] : memref<128x512xbf16, #tpu.memory_space<vmem>>, vector<128x512xbf16>
    %cst_257 = arith.constant dense<0.000000e+00> : vector<8x512xf32>
    %705 = tpu.matmul %703, %704, %cst_257 {dimension_numbers = #tpu.dot_dimension_numbers<[1], [0], [0], [1], [0, 0, 1, 1], [], []>} : vector<8x128xbf16>, vector<128x512xbf16>, vector<8x512xf32> -> vector<8x512xf32>
    %c0_258 = arith.constant 0 : index
    %c4096_259 = arith.constant 4096 : index
    %706 = vector.load %arg16[%c0_258, %c4096_259] : memref<8x6144xf32, #tpu.memory_space<vmem>>, vector<8x512xf32>
    %707 = arith.addf %705, %706 : vector<8x512xf32>
    %708 = vector.extract_strided_slice %707 {offsets = [0, 0], sizes = [8, 128], strides = [1, 1]} : vector<8x512xf32> to vector<8x128xf32>
    %cst_260 = arith.constant 5.000000e-01 : f32
    %709 = vector.broadcast %cst_260 : f32 to vector<8x128xf32>
    %710 = arith.mulf %709, %708 : vector<8x128xf32>
    %711 = math.tanh %710 : vector<8x128xf32>
    %cst_261 = arith.constant 5.000000e-01 : f32
    %712 = vector.broadcast %cst_261 : f32 to vector<8x128xf32>
    %713 = arith.mulf %712, %711 : vector<8x128xf32>
    %cst_262 = arith.constant 5.000000e-01 : f32
    %714 = vector.broadcast %cst_262 : f32 to vector<8x128xf32>
    %715 = arith.addf %713, %714 : vector<8x128xf32>
    %716 = vector.extract_strided_slice %707 {offsets = [0, 128], sizes = [8, 128], strides = [1, 1]} : vector<8x512xf32> to vector<8x128xf32>
    %cst_263 = arith.constant 5.000000e-01 : f32
    %717 = vector.broadcast %cst_263 : f32 to vector<8x128xf32>
    %718 = arith.mulf %717, %716 : vector<8x128xf32>
    %719 = math.tanh %718 : vector<8x128xf32>
    %cst_264 = arith.constant 5.000000e-01 : f32
    %720 = vector.broadcast %cst_264 : f32 to vector<8x128xf32>
    %721 = arith.mulf %720, %719 : vector<8x128xf32>
    %cst_265 = arith.constant 5.000000e-01 : f32
    %722 = vector.broadcast %cst_265 : f32 to vector<8x128xf32>
    %723 = arith.addf %721, %722 : vector<8x128xf32>
    %724 = vector.extract_strided_slice %707 {offsets = [0, 256], sizes = [8, 128], strides = [1, 1]} : vector<8x512xf32> to vector<8x128xf32>
    %725 = math.tanh %724 : vector<8x128xf32>
    %726 = vector.extract_strided_slice %707 {offsets = [0, 384], sizes = [8, 128], strides = [1, 1]} : vector<8x512xf32> to vector<8x128xf32>
    %cst_266 = arith.constant 5.000000e-01 : f32
    %727 = vector.broadcast %cst_266 : f32 to vector<8x128xf32>
    %728 = arith.mulf %727, %726 : vector<8x128xf32>
    %729 = math.tanh %728 : vector<8x128xf32>
    %cst_267 = arith.constant 5.000000e-01 : f32
    %730 = vector.broadcast %cst_267 : f32 to vector<8x128xf32>
    %731 = arith.mulf %730, %729 : vector<8x128xf32>
    %cst_268 = arith.constant 5.000000e-01 : f32
    %732 = vector.broadcast %cst_268 : f32 to vector<8x128xf32>
    %733 = arith.addf %731, %732 : vector<8x128xf32>
    %734 = arith.mulf %723, %660 : vector<8x128xf32>
    %735 = arith.mulf %715, %725 : vector<8x128xf32>
    %736 = arith.addf %734, %735 : vector<8x128xf32>
    %737 = math.tanh %736 : vector<8x128xf32>
    %738 = arith.mulf %733, %737 : vector<8x128xf32>
    %739 = tpu.concatenate %738, %698 in 1 : vector<8x128xf32>, vector<8x128xf32> -> vector<8x256xf32>
    %740 = arith.truncf %739 : vector<8x256xf32> to vector<8x256xbf16>
    %c0_269 = arith.constant 0 : index
    %c0_270 = arith.constant 0 : index
    %741 = vector.load %arg7[%c0_269, %c0_270] : memref<256x512xbf16, #tpu.memory_space<vmem>>, vector<256x512xbf16>
    %cst_271 = arith.constant dense<0.000000e+00> : vector<8x512xf32>
    %742 = tpu.matmul %740, %741, %cst_271 {dimension_numbers = #tpu.dot_dimension_numbers<[1], [0], [0], [1], [0, 0, 1, 1], [], []>} : vector<8x256xbf16>, vector<256x512xbf16>, vector<8x512xf32> -> vector<8x512xf32>
    %743 = arith.addf %742, %33 : vector<8x512xf32>
    %744 = vector.extract_strided_slice %743 {offsets = [0, 0], sizes = [8, 128], strides = [1, 1]} : vector<8x512xf32> to vector<8x128xf32>
    %cst_272 = arith.constant 5.000000e-01 : f32
    %745 = vector.broadcast %cst_272 : f32 to vector<8x128xf32>
    %746 = arith.mulf %745, %744 : vector<8x128xf32>
    %747 = math.tanh %746 : vector<8x128xf32>
    %cst_273 = arith.constant 5.000000e-01 : f32
    %748 = vector.broadcast %cst_273 : f32 to vector<8x128xf32>
    %749 = arith.mulf %748, %747 : vector<8x128xf32>
    %cst_274 = arith.constant 5.000000e-01 : f32
    %750 = vector.broadcast %cst_274 : f32 to vector<8x128xf32>
    %751 = arith.addf %749, %750 : vector<8x128xf32>
    %752 = vector.extract_strided_slice %743 {offsets = [0, 128], sizes = [8, 128], strides = [1, 1]} : vector<8x512xf32> to vector<8x128xf32>
    %cst_275 = arith.constant 5.000000e-01 : f32
    %753 = vector.broadcast %cst_275 : f32 to vector<8x128xf32>
    %754 = arith.mulf %753, %752 : vector<8x128xf32>
    %755 = math.tanh %754 : vector<8x128xf32>
    %cst_276 = arith.constant 5.000000e-01 : f32
    %756 = vector.broadcast %cst_276 : f32 to vector<8x128xf32>
    %757 = arith.mulf %756, %755 : vector<8x128xf32>
    %cst_277 = arith.constant 5.000000e-01 : f32
    %758 = vector.broadcast %cst_277 : f32 to vector<8x128xf32>
    %759 = arith.addf %757, %758 : vector<8x128xf32>
    %760 = vector.extract_strided_slice %743 {offsets = [0, 256], sizes = [8, 128], strides = [1, 1]} : vector<8x512xf32> to vector<8x128xf32>
    %761 = math.tanh %760 : vector<8x128xf32>
    %762 = vector.extract_strided_slice %743 {offsets = [0, 384], sizes = [8, 128], strides = [1, 1]} : vector<8x512xf32> to vector<8x128xf32>
    %cst_278 = arith.constant 5.000000e-01 : f32
    %763 = vector.broadcast %cst_278 : f32 to vector<8x128xf32>
    %764 = arith.mulf %763, %762 : vector<8x128xf32>
    %765 = math.tanh %764 : vector<8x128xf32>
    %cst_279 = arith.constant 5.000000e-01 : f32
    %766 = vector.broadcast %cst_279 : f32 to vector<8x128xf32>
    %767 = arith.mulf %766, %765 : vector<8x128xf32>
    %cst_280 = arith.constant 5.000000e-01 : f32
    %768 = vector.broadcast %cst_280 : f32 to vector<8x128xf32>
    %769 = arith.addf %767, %768 : vector<8x128xf32>
    %770 = arith.mulf %759, %696 : vector<8x128xf32>
    %771 = arith.mulf %751, %761 : vector<8x128xf32>
    %772 = arith.addf %770, %771 : vector<8x128xf32>
    %773 = math.tanh %772 : vector<8x128xf32>
    %774 = arith.mulf %769, %773 : vector<8x128xf32>
    %775 = arith.truncf %774 : vector<8x128xf32> to vector<8x128xbf16>
    %c1024_281 = arith.constant 1024 : index
    %c0_282 = arith.constant 0 : index
    %776 = vector.load %arg9[%c1024_281, %c0_282] : memref<1536x128xbf16, #tpu.memory_space<vmem>>, vector<128x128xbf16>
    %cst_283 = arith.constant dense<0.000000e+00> : vector<8x128xf32>
    %777 = tpu.matmul %775, %776, %cst_283 {dimension_numbers = #tpu.dot_dimension_numbers<[1], [0], [0], [1], [0, 0, 1, 1], [], []>} : vector<8x128xbf16>, vector<128x128xbf16>, vector<8x128xf32> -> vector<8x128xf32>
    %778 = arith.addf %702, %777 : vector<8x128xf32>
    %779 = arith.truncf %738 : vector<8x128xf32> to vector<8x128xbf16>
    %c0_284 = arith.constant 0 : index
    %c0_285 = arith.constant 0 : index
    %780 = vector.load %arg5[%c0_284, %c0_285] : memref<128x512xbf16, #tpu.memory_space<vmem>>, vector<128x512xbf16>
    %cst_286 = arith.constant dense<0.000000e+00> : vector<8x512xf32>
    %781 = tpu.matmul %779, %780, %cst_286 {dimension_numbers = #tpu.dot_dimension_numbers<[1], [0], [0], [1], [0, 0, 1, 1], [], []>} : vector<8x128xbf16>, vector<128x512xbf16>, vector<8x512xf32> -> vector<8x512xf32>
    %c0_287 = arith.constant 0 : index
    %c4608_288 = arith.constant 4608 : index
    %782 = vector.load %arg16[%c0_287, %c4608_288] : memref<8x6144xf32, #tpu.memory_space<vmem>>, vector<8x512xf32>
    %783 = arith.addf %781, %782 : vector<8x512xf32>
    %784 = vector.extract_strided_slice %783 {offsets = [0, 0], sizes = [8, 128], strides = [1, 1]} : vector<8x512xf32> to vector<8x128xf32>
    %cst_289 = arith.constant 5.000000e-01 : f32
    %785 = vector.broadcast %cst_289 : f32 to vector<8x128xf32>
    %786 = arith.mulf %785, %784 : vector<8x128xf32>
    %787 = math.tanh %786 : vector<8x128xf32>
    %cst_290 = arith.constant 5.000000e-01 : f32
    %788 = vector.broadcast %cst_290 : f32 to vector<8x128xf32>
    %789 = arith.mulf %788, %787 : vector<8x128xf32>
    %cst_291 = arith.constant 5.000000e-01 : f32
    %790 = vector.broadcast %cst_291 : f32 to vector<8x128xf32>
    %791 = arith.addf %789, %790 : vector<8x128xf32>
    %792 = vector.extract_strided_slice %783 {offsets = [0, 128], sizes = [8, 128], strides = [1, 1]} : vector<8x512xf32> to vector<8x128xf32>
    %cst_292 = arith.constant 5.000000e-01 : f32
    %793 = vector.broadcast %cst_292 : f32 to vector<8x128xf32>
    %794 = arith.mulf %793, %792 : vector<8x128xf32>
    %795 = math.tanh %794 : vector<8x128xf32>
    %cst_293 = arith.constant 5.000000e-01 : f32
    %796 = vector.broadcast %cst_293 : f32 to vector<8x128xf32>
    %797 = arith.mulf %796, %795 : vector<8x128xf32>
    %cst_294 = arith.constant 5.000000e-01 : f32
    %798 = vector.broadcast %cst_294 : f32 to vector<8x128xf32>
    %799 = arith.addf %797, %798 : vector<8x128xf32>
    %800 = vector.extract_strided_slice %783 {offsets = [0, 256], sizes = [8, 128], strides = [1, 1]} : vector<8x512xf32> to vector<8x128xf32>
    %801 = math.tanh %800 : vector<8x128xf32>
    %802 = vector.extract_strided_slice %783 {offsets = [0, 384], sizes = [8, 128], strides = [1, 1]} : vector<8x512xf32> to vector<8x128xf32>
    %cst_295 = arith.constant 5.000000e-01 : f32
    %803 = vector.broadcast %cst_295 : f32 to vector<8x128xf32>
    %804 = arith.mulf %803, %802 : vector<8x128xf32>
    %805 = math.tanh %804 : vector<8x128xf32>
    %cst_296 = arith.constant 5.000000e-01 : f32
    %806 = vector.broadcast %cst_296 : f32 to vector<8x128xf32>
    %807 = arith.mulf %806, %805 : vector<8x128xf32>
    %cst_297 = arith.constant 5.000000e-01 : f32
    %808 = vector.broadcast %cst_297 : f32 to vector<8x128xf32>
    %809 = arith.addf %807, %808 : vector<8x128xf32>
    %810 = arith.mulf %799, %736 : vector<8x128xf32>
    %811 = arith.mulf %791, %801 : vector<8x128xf32>
    %812 = arith.addf %810, %811 : vector<8x128xf32>
    %813 = math.tanh %812 : vector<8x128xf32>
    %814 = arith.mulf %809, %813 : vector<8x128xf32>
    %815 = tpu.concatenate %814, %774 in 1 : vector<8x128xf32>, vector<8x128xf32> -> vector<8x256xf32>
    %816 = arith.truncf %815 : vector<8x256xf32> to vector<8x256xbf16>
    %c0_298 = arith.constant 0 : index
    %c0_299 = arith.constant 0 : index
    %817 = vector.load %arg7[%c0_298, %c0_299] : memref<256x512xbf16, #tpu.memory_space<vmem>>, vector<256x512xbf16>
    %cst_300 = arith.constant dense<0.000000e+00> : vector<8x512xf32>
    %818 = tpu.matmul %816, %817, %cst_300 {dimension_numbers = #tpu.dot_dimension_numbers<[1], [0], [0], [1], [0, 0, 1, 1], [], []>} : vector<8x256xbf16>, vector<256x512xbf16>, vector<8x512xf32> -> vector<8x512xf32>
    %819 = arith.addf %818, %33 : vector<8x512xf32>
    %820 = vector.extract_strided_slice %819 {offsets = [0, 0], sizes = [8, 128], strides = [1, 1]} : vector<8x512xf32> to vector<8x128xf32>
    %cst_301 = arith.constant 5.000000e-01 : f32
    %821 = vector.broadcast %cst_301 : f32 to vector<8x128xf32>
    %822 = arith.mulf %821, %820 : vector<8x128xf32>
    %823 = math.tanh %822 : vector<8x128xf32>
    %cst_302 = arith.constant 5.000000e-01 : f32
    %824 = vector.broadcast %cst_302 : f32 to vector<8x128xf32>
    %825 = arith.mulf %824, %823 : vector<8x128xf32>
    %cst_303 = arith.constant 5.000000e-01 : f32
    %826 = vector.broadcast %cst_303 : f32 to vector<8x128xf32>
    %827 = arith.addf %825, %826 : vector<8x128xf32>
    %828 = vector.extract_strided_slice %819 {offsets = [0, 128], sizes = [8, 128], strides = [1, 1]} : vector<8x512xf32> to vector<8x128xf32>
    %cst_304 = arith.constant 5.000000e-01 : f32
    %829 = vector.broadcast %cst_304 : f32 to vector<8x128xf32>
    %830 = arith.mulf %829, %828 : vector<8x128xf32>
    %831 = math.tanh %830 : vector<8x128xf32>
    %cst_305 = arith.constant 5.000000e-01 : f32
    %832 = vector.broadcast %cst_305 : f32 to vector<8x128xf32>
    %833 = arith.mulf %832, %831 : vector<8x128xf32>
    %cst_306 = arith.constant 5.000000e-01 : f32
    %834 = vector.broadcast %cst_306 : f32 to vector<8x128xf32>
    %835 = arith.addf %833, %834 : vector<8x128xf32>
    %836 = vector.extract_strided_slice %819 {offsets = [0, 256], sizes = [8, 128], strides = [1, 1]} : vector<8x512xf32> to vector<8x128xf32>
    %837 = math.tanh %836 : vector<8x128xf32>
    %838 = vector.extract_strided_slice %819 {offsets = [0, 384], sizes = [8, 128], strides = [1, 1]} : vector<8x512xf32> to vector<8x128xf32>
    %cst_307 = arith.constant 5.000000e-01 : f32
    %839 = vector.broadcast %cst_307 : f32 to vector<8x128xf32>
    %840 = arith.mulf %839, %838 : vector<8x128xf32>
    %841 = math.tanh %840 : vector<8x128xf32>
    %cst_308 = arith.constant 5.000000e-01 : f32
    %842 = vector.broadcast %cst_308 : f32 to vector<8x128xf32>
    %843 = arith.mulf %842, %841 : vector<8x128xf32>
    %cst_309 = arith.constant 5.000000e-01 : f32
    %844 = vector.broadcast %cst_309 : f32 to vector<8x128xf32>
    %845 = arith.addf %843, %844 : vector<8x128xf32>
    %846 = arith.mulf %835, %772 : vector<8x128xf32>
    %847 = arith.mulf %827, %837 : vector<8x128xf32>
    %848 = arith.addf %846, %847 : vector<8x128xf32>
    %849 = math.tanh %848 : vector<8x128xf32>
    %850 = arith.mulf %845, %849 : vector<8x128xf32>
    %851 = arith.truncf %850 : vector<8x128xf32> to vector<8x128xbf16>
    %c1152 = arith.constant 1152 : index
    %c0_310 = arith.constant 0 : index
    %852 = vector.load %arg9[%c1152, %c0_310] : memref<1536x128xbf16, #tpu.memory_space<vmem>>, vector<128x128xbf16>
    %cst_311 = arith.constant dense<0.000000e+00> : vector<8x128xf32>
    %853 = tpu.matmul %851, %852, %cst_311 {dimension_numbers = #tpu.dot_dimension_numbers<[1], [0], [0], [1], [0, 0, 1, 1], [], []>} : vector<8x128xbf16>, vector<128x128xbf16>, vector<8x128xf32> -> vector<8x128xf32>
    %854 = arith.addf %778, %853 : vector<8x128xf32>
    %855 = arith.truncf %814 : vector<8x128xf32> to vector<8x128xbf16>
    %c0_312 = arith.constant 0 : index
    %c0_313 = arith.constant 0 : index
    %856 = vector.load %arg5[%c0_312, %c0_313] : memref<128x512xbf16, #tpu.memory_space<vmem>>, vector<128x512xbf16>
    %cst_314 = arith.constant dense<0.000000e+00> : vector<8x512xf32>
    %857 = tpu.matmul %855, %856, %cst_314 {dimension_numbers = #tpu.dot_dimension_numbers<[1], [0], [0], [1], [0, 0, 1, 1], [], []>} : vector<8x128xbf16>, vector<128x512xbf16>, vector<8x512xf32> -> vector<8x512xf32>
    %c0_315 = arith.constant 0 : index
    %c5120_316 = arith.constant 5120 : index
    %858 = vector.load %arg16[%c0_315, %c5120_316] : memref<8x6144xf32, #tpu.memory_space<vmem>>, vector<8x512xf32>
    %859 = arith.addf %857, %858 : vector<8x512xf32>
    %860 = vector.extract_strided_slice %859 {offsets = [0, 0], sizes = [8, 128], strides = [1, 1]} : vector<8x512xf32> to vector<8x128xf32>
    %cst_317 = arith.constant 5.000000e-01 : f32
    %861 = vector.broadcast %cst_317 : f32 to vector<8x128xf32>
    %862 = arith.mulf %861, %860 : vector<8x128xf32>
    %863 = math.tanh %862 : vector<8x128xf32>
    %cst_318 = arith.constant 5.000000e-01 : f32
    %864 = vector.broadcast %cst_318 : f32 to vector<8x128xf32>
    %865 = arith.mulf %864, %863 : vector<8x128xf32>
    %cst_319 = arith.constant 5.000000e-01 : f32
    %866 = vector.broadcast %cst_319 : f32 to vector<8x128xf32>
    %867 = arith.addf %865, %866 : vector<8x128xf32>
    %868 = vector.extract_strided_slice %859 {offsets = [0, 128], sizes = [8, 128], strides = [1, 1]} : vector<8x512xf32> to vector<8x128xf32>
    %cst_320 = arith.constant 5.000000e-01 : f32
    %869 = vector.broadcast %cst_320 : f32 to vector<8x128xf32>
    %870 = arith.mulf %869, %868 : vector<8x128xf32>
    %871 = math.tanh %870 : vector<8x128xf32>
    %cst_321 = arith.constant 5.000000e-01 : f32
    %872 = vector.broadcast %cst_321 : f32 to vector<8x128xf32>
    %873 = arith.mulf %872, %871 : vector<8x128xf32>
    %cst_322 = arith.constant 5.000000e-01 : f32
    %874 = vector.broadcast %cst_322 : f32 to vector<8x128xf32>
    %875 = arith.addf %873, %874 : vector<8x128xf32>
    %876 = vector.extract_strided_slice %859 {offsets = [0, 256], sizes = [8, 128], strides = [1, 1]} : vector<8x512xf32> to vector<8x128xf32>
    %877 = math.tanh %876 : vector<8x128xf32>
    %878 = vector.extract_strided_slice %859 {offsets = [0, 384], sizes = [8, 128], strides = [1, 1]} : vector<8x512xf32> to vector<8x128xf32>
    %cst_323 = arith.constant 5.000000e-01 : f32
    %879 = vector.broadcast %cst_323 : f32 to vector<8x128xf32>
    %880 = arith.mulf %879, %878 : vector<8x128xf32>
    %881 = math.tanh %880 : vector<8x128xf32>
    %cst_324 = arith.constant 5.000000e-01 : f32
    %882 = vector.broadcast %cst_324 : f32 to vector<8x128xf32>
    %883 = arith.mulf %882, %881 : vector<8x128xf32>
    %cst_325 = arith.constant 5.000000e-01 : f32
    %884 = vector.broadcast %cst_325 : f32 to vector<8x128xf32>
    %885 = arith.addf %883, %884 : vector<8x128xf32>
    %886 = arith.mulf %875, %812 : vector<8x128xf32>
    %887 = arith.mulf %867, %877 : vector<8x128xf32>
    %888 = arith.addf %886, %887 : vector<8x128xf32>
    %889 = math.tanh %888 : vector<8x128xf32>
    %890 = arith.mulf %885, %889 : vector<8x128xf32>
    %891 = tpu.concatenate %890, %850 in 1 : vector<8x128xf32>, vector<8x128xf32> -> vector<8x256xf32>
    %892 = arith.truncf %891 : vector<8x256xf32> to vector<8x256xbf16>
    %c0_326 = arith.constant 0 : index
    %c0_327 = arith.constant 0 : index
    %893 = vector.load %arg7[%c0_326, %c0_327] : memref<256x512xbf16, #tpu.memory_space<vmem>>, vector<256x512xbf16>
    %cst_328 = arith.constant dense<0.000000e+00> : vector<8x512xf32>
    %894 = tpu.matmul %892, %893, %cst_328 {dimension_numbers = #tpu.dot_dimension_numbers<[1], [0], [0], [1], [0, 0, 1, 1], [], []>} : vector<8x256xbf16>, vector<256x512xbf16>, vector<8x512xf32> -> vector<8x512xf32>
    %895 = arith.addf %894, %33 : vector<8x512xf32>
    %896 = vector.extract_strided_slice %895 {offsets = [0, 0], sizes = [8, 128], strides = [1, 1]} : vector<8x512xf32> to vector<8x128xf32>
    %cst_329 = arith.constant 5.000000e-01 : f32
    %897 = vector.broadcast %cst_329 : f32 to vector<8x128xf32>
    %898 = arith.mulf %897, %896 : vector<8x128xf32>
    %899 = math.tanh %898 : vector<8x128xf32>
    %cst_330 = arith.constant 5.000000e-01 : f32
    %900 = vector.broadcast %cst_330 : f32 to vector<8x128xf32>
    %901 = arith.mulf %900, %899 : vector<8x128xf32>
    %cst_331 = arith.constant 5.000000e-01 : f32
    %902 = vector.broadcast %cst_331 : f32 to vector<8x128xf32>
    %903 = arith.addf %901, %902 : vector<8x128xf32>
    %904 = vector.extract_strided_slice %895 {offsets = [0, 128], sizes = [8, 128], strides = [1, 1]} : vector<8x512xf32> to vector<8x128xf32>
    %cst_332 = arith.constant 5.000000e-01 : f32
    %905 = vector.broadcast %cst_332 : f32 to vector<8x128xf32>
    %906 = arith.mulf %905, %904 : vector<8x128xf32>
    %907 = math.tanh %906 : vector<8x128xf32>
    %cst_333 = arith.constant 5.000000e-01 : f32
    %908 = vector.broadcast %cst_333 : f32 to vector<8x128xf32>
    %909 = arith.mulf %908, %907 : vector<8x128xf32>
    %cst_334 = arith.constant 5.000000e-01 : f32
    %910 = vector.broadcast %cst_334 : f32 to vector<8x128xf32>
    %911 = arith.addf %909, %910 : vector<8x128xf32>
    %912 = vector.extract_strided_slice %895 {offsets = [0, 256], sizes = [8, 128], strides = [1, 1]} : vector<8x512xf32> to vector<8x128xf32>
    %913 = math.tanh %912 : vector<8x128xf32>
    %914 = vector.extract_strided_slice %895 {offsets = [0, 384], sizes = [8, 128], strides = [1, 1]} : vector<8x512xf32> to vector<8x128xf32>
    %cst_335 = arith.constant 5.000000e-01 : f32
    %915 = vector.broadcast %cst_335 : f32 to vector<8x128xf32>
    %916 = arith.mulf %915, %914 : vector<8x128xf32>
    %917 = math.tanh %916 : vector<8x128xf32>
    %cst_336 = arith.constant 5.000000e-01 : f32
    %918 = vector.broadcast %cst_336 : f32 to vector<8x128xf32>
    %919 = arith.mulf %918, %917 : vector<8x128xf32>
    %cst_337 = arith.constant 5.000000e-01 : f32
    %920 = vector.broadcast %cst_337 : f32 to vector<8x128xf32>
    %921 = arith.addf %919, %920 : vector<8x128xf32>
    %922 = arith.mulf %911, %848 : vector<8x128xf32>
    %923 = arith.mulf %903, %913 : vector<8x128xf32>
    %924 = arith.addf %922, %923 : vector<8x128xf32>
    %925 = math.tanh %924 : vector<8x128xf32>
    %926 = arith.mulf %921, %925 : vector<8x128xf32>
    %927 = arith.truncf %926 : vector<8x128xf32> to vector<8x128xbf16>
    %c1280 = arith.constant 1280 : index
    %c0_338 = arith.constant 0 : index
    %928 = vector.load %arg9[%c1280, %c0_338] : memref<1536x128xbf16, #tpu.memory_space<vmem>>, vector<128x128xbf16>
    %cst_339 = arith.constant dense<0.000000e+00> : vector<8x128xf32>
    %929 = tpu.matmul %927, %928, %cst_339 {dimension_numbers = #tpu.dot_dimension_numbers<[1], [0], [0], [1], [0, 0, 1, 1], [], []>} : vector<8x128xbf16>, vector<128x128xbf16>, vector<8x128xf32> -> vector<8x128xf32>
    %930 = arith.addf %854, %929 : vector<8x128xf32>
    %931 = arith.truncf %890 : vector<8x128xf32> to vector<8x128xbf16>
    %c0_340 = arith.constant 0 : index
    %c0_341 = arith.constant 0 : index
    %932 = vector.load %arg5[%c0_340, %c0_341] : memref<128x512xbf16, #tpu.memory_space<vmem>>, vector<128x512xbf16>
    %cst_342 = arith.constant dense<0.000000e+00> : vector<8x512xf32>
    %933 = tpu.matmul %931, %932, %cst_342 {dimension_numbers = #tpu.dot_dimension_numbers<[1], [0], [0], [1], [0, 0, 1, 1], [], []>} : vector<8x128xbf16>, vector<128x512xbf16>, vector<8x512xf32> -> vector<8x512xf32>
    %c0_343 = arith.constant 0 : index
    %c5632_344 = arith.constant 5632 : index
    %934 = vector.load %arg16[%c0_343, %c5632_344] : memref<8x6144xf32, #tpu.memory_space<vmem>>, vector<8x512xf32>
    %935 = arith.addf %933, %934 : vector<8x512xf32>
    %936 = vector.extract_strided_slice %935 {offsets = [0, 0], sizes = [8, 128], strides = [1, 1]} : vector<8x512xf32> to vector<8x128xf32>
    %cst_345 = arith.constant 5.000000e-01 : f32
    %937 = vector.broadcast %cst_345 : f32 to vector<8x128xf32>
    %938 = arith.mulf %937, %936 : vector<8x128xf32>
    %939 = math.tanh %938 : vector<8x128xf32>
    %cst_346 = arith.constant 5.000000e-01 : f32
    %940 = vector.broadcast %cst_346 : f32 to vector<8x128xf32>
    %941 = arith.mulf %940, %939 : vector<8x128xf32>
    %cst_347 = arith.constant 5.000000e-01 : f32
    %942 = vector.broadcast %cst_347 : f32 to vector<8x128xf32>
    %943 = arith.addf %941, %942 : vector<8x128xf32>
    %944 = vector.extract_strided_slice %935 {offsets = [0, 128], sizes = [8, 128], strides = [1, 1]} : vector<8x512xf32> to vector<8x128xf32>
    %cst_348 = arith.constant 5.000000e-01 : f32
    %945 = vector.broadcast %cst_348 : f32 to vector<8x128xf32>
    %946 = arith.mulf %945, %944 : vector<8x128xf32>
    %947 = math.tanh %946 : vector<8x128xf32>
    %cst_349 = arith.constant 5.000000e-01 : f32
    %948 = vector.broadcast %cst_349 : f32 to vector<8x128xf32>
    %949 = arith.mulf %948, %947 : vector<8x128xf32>
    %cst_350 = arith.constant 5.000000e-01 : f32
    %950 = vector.broadcast %cst_350 : f32 to vector<8x128xf32>
    %951 = arith.addf %949, %950 : vector<8x128xf32>
    %952 = vector.extract_strided_slice %935 {offsets = [0, 256], sizes = [8, 128], strides = [1, 1]} : vector<8x512xf32> to vector<8x128xf32>
    %953 = math.tanh %952 : vector<8x128xf32>
    %954 = vector.extract_strided_slice %935 {offsets = [0, 384], sizes = [8, 128], strides = [1, 1]} : vector<8x512xf32> to vector<8x128xf32>
    %cst_351 = arith.constant 5.000000e-01 : f32
    %955 = vector.broadcast %cst_351 : f32 to vector<8x128xf32>
    %956 = arith.mulf %955, %954 : vector<8x128xf32>
    %957 = math.tanh %956 : vector<8x128xf32>
    %cst_352 = arith.constant 5.000000e-01 : f32
    %958 = vector.broadcast %cst_352 : f32 to vector<8x128xf32>
    %959 = arith.mulf %958, %957 : vector<8x128xf32>
    %cst_353 = arith.constant 5.000000e-01 : f32
    %960 = vector.broadcast %cst_353 : f32 to vector<8x128xf32>
    %961 = arith.addf %959, %960 : vector<8x128xf32>
    %962 = arith.mulf %951, %888 : vector<8x128xf32>
    %963 = arith.mulf %943, %953 : vector<8x128xf32>
    %964 = arith.addf %962, %963 : vector<8x128xf32>
    %965 = math.tanh %964 : vector<8x128xf32>
    %966 = arith.mulf %961, %965 : vector<8x128xf32>
    %967 = tpu.concatenate %966, %926 in 1 : vector<8x128xf32>, vector<8x128xf32> -> vector<8x256xf32>
    %968 = arith.truncf %967 : vector<8x256xf32> to vector<8x256xbf16>
    %c0_354 = arith.constant 0 : index
    %c0_355 = arith.constant 0 : index
    %969 = vector.load %arg7[%c0_354, %c0_355] : memref<256x512xbf16, #tpu.memory_space<vmem>>, vector<256x512xbf16>
    %cst_356 = arith.constant dense<0.000000e+00> : vector<8x512xf32>
    %970 = tpu.matmul %968, %969, %cst_356 {dimension_numbers = #tpu.dot_dimension_numbers<[1], [0], [0], [1], [0, 0, 1, 1], [], []>} : vector<8x256xbf16>, vector<256x512xbf16>, vector<8x512xf32> -> vector<8x512xf32>
    %971 = arith.addf %970, %33 : vector<8x512xf32>
    %972 = vector.extract_strided_slice %971 {offsets = [0, 0], sizes = [8, 128], strides = [1, 1]} : vector<8x512xf32> to vector<8x128xf32>
    %cst_357 = arith.constant 5.000000e-01 : f32
    %973 = vector.broadcast %cst_357 : f32 to vector<8x128xf32>
    %974 = arith.mulf %973, %972 : vector<8x128xf32>
    %975 = math.tanh %974 : vector<8x128xf32>
    %cst_358 = arith.constant 5.000000e-01 : f32
    %976 = vector.broadcast %cst_358 : f32 to vector<8x128xf32>
    %977 = arith.mulf %976, %975 : vector<8x128xf32>
    %cst_359 = arith.constant 5.000000e-01 : f32
    %978 = vector.broadcast %cst_359 : f32 to vector<8x128xf32>
    %979 = arith.addf %977, %978 : vector<8x128xf32>
    %980 = vector.extract_strided_slice %971 {offsets = [0, 128], sizes = [8, 128], strides = [1, 1]} : vector<8x512xf32> to vector<8x128xf32>
    %cst_360 = arith.constant 5.000000e-01 : f32
    %981 = vector.broadcast %cst_360 : f32 to vector<8x128xf32>
    %982 = arith.mulf %981, %980 : vector<8x128xf32>
    %983 = math.tanh %982 : vector<8x128xf32>
    %cst_361 = arith.constant 5.000000e-01 : f32
    %984 = vector.broadcast %cst_361 : f32 to vector<8x128xf32>
    %985 = arith.mulf %984, %983 : vector<8x128xf32>
    %cst_362 = arith.constant 5.000000e-01 : f32
    %986 = vector.broadcast %cst_362 : f32 to vector<8x128xf32>
    %987 = arith.addf %985, %986 : vector<8x128xf32>
    %988 = vector.extract_strided_slice %971 {offsets = [0, 256], sizes = [8, 128], strides = [1, 1]} : vector<8x512xf32> to vector<8x128xf32>
    %989 = math.tanh %988 : vector<8x128xf32>
    %990 = vector.extract_strided_slice %971 {offsets = [0, 384], sizes = [8, 128], strides = [1, 1]} : vector<8x512xf32> to vector<8x128xf32>
    %cst_363 = arith.constant 5.000000e-01 : f32
    %991 = vector.broadcast %cst_363 : f32 to vector<8x128xf32>
    %992 = arith.mulf %991, %990 : vector<8x128xf32>
    %993 = math.tanh %992 : vector<8x128xf32>
    %cst_364 = arith.constant 5.000000e-01 : f32
    %994 = vector.broadcast %cst_364 : f32 to vector<8x128xf32>
    %995 = arith.mulf %994, %993 : vector<8x128xf32>
    %cst_365 = arith.constant 5.000000e-01 : f32
    %996 = vector.broadcast %cst_365 : f32 to vector<8x128xf32>
    %997 = arith.addf %995, %996 : vector<8x128xf32>
    %998 = arith.mulf %987, %924 : vector<8x128xf32>
    %999 = arith.mulf %979, %989 : vector<8x128xf32>
    %1000 = arith.addf %998, %999 : vector<8x128xf32>
    %1001 = math.tanh %1000 : vector<8x128xf32>
    %1002 = arith.mulf %997, %1001 : vector<8x128xf32>
    %1003 = arith.truncf %1002 : vector<8x128xf32> to vector<8x128xbf16>
    %c1408 = arith.constant 1408 : index
    %c0_366 = arith.constant 0 : index
    %1004 = vector.load %arg9[%c1408, %c0_366] : memref<1536x128xbf16, #tpu.memory_space<vmem>>, vector<128x128xbf16>
    %cst_367 = arith.constant dense<0.000000e+00> : vector<8x128xf32>
    %1005 = tpu.matmul %1003, %1004, %cst_367 {dimension_numbers = #tpu.dot_dimension_numbers<[1], [0], [0], [1], [0, 0, 1, 1], [], []>} : vector<8x128xbf16>, vector<128x128xbf16>, vector<8x128xf32> -> vector<8x128xf32>
    %1006 = arith.addf %930, %1005 : vector<8x128xf32>
    %c0_368 = arith.constant 0 : index
    %c0_369 = arith.constant 0 : index
    %1007 = vector.load %arg10[%c0_368, %c0_369] : memref<1x128xf32, #tpu.memory_space<vmem>>, vector<1x128xf32>
    %1008 = vector.broadcast %1007 : vector<1x128xf32> to vector<8x128xf32>
    %1009 = arith.addf %1006, %1008 : vector<8x128xf32>
    %cst_370 = arith.constant dense<0.000000e+00> : vector<8xf32>
    %1010 = vector.multi_reduction <add>, %1009, %cst_370 [1] : vector<8x128xf32> to vector<8xf32>
    %1011 = vector.shape_cast %1010 : vector<8xf32> to vector<8x1xf32>
    %cst_371 = arith.constant 1.280000e+02 : f32
    %1012 = vector.broadcast %cst_371 : f32 to vector<8x1xf32>
    %1013 = arith.divf %1011, %1012 : vector<8x1xf32>
    %1014 = vector.broadcast %1013 : vector<8x1xf32> to vector<8x128xf32>
    %1015 = arith.subf %1009, %1014 : vector<8x128xf32>
    %1016 = arith.mulf %1015, %1015 : vector<8x128xf32>
    %cst_372 = arith.constant dense<0.000000e+00> : vector<8xf32>
    %1017 = vector.multi_reduction <add>, %1016, %cst_372 [1] : vector<8x128xf32> to vector<8xf32>
    %1018 = vector.shape_cast %1017 : vector<8xf32> to vector<8x1xf32>
    %cst_373 = arith.constant 1.280000e+02 : f32
    %1019 = vector.broadcast %cst_373 : f32 to vector<8x1xf32>
    %1020 = arith.divf %1018, %1019 : vector<8x1xf32>
    %1021 = vector.broadcast %1013 : vector<8x1xf32> to vector<8x128xf32>
    %1022 = arith.subf %1009, %1021 : vector<8x128xf32>
    %cst_374 = arith.constant 9.99999974E-6 : f32
    %1023 = vector.broadcast %cst_374 : f32 to vector<8x1xf32>
    %1024 = arith.addf %1020, %1023 : vector<8x1xf32>
    %1025 = math.rsqrt %1024 : vector<8x1xf32>
    %1026 = vector.broadcast %1025 : vector<8x1xf32> to vector<8x128xf32>
    %1027 = arith.mulf %1022, %1026 : vector<8x128xf32>
    %c0_375 = arith.constant 0 : index
    %c0_376 = arith.constant 0 : index
    %1028 = vector.load %arg11[%c0_375, %c0_376] : memref<1x128xf32, #tpu.memory_space<vmem>>, vector<1x128xf32>
    %1029 = vector.broadcast %1028 : vector<1x128xf32> to vector<8x128xf32>
    %1030 = arith.mulf %1027, %1029 : vector<8x128xf32>
    %c0_377 = arith.constant 0 : index
    %c0_378 = arith.constant 0 : index
    %1031 = vector.load %arg12[%c0_377, %c0_378] : memref<1x128xf32, #tpu.memory_space<vmem>>, vector<1x128xf32>
    %1032 = vector.broadcast %1031 : vector<1x128xf32> to vector<8x128xf32>
    %1033 = arith.addf %1030, %1032 : vector<8x128xf32>
    %cst_379 = arith.constant 0.000000e+00 : f32
    %1034 = vector.broadcast %cst_379 : f32 to vector<8x128xf32>
    %1035 = arith.maximumf %1033, %1034 : vector<8x128xf32>
    %c0_380 = arith.constant 0 : index
    %c0_381 = arith.constant 0 : index
    %1036 = vector.load %arg13[%c0_380, %c0_381] : memref<1x128xf32, #tpu.memory_space<vmem>>, vector<1x128xf32>
    %1037 = vector.broadcast %1036 : vector<1x128xf32> to vector<8x128xf32>
    %1038 = arith.mulf %1035, %1037 : vector<8x128xf32>
    %cst_382 = arith.constant dense<0.000000e+00> : vector<8xf32>
    %1039 = vector.multi_reduction <add>, %1038, %cst_382 [1] : vector<8x128xf32> to vector<8xf32>
    %1040 = vector.shape_cast %1039 : vector<8xf32> to vector<8x1xf32>
    %c0_383 = arith.constant 0 : index
    %c0_384 = arith.constant 0 : index
    %1041 = vector.load %arg14[%c0_383, %c0_384] : memref<1x1xf32, #tpu.memory_space<vmem>>, vector<1x1xf32>
    %1042 = vector.broadcast %1041 : vector<1x1xf32> to vector<8x1xf32>
    %1043 = arith.addf %1040, %1042 : vector<8x1xf32>
    %c0_385 = arith.constant 0 : index
    %c0_386 = arith.constant 0 : index
    %1044 = vector.load %arg15[%c0_385, %c0_386] : memref<8x1xf32, #tpu.memory_space<vmem>>, vector<8x1xf32>
    tpu.vector_store %arg15[%c0_385, %c0_386], %1043 {strides = array<i32>} : memref<8x1xf32, #tpu.memory_space<vmem>>, vector<8x1xf32>,
    return
  }
  func.func @transform_0(%arg0: i32) -> (i32, i32) {
    %c0_i32 = arith.constant 0 : i32
    %c0_i32_0 = arith.constant 0 : i32
    return %arg0, %c0_i32 : i32, i32
  }
  func.func @transform_1(%arg0: i32) -> (i32, i32) {
    %c0_i32 = arith.constant 0 : i32
    %c0_i32_0 = arith.constant 0 : i32
    %c0_i32_1 = arith.constant 0 : i32
    return %c0_i32, %c0_i32_0 : i32, i32
  }
  func.func @transform_2(%arg0: i32) -> (i32, i32) {
    %c0_i32 = arith.constant 0 : i32
    %c0_i32_0 = arith.constant 0 : i32
    %c0_i32_1 = arith.constant 0 : i32
    return %c0_i32, %c0_i32_0 : i32, i32
  }
  func.func @transform_3(%arg0: i32) -> (i32, i32) {
    %c0_i32 = arith.constant 0 : i32
    %c0_i32_0 = arith.constant 0 : i32
    %c0_i32_1 = arith.constant 0 : i32
    return %c0_i32, %c0_i32_0 : i32, i32
  }
  func.func @transform_4(%arg0: i32) -> (i32, i32) {
    %c0_i32 = arith.constant 0 : i32
    %c0_i32_0 = arith.constant 0 : i32
    %c0_i32_1 = arith.constant 0 : i32
    return %c0_i32, %c0_i32_0 : i32, i32
  }
  func.func @transform_5(%arg0: i32) -> (i32, i32) {
    %c0_i32 = arith.constant 0 : i32
    %c0_i32_0 = arith.constant 0 : i32
    %c0_i32_1 = arith.constant 0 : i32
    return %c0_i32, %c0_i32_0 : i32, i32
  }
  func.func @transform_6(%arg0: i32) -> (i32, i32) {
    %c0_i32 = arith.constant 0 : i32
    %c0_i32_0 = arith.constant 0 : i32
    %c0_i32_1 = arith.constant 0 : i32
    return %c0_i32, %c0_i32_0 : i32, i32
  }
  func.func @transform_7(%arg0: i32) -> (i32, i32) {
    %c0_i32 = arith.constant 0 : i32
    %c0_i32_0 = arith.constant 0 : i32
    %c0_i32_1 = arith.constant 0 : i32
    return %c0_i32, %c0_i32_0 : i32, i32
  }
  func.func @transform_8(%arg0: i32) -> (i32, i32) {
    %c0_i32 = arith.constant 0 : i32
    %c0_i32_0 = arith.constant 0 : i32
    %c0_i32_1 = arith.constant 0 : i32
    return %c0_i32, %c0_i32_0 : i32, i32
  }
  func.func @transform_9(%arg0: i32) -> (i32, i32) {
    %c0_i32 = arith.constant 0 : i32
    %c0_i32_0 = arith.constant 0 : i32
    %c0_i32_1 = arith.constant 0 : i32
    return %c0_i32, %c0_i32_0 : i32, i32
  }
  func.func @transform_10(%arg0: i32) -> (i32, i32) {
    %c0_i32 = arith.constant 0 : i32
    %c0_i32_0 = arith.constant 0 : i32
    %c0_i32_1 = arith.constant 0 : i32
    return %c0_i32, %c0_i32_0 : i32, i32
  }
  func.func @transform_11(%arg0: i32) -> (i32, i32) {
    %c0_i32 = arith.constant 0 : i32
    %c0_i32_0 = arith.constant 0 : i32
    %c0_i32_1 = arith.constant 0 : i32
    return %c0_i32, %c0_i32_0 : i32, i32
  }
  func.func @transform_12(%arg0: i32) -> (i32, i32) {
    %c0_i32 = arith.constant 0 : i32
    %c0_i32_0 = arith.constant 0 : i32
    %c0_i32_1 = arith.constant 0 : i32
    return %c0_i32, %c0_i32_0 : i32, i32
  }
  func.func @transform_13(%arg0: i32) -> (i32, i32) {
    %c0_i32 = arith.constant 0 : i32
    %c0_i32_0 = arith.constant 0 : i32
    %c0_i32_1 = arith.constant 0 : i32
    return %c0_i32, %c0_i32_0 : i32, i32
  }
  func.func @transform_14(%arg0: i32) -> (i32, i32) {
    %c0_i32 = arith.constant 0 : i32
    %c0_i32_0 = arith.constant 0 : i32
    return %arg0, %c0_i32 : i32, i32
  }
}

</mosaic_0001>

<llo_original>
// kernel: forward.1
$region0: #{forward.1}
  #allocation0 [shape = 'u32[]', space=smem, size = 0x4, offset = 0x4, fixed_abs, tag = 'smem constant byte address 0x4 - core index']
  #allocation1 [shape = 'u32[144,128]{1,0:T(1,128)}', space=vmem, size = 0x12000, scoped, tag = 'internal scratch']
  #allocation2 [shape = 'f32[8,6144]{1,0:T(8,128)}', space=vmem, size = 0x30000, scoped, tag = 'scratch operand']
  #allocation3 [shape = 'f32[1,1]{1,0:T(1,128)S(1)}', space=vmem, size = 0x200, scoped, tag = 'scoped memory for forward.1']
  %s0 = inlined_call_operand.hbm [shape: f32[8,12], index: 0, kind: input, shape index: {}]
  %s1 = inlined_call_operand.hbm [shape: f32[1,12], index: 1, kind: input, shape index: {}]
  %s2 = inlined_call_operand.hbm [shape: f32[1,12], index: 2, kind: input, shape index: {}]
  %s3 = inlined_call_operand.hbm [shape: f32[1,512], index: 3, kind: input, shape index: {}]
  %s4 = inlined_call_operand.hbm [shape: bf16[128,512], index: 4, kind: input, shape index: {}]
  %s5 = inlined_call_operand.hbm [shape: f32[1,512], index: 5, kind: input, shape index: {}]
  %s6 = inlined_call_operand.hbm [shape: bf16[256,512], index: 6, kind: input, shape index: {}]
  %s7 = inlined_call_operand.hbm [shape: f32[1,512], index: 7, kind: input, shape index: {}]
  %s8 = inlined_call_operand.hbm [shape: bf16[1536,128], index: 8, kind: input, shape index: {}]
  %s9 = inlined_call_operand.hbm [shape: f32[1,128], index: 9, kind: input, shape index: {}]
  %s10 = inlined_call_operand.hbm [shape: f32[1,128], index: 10, kind: input, shape index: {}]
  %s11 = inlined_call_operand.hbm [shape: f32[1,128], index: 11, kind: input, shape index: {}]
  %s12 = inlined_call_operand.hbm [shape: f32[1,128], index: 12, kind: input, shape index: {}]
  %s13 = inlined_call_operand.<no memory space> [shape: f32[1,1], index: 13, kind: input, shape index: {}]
  %s14 = inlined_call_operand.hbm [shape: f32[8,1], index: 14, kind: output, shape index: {}]
  %s15 = sld [smem:[#allocation0]]
  $region118: #{forward.1} parent=0
    _
  %s17 = ssub.s32 1, %s15
  %s18 = scalar_select 0, %s17, %s15
  %v19 = vstv %s13
  %20 = vst [vmem:[#allocation3] sm:$0x1] %v19
  $region1: #{forward.1} parent=0
    #allocation4 [shape = 'u8[4096]{0}', space=vmem, size = 0x1000, scoped, tag = 'input window, operand 0, single buffered']
    #allocation5 [shape = 's32[1]{0}', space=sflag, size = 0x4, scoped, tag = 'scoped memory for forward.1']
    #allocation6 [shape = 's32[1]{0}', space=sflag, size = 0x4, scoped, tag = 'scoped memory for forward.1']
    #allocation7 [shape = 'u8[512]{0}', space=vmem, size = 0x400, scoped, tag = 'input window, operand 1, single buffered']
    #allocation8 [shape = 's32[1]{0}', space=sflag, size = 0x4, scoped, tag = 'scoped memory for forward.1']
    #allocation9 [shape = 'u8[512]{0}', space=vmem, size = 0x400, scoped, tag = 'input window, operand 2, single buffered']
    #allocation10 [shape = 'u8[2048]{0}', space=vmem, size = 0x800, scoped, tag = 'input window, operand 3, single buffered']
    #allocation11 [shape = 's32[1]{0}', space=sflag, size = 0x4, scoped, tag = 'scoped memory for forward.1']
    #allocation12 [shape = 'u8[131072]{0}', space=vmem, size = 0x20000, scoped, tag = 'input window, operand 4, single buffered']
    #allocation13 [shape = 'u8[2048]{0}', space=vmem, size = 0x800, scoped, tag = 'input window, operand 5, single buffered']
    #allocation14 [shape = 's32[1]{0}', space=sflag, size = 0x4, scoped, tag = 'scoped memory for forward.1']
    #allocation15 [shape = 'u8[262144]{0}', space=vmem, size = 0x40000, scoped, tag = 'input window, operand 6, single buffered']
    #allocation16 [shape = 'u8[2048]{0}', space=vmem, size = 0x800, scoped, tag = 'input window, operand 7, single buffered']
    #allocation17 [shape = 's32[1]{0}', space=sflag, size = 0x4, scoped, tag = 'scoped memory for forward.1']
    #allocation18 [shape = 'u8[393216]{0}', space=vmem, size = 0x60000, scoped, tag = 'input window, operand 8, single buffered']
    #allocation19 [shape = 'u8[512]{0}', space=vmem, size = 0x400, scoped, tag = 'input window, operand 9, single buffered']
    #allocation20 [shape = 's32[1]{0}', space=sflag, size = 0x4, scoped, tag = 'scoped memory for forward.1']
    #allocation21 [shape = 'u8[512]{0}', space=vmem, size = 0x400, scoped, tag = 'input window, operand 10, single buffered']
    #allocation22 [shape = 'u8[512]{0}', space=vmem, size = 0x400, scoped, tag = 'input window, operand 11, single buffered']
    #allocation23 [shape = 's32[1]{0}', space=sflag, size = 0x4, scoped, tag = 'scoped memory for forward.1']
    #allocation24 [shape = 'u8[512]{0}', space=vmem, size = 0x400, scoped, tag = 'input window, operand 12, single buffered']
    #allocation25 [shape = 'u8[4096]{0}', space=vmem, size = 0x1000, scoped, tag = 'output window, operand 0, single buffered']
    %21 = vsyncpa [#allocation5], 0
    %22 = vsyncpa [#allocation8], 0
    %23 = vsyncpa [#allocation11], 0
    %24 = vsyncpa [#allocation14], 0
    %25 = vsyncpa [#allocation17], 0
    %26 = vsyncpa [#allocation20], 0
    %27 = vsyncpa [#allocation23], 0
    %28 = vsyncpa [#allocation6], 0
    // Predicated region
    $region2: #{forward.1} parent=1 // pred_check
      _
    $region3: #{forward.1} parent=1 // pred_check_branch
      %30 = sbr.rel (0) target = $region5
    $region4: #{forward.1} parent=1 // pred_region
      %s32 = ssub.s32 128, 128
      %33 = vsyncadd [#allocation5], %s32
      %s35 = sshll.u32 [#allocation4], 4
      %s36 = int_to_ptr.vmem [resolvable:$true] %s35
      %38 = dma.hbm_to_vmem [thread:$0]  %s0, 128, %s36, [#allocation5]
    $region5: #{forward.1} parent=1 // pred_fallthru
      _
    // Predicated region
    $region6: #{forward.1} parent=1 // pred_check
      _
    $region7: #{forward.1} parent=1 // pred_check_branch
      %40 = sbr.rel (0) target = $region9
    $region8: #{forward.1} parent=1 // pred_region
      %s42 = ssub.s32 16, 16
      %43 = vsyncadd [#allocation8], %s42
      %s45 = sshll.u32 [#allocation7], 4
      %s46 = int_to_ptr.vmem [resolvable:$true] %s45
      %48 = dma.hbm_to_vmem [thread:$0]  %s1, 16, %s46, [#allocation8]
    $region9: #{forward.1} parent=1 // pred_fallthru
      _
    // Predicated region
    $region10: #{forward.1} parent=1 // pred_check
      _
    $region11: #{forward.1} parent=1 // pred_check_branch
      %50 = sbr.rel (0) target = $region13
    $region12: #{forward.1} parent=1 // pred_region
      %s52 = ssub.s32 16, 16
      %53 = vsyncadd [#allocation8], %s52
      %s55 = sshll.u32 [#allocation9], 4
      %s56 = int_to_ptr.vmem [resolvable:$true] %s55
      %58 = dma.hbm_to_vmem [thread:$0]  %s2, 16, %s56, [#allocation8]
    $region13: #{forward.1} parent=1 // pred_fallthru
      _
    // Predicated region
    $region14: #{forward.1} parent=1 // pred_check
      _
    $region15: #{forward.1} parent=1 // pred_check_branch
      %60 = sbr.rel (0) target = $region17
    $region16: #{forward.1} parent=1 // pred_region
      %s62 = ssub.s32 64, 64
      %63 = vsyncadd [#allocation11], %s62
      %s65 = sshll.u32 [#allocation10], 4
      %s66 = int_to_ptr.vmem [resolvable:$true] %s65
      %68 = dma.hbm_to_vmem [thread:$0]  %s3, 64, %s66, [#allocation11]
    $region17: #{forward.1} parent=1 // pred_fallthru
      _
    // Predicated region
    $region18: #{forward.1} parent=1 // pred_check
      _
    $region19: #{forward.1} parent=1 // pred_check_branch
      %70 = sbr.rel (0) target = $region21
    $region20: #{forward.1} parent=1 // pred_region
      %s72 = ssub.s32 4096, 4096
      %73 = vsyncadd [#allocation11], %s72
      %s74 = sshll.u32 [#allocation12], 4
      %s75 = int_to_ptr.vmem [resolvable:$true] %s74
      %80 = dma.hbm_to_vmem [thread:$0]  %s4, 4096, %s75, [#allocation11], 256, 256, 16
    $region21: #{forward.1} parent=1 // pred_fallthru
      _
    // Predicated region
    $region22: #{forward.1} parent=1 // pred_check
      _
    $region23: #{forward.1} parent=1 // pred_check_branch
      %82 = sbr.rel (0) target = $region25
    $region24: #{forward.1} parent=1 // pred_region
      %s84 = ssub.s32 64, 64
      %85 = vsyncadd [#allocation14], %s84
      %s87 = sshll.u32 [#allocation13], 4
      %s88 = int_to_ptr.vmem [resolvable:$true] %s87
      %90 = dma.hbm_to_vmem [thread:$0]  %s5, 64, %s88, [#allocation14]
    $region25: #{forward.1} parent=1 // pred_fallthru
      _
    // Predicated region
    $region26: #{forward.1} parent=1 // pred_check
      _
    $region27: #{forward.1} parent=1 // pred_check_branch
      %92 = sbr.rel (0) target = $region29
    $region28: #{forward.1} parent=1 // pred_region
      %s94 = ssub.s32 8192, 8192
      %95 = vsyncadd [#allocation14], %s94
      %s96 = sshll.u32 [#allocation15], 4
      %s97 = int_to_ptr.vmem [resolvable:$true] %s96
      %102 = dma.hbm_to_vmem [thread:$0]  %s6, 8192, %s97, [#allocation14], 256, 256, 16
    $region29: #{forward.1} parent=1 // pred_fallthru
      _
    // Predicated region
    $region30: #{forward.1} parent=1 // pred_check
      _
    $region31: #{forward.1} parent=1 // pred_check_branch
      %104 = sbr.rel (0) target = $region33
    $region32: #{forward.1} parent=1 // pred_region
      %s106 = ssub.s32 64, 64
      %107 = vsyncadd [#allocation17], %s106
      %s109 = sshll.u32 [#allocation16], 4
      %s110 = int_to_ptr.vmem [resolvable:$true] %s109
      %112 = dma.hbm_to_vmem [thread:$0]  %s7, 64, %s110, [#allocation17]
    $region33: #{forward.1} parent=1 // pred_fallthru
      _
    // Predicated region
    $region34: #{forward.1} parent=1 // pred_check
      _
    $region35: #{forward.1} parent=1 // pred_check_branch
      %114 = sbr.rel (0) target = $region37
    $region36: #{forward.1} parent=1 // pred_region
      %s116 = ssub.s32 12288, 12288
      %117 = vsyncadd [#allocation17], %s116
      %s118 = sshll.u32 [#allocation18], 4
      %s119 = int_to_ptr.vmem [resolvable:$true] %s118
      %124 = dma.hbm_to_vmem [thread:$0]  %s8, 12288, %s119, [#allocation17], 64, 64, 4
    $region37: #{forward.1} parent=1 // pred_fallthru
      _
    // Predicated region
    $region38: #{forward.1} parent=1 // pred_check
      _
    $region39: #{forward.1} parent=1 // pred_check_branch
      %126 = sbr.rel (0) target = $region41
    $region40: #{forward.1} parent=1 // pred_region
      %s128 = ssub.s32 16, 16
      %129 = vsyncadd [#allocation20], %s128
      %s131 = sshll.u32 [#allocation19], 4
      %s132 = int_to_ptr.vmem [resolvable:$true] %s131
      %134 = dma.hbm_to_vmem [thread:$0]  %s9, 16, %s132, [#allocation20]
    $region41: #{forward.1} parent=1 // pred_fallthru
      _
    // Predicated region
    $region42: #{forward.1} parent=1 // pred_check
      _
    $region43: #{forward.1} parent=1 // pred_check_branch
      %136 = sbr.rel (0) target = $region45
    $region44: #{forward.1} parent=1 // pred_region
      %s138 = ssub.s32 16, 16
      %139 = vsyncadd [#allocation20], %s138
      %s141 = sshll.u32 [#allocation21], 4
      %s142 = int_to_ptr.vmem [resolvable:$true] %s141
      %144 = dma.hbm_to_vmem [thread:$0]  %s10, 16, %s142, [#allocation20]
    $region45: #{forward.1} parent=1 // pred_fallthru
      _
    // Predicated region
    $region46: #{forward.1} parent=1 // pred_check
      _
    $region47: #{forward.1} parent=1 // pred_check_branch
      %146 = sbr.rel (0) target = $region49
    $region48: #{forward.1} parent=1 // pred_region
      %s148 = ssub.s32 16, 16
      %149 = vsyncadd [#allocation23], %s148
      %s151 = sshll.u32 [#allocation22], 4
      %s152 = int_to_ptr.vmem [resolvable:$true] %s151
      %154 = dma.hbm_to_vmem [thread:$0]  %s11, 16, %s152, [#allocation23]
    $region49: #{forward.1} parent=1 // pred_fallthru
      _
    // Predicated region
    $region50: #{forward.1} parent=1 // pred_check
      _
    $region51: #{forward.1} parent=1 // pred_check_branch
      %156 = sbr.rel (0) target = $region53
    $region52: #{forward.1} parent=1 // pred_region
      %s158 = ssub.s32 16, 16
      %159 = vsyncadd [#allocation23], %s158
      %s161 = sshll.u32 [#allocation24], 4
      %s162 = int_to_ptr.vmem [resolvable:$true] %s161
      %164 = dma.hbm_to_vmem [thread:$0]  %s12, 16, %s162, [#allocation23]
    $region53: #{forward.1} parent=1 // pred_fallthru
      _
    // Predicated region
    $region54: #{forward.1} parent=1 // pred_check
      _
    $region55: #{forward.1} parent=1 // pred_check_branch
      %166 = sbr.rel (0) target = $region57
    $region56: #{forward.1} parent=1 // pred_region
      _
    $region57: #{forward.1} parent=1 // pred_fallthru
      _
    // Predicated region
    $region58: #{forward.1} parent=1 // pred_check
      _
    $region59: #{forward.1} parent=1 // pred_check_branch
      %168 = sbr.rel (0) target = $region61
    $region60: #{forward.1} parent=1 // pred_region
      %169 = dma.done [#allocation5], 128
    $region61: #{forward.1} parent=1 // pred_fallthru
      _
    // Predicated region
    $region62: #{forward.1} parent=1 // pred_check
      _
    $region63: #{forward.1} parent=1 // pred_check_branch
      %171 = sbr.rel (0) target = $region65
    $region64: #{forward.1} parent=1 // pred_region
      %172 = dma.done [#allocation8], 16
    $region65: #{forward.1} parent=1 // pred_fallthru
      _
    // Predicated region
    $region66: #{forward.1} parent=1 // pred_check
      _
    $region67: #{forward.1} parent=1 // pred_check_branch
      %174 = sbr.rel (0) target = $region69
    $region68: #{forward.1} parent=1 // pred_region
      %175 = dma.done [#allocation8], 16
    $region69: #{forward.1} parent=1 // pred_fallthru
      _
    // Predicated region
    $region70: #{forward.1} parent=1 // pred_check
      _
    $region71: #{forward.1} parent=1 // pred_check_branch
      %177 = sbr.rel (0) target = $region73
    $region72: #{forward.1} parent=1 // pred_region
      %178 = dma.done [#allocation11], 64
    $region73: #{forward.1} parent=1 // pred_fallthru
      _
    // Predicated region
    $region74: #{forward.1} parent=1 // pred_check
      _
    $region75: #{forward.1} parent=1 // pred_check_branch
      %180 = sbr.rel (0) target = $region77
    $region76: #{forward.1} parent=1 // pred_region
      %181 = dma.done [#allocation11], 4096
    $region77: #{forward.1} parent=1 // pred_fallthru
      _
    // Predicated region
    $region78: #{forward.1} parent=1 // pred_check
      _
    $region79: #{forward.1} parent=1 // pred_check_branch
      %183 = sbr.rel (0) target = $region81
    $region80: #{forward.1} parent=1 // pred_region
      %184 = dma.done [#allocation14], 64
    $region81: #{forward.1} parent=1 // pred_fallthru
      _
    // Predicated region
    $region82: #{forward.1} parent=1 // pred_check
      _
    $region83: #{forward.1} parent=1 // pred_check_branch
      %186 = sbr.rel (0) target = $region85
    $region84: #{forward.1} parent=1 // pred_region
      %187 = dma.done [#allocation14], 8192
    $region85: #{forward.1} parent=1 // pred_fallthru
      _
    // Predicated region
    $region86: #{forward.1} parent=1 // pred_check
      _
    $region87: #{forward.1} parent=1 // pred_check_branch
      %189 = sbr.rel (0) target = $region89
    $region88: #{forward.1} parent=1 // pred_region
      %190 = dma.done [#allocation17], 64
    $region89: #{forward.1} parent=1 // pred_fallthru
      _
    // Predicated region
    $region90: #{forward.1} parent=1 // pred_check
      _
    $region91: #{forward.1} parent=1 // pred_check_branch
      %192 = sbr.rel (0) target = $region93
    $region92: #{forward.1} parent=1 // pred_region
      %193 = dma.done [#allocation17], 12288
    $region93: #{forward.1} parent=1 // pred_fallthru
      _
    // Predicated region
    $region94: #{forward.1} parent=1 // pred_check
      _
    $region95: #{forward.1} parent=1 // pred_check_branch
      %195 = sbr.rel (0) target = $region97
    $region96: #{forward.1} parent=1 // pred_region
      %196 = dma.done [#allocation20], 16
    $region97: #{forward.1} parent=1 // pred_fallthru
      _
    // Predicated region
    $region98: #{forward.1} parent=1 // pred_check
      _
    $region99: #{forward.1} parent=1 // pred_check_branch
      %198 = sbr.rel (0) target = $region101
    $region100: #{forward.1} parent=1 // pred_region
      %199 = dma.done [#allocation20], 16
    $region101: #{forward.1} parent=1 // pred_fallthru
      _
    // Predicated region
    $region102: #{forward.1} parent=1 // pred_check
      _
    $region103: #{forward.1} parent=1 // pred_check_branch
      %201 = sbr.rel (0) target = $region105
    $region104: #{forward.1} parent=1 // pred_region
      %202 = dma.done [#allocation23], 16
    $region105: #{forward.1} parent=1 // pred_fallthru
      _
    // Predicated region
    $region106: #{forward.1} parent=1 // pred_check
      _
    $region107: #{forward.1} parent=1 // pred_check_branch
      %204 = sbr.rel (0) target = $region109
    $region108: #{forward.1} parent=1 // pred_region
      %205 = dma.done [#allocation23], 16
    $region109: #{forward.1} parent=1 // pred_fallthru
      _
    %v207 = vld [vmem:[#allocation4] sm:$0xff]
    %vm208 = vcmask 97280
    %v209 = vsel %vm208, %v207, 0.0
    %210 = vadd.xlane.f32.xlu0 %v209
    %v211 = vpop.xlane.xlu0 %210
    %v212 = vrcp.pop 12.0
    %v213 = vmul.f32 %v211, %v212
    %v214 = vsub.f32 %v207, %v213
    %v215 = vmul.f32 %v214, %v214
    %v216 = vsel %vm208, %v215, 0.0
    %217 = vadd.xlane.f32.xlu0 %v216
    %v218 = vpop.xlane.xlu0 %217
    %v219 = vmul.f32 %v218, %v212
    %v220 = vadd.f32 %v219, 1e-05
    %v221 = vrsqrt.pop %v220
    %v222 = vmul.f32 %v214, %v221
    %v223 = vld [vmem:[#allocation7] sm:$0x1]
    %v225 = vlaneseq
    %v226 = vshrl.u32 %v225, 7
    %v227 = vsub.s32 0, %v226
    %v228 = vrot.slane %v223, %v227
    %v230 = vmul.f32 %v222, %v228
    %v231 = vld [vmem:[#allocation9] sm:$0x1]
    %v233 = vlaneseq
    %v234 = vshrl.u32 %v233, 7
    %v235 = vsub.s32 0, %v234
    %v236 = vrot.slane %v231, %v235
    %v238 = vadd.f32 %v230, %v236
    %v239 = vld [vmem:[#allocation10] sm:$0xf]
    %v241 = vlaneseq
    %v242 = vshrl.u32 %v241, 7
    %v243 = vsub.s32 0, %v242
    %v244 = vrot.slane %v239, %v243
    %v245 = vlaneseq
    %v246 = vshrl.u32 %v245, 7
    %v247 = vsub.s32 1, %v246
    %v248 = vrot.slane %v239, %v247
    %v249 = vlaneseq
    %v250 = vshrl.u32 %v249, 7
    %v251 = vsub.s32 2, %v250
    %v252 = vrot.slane %v239, %v251
    %v253 = vlaneseq
    %v254 = vshrl.u32 %v253, 7
    %v255 = vsub.s32 3, %v254
    %v256 = vrot.slane %v239, %v255
    %v261 = vld [vmem:[#allocation13] sm:$0xf]
    %v263 = vlaneseq
    %v264 = vshrl.u32 %v263, 7
    %v265 = vsub.s32 0, %v264
    %v266 = vrot.slane %v261, %v265
    %v267 = vlaneseq
    %v268 = vshrl.u32 %v267, 7
    %v269 = vsub.s32 1, %v268
    %v270 = vrot.slane %v261, %v269
    %v271 = vlaneseq
    %v272 = vshrl.u32 %v271, 7
    %v273 = vsub.s32 2, %v272
    %v274 = vrot.slane %v261, %v273
    %v275 = vlaneseq
    %v276 = vshrl.u32 %v275, 7
    %v277 = vsub.s32 3, %v276
    %v278 = vrot.slane %v261, %v277
    %v283 = vld [vmem:[#allocation16] sm:$0xf]
    %v285 = vlaneseq
    %v286 = vshrl.u32 %v285, 7
    %v287 = vsub.s32 0, %v286
    %v288 = vrot.slane %v283, %v287
    %v289 = vlaneseq
    %v290 = vshrl.u32 %v289, 7
    %v291 = vsub.s32 1, %v290
    %v292 = vrot.slane %v283, %v291
    %v293 = vlaneseq
    %v294 = vshrl.u32 %v293, 7
    %v295 = vsub.s32 2, %v294
    %v296 = vrot.slane %v283, %v295
    %v297 = vlaneseq
    %v298 = vshrl.u32 %v297, 7
    %v299 = vsub.s32 3, %v298
    %v300 = vrot.slane %v283, %v299
    %306 = vset.pattern.permute.xlu0 0
    %307 = vperm.xlu0 %306, %v238
    %v308 = vpop.permute.xlu0 %307
    %v310 = vmul.f32 %v308, %v244
    %v311 = vmul.f32 %v308, %v248
    %v312 = vmul.f32 %v308, %v252
    %v313 = vmul.f32 %v308, %v256
    %v314 = vadd.f32 %v310, %v266
    %v315 = vadd.f32 %v311, %v270
    %v316 = vadd.f32 %v312, %v274
    %v317 = vadd.f32 %v313, %v278
    %318 = vst [vmem:[#allocation2] sm:$0xff] %v314
    %319 = vst [vmem:[#allocation2 + $0x8] sm:$0xff] %v315
    %320 = vst [vmem:[#allocation2 + $0x10] sm:$0xff] %v316
    %321 = vst [vmem:[#allocation2 + $0x18] sm:$0xff] %v317
    %322 = vset.pattern.permute.xlu0 1
    %323 = vperm.xlu0 %322, %v238
    %v324 = vpop.permute.xlu0 %323
    %v326 = vmul.f32 %v324, %v244
    %v327 = vmul.f32 %v324, %v248
    %v328 = vmul.f32 %v324, %v252
    %v329 = vmul.f32 %v324, %v256
    %v330 = vadd.f32 %v326, %v266
    %v331 = vadd.f32 %v327, %v270
    %v332 = vadd.f32 %v328, %v274
    %v333 = vadd.f32 %v329, %v278
    %334 = vst [vmem:[#allocation2 + $0x20] sm:$0xff] %v330
    %335 = vst [vmem:[#allocation2 + $0x28] sm:$0xff] %v331
    %336 = vst [vmem:[#allocation2 + $0x30] sm:$0xff] %v332
    %337 = vst [vmem:[#allocation2 + $0x38] sm:$0xff] %v333
    %338 = vset.pattern.permute.xlu0 2
    %339 = vperm.xlu0 %338, %v238
    %v340 = vpop.permute.xlu0 %339
    %v342 = vmul.f32 %v340, %v244
    %v343 = vmul.f32 %v340, %v248
    %v344 = vmul.f32 %v340, %v252
    %v345 = vmul.f32 %v340, %v256
    %v346 = vadd.f32 %v342, %v266
    %v347 = vadd.f32 %v343, %v270
    %v348 = vadd.f32 %v344, %v274
    %v349 = vadd.f32 %v345, %v278
    %350 = vst [vmem:[#allocation2 + $0x40] sm:$0xff] %v346
    %351 = vst [vmem:[#allocation2 + $0x48] sm:$0xff] %v347
    %352 = vst [vmem:[#allocation2 + $0x50] sm:$0xff] %v348
    %353 = vst [vmem:[#allocation2 + $0x58] sm:$0xff] %v349
    %354 = vset.pattern.permute.xlu0 3
    %355 = vperm.xlu0 %354, %v238
    %v356 = vpop.permute.xlu0 %355
    %v358 = vmul.f32 %v356, %v244
    %v359 = vmul.f32 %v356, %v248
    %v360 = vmul.f32 %v356, %v252
    %v361 = vmul.f32 %v356, %v256
    %v362 = vadd.f32 %v358, %v266
    %v363 = vadd.f32 %v359, %v270
    %v364 = vadd.f32 %v360, %v274
    %v365 = vadd.f32 %v361, %v278
    %366 = vst [vmem:[#allocation2 + $0x60] sm:$0xff] %v362
    %367 = vst [vmem:[#allocation2 + $0x68] sm:$0xff] %v363
    %368 = vst [vmem:[#allocation2 + $0x70] sm:$0xff] %v364
    %369 = vst [vmem:[#allocation2 + $0x78] sm:$0xff] %v365
    %370 = vset.pattern.permute.xlu0 4
    %371 = vperm.xlu0 %370, %v238
    %v372 = vpop.permute.xlu0 %371
    %v374 = vmul.f32 %v372, %v244
    %v375 = vmul.f32 %v372, %v248
    %v376 = vmul.f32 %v372, %v252
    %v377 = vmul.f32 %v372, %v256
    %v378 = vadd.f32 %v374, %v266
    %v379 = vadd.f32 %v375, %v270
    %v380 = vadd.f32 %v376, %v274
    %v381 = vadd.f32 %v377, %v278
    %382 = vst [vmem:[#allocation2 + $0x80] sm:$0xff] %v378
    %383 = vst [vmem:[#allocation2 + $0x88] sm:$0xff] %v379
    %384 = vst [vmem:[#allocation2 + $0x90] sm:$0xff] %v380
    %385 = vst [vmem:[#allocation2 + $0x98] sm:$0xff] %v381
    %386 = vset.pattern.permute.xlu0 5
    %387 = vperm.xlu0 %386, %v238
    %v388 = vpop.permute.xlu0 %387
    %v390 = vmul.f32 %v388, %v244
    %v391 = vmul.f32 %v388, %v248
    %v392 = vmul.f32 %v388, %v252
    %v393 = vmul.f32 %v388, %v256
    %v394 = vadd.f32 %v390, %v266
    %v395 = vadd.f32 %v391, %v270
    %v396 = vadd.f32 %v392, %v274
    %v397 = vadd.f32 %v393, %v278
    %398 = vst [vmem:[#allocation2 + $0xa0] sm:$0xff] %v394
    %399 = vst [vmem:[#allocation2 + $0xa8] sm:$0xff] %v395
    %400 = vst [vmem:[#allocation2 + $0xb0] sm:$0xff] %v396
    %401 = vst [vmem:[#allocation2 + $0xb8] sm:$0xff] %v397
    %402 = vset.pattern.permute.xlu0 6
    %403 = vperm.xlu0 %402, %v238
    %v404 = vpop.permute.xlu0 %403
    %v406 = vmul.f32 %v404, %v244
    %v407 = vmul.f32 %v404, %v248
    %v408 = vmul.f32 %v404, %v252
    %v409 = vmul.f32 %v404, %v256
    %v410 = vadd.f32 %v406, %v266
    %v411 = vadd.f32 %v407, %v270
    %v412 = vadd.f32 %v408, %v274
    %v413 = vadd.f32 %v409, %v278
    %414 = vst [vmem:[#allocation2 + $0xc0] sm:$0xff] %v410
    %415 = vst [vmem:[#allocation2 + $0xc8] sm:$0xff] %v411
    %416 = vst [vmem:[#allocation2 + $0xd0] sm:$0xff] %v412
    %417 = vst [vmem:[#allocation2 + $0xd8] sm:$0xff] %v413
    %418 = vset.pattern.permute.xlu0 7
    %419 = vperm.xlu0 %418, %v238
    %v420 = vpop.permute.xlu0 %419
    %v422 = vmul.f32 %v420, %v244
    %v423 = vmul.f32 %v420, %v248
    %v424 = vmul.f32 %v420, %v252
    %v425 = vmul.f32 %v420, %v256
    %v426 = vadd.f32 %v422, %v266
    %v427 = vadd.f32 %v423, %v270
    %v428 = vadd.f32 %v424, %v274
    %v429 = vadd.f32 %v425, %v278
    %430 = vst [vmem:[#allocation2 + $0xe0] sm:$0xff] %v426
    %431 = vst [vmem:[#allocation2 + $0xe8] sm:$0xff] %v427
    %432 = vst [vmem:[#allocation2 + $0xf0] sm:$0xff] %v428
    %433 = vst [vmem:[#allocation2 + $0xf8] sm:$0xff] %v429
    %434 = vset.pattern.permute.xlu0 8
    %435 = vperm.xlu0 %434, %v238
    %v436 = vpop.permute.xlu0 %435
    %v438 = vmul.f32 %v436, %v244
    %v439 = vmul.f32 %v436, %v248
    %v440 = vmul.f32 %v436, %v252
    %v441 = vmul.f32 %v436, %v256
    %v442 = vadd.f32 %v438, %v266
    %v443 = vadd.f32 %v439, %v270
    %v444 = vadd.f32 %v440, %v274
    %v445 = vadd.f32 %v441, %v278
    %446 = vst [vmem:[#allocation2 + $0x100] sm:$0xff] %v442
    %447 = vst [vmem:[#allocation2 + $0x108] sm:$0xff] %v443
    %448 = vst [vmem:[#allocation2 + $0x110] sm:$0xff] %v444
    %449 = vst [vmem:[#allocation2 + $0x118] sm:$0xff] %v445
    %450 = vset.pattern.permute.xlu0 9
    %451 = vperm.xlu0 %450, %v238
    %v452 = vpop.permute.xlu0 %451
    %v454 = vmul.f32 %v452, %v244
    %v455 = vmul.f32 %v452, %v248
    %v456 = vmul.f32 %v452, %v252
    %v457 = vmul.f32 %v452, %v256
    %v458 = vadd.f32 %v454, %v266
    %v459 = vadd.f32 %v455, %v270
    %v460 = vadd.f32 %v456, %v274
    %v461 = vadd.f32 %v457, %v278
    %462 = vst [vmem:[#allocation2 + $0x120] sm:$0xff] %v458
    %463 = vst [vmem:[#allocation2 + $0x128] sm:$0xff] %v459
    %464 = vst [vmem:[#allocation2 + $0x130] sm:$0xff] %v460
    %465 = vst [vmem:[#allocation2 + $0x138] sm:$0xff] %v461
    %466 = vset.pattern.permute.xlu0 10
    %467 = vperm.xlu0 %466, %v238
    %v468 = vpop.permute.xlu0 %467
    %v470 = vmul.f32 %v468, %v244
    %v471 = vmul.f32 %v468, %v248
    %v472 = vmul.f32 %v468, %v252
    %v473 = vmul.f32 %v468, %v256
    %v474 = vadd.f32 %v470, %v266
    %v475 = vadd.f32 %v471, %v270
    %v476 = vadd.f32 %v472, %v274
    %v477 = vadd.f32 %v473, %v278
    %478 = vst [vmem:[#allocation2 + $0x140] sm:$0xff] %v474
    %479 = vst [vmem:[#allocation2 + $0x148] sm:$0xff] %v475
    %480 = vst [vmem:[#allocation2 + $0x150] sm:$0xff] %v476
    %481 = vst [vmem:[#allocation2 + $0x158] sm:$0xff] %v477
    %482 = vset.pattern.permute.xlu0 11
    %483 = vperm.xlu0 %482, %v238
    %v484 = vpop.permute.xlu0 %483
    %v486 = vmul.f32 %v484, %v244
    %v487 = vmul.f32 %v484, %v248
    %v488 = vmul.f32 %v484, %v252
    %v489 = vmul.f32 %v484, %v256
    %v490 = vadd.f32 %v486, %v266
    %v491 = vadd.f32 %v487, %v270
    %v492 = vadd.f32 %v488, %v274
    %v493 = vadd.f32 %v489, %v278
    %494 = vst [vmem:[#allocation2 + $0x160] sm:$0xff] %v490
    %495 = vst [vmem:[#allocation2 + $0x168] sm:$0xff] %v491
    %496 = vst [vmem:[#allocation2 + $0x170] sm:$0xff] %v492
    %497 = vst [vmem:[#allocation2 + $0x178] sm:$0xff] %v493
    %v498 = vld [vmem:[#allocation12] sm:$0xff]
    %v499 = vld [vmem:[#allocation12 + $0x8] sm:$0xff]
    %v500 = vld [vmem:[#allocation12 + $0x10] sm:$0xff]
    %v501 = vld [vmem:[#allocation12 + $0x18] sm:$0xff]
    %v502 = vld [vmem:[#allocation12 + $0x20] sm:$0xff]
    %v503 = vld [vmem:[#allocation12 + $0x28] sm:$0xff]
    %v504 = vld [vmem:[#allocation12 + $0x30] sm:$0xff]
    %v505 = vld [vmem:[#allocation12 + $0x38] sm:$0xff]
    %v506 = vld [vmem:[#allocation12 + $0x40] sm:$0xff]
    %v507 = vld [vmem:[#allocation12 + $0x48] sm:$0xff]
    %v508 = vld [vmem:[#allocation12 + $0x50] sm:$0xff]
    %v509 = vld [vmem:[#allocation12 + $0x58] sm:$0xff]
    %v510 = vld [vmem:[#allocation12 + $0x60] sm:$0xff]
    %v511 = vld [vmem:[#allocation12 + $0x68] sm:$0xff]
    %v512 = vld [vmem:[#allocation12 + $0x70] sm:$0xff]
    %v513 = vld [vmem:[#allocation12 + $0x78] sm:$0xff]
    %v514 = vld [vmem:[#allocation12 + $0x80] sm:$0xff]
    %v515 = vld [vmem:[#allocation12 + $0x88] sm:$0xff]
    %v516 = vld [vmem:[#allocation12 + $0x90] sm:$0xff]
    %v517 = vld [vmem:[#allocation12 + $0x98] sm:$0xff]
    %v518 = vld [vmem:[#allocation12 + $0xa0] sm:$0xff]
    %v519 = vld [vmem:[#allocation12 + $0xa8] sm:$0xff]
    %v520 = vld [vmem:[#allocation12 + $0xb0] sm:$0xff]
    %v521 = vld [vmem:[#allocation12 + $0xb8] sm:$0xff]
    %v522 = vld [vmem:[#allocation12 + $0xc0] sm:$0xff]
    %v523 = vld [vmem:[#allocation12 + $0xc8] sm:$0xff]
    %v524 = vld [vmem:[#allocation12 + $0xd0] sm:$0xff]
    %v525 = vld [vmem:[#allocation12 + $0xd8] sm:$0xff]
    %v526 = vld [vmem:[#allocation12 + $0xe0] sm:$0xff]
    %v527 = vld [vmem:[#allocation12 + $0xe8] sm:$0xff]
    %v528 = vld [vmem:[#allocation12 + $0xf0] sm:$0xff]
    %v529 = vld [vmem:[#allocation12 + $0xf8] sm:$0xff]
    %v530 = vld [vmem:[#allocation2] sm:$0xff]
    %v531 = vld [vmem:[#allocation2 + $0x8] sm:$0xff]
    %v532 = vld [vmem:[#allocation2 + $0x10] sm:$0xff]
    %v533 = vld [vmem:[#allocation2 + $0x18] sm:$0xff]
    %v566 = vunpack.c.l.b16 %v498
    %v567 = vunpack.c.h.b16 %v498
    %v568 = vunpack.c.l.b16 %v499
    %v569 = vunpack.c.h.b16 %v499
    %v570 = vunpack.c.l.b16 %v500
    %v571 = vunpack.c.h.b16 %v500
    %v572 = vunpack.c.l.b16 %v501
    %v573 = vunpack.c.h.b16 %v501
    %v574 = vunpack.c.l.b16 %v502
    %v575 = vunpack.c.h.b16 %v502
    %v576 = vunpack.c.l.b16 %v503
    %v577 = vunpack.c.h.b16 %v503
    %v578 = vunpack.c.l.b16 %v504
    %v579 = vunpack.c.h.b16 %v504
    %v580 = vunpack.c.l.b16 %v505
    %v581 = vunpack.c.h.b16 %v505
    %v582 = vunpack.c.l.b16 %v506
    %v583 = vunpack.c.h.b16 %v506
    %v584 = vunpack.c.l.b16 %v507
    %v585 = vunpack.c.h.b16 %v507
    %v586 = vunpack.c.l.b16 %v508
    %v587 = vunpack.c.h.b16 %v508
    %v588 = vunpack.c.l.b16 %v509
    %v589 = vunpack.c.h.b16 %v509
    %v590 = vunpack.c.l.b16 %v510
    %v591 = vunpack.c.h.b16 %v510
    %v592 = vunpack.c.l.b16 %v511
    %v593 = vunpack.c.h.b16 %v511
    %v594 = vunpack.c.l.b16 %v512
    %v595 = vunpack.c.h.b16 %v512
    %v596 = vunpack.c.l.b16 %v513
    %v597 = vunpack.c.h.b16 %v513
    %v598 = vunpack.c.l.b16 %v514
    %v599 = vunpack.c.h.b16 %v514
    %v600 = vunpack.c.l.b16 %v515
    %v601 = vunpack.c.h.b16 %v515
    %v602 = vunpack.c.l.b16 %v516
    %v603 = vunpack.c.h.b16 %v516
    %v604 = vunpack.c.l.b16 %v517
    %v605 = vunpack.c.h.b16 %v517
    %v606 = vunpack.c.l.b16 %v518
    %v607 = vunpack.c.h.b16 %v518
    %v608 = vunpack.c.l.b16 %v519
    %v609 = vunpack.c.h.b16 %v519
    %v610 = vunpack.c.l.b16 %v520
    %v611 = vunpack.c.h.b16 %v520
    %v612 = vunpack.c.l.b16 %v521
    %v613 = vunpack.c.h.b16 %v521
    %v614 = vunpack.c.l.b16 %v522
    %v615 = vunpack.c.h.b16 %v522
    %v616 = vunpack.c.l.b16 %v523
    %v617 = vunpack.c.h.b16 %v523
    %v618 = vunpack.c.l.b16 %v524
    %v619 = vunpack.c.h.b16 %v524
    %v620 = vunpack.c.l.b16 %v525
    %v621 = vunpack.c.h.b16 %v525
    %v622 = vunpack.c.l.b16 %v526
    %v623 = vunpack.c.h.b16 %v526
    %v624 = vunpack.c.l.b16 %v527
    %v625 = vunpack.c.h.b16 %v527
    %v626 = vunpack.c.l.b16 %v528
    %v627 = vunpack.c.h.b16 %v528
    %v628 = vunpack.c.l.b16 %v529
    %v629 = vunpack.c.h.b16 %v529
    %v630 = vpack.c.b16 %v570, %v566
    %v631 = vpack.c.b16 %v571, %v567
    %v632 = vpack.c.b16 %v572, %v568
    %v633 = vpack.c.b16 %v573, %v569
    %v634 = vpack.c.b16 %v578, %v574
    %v635 = vpack.c.b16 %v579, %v575
    %v636 = vpack.c.b16 %v580, %v576
    %v637 = vpack.c.b16 %v581, %v577
    %v638 = vpack.c.b16 %v586, %v582
    %v639 = vpack.c.b16 %v587, %v583
    %v640 = vpack.c.b16 %v588, %v584
    %v641 = vpack.c.b16 %v589, %v585
    %v642 = vpack.c.b16 %v594, %v590
    %v643 = vpack.c.b16 %v595, %v591
    %v644 = vpack.c.b16 %v596, %v592
    %v645 = vpack.c.b16 %v597, %v593
    %v646 = vpack.c.b16 %v602, %v598
    %v647 = vpack.c.b16 %v603, %v599
    %v648 = vpack.c.b16 %v604, %v600
    %v649 = vpack.c.b16 %v605, %v601
    %v650 = vpack.c.b16 %v610, %v606
    %v651 = vpack.c.b16 %v611, %v607
    %v652 = vpack.c.b16 %v612, %v608
    %v653 = vpack.c.b16 %v613, %v609
    %v654 = vpack.c.b16 %v618, %v614
    %v655 = vpack.c.b16 %v619, %v615
    %v656 = vpack.c.b16 %v620, %v616
    %v657 = vpack.c.b16 %v621, %v617
    %v658 = vpack.c.b16 %v626, %v622
    %v659 = vpack.c.b16 %v627, %v623
    %v660 = vpack.c.b16 %v628, %v624
    %v661 = vpack.c.b16 %v629, %v625
    %694 = vmatprep.subr.bf16.mxu0 %v631
    %695 = vmatpush1.bf16.msra.mxu0 %v630
    %696 = vmatprep.subr.bf16.mxu0 %v635
    %697 = vmatpush1.bf16.msra.mxu0 %v634
    %698 = vmatprep.subr.bf16.mxu0 %v639
    %699 = vmatpush1.bf16.msra.mxu0 %v638
    %700 = vmatprep.subr.bf16.mxu0 %v643
    %701 = vmatpush1.bf16.msra.mxu0 %v642
    %702 = vmatprep.subr.bf16.mxu0 %v647
    %703 = vmatpush1.bf16.msra.mxu0 %v646
    %704 = vmatprep.subr.bf16.mxu0 %v651
    %705 = vmatpush1.bf16.msra.mxu0 %v650
    %706 = vmatprep.subr.bf16.mxu0 %v655
    %707 = vmatpush1.bf16.msra.mxu0 %v654
    %708 = vmatprep.subr.bf16.mxu0 %v659
    %709 = vmatpush1.bf16.msra.mxu0 %v658
    %710 = vmatprep.subr.bf16.mxu0 0
    %711 = vmatpush1.bf16.msra.mxu0 0
    %712 = vmatprep.subr.bf16.mxu0 0
    %713 = vmatpush1.bf16.msra.mxu0 0
    %714 = vmatprep.subr.bf16.mxu0 0
    %715 = vmatpush1.bf16.msra.mxu0 0
    %716 = vmatprep.subr.bf16.mxu0 0
    %717 = vmatpush1.bf16.msra.mxu0 0
    %718 = vmatprep.subr.bf16.mxu0 0
    %719 = vmatpush1.bf16.msra.mxu0 0
    %720 = vmatprep.subr.bf16.mxu0 0
    %721 = vmatpush1.bf16.msra.mxu0 0
    %722 = vmatprep.subr.bf16.mxu0 0
    %723 = vmatpush1.bf16.msra.mxu0 0
    %724 = vmatprep.subr.bf16.mxu0 0
    %725 = vmatpush1.bf16.msra.mxu0 0
    %726 = vmatprep.mubr.bf16.mxu0 0
    %727 = vmatmul.mubr.bf16.gmra.mrb[0].mxu0 0
    %v728 = vpop.f32.mrb[0].mxu0
    %v729 = vadd.f32 %v530, %v728
    %v730 = vpop.f32.mrb[0].mxu0
    %v731 = vadd.f32 %v531, %v730
    %v732 = vpop.f32.mrb[0].mxu0
    %v733 = vpop.f32.mrb[0].mxu0
    %734 = vdwg.mxu0
    %735 = vmatprep.subr.bf16.mxu0 %v633
    %736 = vmatpush1.bf16.msra.mxu0 %v632
    %737 = vmatprep.subr.bf16.mxu0 %v637
    %738 = vmatpush1.bf16.msra.mxu0 %v636
    %739 = vmatprep.subr.bf16.mxu0 %v641
    %740 = vmatpush1.bf16.msra.mxu0 %v640
    %741 = vmatprep.subr.bf16.mxu0 %v645
    %742 = vmatpush1.bf16.msra.mxu0 %v644
    %743 = vmatprep.subr.bf16.mxu0 %v649
    %744 = vmatpush1.bf16.msra.mxu0 %v648
    %745 = vmatprep.subr.bf16.mxu0 %v653
    %746 = vmatpush1.bf16.msra.mxu0 %v652
    %747 = vmatprep.subr.bf16.mxu0 %v657
    %748 = vmatpush1.bf16.msra.mxu0 %v656
    %749 = vmatprep.subr.bf16.mxu0 %v661
    %750 = vmatpush1.bf16.msra.mxu0 %v660
    %751 = vmatprep.subr.bf16.mxu0 0
    %752 = vmatpush1.bf16.msra.mxu0 0
    %753 = vmatprep.subr.bf16.mxu0 0
    %754 = vmatpush1.bf16.msra.mxu0 0
    %755 = vmatprep.subr.bf16.mxu0 0
    %756 = vmatpush1.bf16.msra.mxu0 0
    %757 = vmatprep.subr.bf16.mxu0 0
    %758 = vmatpush1.bf16.msra.mxu0 0
    %759 = vmatprep.subr.bf16.mxu0 0
    %760 = vmatpush1.bf16.msra.mxu0 0
    %761 = vmatprep.subr.bf16.mxu0 0
    %762 = vmatpush1.bf16.msra.mxu0 0
    %763 = vmatprep.subr.bf16.mxu0 0
    %764 = vmatpush1.bf16.msra.mxu0 0
    %765 = vmatprep.subr.bf16.mxu0 0
    %766 = vmatpush1.bf16.msra.mxu0 0
    %767 = vmatprep.mubr.bf16.mxu0 0
    %768 = vmatmul.mubr.bf16.gmra.mrb[0].mxu0 0
    %v769 = vpop.f32.mrb[0].mxu0
    %v770 = vadd.f32 %v532, %v769
    %v771 = vpop.f32.mrb[0].mxu0
    %v772 = vadd.f32 %v533, %v771
    %v773 = vpop.f32.mrb[0].mxu0
    %v774 = vpop.f32.mrb[0].mxu0
    %775 = vdwg.mxu0
    %v776 = vmul.f32 %v729, 0.5
    %v777 = vtanh.pop %v776
    %v778 = vmul.f32 %v777, 0.5
    %v779 = vadd.f32 %v778, 0.5
    %v780 = vmul.f32 %v731, 0.5
    %v781 = vtanh.pop %v780
    %v782 = vmul.f32 %v781, 0.5
    %v783 = vadd.f32 %v782, 0.5
    %v784 = vtanh.pop %v770
    %v785 = vmul.f32 %v772, 0.5
    %v786 = vtanh.pop %v785
    %v787 = vmul.f32 %v786, 0.5
    %v788 = vadd.f32 %v787, 0.5
    %v789 = vmul.f32 %v783, 0.0
    %v790 = vmul.f32 %v779, %v784
    %v791 = vadd.f32 %v789, %v790
    %v792 = vtanh.pop %v791
    %v793 = vmul.f32 %v788, %v792
    %v794 = vpack.c.bf16 %v793, %v793
    %v795 = vpack.c.bf16 0.0, 0.0
    %v796 = vld [vmem:[#allocation15] sm:$0xff]
    %v797 = vld [vmem:[#allocation15 + $0x8] sm:$0xff]
    %v798 = vld [vmem:[#allocation15 + $0x10] sm:$0xff]
    %v799 = vld [vmem:[#allocation15 + $0x18] sm:$0xff]
    %v800 = vld [vmem:[#allocation15 + $0x20] sm:$0xff]
    %v801 = vld [vmem:[#allocation15 + $0x28] sm:$0xff]
    %v802 = vld [vmem:[#allocation15 + $0x30] sm:$0xff]
    %v803 = vld [vmem:[#allocation15 + $0x38] sm:$0xff]
    %v804 = vld [vmem:[#allocation15 + $0x40] sm:$0xff]
    %v805 = vld [vmem:[#allocation15 + $0x48] sm:$0xff]
    %v806 = vld [vmem:[#allocation15 + $0x50] sm:$0xff]
    %v807 = vld [vmem:[#allocation15 + $0x58] sm:$0xff]
    %v808 = vld [vmem:[#allocation15 + $0x60] sm:$0xff]
    %v809 = vld [vmem:[#allocation15 + $0x68] sm:$0xff]
    %v810 = vld [vmem:[#allocation15 + $0x70] sm:$0xff]
    %v811 = vld [vmem:[#allocation15 + $0x78] sm:$0xff]
    %v812 = vld [vmem:[#allocation15 + $0x80] sm:$0xff]
    %v813 = vld [vmem:[#allocation15 + $0x88] sm:$0xff]
    %v814 = vld [vmem:[#allocation15 + $0x90] sm:$0xff]
    %v815 = vld [vmem:[#allocation15 + $0x98] sm:$0xff]
    %v816 = vld [vmem:[#allocation15 + $0xa0] sm:$0xff]
    %v817 = vld [vmem:[#allocation15 + $0xa8] sm:$0xff]
    %v818 = vld [vmem:[#allocation15 + $0xb0] sm:$0xff]
    %v819 = vld [vmem:[#allocation15 + $0xb8] sm:$0xff]
    %v820 = vld [vmem:[#allocation15 + $0xc0] sm:$0xff]
    %v821 = vld [vmem:[#allocation15 + $0xc8] sm:$0xff]
    %v822 = vld [vmem:[#allocation15 + $0xd0] sm:$0xff]
    %v823 = vld [vmem:[#allocation15 + $0xd8] sm:$0xff]
    %v824 = vld [vmem:[#allocation15 + $0xe0] sm:$0xff]
    %v825 = vld [vmem:[#allocation15 + $0xe8] sm:$0xff]
    %v826 = vld [vmem:[#allocation15 + $0xf0] sm:$0xff]
    %v827 = vld [vmem:[#allocation15 + $0xf8] sm:$0xff]
    %v828 = vld [vmem:[#allocation15 + $0x100] sm:$0xff]
    %v829 = vld [vmem:[#allocation15 + $0x108] sm:$0xff]
    %v830 = vld [vmem:[#allocation15 + $0x110] sm:$0xff]
    %v831 = vld [vmem:[#allocation15 + $0x118] sm:$0xff]
    %v832 = vld [vmem:[#allocation15 + $0x120] sm:$0xff]
    %v833 = vld [vmem:[#allocation15 + $0x128] sm:$0xff]
    %v834 = vld [vmem:[#allocation15 + $0x130] sm:$0xff]
    %v835 = vld [vmem:[#allocation15 + $0x138] sm:$0xff]
    %v836 = vld [vmem:[#allocation15 + $0x140] sm:$0xff]
    %v837 = vld [vmem:[#allocation15 + $0x148] sm:$0xff]
    %v838 = vld [vmem:[#allocation15 + $0x150] sm:$0xff]
    %v839 = vld [vmem:[#allocation15 + $0x158] sm:$0xff]
    %v840 = vld [vmem:[#allocation15 + $0x160] sm:$0xff]
    %v841 = vld [vmem:[#allocation15 + $0x168] sm:$0xff]
    %v842 = vld [vmem:[#allocation15 + $0x170] sm:$0xff]
    %v843 = vld [vmem:[#allocation15 + $0x178] sm:$0xff]
    %v844 = vld [vmem:[#allocation15 + $0x180] sm:$0xff]
    %v845 = vld [vmem:[#allocation15 + $0x188] sm:$0xff]
    %v846 = vld [vmem:[#allocation15 + $0x190] sm:$0xff]
    %v847 = vld [vmem:[#allocation15 + $0x198] sm:$0xff]
    %v848 = vld [vmem:[#allocation15 + $0x1a0] sm:$0xff]
    %v849 = vld [vmem:[#allocation15 + $0x1a8] sm:$0xff]
    %v850 = vld [vmem:[#allocation15 + $0x1b0] sm:$0xff]
    %v851 = vld [vmem:[#allocation15 + $0x1b8] sm:$0xff]
    %v852 = vld [vmem:[#allocation15 + $0x1c0] sm:$0xff]
    %v853 = vld [vmem:[#allocation15 + $0x1c8] sm:$0xff]
    %v854 = vld [vmem:[#allocation15 + $0x1d0] sm:$0xff]
    %v855 = vld [vmem:[#allocation15 + $0x1d8] sm:$0xff]
    %v856 = vld [vmem:[#allocation15 + $0x1e0] sm:$0xff]
    %v857 = vld [vmem:[#allocation15 + $0x1e8] sm:$0xff]
    %v858 = vld [vmem:[#allocation15 + $0x1f0] sm:$0xff]
    %v859 = vld [vmem:[#allocation15 + $0x1f8] sm:$0xff]
    %v924 = vunpack.c.l.b16 %v796
    %v925 = vunpack.c.h.b16 %v796
    %v926 = vunpack.c.l.b16 %v797
    %v927 = vunpack.c.h.b16 %v797
    %v928 = vunpack.c.l.b16 %v798
    %v929 = vunpack.c.h.b16 %v798
    %v930 = vunpack.c.l.b16 %v799
    %v931 = vunpack.c.h.b16 %v799
    %v932 = vunpack.c.l.b16 %v800
    %v933 = vunpack.c.h.b16 %v800
    %v934 = vunpack.c.l.b16 %v801
    %v935 = vunpack.c.h.b16 %v801
    %v936 = vunpack.c.l.b16 %v802
    %v937 = vunpack.c.h.b16 %v802
    %v938 = vunpack.c.l.b16 %v803
    %v939 = vunpack.c.h.b16 %v803
    %v940 = vunpack.c.l.b16 %v804
    %v941 = vunpack.c.h.b16 %v804
    %v942 = vunpack.c.l.b16 %v805
    %v943 = vunpack.c.h.b16 %v805
    %v944 = vunpack.c.l.b16 %v806
    %v945 = vunpack.c.h.b16 %v806
    %v946 = vunpack.c.l.b16 %v807
    %v947 = vunpack.c.h.b16 %v807
    %v948 = vunpack.c.l.b16 %v808
    %v949 = vunpack.c.h.b16 %v808
    %v950 = vunpack.c.l.b16 %v809
    %v951 = vunpack.c.h.b16 %v809
    %v952 = vunpack.c.l.b16 %v810
    %v953 = vunpack.c.h.b16 %v810
    %v954 = vunpack.c.l.b16 %v811
    %v955 = vunpack.c.h.b16 %v811
    %v956 = vunpack.c.l.b16 %v812
    %v957 = vunpack.c.h.b16 %v812
    %v958 = vunpack.c.l.b16 %v813
    %v959 = vunpack.c.h.b16 %v813
    %v960 = vunpack.c.l.b16 %v814
    %v961 = vunpack.c.h.b16 %v814
    %v962 = vunpack.c.l.b16 %v815
    %v963 = vunpack.c.h.b16 %v815
    %v964 = vunpack.c.l.b16 %v816
    %v965 = vunpack.c.h.b16 %v816
    %v966 = vunpack.c.l.b16 %v817
    %v967 = vunpack.c.h.b16 %v817
    %v968 = vunpack.c.l.b16 %v818
    %v969 = vunpack.c.h.b16 %v818
    %v970 = vunpack.c.l.b16 %v819
    %v971 = vunpack.c.h.b16 %v819
    %v972 = vunpack.c.l.b16 %v820
    %v973 = vunpack.c.h.b16 %v820
    %v974 = vunpack.c.l.b16 %v821
    %v975 = vunpack.c.h.b16 %v821
    %v976 = vunpack.c.l.b16 %v822
    %v977 = vunpack.c.h.b16 %v822
    %v978 = vunpack.c.l.b16 %v823
    %v979 = vunpack.c.h.b16 %v823
    %v980 = vunpack.c.l.b16 %v824
    %v981 = vunpack.c.h.b16 %v824
    %v982 = vunpack.c.l.b16 %v825
    %v983 = vunpack.c.h.b16 %v825
    %v984 = vunpack.c.l.b16 %v826
    %v985 = vunpack.c.h.b16 %v826
    %v986 = vunpack.c.l.b16 %v827
    %v987 = vunpack.c.h.b16 %v827
    %v988 = vunpack.c.l.b16 %v828
    %v989 = vunpack.c.h.b16 %v828
    %v990 = vunpack.c.l.b16 %v829
    %v991 = vunpack.c.h.b16 %v829
    %v992 = vunpack.c.l.b16 %v830
    %v993 = vunpack.c.h.b16 %v830
    %v994 = vunpack.c.l.b16 %v831
    %v995 = vunpack.c.h.b16 %v831
    %v996 = vunpack.c.l.b16 %v832
    %v997 = vunpack.c.h.b16 %v832
    %v998 = vunpack.c.l.b16 %v833
    %v999 = vunpack.c.h.b16 %v833
    %v1000 = vunpack.c.l.b16 %v834
    %v1001 = vunpack.c.h.b16 %v834
    %v1002 = vunpack.c.l.b16 %v835
    %v1003 = vunpack.c.h.b16 %v835
    %v1004 = vunpack.c.l.b16 %v836
    %v1005 = vunpack.c.h.b16 %v836
    %v1006 = vunpack.c.l.b16 %v837
    %v1007 = vunpack.c.h.b16 %v837
    %v1008 = vunpack.c.l.b16 %v838
    %v1009 = vunpack.c.h.b16 %v838
    %v1010 = vunpack.c.l.b16 %v839
    %v1011 = vunpack.c.h.b16 %v839
    %v1012 = vunpack.c.l.b16 %v840
    %v1013 = vunpack.c.h.b16 %v840
    %v1014 = vunpack.c.l.b16 %v841
    %v1015 = vunpack.c.h.b16 %v841
    %v1016 = vunpack.c.l.b16 %v842
    %v1017 = vunpack.c.h.b16 %v842
    %v1018 = vunpack.c.l.b16 %v843
    %v1019 = vunpack.c.h.b16 %v843
    %v1020 = vunpack.c.l.b16 %v844
    %v1021 = vunpack.c.h.b16 %v844
    %v1022 = vunpack.c.l.b16 %v845
    %v1023 = vunpack.c.h.b16 %v845
    %v1024 = vunpack.c.l.b16 %v846
    %v1025 = vunpack.c.h.b16 %v846
    %v1026 = vunpack.c.l.b16 %v847
    %v1027 = vunpack.c.h.b16 %v847
    %v1028 = vunpack.c.l.b16 %v848
    %v1029 = vunpack.c.h.b16 %v848
    %v1030 = vunpack.c.l.b16 %v849
    %v1031 = vunpack.c.h.b16 %v849
    %v1032 = vunpack.c.l.b16 %v850
    %v1033 = vunpack.c.h.b16 %v850
    %v1034 = vunpack.c.l.b16 %v851
    %v1035 = vunpack.c.h.b16 %v851
    %v1036 = vunpack.c.l.b16 %v852
    %v1037 = vunpack.c.h.b16 %v852
    %v1038 = vunpack.c.l.b16 %v853
    %v1039 = vunpack.c.h.b16 %v853
    %v1040 = vunpack.c.l.b16 %v854
    %v1041 = vunpack.c.h.b16 %v854
    %v1042 = vunpack.c.l.b16 %v855
    %v1043 = vunpack.c.h.b16 %v855
    %v1044 = vunpack.c.l.b16 %v856
    %v1045 = vunpack.c.h.b16 %v856
    %v1046 = vunpack.c.l.b16 %v857
    %v1047 = vunpack.c.h.b16 %v857
    %v1048 = vunpack.c.l.b16 %v858
    %v1049 = vunpack.c.h.b16 %v858
    %v1050 = vunpack.c.l.b16 %v859
    %v1051 = vunpack.c.h.b16 %v859
    %v1052 = vpack.c.b16 %v928, %v924
    %v1053 = vpack.c.b16 %v929, %v925
    %v1054 = vpack.c.b16 %v930, %v926
    %v1055 = vpack.c.b16 %v931, %v927
    %v1056 = vpack.c.b16 %v936, %v932
    %v1057 = vpack.c.b16 %v937, %v933
    %v1058 = vpack.c.b16 %v938, %v934
    %v1059 = vpack.c.b16 %v939, %v935
    %v1060 = vpack.c.b16 %v944, %v940
    %v1061 = vpack.c.b16 %v945, %v941
    %v1062 = vpack.c.b16 %v946, %v942
    %v1063 = vpack.c.b16 %v947, %v943
    %v1064 = vpack.c.b16 %v952, %v948
    %v1065 = vpack.c.b16 %v953, %v949
    %v1066 = vpack.c.b16 %v954, %v950
    %v1067 = vpack.c.b16 %v955, %v951
    %v1068 = vpack.c.b16 %v960, %v956
    %v1069 = vpack.c.b16 %v961, %v957
    %v1070 = vpack.c.b16 %v962, %v958
    %v1071 = vpack.c.b16 %v963, %v959
    %v1072 = vpack.c.b16 %v968, %v964
    %v1073 = vpack.c.b16 %v969, %v965
    %v1074 = vpack.c.b16 %v970, %v966
    %v1075 = vpack.c.b16 %v971, %v967
    %v1076 = vpack.c.b16 %v976, %v972
    %v1077 = vpack.c.b16 %v977, %v973
    %v1078 = vpack.c.b16 %v978, %v974
    %v1079 = vpack.c.b16 %v979, %v975
    %v1080 = vpack.c.b16 %v984, %v980
    %v1081 = vpack.c.b16 %v985, %v981
    %v1082 = vpack.c.b16 %v986, %v982
    %v1083 = vpack.c.b16 %v987, %v983
    %v1084 = vpack.c.b16 %v992, %v988
    %v1085 = vpack.c.b16 %v993, %v989
    %v1086 = vpack.c.b16 %v994, %v990
    %v1087 = vpack.c.b16 %v995, %v991
    %v1088 = vpack.c.b16 %v1000, %v996
    %v1089 = vpack.c.b16 %v1001, %v997
    %v1090 = vpack.c.b16 %v1002, %v998
    %v1091 = vpack.c.b16 %v1003, %v999
    %v1092 = vpack.c.b16 %v1008, %v1004
    %v1093 = vpack.c.b16 %v1009, %v1005
    %v1094 = vpack.c.b16 %v1010, %v1006
    %v1095 = vpack.c.b16 %v1011, %v1007
    %v1096 = vpack.c.b16 %v1016, %v1012
    %v1097 = vpack.c.b16 %v1017, %v1013
    %v1098 = vpack.c.b16 %v1018, %v1014
    %v1099 = vpack.c.b16 %v1019, %v1015
    %v1100 = vpack.c.b16 %v1024, %v1020
    %v1101 = vpack.c.b16 %v1025, %v1021
    %v1102 = vpack.c.b16 %v1026, %v1022
    %v1103 = vpack.c.b16 %v1027, %v1023
    %v1104 = vpack.c.b16 %v1032, %v1028
    %v1105 = vpack.c.b16 %v1033, %v1029
    %v1106 = vpack.c.b16 %v1034, %v1030
    %v1107 = vpack.c.b16 %v1035, %v1031
    %v1108 = vpack.c.b16 %v1040, %v1036
    %v1109 = vpack.c.b16 %v1041, %v1037
    %v1110 = vpack.c.b16 %v1042, %v1038
    %v1111 = vpack.c.b16 %v1043, %v1039
    %v1112 = vpack.c.b16 %v1048, %v1044
    %v1113 = vpack.c.b16 %v1049, %v1045
    %v1114 = vpack.c.b16 %v1050, %v1046
    %v1115 = vpack.c.b16 %v1051, %v1047
    %1180 = vmatprep.subr.bf16.mxu0 %v1053
    %1181 = vmatpush1.bf16.msra.mxu0 %v1052
    %1182 = vmatprep.subr.bf16.mxu0 %v1057
    %1183 = vmatpush1.bf16.msra.mxu0 %v1056
    %1184 = vmatprep.subr.bf16.mxu0 %v1061
    %1185 = vmatpush1.bf16.msra.mxu0 %v1060
    %1186 = vmatprep.subr.bf16.mxu0 %v1065
    %1187 = vmatpush1.bf16.msra.mxu0 %v1064
    %1188 = vmatprep.subr.bf16.mxu0 %v1069
    %1189 = vmatpush1.bf16.msra.mxu0 %v1068
    %1190 = vmatprep.subr.bf16.mxu0 %v1073
    %1191 = vmatpush1.bf16.msra.mxu0 %v1072
    %1192 = vmatprep.subr.bf16.mxu0 %v1077
    %1193 = vmatpush1.bf16.msra.mxu0 %v1076
    %1194 = vmatprep.subr.bf16.mxu0 %v1081
    %1195 = vmatpush1.bf16.msra.mxu0 %v1080
    %1196 = vmatprep.subr.bf16.mxu0 %v1085
    %1197 = vmatpush1.bf16.msra.mxu0 %v1084
    %1198 = vmatprep.subr.bf16.mxu0 %v1089
    %1199 = vmatpush1.bf16.msra.mxu0 %v1088
    %1200 = vmatprep.subr.bf16.mxu0 %v1093
    %1201 = vmatpush1.bf16.msra.mxu0 %v1092
    %1202 = vmatprep.subr.bf16.mxu0 %v1097
    %1203 = vmatpush1.bf16.msra.mxu0 %v1096
    %1204 = vmatprep.subr.bf16.mxu0 %v1101
    %1205 = vmatpush1.bf16.msra.mxu0 %v1100
    %1206 = vmatprep.subr.bf16.mxu0 %v1105
    %1207 = vmatpush1.bf16.msra.mxu0 %v1104
    %1208 = vmatprep.subr.bf16.mxu0 %v1109
    %1209 = vmatpush1.bf16.msra.mxu0 %v1108
    %1210 = vmatprep.subr.bf16.mxu0 %v1113
    %1211 = vmatpush1.bf16.msra.mxu0 %v1112
    %1212 = vmatprep.mubr.bf16.mxu0 %v795
    %1213 = vmatmul.mubr.bf16.gmra.mrb[0].mxu0 %v794
    %v1214 = vpop.f32.mrb[0].mxu0
    %v1215 = vadd.f32 %v288, %v1214
    %v1216 = vpop.f32.mrb[0].mxu0
    %v1217 = vadd.f32 %v292, %v1216
    %v1218 = vpop.f32.mrb[0].mxu0
    %v1219 = vpop.f32.mrb[0].mxu0
    %1220 = vdwg.mxu0
    %1221 = vmatprep.subr.bf16.mxu0 %v1055
    %1222 = vmatpush1.bf16.msra.mxu0 %v1054
    %1223 = vmatprep.subr.bf16.mxu0 %v1059
    %1224 = vmatpush1.bf16.msra.mxu0 %v1058
    %1225 = vmatprep.subr.bf16.mxu0 %v1063
    %1226 = vmatpush1.bf16.msra.mxu0 %v1062
    %1227 = vmatprep.subr.bf16.mxu0 %v1067
    %1228 = vmatpush1.bf16.msra.mxu0 %v1066
    %1229 = vmatprep.subr.bf16.mxu0 %v1071
    %1230 = vmatpush1.bf16.msra.mxu0 %v1070
    %1231 = vmatprep.subr.bf16.mxu0 %v1075
    %1232 = vmatpush1.bf16.msra.mxu0 %v1074
    %1233 = vmatprep.subr.bf16.mxu0 %v1079
    %1234 = vmatpush1.bf16.msra.mxu0 %v1078
    %1235 = vmatprep.subr.bf16.mxu0 %v1083
    %1236 = vmatpush1.bf16.msra.mxu0 %v1082
    %1237 = vmatprep.subr.bf16.mxu0 %v1087
    %1238 = vmatpush1.bf16.msra.mxu0 %v1086
    %1239 = vmatprep.subr.bf16.mxu0 %v1091
    %1240 = vmatpush1.bf16.msra.mxu0 %v1090
    %1241 = vmatprep.subr.bf16.mxu0 %v1095
    %1242 = vmatpush1.bf16.msra.mxu0 %v1094
    %1243 = vmatprep.subr.bf16.mxu0 %v1099
    %1244 = vmatpush1.bf16.msra.mxu0 %v1098
    %1245 = vmatprep.subr.bf16.mxu0 %v1103
    %1246 = vmatpush1.bf16.msra.mxu0 %v1102
    %1247 = vmatprep.subr.bf16.mxu0 %v1107
    %1248 = vmatpush1.bf16.msra.mxu0 %v1106
    %1249 = vmatprep.subr.bf16.mxu0 %v1111
    %1250 = vmatpush1.bf16.msra.mxu0 %v1110
    %1251 = vmatprep.subr.bf16.mxu0 %v1115
    %1252 = vmatpush1.bf16.msra.mxu0 %v1114
    %1253 = vmatprep.mubr.bf16.mxu0 %v795
    %1254 = vmatmul.mubr.bf16.gmra.mrb[0].mxu0 %v794
    %v1255 = vpop.f32.mrb[0].mxu0
    %v1256 = vadd.f32 %v296, %v1255
    %v1257 = vpop.f32.mrb[0].mxu0
    %v1258 = vadd.f32 %v300, %v1257
    %v1259 = vpop.f32.mrb[0].mxu0
    %v1260 = vpop.f32.mrb[0].mxu0
    %1261 = vdwg.mxu0
    %v1262 = vmul.f32 %v1215, 0.5
    %v1263 = vtanh.pop %v1262
    %v1264 = vmul.f32 %v1263, 0.5
    %v1265 = vadd.f32 %v1264, 0.5
    %v1266 = vmul.f32 %v1217, 0.5
    %v1267 = vtanh.pop %v1266
    %v1268 = vmul.f32 %v1267, 0.5
    %v1269 = vadd.f32 %v1268, 0.5
    %v1270 = vtanh.pop %v1256
    %v1271 = vmul.f32 %v1258, 0.5
    %v1272 = vtanh.pop %v1271
    %v1273 = vmul.f32 %v1272, 0.5
    %v1274 = vadd.f32 %v1273, 0.5
    %v1275 = vmul.f32 %v1269, 0.0
    %v1276 = vmul.f32 %v1265, %v1270
    %v1277 = vadd.f32 %v1275, %v1276
    %v1278 = vtanh.pop %v1277
    %v1279 = vmul.f32 %v1274, %v1278
    %v1280 = vpack.c.bf16 %v1279, %v1279
    %v1281 = vld [vmem:[#allocation18] sm:$0xf]
    %v1282 = vld [vmem:[#allocation18 + $0x4] sm:$0xf]
    %v1283 = vld [vmem:[#allocation18 + $0x8] sm:$0xf]
    %v1284 = vld [vmem:[#allocation18 + $0xc] sm:$0xf]
    %v1285 = vld [vmem:[#allocation18 + $0x10] sm:$0xf]
    %v1286 = vld [vmem:[#allocation18 + $0x14] sm:$0xf]
    %v1287 = vld [vmem:[#allocation18 + $0x18] sm:$0xf]
    %v1288 = vld [vmem:[#allocation18 + $0x1c] sm:$0xf]
    %v1289 = vld [vmem:[#allocation18 + $0x20] sm:$0xf]
    %v1290 = vld [vmem:[#allocation18 + $0x24] sm:$0xf]
    %v1291 = vld [vmem:[#allocation18 + $0x28] sm:$0xf]
    %v1292 = vld [vmem:[#allocation18 + $0x2c] sm:$0xf]
    %v1293 = vld [vmem:[#allocation18 + $0x30] sm:$0xf]
    %v1294 = vld [vmem:[#allocation18 + $0x34] sm:$0xf]
    %v1295 = vld [vmem:[#allocation18 + $0x38] sm:$0xf]
    %v1296 = vld [vmem:[#allocation18 + $0x3c] sm:$0xf]
    %v1297 = vld [vmem:[#allocation2 + $0x20] sm:$0xff]
    %v1298 = vld [vmem:[#allocation2 + $0x28] sm:$0xff]
    %v1299 = vld [vmem:[#allocation2 + $0x30] sm:$0xff]
    %v1300 = vld [vmem:[#allocation2 + $0x38] sm:$0xff]
    %1301 = vmatprep.subr.bf16.mxu0 %v631
    %1302 = vmatpush1.bf16.msra.mxu0 %v630
    %1303 = vmatprep.subr.bf16.mxu0 %v635
    %1304 = vmatpush1.bf16.msra.mxu0 %v634
    %1305 = vmatprep.subr.bf16.mxu0 %v639
    %1306 = vmatpush1.bf16.msra.mxu0 %v638
    %1307 = vmatprep.subr.bf16.mxu0 %v643
    %1308 = vmatpush1.bf16.msra.mxu0 %v642
    %1309 = vmatprep.subr.bf16.mxu0 %v647
    %1310 = vmatpush1.bf16.msra.mxu0 %v646
    %1311 = vmatprep.subr.bf16.mxu0 %v651
    %1312 = vmatpush1.bf16.msra.mxu0 %v650
    %1313 = vmatprep.subr.bf16.mxu0 %v655
    %1314 = vmatpush1.bf16.msra.mxu0 %v654
    %1315 = vmatprep.subr.bf16.mxu0 %v659
    %1316 = vmatpush1.bf16.msra.mxu0 %v658
    %1317 = vmatprep.subr.bf16.mxu0 0
    %1318 = vmatpush1.bf16.msra.mxu0 0
    %1319 = vmatprep.subr.bf16.mxu0 0
    %1320 = vmatpush1.bf16.msra.mxu0 0
    %1321 = vmatprep.subr.bf16.mxu0 0
    %1322 = vmatpush1.bf16.msra.mxu0 0
    %1323 = vmatprep.subr.bf16.mxu0 0
    %1324 = vmatpush1.bf16.msra.mxu0 0
    %1325 = vmatprep.subr.bf16.mxu0 0
    %1326 = vmatpush1.bf16.msra.mxu0 0
    %1327 = vmatprep.subr.bf16.mxu0 0
    %1328 = vmatpush1.bf16.msra.mxu0 0
    %1329 = vmatprep.subr.bf16.mxu0 0
    %1330 = vmatpush1.bf16.msra.mxu0 0
    %1331 = vmatprep.subr.bf16.mxu0 0
    %1332 = vmatpush1.bf16.msra.mxu0 0
    %1333 = vmatprep.mubr.bf16.mxu0 0
    %1334 = vmatmul.mubr.bf16.gmra.mrb[0].mxu0 %v794
    %v1335 = vpop.f32.mrb[0].mxu0
    %v1336 = vadd.f32 %v1297, %v1335
    %v1337 = vpop.f32.mrb[0].mxu0
    %v1338 = vadd.f32 %v1298, %v1337
    %v1339 = vpop.f32.mrb[0].mxu0
    %v1340 = vpop.f32.mrb[0].mxu0
    %1341 = vdwg.mxu0
    %1342 = vmatprep.subr.bf16.mxu0 %v633
    %1343 = vmatpush1.bf16.msra.mxu0 %v632
    %1344 = vmatprep.subr.bf16.mxu0 %v637
    %1345 = vmatpush1.bf16.msra.mxu0 %v636
    %1346 = vmatprep.subr.bf16.mxu0 %v641
    %1347 = vmatpush1.bf16.msra.mxu0 %v640
    %1348 = vmatprep.subr.bf16.mxu0 %v645
    %1349 = vmatpush1.bf16.msra.mxu0 %v644
    %1350 = vmatprep.subr.bf16.mxu0 %v649
    %1351 = vmatpush1.bf16.msra.mxu0 %v648
    %1352 = vmatprep.subr.bf16.mxu0 %v653
    %1353 = vmatpush1.bf16.msra.mxu0 %v652
    %1354 = vmatprep.subr.bf16.mxu0 %v657
    %1355 = vmatpush1.bf16.msra.mxu0 %v656
    %1356 = vmatprep.subr.bf16.mxu0 %v661
    %1357 = vmatpush1.bf16.msra.mxu0 %v660
    %1358 = vmatprep.subr.bf16.mxu0 0
    %1359 = vmatpush1.bf16.msra.mxu0 0
    %1360 = vmatprep.subr.bf16.mxu0 0
    %1361 = vmatpush1.bf16.msra.mxu0 0
    %1362 = vmatprep.subr.bf16.mxu0 0
    %1363 = vmatpush1.bf16.msra.mxu0 0
    %1364 = vmatprep.subr.bf16.mxu0 0
    %1365 = vmatpush1.bf16.msra.mxu0 0
    %1366 = vmatprep.subr.bf16.mxu0 0
    %1367 = vmatpush1.bf16.msra.mxu0 0
    %1368 = vmatprep.subr.bf16.mxu0 0
    %1369 = vmatpush1.bf16.msra.mxu0 0
    %1370 = vmatprep.subr.bf16.mxu0 0
    %1371 = vmatpush1.bf16.msra.mxu0 0
    %1372 = vmatprep.subr.bf16.mxu0 0
    %1373 = vmatpush1.bf16.msra.mxu0 0
    %1374 = vmatprep.mubr.bf16.mxu0 0
    %1375 = vmatmul.mubr.bf16.gmra.mrb[0].mxu0 %v794
    %v1376 = vpop.f32.mrb[0].mxu0
    %v1377 = vadd.f32 %v1299, %v1376
    %v1378 = vpop.f32.mrb[0].mxu0
    %v1379 = vadd.f32 %v1300, %v1378
    %v1380 = vpop.f32.mrb[0].mxu0
    %v1381 = vpop.f32.mrb[0].mxu0
    %1382 = vdwg.mxu0
    %v1383 = vmul.f32 %v1336, 0.5
    %v1384 = vtanh.pop %v1383
    %v1385 = vmul.f32 %v1384, 0.5
    %v1386 = vadd.f32 %v1385, 0.5
    %v1387 = vmul.f32 %v1338, 0.5
    %v1388 = vtanh.pop %v1387
    %v1389 = vmul.f32 %v1388, 0.5
    %v1390 = vadd.f32 %v1389, 0.5
    %v1391 = vtanh.pop %v1377
    %v1392 = vmul.f32 %v1379, 0.5
    %v1393 = vtanh.pop %v1392
    %v1394 = vmul.f32 %v1393, 0.5
    %v1395 = vadd.f32 %v1394, 0.5
    %v1396 = vmul.f32 %v1390, %v791
    %v1397 = vmul.f32 %v1386, %v1391
    %v1398 = vadd.f32 %v1396, %v1397
    %v1399 = vtanh.pop %v1398
    %v1400 = vmul.f32 %v1395, %v1399
    %v1401 = vpack.c.bf16 %v1400, %v1400
    %1402 = vmatprep.subr.bf16.mxu0 %v1053
    %1403 = vmatpush1.bf16.msra.mxu0 %v1052
    %1404 = vmatprep.subr.bf16.mxu0 %v1057
    %1405 = vmatpush1.bf16.msra.mxu0 %v1056
    %1406 = vmatprep.subr.bf16.mxu0 %v1061
    %1407 = vmatpush1.bf16.msra.mxu0 %v1060
    %1408 = vmatprep.subr.bf16.mxu0 %v1065
    %1409 = vmatpush1.bf16.msra.mxu0 %v1064
    %1410 = vmatprep.subr.bf16.mxu0 %v1069
    %1411 = vmatpush1.bf16.msra.mxu0 %v1068
    %1412 = vmatprep.subr.bf16.mxu0 %v1073
    %1413 = vmatpush1.bf16.msra.mxu0 %v1072
    %1414 = vmatprep.subr.bf16.mxu0 %v1077
    %1415 = vmatpush1.bf16.msra.mxu0 %v1076
    %1416 = vmatprep.subr.bf16.mxu0 %v1081
    %1417 = vmatpush1.bf16.msra.mxu0 %v1080
    %1418 = vmatprep.subr.bf16.mxu0 %v1085
    %1419 = vmatpush1.bf16.msra.mxu0 %v1084
    %1420 = vmatprep.subr.bf16.mxu0 %v1089
    %1421 = vmatpush1.bf16.msra.mxu0 %v1088
    %1422 = vmatprep.subr.bf16.mxu0 %v1093
    %1423 = vmatpush1.bf16.msra.mxu0 %v1092
    %1424 = vmatprep.subr.bf16.mxu0 %v1097
    %1425 = vmatpush1.bf16.msra.mxu0 %v1096
    %1426 = vmatprep.subr.bf16.mxu0 %v1101
    %1427 = vmatpush1.bf16.msra.mxu0 %v1100
    %1428 = vmatprep.subr.bf16.mxu0 %v1105
    %1429 = vmatpush1.bf16.msra.mxu0 %v1104
    %1430 = vmatprep.subr.bf16.mxu0 %v1109
    %1431 = vmatpush1.bf16.msra.mxu0 %v1108
    %1432 = vmatprep.subr.bf16.mxu0 %v1113
    %1433 = vmatpush1.bf16.msra.mxu0 %v1112
    %1434 = vmatprep.mubr.bf16.mxu0 %v1280
    %1435 = vmatmul.mubr.bf16.gmra.mrb[0].mxu0 %v1401
    %v1436 = vpop.f32.mrb[0].mxu0
    %v1437 = vadd.f32 %v288, %v1436
    %v1438 = vpop.f32.mrb[0].mxu0
    %v1439 = vadd.f32 %v292, %v1438
    %v1440 = vpop.f32.mrb[0].mxu0
    %v1441 = vpop.f32.mrb[0].mxu0
    %1442 = vdwg.mxu0
    %1443 = vmatprep.subr.bf16.mxu0 %v1055
    %1444 = vmatpush1.bf16.msra.mxu0 %v1054
    %1445 = vmatprep.subr.bf16.mxu0 %v1059
    %1446 = vmatpush1.bf16.msra.mxu0 %v1058
    %1447 = vmatprep.subr.bf16.mxu0 %v1063
    %1448 = vmatpush1.bf16.msra.mxu0 %v1062
    %1449 = vmatprep.subr.bf16.mxu0 %v1067
    %1450 = vmatpush1.bf16.msra.mxu0 %v1066
    %1451 = vmatprep.subr.bf16.mxu0 %v1071
    %1452 = vmatpush1.bf16.msra.mxu0 %v1070
    %1453 = vmatprep.subr.bf16.mxu0 %v1075
    %1454 = vmatpush1.bf16.msra.mxu0 %v1074
    %1455 = vmatprep.subr.bf16.mxu0 %v1079
    %1456 = vmatpush1.bf16.msra.mxu0 %v1078
    %1457 = vmatprep.subr.bf16.mxu0 %v1083
    %1458 = vmatpush1.bf16.msra.mxu0 %v1082
    %1459 = vmatprep.subr.bf16.mxu0 %v1087
    %1460 = vmatpush1.bf16.msra.mxu0 %v1086
    %1461 = vmatprep.subr.bf16.mxu0 %v1091
    %1462 = vmatpush1.bf16.msra.mxu0 %v1090
    %1463 = vmatprep.subr.bf16.mxu0 %v1095
    %1464 = vmatpush1.bf16.msra.mxu0 %v1094
    %1465 = vmatprep.subr.bf16.mxu0 %v1099
    %1466 = vmatpush1.bf16.msra.mxu0 %v1098
    %1467 = vmatprep.subr.bf16.mxu0 %v1103
    %1468 = vmatpush1.bf16.msra.mxu0 %v1102
    %1469 = vmatprep.subr.bf16.mxu0 %v1107
    %1470 = vmatpush1.bf16.msra.mxu0 %v1106
    %1471 = vmatprep.subr.bf16.mxu0 %v1111
    %1472 = vmatpush1.bf16.msra.mxu0 %v1110
    %1473 = vmatprep.subr.bf16.mxu0 %v1115
    %1474 = vmatpush1.bf16.msra.mxu0 %v1114
    %1475 = vmatprep.mubr.bf16.mxu0 %v1280
    %1476 = vmatmul.mubr.bf16.gmra.mrb[0].mxu0 %v1401
    %v1477 = vpop.f32.mrb[0].mxu0
    %v1478 = vadd.f32 %v296, %v1477
    %v1479 = vpop.f32.mrb[0].mxu0
    %v1480 = vadd.f32 %v300, %v1479
    %v1481 = vpop.f32.mrb[0].mxu0
    %v1482 = vpop.f32.mrb[0].mxu0
    %1483 = vdwg.mxu0
    %v1484 = vmul.f32 %v1437, 0.5
    %v1485 = vtanh.pop %v1484
    %v1486 = vmul.f32 %v1485, 0.5
    %v1487 = vadd.f32 %v1486, 0.5
    %v1488 = vmul.f32 %v1439, 0.5
    %v1489 = vtanh.pop %v1488
    %v1490 = vmul.f32 %v1489, 0.5
    %v1491 = vadd.f32 %v1490, 0.5
    %v1492 = vtanh.pop %v1478
    %v1493 = vmul.f32 %v1480, 0.5
    %v1494 = vtanh.pop %v1493
    %v1495 = vmul.f32 %v1494, 0.5
    %v1496 = vadd.f32 %v1495, 0.5
    %v1497 = vmul.f32 %v1491, %v1277
    %v1498 = vmul.f32 %v1487, %v1492
    %v1499 = vadd.f32 %v1497, %v1498
    %v1500 = vtanh.pop %v1499
    %v1501 = vmul.f32 %v1496, %v1500
    %v1502 = vpack.c.bf16 %v1501, %v1501
    %v1503 = vld [vmem:[#allocation18 + $0x40] sm:$0xf]
    %v1504 = vld [vmem:[#allocation18 + $0x44] sm:$0xf]
    %v1505 = vld [vmem:[#allocation18 + $0x48] sm:$0xf]
    %v1506 = vld [vmem:[#allocation18 + $0x4c] sm:$0xf]
    %v1507 = vld [vmem:[#allocation18 + $0x50] sm:$0xf]
    %v1508 = vld [vmem:[#allocation18 + $0x54] sm:$0xf]
    %v1509 = vld [vmem:[#allocation18 + $0x58] sm:$0xf]
    %v1510 = vld [vmem:[#allocation18 + $0x5c] sm:$0xf]
    %v1511 = vld [vmem:[#allocation18 + $0x60] sm:$0xf]
    %v1512 = vld [vmem:[#allocation18 + $0x64] sm:$0xf]
    %v1513 = vld [vmem:[#allocation18 + $0x68] sm:$0xf]
    %v1514 = vld [vmem:[#allocation18 + $0x6c] sm:$0xf]
    %v1515 = vld [vmem:[#allocation18 + $0x70] sm:$0xf]
    %v1516 = vld [vmem:[#allocation18 + $0x74] sm:$0xf]
    %v1517 = vld [vmem:[#allocation18 + $0x78] sm:$0xf]
    %v1518 = vld [vmem:[#allocation18 + $0x7c] sm:$0xf]
    %v1535 = vunpack.c.l.b16 %v1503
    %v1536 = vunpack.c.l.b16 %v1504
    %v1537 = vunpack.c.l.b16 %v1505
    %v1538 = vunpack.c.l.b16 %v1506
    %v1539 = vunpack.c.l.b16 %v1507
    %v1540 = vunpack.c.l.b16 %v1508
    %v1541 = vunpack.c.l.b16 %v1509
    %v1542 = vunpack.c.l.b16 %v1510
    %v1543 = vunpack.c.l.b16 %v1511
    %v1544 = vunpack.c.l.b16 %v1512
    %v1545 = vunpack.c.l.b16 %v1513
    %v1546 = vunpack.c.l.b16 %v1514
    %v1547 = vunpack.c.l.b16 %v1515
    %v1548 = vunpack.c.l.b16 %v1516
    %v1549 = vunpack.c.l.b16 %v1517
    %v1550 = vunpack.c.l.b16 %v1518
    %v1551 = vpack.c.b16 %v1536, %v1535
    %v1552 = vpack.c.b16 %v1538, %v1537
    %v1553 = vpack.c.b16 %v1540, %v1539
    %v1554 = vpack.c.b16 %v1542, %v1541
    %v1555 = vpack.c.b16 %v1544, %v1543
    %v1556 = vpack.c.b16 %v1546, %v1545
    %v1557 = vpack.c.b16 %v1548, %v1547
    %v1558 = vpack.c.b16 %v1550, %v1549
    %1567 = vmatprep.subr.bf16.mxu0 0
    %1568 = vmatpush1.bf16.msra.mxu0 %v1551
    %1569 = vmatprep.subr.bf16.mxu0 0
    %1570 = vmatpush1.bf16.msra.mxu0 %v1552
    %1571 = vmatprep.subr.bf16.mxu0 0
    %1572 = vmatpush1.bf16.msra.mxu0 %v1553
    %1573 = vmatprep.subr.bf16.mxu0 0
    %1574 = vmatpush1.bf16.msra.mxu0 %v1554
    %1575 = vmatprep.subr.bf16.mxu0 0
    %1576 = vmatpush1.bf16.msra.mxu0 %v1555
    %1577 = vmatprep.subr.bf16.mxu0 0
    %1578 = vmatpush1.bf16.msra.mxu0 %v1556
    %1579 = vmatprep.subr.bf16.mxu0 0
    %1580 = vmatpush1.bf16.msra.mxu0 %v1557
    %1581 = vmatprep.subr.bf16.mxu0 0
    %1582 = vmatpush1.bf16.msra.mxu0 %v1558
    %1583 = vmatprep.subr.bf16.mxu0 0
    %1584 = vmatpush1.bf16.msra.mxu0 0
    %1585 = vmatprep.subr.bf16.mxu0 0
    %1586 = vmatpush1.bf16.msra.mxu0 0
    %1587 = vmatprep.subr.bf16.mxu0 0
    %1588 = vmatpush1.bf16.msra.mxu0 0
    %1589 = vmatprep.subr.bf16.mxu0 0
    %1590 = vmatpush1.bf16.msra.mxu0 0
    %1591 = vmatprep.subr.bf16.mxu0 0
    %1592 = vmatpush1.bf16.msra.mxu0 0
    %1593 = vmatprep.subr.bf16.mxu0 0
    %1594 = vmatpush1.bf16.msra.mxu0 0
    %1595 = vmatprep.subr.bf16.mxu0 0
    %1596 = vmatpush1.bf16.msra.mxu0 0
    %1597 = vmatprep.subr.bf16.mxu0 0
    %1598 = vmatpush1.bf16.msra.mxu0 0
    %1599 = vmatprep.mubr.bf16.mxu0 0
    %1600 = vmatmul.mubr.bf16.gmra.mrb[0].mxu0 %v1502
    %v1601 = vpop.f32.mrb[0].mxu0
    %v1602 = vadd.f32 0.0, %v1601
    %v1603 = vpop.f32.mrb[0].mxu0
    %v1604 = vpop.f32.mrb[0].mxu0
    %v1605 = vpop.f32.mrb[0].mxu0
    %1606 = vdwg.mxu0
    %v1623 = vunpack.c.l.b16 %v1281
    %v1624 = vunpack.c.l.b16 %v1282
    %v1625 = vunpack.c.l.b16 %v1283
    %v1626 = vunpack.c.l.b16 %v1284
    %v1627 = vunpack.c.l.b16 %v1285
    %v1628 = vunpack.c.l.b16 %v1286
    %v1629 = vunpack.c.l.b16 %v1287
    %v1630 = vunpack.c.l.b16 %v1288
    %v1631 = vunpack.c.l.b16 %v1289
    %v1632 = vunpack.c.l.b16 %v1290
    %v1633 = vunpack.c.l.b16 %v1291
    %v1634 = vunpack.c.l.b16 %v1292
    %v1635 = vunpack.c.l.b16 %v1293
    %v1636 = vunpack.c.l.b16 %v1294
    %v1637 = vunpack.c.l.b16 %v1295
    %v1638 = vunpack.c.l.b16 %v1296
    %v1639 = vpack.c.b16 %v1624, %v1623
    %v1640 = vpack.c.b16 %v1626, %v1625
    %v1641 = vpack.c.b16 %v1628, %v1627
    %v1642 = vpack.c.b16 %v1630, %v1629
    %v1643 = vpack.c.b16 %v1632, %v1631
    %v1644 = vpack.c.b16 %v1634, %v1633
    %v1645 = vpack.c.b16 %v1636, %v1635
    %v1646 = vpack.c.b16 %v1638, %v1637
    %1655 = vmatprep.subr.bf16.mxu0 0
    %1656 = vmatpush1.bf16.msra.mxu0 %v1639
    %1657 = vmatprep.subr.bf16.mxu0 0
    %1658 = vmatpush1.bf16.msra.mxu0 %v1640
    %1659 = vmatprep.subr.bf16.mxu0 0
    %1660 = vmatpush1.bf16.msra.mxu0 %v1641
    %1661 = vmatprep.subr.bf16.mxu0 0
    %1662 = vmatpush1.bf16.msra.mxu0 %v1642
    %1663 = vmatprep.subr.bf16.mxu0 0
    %1664 = vmatpush1.bf16.msra.mxu0 %v1643
    %1665 = vmatprep.subr.bf16.mxu0 0
    %1666 = vmatpush1.bf16.msra.mxu0 %v1644
    %1667 = vmatprep.subr.bf16.mxu0 0
    %1668 = vmatpush1.bf16.msra.mxu0 %v1645
    %1669 = vmatprep.subr.bf16.mxu0 0
    %1670 = vmatpush1.bf16.msra.mxu0 %v1646
    %1671 = vmatprep.subr.bf16.mxu0 0
    %1672 = vmatpush1.bf16.msra.mxu0 0
    %1673 = vmatprep.subr.bf16.mxu0 0
    %1674 = vmatpush1.bf16.msra.mxu0 0
    %1675 = vmatprep.subr.bf16.mxu0 0
    %1676 = vmatpush1.bf16.msra.mxu0 0
    %1677 = vmatprep.subr.bf16.mxu0 0
    %1678 = vmatpush1.bf16.msra.mxu0 0
    %1679 = vmatprep.subr.bf16.mxu0 0
    %1680 = vmatpush1.bf16.msra.mxu0 0
    %1681 = vmatprep.subr.bf16.mxu0 0
    %1682 = vmatpush1.bf16.msra.mxu0 0
    %1683 = vmatprep.subr.bf16.mxu0 0
    %1684 = vmatpush1.bf16.msra.mxu0 0
    %1685 = vmatprep.subr.bf16.mxu0 0
    %1686 = vmatpush1.bf16.msra.mxu0 0
    %1687 = vmatprep.mubr.bf16.mxu0 0
    %1688 = vmatmul.mubr.bf16.gmra.mrb[0].mxu0 %v1280
    %v1689 = vpop.f32.mrb[0].mxu0
    %v1690 = vadd.f32 %v1602, %v1689
    %v1691 = vpop.f32.mrb[0].mxu0
    %v1692 = vpop.f32.mrb[0].mxu0
    %v1693 = vpop.f32.mrb[0].mxu0
    %1694 = vdwg.mxu0
    %v1695 = vld [vmem:[#allocation2 + $0x40] sm:$0xff]
    %v1696 = vld [vmem:[#allocation2 + $0x48] sm:$0xff]
    %v1697 = vld [vmem:[#allocation2 + $0x50] sm:$0xff]
    %v1698 = vld [vmem:[#allocation2 + $0x58] sm:$0xff]
    %1699 = vmatprep.subr.bf16.mxu0 %v631
    %1700 = vmatpush1.bf16.msra.mxu0 %v630
    %1701 = vmatprep.subr.bf16.mxu0 %v635
    %1702 = vmatpush1.bf16.msra.mxu0 %v634
    %1703 = vmatprep.subr.bf16.mxu0 %v639
    %1704 = vmatpush1.bf16.msra.mxu0 %v638
    %1705 = vmatprep.subr.bf16.mxu0 %v643
    %1706 = vmatpush1.bf16.msra.mxu0 %v642
    %1707 = vmatprep.subr.bf16.mxu0 %v647
    %1708 = vmatpush1.bf16.msra.mxu0 %v646
    %1709 = vmatprep.subr.bf16.mxu0 %v651
    %1710 = vmatpush1.bf16.msra.mxu0 %v650
    %1711 = vmatprep.subr.bf16.mxu0 %v655
    %1712 = vmatpush1.bf16.msra.mxu0 %v654
    %1713 = vmatprep.subr.bf16.mxu0 %v659
    %1714 = vmatpush1.bf16.msra.mxu0 %v658
    %1715 = vmatprep.subr.bf16.mxu0 0
    %1716 = vmatpush1.bf16.msra.mxu0 0
    %1717 = vmatprep.subr.bf16.mxu0 0
    %1718 = vmatpush1.bf16.msra.mxu0 0
    %1719 = vmatprep.subr.bf16.mxu0 0
    %1720 = vmatpush1.bf16.msra.mxu0 0
    %1721 = vmatprep.subr.bf16.mxu0 0
    %1722 = vmatpush1.bf16.msra.mxu0 0
    %1723 = vmatprep.subr.bf16.mxu0 0
    %1724 = vmatpush1.bf16.msra.mxu0 0
    %1725 = vmatprep.subr.bf16.mxu0 0
    %1726 = vmatpush1.bf16.msra.mxu0 0
    %1727 = vmatprep.subr.bf16.mxu0 0
    %1728 = vmatpush1.bf16.msra.mxu0 0
    %1729 = vmatprep.subr.bf16.mxu0 0
    %1730 = vmatpush1.bf16.msra.mxu0 0
    %1731 = vmatprep.mubr.bf16.mxu0 0
    %1732 = vmatmul.mubr.bf16.gmra.mrb[0].mxu0 %v1401
    %v1733 = vpop.f32.mrb[0].mxu0
    %v1734 = vadd.f32 %v1695, %v1733
    %v1735 = vpop.f32.mrb[0].mxu0
    %v1736 = vadd.f32 %v1696, %v1735
    %v1737 = vpop.f32.mrb[0].mxu0
    %v1738 = vpop.f32.mrb[0].mxu0
    %1739 = vdwg.mxu0
    %1740 = vmatprep.subr.bf16.mxu0 %v633
    %1741 = vmatpush1.bf16.msra.mxu0 %v632
    %1742 = vmatprep.subr.bf16.mxu0 %v637
    %1743 = vmatpush1.bf16.msra.mxu0 %v636
    %1744 = vmatprep.subr.bf16.mxu0 %v641
    %1745 = vmatpush1.bf16.msra.mxu0 %v640
    %1746 = vmatprep.subr.bf16.mxu0 %v645
    %1747 = vmatpush1.bf16.msra.mxu0 %v644
    %1748 = vmatprep.subr.bf16.mxu0 %v649
    %1749 = vmatpush1.bf16.msra.mxu0 %v648
    %1750 = vmatprep.subr.bf16.mxu0 %v653
    %1751 = vmatpush1.bf16.msra.mxu0 %v652
    %1752 = vmatprep.subr.bf16.mxu0 %v657
    %1753 = vmatpush1.bf16.msra.mxu0 %v656
    %1754 = vmatprep.subr.bf16.mxu0 %v661
    %1755 = vmatpush1.bf16.msra.mxu0 %v660
    %1756 = vmatprep.subr.bf16.mxu0 0
    %1757 = vmatpush1.bf16.msra.mxu0 0
    %1758 = vmatprep.subr.bf16.mxu0 0
    %1759 = vmatpush1.bf16.msra.mxu0 0
    %1760 = vmatprep.subr.bf16.mxu0 0
    %1761 = vmatpush1.bf16.msra.mxu0 0
    %1762 = vmatprep.subr.bf16.mxu0 0
    %1763 = vmatpush1.bf16.msra.mxu0 0
    %1764 = vmatprep.subr.bf16.mxu0 0
    %1765 = vmatpush1.bf16.msra.mxu0 0
    %1766 = vmatprep.subr.bf16.mxu0 0
    %1767 = vmatpush1.bf16.msra.mxu0 0
    %1768 = vmatprep.subr.bf16.mxu0 0
    %1769 = vmatpush1.bf16.msra.mxu0 0
    %1770 = vmatprep.subr.bf16.mxu0 0
    %1771 = vmatpush1.bf16.msra.mxu0 0
    %1772 = vmatprep.mubr.bf16.mxu0 0
    %1773 = vmatmul.mubr.bf16.gmra.mrb[0].mxu0 %v1401
    %v1774 = vpop.f32.mrb[0].mxu0
    %v1775 = vadd.f32 %v1697, %v1774
    %v1776 = vpop.f32.mrb[0].mxu0
    %v1777 = vadd.f32 %v1698, %v1776
    %v1778 = vpop.f32.mrb[0].mxu0
    %v1779 = vpop.f32.mrb[0].mxu0
    %1780 = vdwg.mxu0
    %v1781 = vmul.f32 %v1734, 0.5
    %v1782 = vtanh.pop %v1781
    %v1783 = vmul.f32 %v1782, 0.5
    %v1784 = vadd.f32 %v1783, 0.5
    %v1785 = vmul.f32 %v1736, 0.5
    %v1786 = vtanh.pop %v1785
    %v1787 = vmul.f32 %v1786, 0.5
    %v1788 = vadd.f32 %v1787, 0.5
    %v1789 = vtanh.pop %v1775
    %v1790 = vmul.f32 %v1777, 0.5
    %v1791 = vtanh.pop %v1790
    %v1792 = vmul.f32 %v1791, 0.5
    %v1793 = vadd.f32 %v1792, 0.5
    %v1794 = vmul.f32 %v1788, %v1398
    %v1795 = vmul.f32 %v1784, %v1789
    %v1796 = vadd.f32 %v1794, %v1795
    %v1797 = vtanh.pop %v1796
    %v1798 = vmul.f32 %v1793, %v1797
    %v1799 = vpack.c.bf16 %v1798, %v1798
    %1800 = vmatprep.subr.bf16.mxu0 %v1053
    %1801 = vmatpush1.bf16.msra.mxu0 %v1052
    %1802 = vmatprep.subr.bf16.mxu0 %v1057
    %1803 = vmatpush1.bf16.msra.mxu0 %v1056
    %1804 = vmatprep.subr.bf16.mxu0 %v1061
    %1805 = vmatpush1.bf16.msra.mxu0 %v1060
    %1806 = vmatprep.subr.bf16.mxu0 %v1065
    %1807 = vmatpush1.bf16.msra.mxu0 %v1064
    %1808 = vmatprep.subr.bf16.mxu0 %v1069
    %1809 = vmatpush1.bf16.msra.mxu0 %v1068
    %1810 = vmatprep.subr.bf16.mxu0 %v1073
    %1811 = vmatpush1.bf16.msra.mxu0 %v1072
    %1812 = vmatprep.subr.bf16.mxu0 %v1077
    %1813 = vmatpush1.bf16.msra.mxu0 %v1076
    %1814 = vmatprep.subr.bf16.mxu0 %v1081
    %1815 = vmatpush1.bf16.msra.mxu0 %v1080
    %1816 = vmatprep.subr.bf16.mxu0 %v1085
    %1817 = vmatpush1.bf16.msra.mxu0 %v1084
    %1818 = vmatprep.subr.bf16.mxu0 %v1089
    %1819 = vmatpush1.bf16.msra.mxu0 %v1088
    %1820 = vmatprep.subr.bf16.mxu0 %v1093
    %1821 = vmatpush1.bf16.msra.mxu0 %v1092
    %1822 = vmatprep.subr.bf16.mxu0 %v1097
    %1823 = vmatpush1.bf16.msra.mxu0 %v1096
    %1824 = vmatprep.subr.bf16.mxu0 %v1101
    %1825 = vmatpush1.bf16.msra.mxu0 %v1100
    %1826 = vmatprep.subr.bf16.mxu0 %v1105
    %1827 = vmatpush1.bf16.msra.mxu0 %v1104
    %1828 = vmatprep.subr.bf16.mxu0 %v1109
    %1829 = vmatpush1.bf16.msra.mxu0 %v1108
    %1830 = vmatprep.subr.bf16.mxu0 %v1113
    %1831 = vmatpush1.bf16.msra.mxu0 %v1112
    %1832 = vmatprep.mubr.bf16.mxu0 %v1502
    %1833 = vmatmul.mubr.bf16.gmra.mrb[0].mxu0 %v1799
    %v1834 = vpop.f32.mrb[0].mxu0
    %v1835 = vadd.f32 %v288, %v1834
    %v1836 = vpop.f32.mrb[0].mxu0
    %v1837 = vadd.f32 %v292, %v1836
    %v1838 = vpop.f32.mrb[0].mxu0
    %v1839 = vpop.f32.mrb[0].mxu0
    %1840 = vdwg.mxu0
    %1841 = vmatprep.subr.bf16.mxu0 %v1055
    %1842 = vmatpush1.bf16.msra.mxu0 %v1054
    %1843 = vmatprep.subr.bf16.mxu0 %v1059
    %1844 = vmatpush1.bf16.msra.mxu0 %v1058
    %1845 = vmatprep.subr.bf16.mxu0 %v1063
    %1846 = vmatpush1.bf16.msra.mxu0 %v1062
    %1847 = vmatprep.subr.bf16.mxu0 %v1067
    %1848 = vmatpush1.bf16.msra.mxu0 %v1066
    %1849 = vmatprep.subr.bf16.mxu0 %v1071
    %1850 = vmatpush1.bf16.msra.mxu0 %v1070
    %1851 = vmatprep.subr.bf16.mxu0 %v1075
    %1852 = vmatpush1.bf16.msra.mxu0 %v1074
    %1853 = vmatprep.subr.bf16.mxu0 %v1079
    %1854 = vmatpush1.bf16.msra.mxu0 %v1078
    %1855 = vmatprep.subr.bf16.mxu0 %v1083
    %1856 = vmatpush1.bf16.msra.mxu0 %v1082
    %1857 = vmatprep.subr.bf16.mxu0 %v1087
    %1858 = vmatpush1.bf16.msra.mxu0 %v1086
    %1859 = vmatprep.subr.bf16.mxu0 %v1091
    %1860 = vmatpush1.bf16.msra.mxu0 %v1090
    %1861 = vmatprep.subr.bf16.mxu0 %v1095
    %1862 = vmatpush1.bf16.msra.mxu0 %v1094
    %1863 = vmatprep.subr.bf16.mxu0 %v1099
    %1864 = vmatpush1.bf16.msra.mxu0 %v1098
    %1865 = vmatprep.subr.bf16.mxu0 %v1103
    %1866 = vmatpush1.bf16.msra.mxu0 %v1102
    %1867 = vmatprep.subr.bf16.mxu0 %v1107
    %1868 = vmatpush1.bf16.msra.mxu0 %v1106
    %1869 = vmatprep.subr.bf16.mxu0 %v1111
    %1870 = vmatpush1.bf16.msra.mxu0 %v1110
    %1871 = vmatprep.subr.bf16.mxu0 %v1115
    %1872 = vmatpush1.bf16.msra.mxu0 %v1114
    %1873 = vmatprep.mubr.bf16.mxu0 %v1502
    %1874 = vmatmul.mubr.bf16.gmra.mrb[0].mxu0 %v1799
    %v1875 = vpop.f32.mrb[0].mxu0
    %v1876 = vadd.f32 %v296, %v1875
    %v1877 = vpop.f32.mrb[0].mxu0
    %v1878 = vadd.f32 %v300, %v1877
    %v1879 = vpop.f32.mrb[0].mxu0
    %v1880 = vpop.f32.mrb[0].mxu0
    %1881 = vdwg.mxu0
    %v1882 = vmul.f32 %v1835, 0.5
    %v1883 = vtanh.pop %v1882
    %v1884 = vmul.f32 %v1883, 0.5
    %v1885 = vadd.f32 %v1884, 0.5
    %v1886 = vmul.f32 %v1837, 0.5
    %v1887 = vtanh.pop %v1886
    %v1888 = vmul.f32 %v1887, 0.5
    %v1889 = vadd.f32 %v1888, 0.5
    %v1890 = vtanh.pop %v1876
    %v1891 = vmul.f32 %v1878, 0.5
    %v1892 = vtanh.pop %v1891
    %v1893 = vmul.f32 %v1892, 0.5
    %v1894 = vadd.f32 %v1893, 0.5
    %v1895 = vmul.f32 %v1889, %v1499
    %v1896 = vmul.f32 %v1885, %v1890
    %v1897 = vadd.f32 %v1895, %v1896
    %v1898 = vtanh.pop %v1897
    %v1899 = vmul.f32 %v1894, %v1898
    %v1900 = vpack.c.bf16 %v1899, %v1899
    %v1901 = vld [vmem:[#allocation18 + $0x80] sm:$0xf]
    %v1902 = vld [vmem:[#allocation18 + $0x84] sm:$0xf]
    %v1903 = vld [vmem:[#allocation18 + $0x88] sm:$0xf]
    %v1904 = vld [vmem:[#allocation18 + $0x8c] sm:$0xf]
    %v1905 = vld [vmem:[#allocation18 + $0x90] sm:$0xf]
    %v1906 = vld [vmem:[#allocation18 + $0x94] sm:$0xf]
    %v1907 = vld [vmem:[#allocation18 + $0x98] sm:$0xf]
    %v1908 = vld [vmem:[#allocation18 + $0x9c] sm:$0xf]
    %v1909 = vld [vmem:[#allocation18 + $0xa0] sm:$0xf]
    %v1910 = vld [vmem:[#allocation18 + $0xa4] sm:$0xf]
    %v1911 = vld [vmem:[#allocation18 + $0xa8] sm:$0xf]
    %v1912 = vld [vmem:[#allocation18 + $0xac] sm:$0xf]
    %v1913 = vld [vmem:[#allocation18 + $0xb0] sm:$0xf]
    %v1914 = vld [vmem:[#allocation18 + $0xb4] sm:$0xf]
    %v1915 = vld [vmem:[#allocation18 + $0xb8] sm:$0xf]
    %v1916 = vld [vmem:[#allocation18 + $0xbc] sm:$0xf]
    %v1933 = vunpack.c.l.b16 %v1901
    %v1934 = vunpack.c.l.b16 %v1902
    %v1935 = vunpack.c.l.b16 %v1903
    %v1936 = vunpack.c.l.b16 %v1904
    %v1937 = vunpack.c.l.b16 %v1905
    %v1938 = vunpack.c.l.b16 %v1906
    %v1939 = vunpack.c.l.b16 %v1907
    %v1940 = vunpack.c.l.b16 %v1908
    %v1941 = vunpack.c.l.b16 %v1909
    %v1942 = vunpack.c.l.b16 %v1910
    %v1943 = vunpack.c.l.b16 %v1911
    %v1944 = vunpack.c.l.b16 %v1912
    %v1945 = vunpack.c.l.b16 %v1913
    %v1946 = vunpack.c.l.b16 %v1914
    %v1947 = vunpack.c.l.b16 %v1915
    %v1948 = vunpack.c.l.b16 %v1916
    %v1949 = vpack.c.b16 %v1934, %v1933
    %v1950 = vpack.c.b16 %v1936, %v1935
    %v1951 = vpack.c.b16 %v1938, %v1937
    %v1952 = vpack.c.b16 %v1940, %v1939
    %v1953 = vpack.c.b16 %v1942, %v1941
    %v1954 = vpack.c.b16 %v1944, %v1943
    %v1955 = vpack.c.b16 %v1946, %v1945
    %v1956 = vpack.c.b16 %v1948, %v1947
    %1965 = vmatprep.subr.bf16.mxu0 0
    %1966 = vmatpush1.bf16.msra.mxu0 %v1949
    %1967 = vmatprep.subr.bf16.mxu0 0
    %1968 = vmatpush1.bf16.msra.mxu0 %v1950
    %1969 = vmatprep.subr.bf16.mxu0 0
    %1970 = vmatpush1.bf16.msra.mxu0 %v1951
    %1971 = vmatprep.subr.bf16.mxu0 0
    %1972 = vmatpush1.bf16.msra.mxu0 %v1952
    %1973 = vmatprep.subr.bf16.mxu0 0
    %1974 = vmatpush1.bf16.msra.mxu0 %v1953
    %1975 = vmatprep.subr.bf16.mxu0 0
    %1976 = vmatpush1.bf16.msra.mxu0 %v1954
    %1977 = vmatprep.subr.bf16.mxu0 0
    %1978 = vmatpush1.bf16.msra.mxu0 %v1955
    %1979 = vmatprep.subr.bf16.mxu0 0
    %1980 = vmatpush1.bf16.msra.mxu0 %v1956
    %1981 = vmatprep.subr.bf16.mxu0 0
    %1982 = vmatpush1.bf16.msra.mxu0 0
    %1983 = vmatprep.subr.bf16.mxu0 0
    %1984 = vmatpush1.bf16.msra.mxu0 0
    %1985 = vmatprep.subr.bf16.mxu0 0
    %1986 = vmatpush1.bf16.msra.mxu0 0
    %1987 = vmatprep.subr.bf16.mxu0 0
    %1988 = vmatpush1.bf16.msra.mxu0 0
    %1989 = vmatprep.subr.bf16.mxu0 0
    %1990 = vmatpush1.bf16.msra.mxu0 0
    %1991 = vmatprep.subr.bf16.mxu0 0
    %1992 = vmatpush1.bf16.msra.mxu0 0
    %1993 = vmatprep.subr.bf16.mxu0 0
    %1994 = vmatpush1.bf16.msra.mxu0 0
    %1995 = vmatprep.subr.bf16.mxu0 0
    %1996 = vmatpush1.bf16.msra.mxu0 0
    %1997 = vmatprep.mubr.bf16.mxu0 0
    %1998 = vmatmul.mubr.bf16.gmra.mrb[0].mxu0 %v1900
    %v1999 = vpop.f32.mrb[0].mxu0
    %v2000 = vadd.f32 0.0, %v1999
    %v2001 = vpop.f32.mrb[0].mxu0
    %v2002 = vpop.f32.mrb[0].mxu0
    %v2003 = vpop.f32.mrb[0].mxu0
    %2004 = vdwg.mxu0
    %v2005 = vadd.f32 %v1690, %v2000
    %v2006 = vld [vmem:[#allocation2 + $0x60] sm:$0xff]
    %v2007 = vld [vmem:[#allocation2 + $0x68] sm:$0xff]
    %v2008 = vld [vmem:[#allocation2 + $0x70] sm:$0xff]
    %v2009 = vld [vmem:[#allocation2 + $0x78] sm:$0xff]
    %2010 = vmatprep.subr.bf16.mxu0 %v631
    %2011 = vmatpush1.bf16.msra.mxu0 %v630
    %2012 = vmatprep.subr.bf16.mxu0 %v635
    %2013 = vmatpush1.bf16.msra.mxu0 %v634
    %2014 = vmatprep.subr.bf16.mxu0 %v639
    %2015 = vmatpush1.bf16.msra.mxu0 %v638
    %2016 = vmatprep.subr.bf16.mxu0 %v643
    %2017 = vmatpush1.bf16.msra.mxu0 %v642
    %2018 = vmatprep.subr.bf16.mxu0 %v647
    %2019 = vmatpush1.bf16.msra.mxu0 %v646
    %2020 = vmatprep.subr.bf16.mxu0 %v651
    %2021 = vmatpush1.bf16.msra.mxu0 %v650
    %2022 = vmatprep.subr.bf16.mxu0 %v655
    %2023 = vmatpush1.bf16.msra.mxu0 %v654
    %2024 = vmatprep.subr.bf16.mxu0 %v659
    %2025 = vmatpush1.bf16.msra.mxu0 %v658
    %2026 = vmatprep.subr.bf16.mxu0 0
    %2027 = vmatpush1.bf16.msra.mxu0 0
    %2028 = vmatprep.subr.bf16.mxu0 0
    %2029 = vmatpush1.bf16.msra.mxu0 0
    %2030 = vmatprep.subr.bf16.mxu0 0
    %2031 = vmatpush1.bf16.msra.mxu0 0
    %2032 = vmatprep.subr.bf16.mxu0 0
    %2033 = vmatpush1.bf16.msra.mxu0 0
    %2034 = vmatprep.subr.bf16.mxu0 0
    %2035 = vmatpush1.bf16.msra.mxu0 0
    %2036 = vmatprep.subr.bf16.mxu0 0
    %2037 = vmatpush1.bf16.msra.mxu0 0
    %2038 = vmatprep.subr.bf16.mxu0 0
    %2039 = vmatpush1.bf16.msra.mxu0 0
    %2040 = vmatprep.subr.bf16.mxu0 0
    %2041 = vmatpush1.bf16.msra.mxu0 0
    %2042 = vmatprep.mubr.bf16.mxu0 0
    %2043 = vmatmul.mubr.bf16.gmra.mrb[0].mxu0 %v1799
    %v2044 = vpop.f32.mrb[0].mxu0
    %v2045 = vadd.f32 %v2006, %v2044
    %v2046 = vpop.f32.mrb[0].mxu0
    %v2047 = vadd.f32 %v2007, %v2046
    %v2048 = vpop.f32.mrb[0].mxu0
    %v2049 = vpop.f32.mrb[0].mxu0
    %2050 = vdwg.mxu0
    %2051 = vmatprep.subr.bf16.mxu0 %v633
    %2052 = vmatpush1.bf16.msra.mxu0 %v632
    %2053 = vmatprep.subr.bf16.mxu0 %v637
    %2054 = vmatpush1.bf16.msra.mxu0 %v636
    %2055 = vmatprep.subr.bf16.mxu0 %v641
    %2056 = vmatpush1.bf16.msra.mxu0 %v640
    %2057 = vmatprep.subr.bf16.mxu0 %v645
    %2058 = vmatpush1.bf16.msra.mxu0 %v644
    %2059 = vmatprep.subr.bf16.mxu0 %v649
    %2060 = vmatpush1.bf16.msra.mxu0 %v648
    %2061 = vmatprep.subr.bf16.mxu0 %v653
    %2062 = vmatpush1.bf16.msra.mxu0 %v652
    %2063 = vmatprep.subr.bf16.mxu0 %v657
    %2064 = vmatpush1.bf16.msra.mxu0 %v656
    %2065 = vmatprep.subr.bf16.mxu0 %v661
    %2066 = vmatpush1.bf16.msra.mxu0 %v660
    %2067 = vmatprep.subr.bf16.mxu0 0
    %2068 = vmatpush1.bf16.msra.mxu0 0
    %2069 = vmatprep.subr.bf16.mxu0 0
    %2070 = vmatpush1.bf16.msra.mxu0 0
    %2071 = vmatprep.subr.bf16.mxu0 0
    %2072 = vmatpush1.bf16.msra.mxu0 0
    %2073 = vmatprep.subr.bf16.mxu0 0
    %2074 = vmatpush1.bf16.msra.mxu0 0
    %2075 = vmatprep.subr.bf16.mxu0 0
    %2076 = vmatpush1.bf16.msra.mxu0 0
    %2077 = vmatprep.subr.bf16.mxu0 0
    %2078 = vmatpush1.bf16.msra.mxu0 0
    %2079 = vmatprep.subr.bf16.mxu0 0
    %2080 = vmatpush1.bf16.msra.mxu0 0
    %2081 = vmatprep.subr.bf16.mxu0 0
    %2082 = vmatpush1.bf16.msra.mxu0 0
    %2083 = vmatprep.mubr.bf16.mxu0 0
    %2084 = vmatmul.mubr.bf16.gmra.mrb[0].mxu0 %v1799
    %v2085 = vpop.f32.mrb[0].mxu0
    %v2086 = vadd.f32 %v2008, %v2085
    %v2087 = vpop.f32.mrb[0].mxu0
    %v2088 = vadd.f32 %v2009, %v2087
    %v2089 = vpop.f32.mrb[0].mxu0
    %v2090 = vpop.f32.mrb[0].mxu0
    %2091 = vdwg.mxu0
    %v2092 = vmul.f32 %v2045, 0.5
    %v2093 = vtanh.pop %v2092
    %v2094 = vmul.f32 %v2093, 0.5
    %v2095 = vadd.f32 %v2094, 0.5
    %v2096 = vmul.f32 %v2047, 0.5
    %v2097 = vtanh.pop %v2096
    %v2098 = vmul.f32 %v2097, 0.5
    %v2099 = vadd.f32 %v2098, 0.5
    %v2100 = vtanh.pop %v2086
    %v2101 = vmul.f32 %v2088, 0.5
    %v2102 = vtanh.pop %v2101
    %v2103 = vmul.f32 %v2102, 0.5
    %v2104 = vadd.f32 %v2103, 0.5
    %v2105 = vmul.f32 %v2099, %v1796
    %v2106 = vmul.f32 %v2095, %v2100
    %v2107 = vadd.f32 %v2105, %v2106
    %v2108 = vtanh.pop %v2107
    %v2109 = vmul.f32 %v2104, %v2108
    %v2110 = vpack.c.bf16 %v2109, %v2109
    %2111 = vmatprep.subr.bf16.mxu0 %v1053
    %2112 = vmatpush1.bf16.msra.mxu0 %v1052
    %2113 = vmatprep.subr.bf16.mxu0 %v1057
    %2114 = vmatpush1.bf16.msra.mxu0 %v1056
    %2115 = vmatprep.subr.bf16.mxu0 %v1061
    %2116 = vmatpush1.bf16.msra.mxu0 %v1060
    %2117 = vmatprep.subr.bf16.mxu0 %v1065
    %2118 = vmatpush1.bf16.msra.mxu0 %v1064
    %2119 = vmatprep.subr.bf16.mxu0 %v1069
    %2120 = vmatpush1.bf16.msra.mxu0 %v1068
    %2121 = vmatprep.subr.bf16.mxu0 %v1073
    %2122 = vmatpush1.bf16.msra.mxu0 %v1072
    %2123 = vmatprep.subr.bf16.mxu0 %v1077
    %2124 = vmatpush1.bf16.msra.mxu0 %v1076
    %2125 = vmatprep.subr.bf16.mxu0 %v1081
    %2126 = vmatpush1.bf16.msra.mxu0 %v1080
    %2127 = vmatprep.subr.bf16.mxu0 %v1085
    %2128 = vmatpush1.bf16.msra.mxu0 %v1084
    %2129 = vmatprep.subr.bf16.mxu0 %v1089
    %2130 = vmatpush1.bf16.msra.mxu0 %v1088
    %2131 = vmatprep.subr.bf16.mxu0 %v1093
    %2132 = vmatpush1.bf16.msra.mxu0 %v1092
    %2133 = vmatprep.subr.bf16.mxu0 %v1097
    %2134 = vmatpush1.bf16.msra.mxu0 %v1096
    %2135 = vmatprep.subr.bf16.mxu0 %v1101
    %2136 = vmatpush1.bf16.msra.mxu0 %v1100
    %2137 = vmatprep.subr.bf16.mxu0 %v1105
    %2138 = vmatpush1.bf16.msra.mxu0 %v1104
    %2139 = vmatprep.subr.bf16.mxu0 %v1109
    %2140 = vmatpush1.bf16.msra.mxu0 %v1108
    %2141 = vmatprep.subr.bf16.mxu0 %v1113
    %2142 = vmatpush1.bf16.msra.mxu0 %v1112
    %2143 = vmatprep.mubr.bf16.mxu0 %v1900
    %2144 = vmatmul.mubr.bf16.gmra.mrb[0].mxu0 %v2110
    %v2145 = vpop.f32.mrb[0].mxu0
    %v2146 = vadd.f32 %v288, %v2145
    %v2147 = vpop.f32.mrb[0].mxu0
    %v2148 = vadd.f32 %v292, %v2147
    %v2149 = vpop.f32.mrb[0].mxu0
    %v2150 = vpop.f32.mrb[0].mxu0
    %2151 = vdwg.mxu0
    %2152 = vmatprep.subr.bf16.mxu0 %v1055
    %2153 = vmatpush1.bf16.msra.mxu0 %v1054
    %2154 = vmatprep.subr.bf16.mxu0 %v1059
    %2155 = vmatpush1.bf16.msra.mxu0 %v1058
    %2156 = vmatprep.subr.bf16.mxu0 %v1063
    %2157 = vmatpush1.bf16.msra.mxu0 %v1062
    %2158 = vmatprep.subr.bf16.mxu0 %v1067
    %2159 = vmatpush1.bf16.msra.mxu0 %v1066
    %2160 = vmatprep.subr.bf16.mxu0 %v1071
    %2161 = vmatpush1.bf16.msra.mxu0 %v1070
    %2162 = vmatprep.subr.bf16.mxu0 %v1075
    %2163 = vmatpush1.bf16.msra.mxu0 %v1074
    %2164 = vmatprep.subr.bf16.mxu0 %v1079
    %2165 = vmatpush1.bf16.msra.mxu0 %v1078
    %2166 = vmatprep.subr.bf16.mxu0 %v1083
    %2167 = vmatpush1.bf16.msra.mxu0 %v1082
    %2168 = vmatprep.subr.bf16.mxu0 %v1087
    %2169 = vmatpush1.bf16.msra.mxu0 %v1086
    %2170 = vmatprep.subr.bf16.mxu0 %v1091
    %2171 = vmatpush1.bf16.msra.mxu0 %v1090
    %2172 = vmatprep.subr.bf16.mxu0 %v1095
    %2173 = vmatpush1.bf16.msra.mxu0 %v1094
    %2174 = vmatprep.subr.bf16.mxu0 %v1099
    %2175 = vmatpush1.bf16.msra.mxu0 %v1098
    %2176 = vmatprep.subr.bf16.mxu0 %v1103
    %2177 = vmatpush1.bf16.msra.mxu0 %v1102
    %2178 = vmatprep.subr.bf16.mxu0 %v1107
    %2179 = vmatpush1.bf16.msra.mxu0 %v1106
    %2180 = vmatprep.subr.bf16.mxu0 %v1111
    %2181 = vmatpush1.bf16.msra.mxu0 %v1110
    %2182 = vmatprep.subr.bf16.mxu0 %v1115
    %2183 = vmatpush1.bf16.msra.mxu0 %v1114
    %2184 = vmatprep.mubr.bf16.mxu0 %v1900
    %2185 = vmatmul.mubr.bf16.gmra.mrb[0].mxu0 %v2110
    %v2186 = vpop.f32.mrb[0].mxu0
    %v2187 = vadd.f32 %v296, %v2186
    %v2188 = vpop.f32.mrb[0].mxu0
    %v2189 = vadd.f32 %v300, %v2188
    %v2190 = vpop.f32.mrb[0].mxu0
    %v2191 = vpop.f32.mrb[0].mxu0
    %2192 = vdwg.mxu0
    %v2193 = vmul.f32 %v2146, 0.5
    %v2194 = vtanh.pop %v2193
    %v2195 = vmul.f32 %v2194, 0.5
    %v2196 = vadd.f32 %v2195, 0.5
    %v2197 = vmul.f32 %v2148, 0.5
    %v2198 = vtanh.pop %v2197
    %v2199 = vmul.f32 %v2198, 0.5
    %v2200 = vadd.f32 %v2199, 0.5
    %v2201 = vtanh.pop %v2187
    %v2202 = vmul.f32 %v2189, 0.5
    %v2203 = vtanh.pop %v2202
    %v2204 = vmul.f32 %v2203, 0.5
    %v2205 = vadd.f32 %v2204, 0.5
    %v2206 = vmul.f32 %v2200, %v1897
    %v2207 = vmul.f32 %v2196, %v2201
    %v2208 = vadd.f32 %v2206, %v2207
    %v2209 = vtanh.pop %v2208
    %v2210 = vmul.f32 %v2205, %v2209
    %v2211 = vpack.c.bf16 %v2210, %v2210
    %v2212 = vld [vmem:[#allocation18 + $0xc0] sm:$0xf]
    %v2213 = vld [vmem:[#allocation18 + $0xc4] sm:$0xf]
    %v2214 = vld [vmem:[#allocation18 + $0xc8] sm:$0xf]
    %v2215 = vld [vmem:[#allocation18 + $0xcc] sm:$0xf]
    %v2216 = vld [vmem:[#allocation18 + $0xd0] sm:$0xf]
    %v2217 = vld [vmem:[#allocation18 + $0xd4] sm:$0xf]
    %v2218 = vld [vmem:[#allocation18 + $0xd8] sm:$0xf]
    %v2219 = vld [vmem:[#allocation18 + $0xdc] sm:$0xf]
    %v2220 = vld [vmem:[#allocation18 + $0xe0] sm:$0xf]
    %v2221 = vld [vmem:[#allocation18 + $0xe4] sm:$0xf]
    %v2222 = vld [vmem:[#allocation18 + $0xe8] sm:$0xf]
    %v2223 = vld [vmem:[#allocation18 + $0xec] sm:$0xf]
    %v2224 = vld [vmem:[#allocation18 + $0xf0] sm:$0xf]
    %v2225 = vld [vmem:[#allocation18 + $0xf4] sm:$0xf]
    %v2226 = vld [vmem:[#allocation18 + $0xf8] sm:$0xf]
    %v2227 = vld [vmem:[#allocation18 + $0xfc] sm:$0xf]
    %v2244 = vunpack.c.l.b16 %v2212
    %v2245 = vunpack.c.l.b16 %v2213
    %v2246 = vunpack.c.l.b16 %v2214
    %v2247 = vunpack.c.l.b16 %v2215
    %v2248 = vunpack.c.l.b16 %v2216
    %v2249 = vunpack.c.l.b16 %v2217
    %v2250 = vunpack.c.l.b16 %v2218
    %v2251 = vunpack.c.l.b16 %v2219
    %v2252 = vunpack.c.l.b16 %v2220
    %v2253 = vunpack.c.l.b16 %v2221
    %v2254 = vunpack.c.l.b16 %v2222
    %v2255 = vunpack.c.l.b16 %v2223
    %v2256 = vunpack.c.l.b16 %v2224
    %v2257 = vunpack.c.l.b16 %v2225
    %v2258 = vunpack.c.l.b16 %v2226
    %v2259 = vunpack.c.l.b16 %v2227
    %v2260 = vpack.c.b16 %v2245, %v2244
    %v2261 = vpack.c.b16 %v2247, %v2246
    %v2262 = vpack.c.b16 %v2249, %v2248
    %v2263 = vpack.c.b16 %v2251, %v2250
    %v2264 = vpack.c.b16 %v2253, %v2252
    %v2265 = vpack.c.b16 %v2255, %v2254
    %v2266 = vpack.c.b16 %v2257, %v2256
    %v2267 = vpack.c.b16 %v2259, %v2258
    %2276 = vmatprep.subr.bf16.mxu0 0
    %2277 = vmatpush1.bf16.msra.mxu0 %v2260
    %2278 = vmatprep.subr.bf16.mxu0 0
    %2279 = vmatpush1.bf16.msra.mxu0 %v2261
    %2280 = vmatprep.subr.bf16.mxu0 0
    %2281 = vmatpush1.bf16.msra.mxu0 %v2262
    %2282 = vmatprep.subr.bf16.mxu0 0
    %2283 = vmatpush1.bf16.msra.mxu0 %v2263
    %2284 = vmatprep.subr.bf16.mxu0 0
    %2285 = vmatpush1.bf16.msra.mxu0 %v2264
    %2286 = vmatprep.subr.bf16.mxu0 0
    %2287 = vmatpush1.bf16.msra.mxu0 %v2265
    %2288 = vmatprep.subr.bf16.mxu0 0
    %2289 = vmatpush1.bf16.msra.mxu0 %v2266
    %2290 = vmatprep.subr.bf16.mxu0 0
    %2291 = vmatpush1.bf16.msra.mxu0 %v2267
    %2292 = vmatprep.subr.bf16.mxu0 0
    %2293 = vmatpush1.bf16.msra.mxu0 0
    %2294 = vmatprep.subr.bf16.mxu0 0
    %2295 = vmatpush1.bf16.msra.mxu0 0
    %2296 = vmatprep.subr.bf16.mxu0 0
    %2297 = vmatpush1.bf16.msra.mxu0 0
    %2298 = vmatprep.subr.bf16.mxu0 0
    %2299 = vmatpush1.bf16.msra.mxu0 0
    %2300 = vmatprep.subr.bf16.mxu0 0
    %2301 = vmatpush1.bf16.msra.mxu0 0
    %2302 = vmatprep.subr.bf16.mxu0 0
    %2303 = vmatpush1.bf16.msra.mxu0 0
    %2304 = vmatprep.subr.bf16.mxu0 0
    %2305 = vmatpush1.bf16.msra.mxu0 0
    %2306 = vmatprep.subr.bf16.mxu0 0
    %2307 = vmatpush1.bf16.msra.mxu0 0
    %2308 = vmatprep.mubr.bf16.mxu0 0
    %2309 = vmatmul.mubr.bf16.gmra.mrb[0].mxu0 %v2211
    %v2310 = vpop.f32.mrb[0].mxu0
    %v2311 = vadd.f32 0.0, %v2310
    %v2312 = vpop.f32.mrb[0].mxu0
    %v2313 = vpop.f32.mrb[0].mxu0
    %v2314 = vpop.f32.mrb[0].mxu0
    %2315 = vdwg.mxu0
    %v2316 = vadd.f32 %v2005, %v2311
    %v2317 = vld [vmem:[#allocation2 + $0x80] sm:$0xff]
    %v2318 = vld [vmem:[#allocation2 + $0x88] sm:$0xff]
    %v2319 = vld [vmem:[#allocation2 + $0x90] sm:$0xff]
    %v2320 = vld [vmem:[#allocation2 + $0x98] sm:$0xff]
    %2321 = vmatprep.subr.bf16.mxu0 %v631
    %2322 = vmatpush1.bf16.msra.mxu0 %v630
    %2323 = vmatprep.subr.bf16.mxu0 %v635
    %2324 = vmatpush1.bf16.msra.mxu0 %v634
    %2325 = vmatprep.subr.bf16.mxu0 %v639
    %2326 = vmatpush1.bf16.msra.mxu0 %v638
    %2327 = vmatprep.subr.bf16.mxu0 %v643
    %2328 = vmatpush1.bf16.msra.mxu0 %v642
    %2329 = vmatprep.subr.bf16.mxu0 %v647
    %2330 = vmatpush1.bf16.msra.mxu0 %v646
    %2331 = vmatprep.subr.bf16.mxu0 %v651
    %2332 = vmatpush1.bf16.msra.mxu0 %v650
    %2333 = vmatprep.subr.bf16.mxu0 %v655
    %2334 = vmatpush1.bf16.msra.mxu0 %v654
    %2335 = vmatprep.subr.bf16.mxu0 %v659
    %2336 = vmatpush1.bf16.msra.mxu0 %v658
    %2337 = vmatprep.subr.bf16.mxu0 0
    %2338 = vmatpush1.bf16.msra.mxu0 0
    %2339 = vmatprep.subr.bf16.mxu0 0
    %2340 = vmatpush1.bf16.msra.mxu0 0
    %2341 = vmatprep.subr.bf16.mxu0 0
    %2342 = vmatpush1.bf16.msra.mxu0 0
    %2343 = vmatprep.subr.bf16.mxu0 0
    %2344 = vmatpush1.bf16.msra.mxu0 0
    %2345 = vmatprep.subr.bf16.mxu0 0
    %2346 = vmatpush1.bf16.msra.mxu0 0
    %2347 = vmatprep.subr.bf16.mxu0 0
    %2348 = vmatpush1.bf16.msra.mxu0 0
    %2349 = vmatprep.subr.bf16.mxu0 0
    %2350 = vmatpush1.bf16.msra.mxu0 0
    %2351 = vmatprep.subr.bf16.mxu0 0
    %2352 = vmatpush1.bf16.msra.mxu0 0
    %2353 = vmatprep.mubr.bf16.mxu0 0
    %2354 = vmatmul.mubr.bf16.gmra.mrb[0].mxu0 %v2110
    %v2355 = vpop.f32.mrb[0].mxu0
    %v2356 = vadd.f32 %v2317, %v2355
    %v2357 = vpop.f32.mrb[0].mxu0
    %v2358 = vadd.f32 %v2318, %v2357
    %v2359 = vpop.f32.mrb[0].mxu0
    %v2360 = vpop.f32.mrb[0].mxu0
    %2361 = vdwg.mxu0
    %2362 = vmatprep.subr.bf16.mxu0 %v633
    %2363 = vmatpush1.bf16.msra.mxu0 %v632
    %2364 = vmatprep.subr.bf16.mxu0 %v637
    %2365 = vmatpush1.bf16.msra.mxu0 %v636
    %2366 = vmatprep.subr.bf16.mxu0 %v641
    %2367 = vmatpush1.bf16.msra.mxu0 %v640
    %2368 = vmatprep.subr.bf16.mxu0 %v645
    %2369 = vmatpush1.bf16.msra.mxu0 %v644
    %2370 = vmatprep.subr.bf16.mxu0 %v649
    %2371 = vmatpush1.bf16.msra.mxu0 %v648
    %2372 = vmatprep.subr.bf16.mxu0 %v653
    %2373 = vmatpush1.bf16.msra.mxu0 %v652
    %2374 = vmatprep.subr.bf16.mxu0 %v657
    %2375 = vmatpush1.bf16.msra.mxu0 %v656
    %2376 = vmatprep.subr.bf16.mxu0 %v661
    %2377 = vmatpush1.bf16.msra.mxu0 %v660
    %2378 = vmatprep.subr.bf16.mxu0 0
    %2379 = vmatpush1.bf16.msra.mxu0 0
    %2380 = vmatprep.subr.bf16.mxu0 0
    %2381 = vmatpush1.bf16.msra.mxu0 0
    %2382 = vmatprep.subr.bf16.mxu0 0
    %2383 = vmatpush1.bf16.msra.mxu0 0
    %2384 = vmatprep.subr.bf16.mxu0 0
    %2385 = vmatpush1.bf16.msra.mxu0 0
    %2386 = vmatprep.subr.bf16.mxu0 0
    %2387 = vmatpush1.bf16.msra.mxu0 0
    %2388 = vmatprep.subr.bf16.mxu0 0
    %2389 = vmatpush1.bf16.msra.mxu0 0
    %2390 = vmatprep.subr.bf16.mxu0 0
    %2391 = vmatpush1.bf16.msra.mxu0 0
    %2392 = vmatprep.subr.bf16.mxu0 0
    %2393 = vmatpush1.bf16.msra.mxu0 0
    %2394 = vmatprep.mubr.bf16.mxu0 0
    %2395 = vmatmul.mubr.bf16.gmra.mrb[0].mxu0 %v2110
    %v2396 = vpop.f32.mrb[0].mxu0
    %v2397 = vadd.f32 %v2319, %v2396
    %v2398 = vpop.f32.mrb[0].mxu0
    %v2399 = vadd.f32 %v2320, %v2398
    %v2400 = vpop.f32.mrb[0].mxu0
    %v2401 = vpop.f32.mrb[0].mxu0
    %2402 = vdwg.mxu0
    %v2403 = vmul.f32 %v2356, 0.5
    %v2404 = vtanh.pop %v2403
    %v2405 = vmul.f32 %v2404, 0.5
    %v2406 = vadd.f32 %v2405, 0.5
    %v2407 = vmul.f32 %v2358, 0.5
    %v2408 = vtanh.pop %v2407
    %v2409 = vmul.f32 %v2408, 0.5
    %v2410 = vadd.f32 %v2409, 0.5
    %v2411 = vtanh.pop %v2397
    %v2412 = vmul.f32 %v2399, 0.5
    %v2413 = vtanh.pop %v2412
    %v2414 = vmul.f32 %v2413, 0.5
    %v2415 = vadd.f32 %v2414, 0.5
    %v2416 = vmul.f32 %v2410, %v2107
    %v2417 = vmul.f32 %v2406, %v2411
    %v2418 = vadd.f32 %v2416, %v2417
    %v2419 = vtanh.pop %v2418
    %v2420 = vmul.f32 %v2415, %v2419
    %v2421 = vpack.c.bf16 %v2420, %v2420
    %2422 = vmatprep.subr.bf16.mxu0 %v1053
    %2423 = vmatpush1.bf16.msra.mxu0 %v1052
    %2424 = vmatprep.subr.bf16.mxu0 %v1057
    %2425 = vmatpush1.bf16.msra.mxu0 %v1056
    %2426 = vmatprep.subr.bf16.mxu0 %v1061
    %2427 = vmatpush1.bf16.msra.mxu0 %v1060
    %2428 = vmatprep.subr.bf16.mxu0 %v1065
    %2429 = vmatpush1.bf16.msra.mxu0 %v1064
    %2430 = vmatprep.subr.bf16.mxu0 %v1069
    %2431 = vmatpush1.bf16.msra.mxu0 %v1068
    %2432 = vmatprep.subr.bf16.mxu0 %v1073
    %2433 = vmatpush1.bf16.msra.mxu0 %v1072
    %2434 = vmatprep.subr.bf16.mxu0 %v1077
    %2435 = vmatpush1.bf16.msra.mxu0 %v1076
    %2436 = vmatprep.subr.bf16.mxu0 %v1081
    %2437 = vmatpush1.bf16.msra.mxu0 %v1080
    %2438 = vmatprep.subr.bf16.mxu0 %v1085
    %2439 = vmatpush1.bf16.msra.mxu0 %v1084
    %2440 = vmatprep.subr.bf16.mxu0 %v1089
    %2441 = vmatpush1.bf16.msra.mxu0 %v1088
    %2442 = vmatprep.subr.bf16.mxu0 %v1093
    %2443 = vmatpush1.bf16.msra.mxu0 %v1092
    %2444 = vmatprep.subr.bf16.mxu0 %v1097
    %2445 = vmatpush1.bf16.msra.mxu0 %v1096
    %2446 = vmatprep.subr.bf16.mxu0 %v1101
    %2447 = vmatpush1.bf16.msra.mxu0 %v1100
    %2448 = vmatprep.subr.bf16.mxu0 %v1105
    %2449 = vmatpush1.bf16.msra.mxu0 %v1104
    %2450 = vmatprep.subr.bf16.mxu0 %v1109
    %2451 = vmatpush1.bf16.msra.mxu0 %v1108
    %2452 = vmatprep.subr.bf16.mxu0 %v1113
    %2453 = vmatpush1.bf16.msra.mxu0 %v1112
    %2454 = vmatprep.mubr.bf16.mxu0 %v2211
    %2455 = vmatmul.mubr.bf16.gmra.mrb[0].mxu0 %v2421
    %v2456 = vpop.f32.mrb[0].mxu0
    %v2457 = vadd.f32 %v288, %v2456
    %v2458 = vpop.f32.mrb[0].mxu0
    %v2459 = vadd.f32 %v292, %v2458
    %v2460 = vpop.f32.mrb[0].mxu0
    %v2461 = vpop.f32.mrb[0].mxu0
    %2462 = vdwg.mxu0
    %2463 = vmatprep.subr.bf16.mxu0 %v1055
    %2464 = vmatpush1.bf16.msra.mxu0 %v1054
    %2465 = vmatprep.subr.bf16.mxu0 %v1059
    %2466 = vmatpush1.bf16.msra.mxu0 %v1058
    %2467 = vmatprep.subr.bf16.mxu0 %v1063
    %2468 = vmatpush1.bf16.msra.mxu0 %v1062
    %2469 = vmatprep.subr.bf16.mxu0 %v1067
    %2470 = vmatpush1.bf16.msra.mxu0 %v1066
    %2471 = vmatprep.subr.bf16.mxu0 %v1071
    %2472 = vmatpush1.bf16.msra.mxu0 %v1070
    %2473 = vmatprep.subr.bf16.mxu0 %v1075
    %2474 = vmatpush1.bf16.msra.mxu0 %v1074
    %2475 = vmatprep.subr.bf16.mxu0 %v1079
    %2476 = vmatpush1.bf16.msra.mxu0 %v1078
    %2477 = vmatprep.subr.bf16.mxu0 %v1083
    %2478 = vmatpush1.bf16.msra.mxu0 %v1082
    %2479 = vmatprep.subr.bf16.mxu0 %v1087
    %2480 = vmatpush1.bf16.msra.mxu0 %v1086
    %2481 = vmatprep.subr.bf16.mxu0 %v1091
    %2482 = vmatpush1.bf16.msra.mxu0 %v1090
    %2483 = vmatprep.subr.bf16.mxu0 %v1095
    %2484 = vmatpush1.bf16.msra.mxu0 %v1094
    %2485 = vmatprep.subr.bf16.mxu0 %v1099
    %2486 = vmatpush1.bf16.msra.mxu0 %v1098
    %2487 = vmatprep.subr.bf16.mxu0 %v1103
    %2488 = vmatpush1.bf16.msra.mxu0 %v1102
    %2489 = vmatprep.subr.bf16.mxu0 %v1107
    %2490 = vmatpush1.bf16.msra.mxu0 %v1106
    %2491 = vmatprep.subr.bf16.mxu0 %v1111
    %2492 = vmatpush1.bf16.msra.mxu0 %v1110
    %2493 = vmatprep.subr.bf16.mxu0 %v1115
    %2494 = vmatpush1.bf16.msra.mxu0 %v1114
    %2495 = vmatprep.mubr.bf16.mxu0 %v2211
    %2496 = vmatmul.mubr.bf16.gmra.mrb[0].mxu0 %v2421
    %v2497 = vpop.f32.mrb[0].mxu0
    %v2498 = vadd.f32 %v296, %v2497
    %v2499 = vpop.f32.mrb[0].mxu0
    %v2500 = vadd.f32 %v300, %v2499
    %v2501 = vpop.f32.mrb[0].mxu0
    %v2502 = vpop.f32.mrb[0].mxu0
    %2503 = vdwg.mxu0
    %v2504 = vmul.f32 %v2457, 0.5
    %v2505 = vtanh.pop %v2504
    %v2506 = vmul.f32 %v2505, 0.5
    %v2507 = vadd.f32 %v2506, 0.5
    %v2508 = vmul.f32 %v2459, 0.5
    %v2509 = vtanh.pop %v2508
    %v2510 = vmul.f32 %v2509, 0.5
    %v2511 = vadd.f32 %v2510, 0.5
    %v2512 = vtanh.pop %v2498
    %v2513 = vmul.f32 %v2500, 0.5
    %v2514 = vtanh.pop %v2513
    %v2515 = vmul.f32 %v2514, 0.5
    %v2516 = vadd.f32 %v2515, 0.5
    %v2517 = vmul.f32 %v2511, %v2208
    %v2518 = vmul.f32 %v2507, %v2512
    %v2519 = vadd.f32 %v2517, %v2518
    %v2520 = vtanh.pop %v2519
    %v2521 = vmul.f32 %v2516, %v2520
    %v2522 = vpack.c.bf16 %v2521, %v2521
    %v2523 = vld [vmem:[#allocation18 + $0x100] sm:$0xf]
    %v2524 = vld [vmem:[#allocation18 + $0x104] sm:$0xf]
    %v2525 = vld [vmem:[#allocation18 + $0x108] sm:$0xf]
    %v2526 = vld [vmem:[#allocation18 + $0x10c] sm:$0xf]
    %v2527 = vld [vmem:[#allocation18 + $0x110] sm:$0xf]
    %v2528 = vld [vmem:[#allocation18 + $0x114] sm:$0xf]
    %v2529 = vld [vmem:[#allocation18 + $0x118] sm:$0xf]
    %v2530 = vld [vmem:[#allocation18 + $0x11c] sm:$0xf]
    %v2531 = vld [vmem:[#allocation18 + $0x120] sm:$0xf]
    %v2532 = vld [vmem:[#allocation18 + $0x124] sm:$0xf]
    %v2533 = vld [vmem:[#allocation18 + $0x128] sm:$0xf]
    %v2534 = vld [vmem:[#allocation18 + $0x12c] sm:$0xf]
    %v2535 = vld [vmem:[#allocation18 + $0x130] sm:$0xf]
    %v2536 = vld [vmem:[#allocation18 + $0x134] sm:$0xf]
    %v2537 = vld [vmem:[#allocation18 + $0x138] sm:$0xf]
    %v2538 = vld [vmem:[#allocation18 + $0x13c] sm:$0xf]
    %v2555 = vunpack.c.l.b16 %v2523
    %v2556 = vunpack.c.l.b16 %v2524
    %v2557 = vunpack.c.l.b16 %v2525
    %v2558 = vunpack.c.l.b16 %v2526
    %v2559 = vunpack.c.l.b16 %v2527
    %v2560 = vunpack.c.l.b16 %v2528
    %v2561 = vunpack.c.l.b16 %v2529
    %v2562 = vunpack.c.l.b16 %v2530
    %v2563 = vunpack.c.l.b16 %v2531
    %v2564 = vunpack.c.l.b16 %v2532
    %v2565 = vunpack.c.l.b16 %v2533
    %v2566 = vunpack.c.l.b16 %v2534
    %v2567 = vunpack.c.l.b16 %v2535
    %v2568 = vunpack.c.l.b16 %v2536
    %v2569 = vunpack.c.l.b16 %v2537
    %v2570 = vunpack.c.l.b16 %v2538
    %v2571 = vpack.c.b16 %v2556, %v2555
    %v2572 = vpack.c.b16 %v2558, %v2557
    %v2573 = vpack.c.b16 %v2560, %v2559
    %v2574 = vpack.c.b16 %v2562, %v2561
    %v2575 = vpack.c.b16 %v2564, %v2563
    %v2576 = vpack.c.b16 %v2566, %v2565
    %v2577 = vpack.c.b16 %v2568, %v2567
    %v2578 = vpack.c.b16 %v2570, %v2569
    %2587 = vmatprep.subr.bf16.mxu0 0
    %2588 = vmatpush1.bf16.msra.mxu0 %v2571
    %2589 = vmatprep.subr.bf16.mxu0 0
    %2590 = vmatpush1.bf16.msra.mxu0 %v2572
    %2591 = vmatprep.subr.bf16.mxu0 0
    %2592 = vmatpush1.bf16.msra.mxu0 %v2573
    %2593 = vmatprep.subr.bf16.mxu0 0
    %2594 = vmatpush1.bf16.msra.mxu0 %v2574
    %2595 = vmatprep.subr.bf16.mxu0 0
    %2596 = vmatpush1.bf16.msra.mxu0 %v2575
    %2597 = vmatprep.subr.bf16.mxu0 0
    %2598 = vmatpush1.bf16.msra.mxu0 %v2576
    %2599 = vmatprep.subr.bf16.mxu0 0
    %2600 = vmatpush1.bf16.msra.mxu0 %v2577
    %2601 = vmatprep.subr.bf16.mxu0 0
    %2602 = vmatpush1.bf16.msra.mxu0 %v2578
    %2603 = vmatprep.subr.bf16.mxu0 0
    %2604 = vmatpush1.bf16.msra.mxu0 0
    %2605 = vmatprep.subr.bf16.mxu0 0
    %2606 = vmatpush1.bf16.msra.mxu0 0
    %2607 = vmatprep.subr.bf16.mxu0 0
    %2608 = vmatpush1.bf16.msra.mxu0 0
    %2609 = vmatprep.subr.bf16.mxu0 0
    %2610 = vmatpush1.bf16.msra.mxu0 0
    %2611 = vmatprep.subr.bf16.mxu0 0
    %2612 = vmatpush1.bf16.msra.mxu0 0
    %2613 = vmatprep.subr.bf16.mxu0 0
    %2614 = vmatpush1.bf16.msra.mxu0 0
    %2615 = vmatprep.subr.bf16.mxu0 0
    %2616 = vmatpush1.bf16.msra.mxu0 0
    %2617 = vmatprep.subr.bf16.mxu0 0
    %2618 = vmatpush1.bf16.msra.mxu0 0
    %2619 = vmatprep.mubr.bf16.mxu0 0
    %2620 = vmatmul.mubr.bf16.gmra.mrb[0].mxu0 %v2522
    %v2621 = vpop.f32.mrb[0].mxu0
    %v2622 = vadd.f32 0.0, %v2621
    %v2623 = vpop.f32.mrb[0].mxu0
    %v2624 = vpop.f32.mrb[0].mxu0
    %v2625 = vpop.f32.mrb[0].mxu0
    %2626 = vdwg.mxu0
    %v2627 = vadd.f32 %v2316, %v2622
    %v2628 = vld [vmem:[#allocation2 + $0xa0] sm:$0xff]
    %v2629 = vld [vmem:[#allocation2 + $0xa8] sm:$0xff]
    %v2630 = vld [vmem:[#allocation2 + $0xb0] sm:$0xff]
    %v2631 = vld [vmem:[#allocation2 + $0xb8] sm:$0xff]
    %2632 = vmatprep.subr.bf16.mxu0 %v631
    %2633 = vmatpush1.bf16.msra.mxu0 %v630
    %2634 = vmatprep.subr.bf16.mxu0 %v635
    %2635 = vmatpush1.bf16.msra.mxu0 %v634
    %2636 = vmatprep.subr.bf16.mxu0 %v639
    %2637 = vmatpush1.bf16.msra.mxu0 %v638
    %2638 = vmatprep.subr.bf16.mxu0 %v643
    %2639 = vmatpush1.bf16.msra.mxu0 %v642
    %2640 = vmatprep.subr.bf16.mxu0 %v647
    %2641 = vmatpush1.bf16.msra.mxu0 %v646
    %2642 = vmatprep.subr.bf16.mxu0 %v651
    %2643 = vmatpush1.bf16.msra.mxu0 %v650
    %2644 = vmatprep.subr.bf16.mxu0 %v655
    %2645 = vmatpush1.bf16.msra.mxu0 %v654
    %2646 = vmatprep.subr.bf16.mxu0 %v659
    %2647 = vmatpush1.bf16.msra.mxu0 %v658
    %2648 = vmatprep.subr.bf16.mxu0 0
    %2649 = vmatpush1.bf16.msra.mxu0 0
    %2650 = vmatprep.subr.bf16.mxu0 0
    %2651 = vmatpush1.bf16.msra.mxu0 0
    %2652 = vmatprep.subr.bf16.mxu0 0
    %2653 = vmatpush1.bf16.msra.mxu0 0
    %2654 = vmatprep.subr.bf16.mxu0 0
    %2655 = vmatpush1.bf16.msra.mxu0 0
    %2656 = vmatprep.subr.bf16.mxu0 0
    %2657 = vmatpush1.bf16.msra.mxu0 0
    %2658 = vmatprep.subr.bf16.mxu0 0
    %2659 = vmatpush1.bf16.msra.mxu0 0
    %2660 = vmatprep.subr.bf16.mxu0 0
    %2661 = vmatpush1.bf16.msra.mxu0 0
    %2662 = vmatprep.subr.bf16.mxu0 0
    %2663 = vmatpush1.bf16.msra.mxu0 0
    %2664 = vmatprep.mubr.bf16.mxu0 0
    %2665 = vmatmul.mubr.bf16.gmra.mrb[0].mxu0 %v2421
    %v2666 = vpop.f32.mrb[0].mxu0
    %v2667 = vadd.f32 %v2628, %v2666
    %v2668 = vpop.f32.mrb[0].mxu0
    %v2669 = vadd.f32 %v2629, %v2668
    %v2670 = vpop.f32.mrb[0].mxu0
    %v2671 = vpop.f32.mrb[0].mxu0
    %2672 = vdwg.mxu0
    %2673 = vmatprep.subr.bf16.mxu0 %v633
    %2674 = vmatpush1.bf16.msra.mxu0 %v632
    %2675 = vmatprep.subr.bf16.mxu0 %v637
    %2676 = vmatpush1.bf16.msra.mxu0 %v636
    %2677 = vmatprep.subr.bf16.mxu0 %v641
    %2678 = vmatpush1.bf16.msra.mxu0 %v640
    %2679 = vmatprep.subr.bf16.mxu0 %v645
    %2680 = vmatpush1.bf16.msra.mxu0 %v644
    %2681 = vmatprep.subr.bf16.mxu0 %v649
    %2682 = vmatpush1.bf16.msra.mxu0 %v648
    %2683 = vmatprep.subr.bf16.mxu0 %v653
    %2684 = vmatpush1.bf16.msra.mxu0 %v652
    %2685 = vmatprep.subr.bf16.mxu0 %v657
    %2686 = vmatpush1.bf16.msra.mxu0 %v656
    %2687 = vmatprep.subr.bf16.mxu0 %v661
    %2688 = vmatpush1.bf16.msra.mxu0 %v660
    %2689 = vmatprep.subr.bf16.mxu0 0
    %2690 = vmatpush1.bf16.msra.mxu0 0
    %2691 = vmatprep.subr.bf16.mxu0 0
    %2692 = vmatpush1.bf16.msra.mxu0 0
    %2693 = vmatprep.subr.bf16.mxu0 0
    %2694 = vmatpush1.bf16.msra.mxu0 0
    %2695 = vmatprep.subr.bf16.mxu0 0
    %2696 = vmatpush1.bf16.msra.mxu0 0
    %2697 = vmatprep.subr.bf16.mxu0 0
    %2698 = vmatpush1.bf16.msra.mxu0 0
    %2699 = vmatprep.subr.bf16.mxu0 0
    %2700 = vmatpush1.bf16.msra.mxu0 0
    %2701 = vmatprep.subr.bf16.mxu0 0
    %2702 = vmatpush1.bf16.msra.mxu0 0
    %2703 = vmatprep.subr.bf16.mxu0 0
    %2704 = vmatpush1.bf16.msra.mxu0 0
    %2705 = vmatprep.mubr.bf16.mxu0 0
    %2706 = vmatmul.mubr.bf16.gmra.mrb[0].mxu0 %v2421
    %v2707 = vpop.f32.mrb[0].mxu0
    %v2708 = vadd.f32 %v2630, %v2707
    %v2709 = vpop.f32.mrb[0].mxu0
    %v2710 = vadd.f32 %v2631, %v2709
    %v2711 = vpop.f32.mrb[0].mxu0
    %v2712 = vpop.f32.mrb[0].mxu0
    %2713 = vdwg.mxu0
    %v2714 = vmul.f32 %v2667, 0.5
    %v2715 = vtanh.pop %v2714
    %v2716 = vmul.f32 %v2715, 0.5
    %v2717 = vadd.f32 %v2716, 0.5
    %v2718 = vmul.f32 %v2669, 0.5
    %v2719 = vtanh.pop %v2718
    %v2720 = vmul.f32 %v2719, 0.5
    %v2721 = vadd.f32 %v2720, 0.5
    %v2722 = vtanh.pop %v2708
    %v2723 = vmul.f32 %v2710, 0.5
    %v2724 = vtanh.pop %v2723
    %v2725 = vmul.f32 %v2724, 0.5
    %v2726 = vadd.f32 %v2725, 0.5
    %v2727 = vmul.f32 %v2721, %v2418
    %v2728 = vmul.f32 %v2717, %v2722
    %v2729 = vadd.f32 %v2727, %v2728
    %v2730 = vtanh.pop %v2729
    %v2731 = vmul.f32 %v2726, %v2730
    %v2732 = vpack.c.bf16 %v2731, %v2731
    %2733 = vmatprep.subr.bf16.mxu0 %v1053
    %2734 = vmatpush1.bf16.msra.mxu0 %v1052
    %2735 = vmatprep.subr.bf16.mxu0 %v1057
    %2736 = vmatpush1.bf16.msra.mxu0 %v1056
    %2737 = vmatprep.subr.bf16.mxu0 %v1061
    %2738 = vmatpush1.bf16.msra.mxu0 %v1060
    %2739 = vmatprep.subr.bf16.mxu0 %v1065
    %2740 = vmatpush1.bf16.msra.mxu0 %v1064
    %2741 = vmatprep.subr.bf16.mxu0 %v1069
    %2742 = vmatpush1.bf16.msra.mxu0 %v1068
    %2743 = vmatprep.subr.bf16.mxu0 %v1073
    %2744 = vmatpush1.bf16.msra.mxu0 %v1072
    %2745 = vmatprep.subr.bf16.mxu0 %v1077
    %2746 = vmatpush1.bf16.msra.mxu0 %v1076
    %2747 = vmatprep.subr.bf16.mxu0 %v1081
    %2748 = vmatpush1.bf16.msra.mxu0 %v1080
    %2749 = vmatprep.subr.bf16.mxu0 %v1085
    %2750 = vmatpush1.bf16.msra.mxu0 %v1084
    %2751 = vmatprep.subr.bf16.mxu0 %v1089
    %2752 = vmatpush1.bf16.msra.mxu0 %v1088
    %2753 = vmatprep.subr.bf16.mxu0 %v1093
    %2754 = vmatpush1.bf16.msra.mxu0 %v1092
    %2755 = vmatprep.subr.bf16.mxu0 %v1097
    %2756 = vmatpush1.bf16.msra.mxu0 %v1096
    %2757 = vmatprep.subr.bf16.mxu0 %v1101
    %2758 = vmatpush1.bf16.msra.mxu0 %v1100
    %2759 = vmatprep.subr.bf16.mxu0 %v1105
    %2760 = vmatpush1.bf16.msra.mxu0 %v1104
    %2761 = vmatprep.subr.bf16.mxu0 %v1109
    %2762 = vmatpush1.bf16.msra.mxu0 %v1108
    %2763 = vmatprep.subr.bf16.mxu0 %v1113
    %2764 = vmatpush1.bf16.msra.mxu0 %v1112
    %2765 = vmatprep.mubr.bf16.mxu0 %v2522
    %2766 = vmatmul.mubr.bf16.gmra.mrb[0].mxu0 %v2732
    %v2767 = vpop.f32.mrb[0].mxu0
    %v2768 = vadd.f32 %v288, %v2767
    %v2769 = vpop.f32.mrb[0].mxu0
    %v2770 = vadd.f32 %v292, %v2769
    %v2771 = vpop.f32.mrb[0].mxu0
    %v2772 = vpop.f32.mrb[0].mxu0
    %2773 = vdwg.mxu0
    %2774 = vmatprep.subr.bf16.mxu0 %v1055
    %2775 = vmatpush1.bf16.msra.mxu0 %v1054
    %2776 = vmatprep.subr.bf16.mxu0 %v1059
    %2777 = vmatpush1.bf16.msra.mxu0 %v1058
    %2778 = vmatprep.subr.bf16.mxu0 %v1063
    %2779 = vmatpush1.bf16.msra.mxu0 %v1062
    %2780 = vmatprep.subr.bf16.mxu0 %v1067
    %2781 = vmatpush1.bf16.msra.mxu0 %v1066
    %2782 = vmatprep.subr.bf16.mxu0 %v1071
    %2783 = vmatpush1.bf16.msra.mxu0 %v1070
    %2784 = vmatprep.subr.bf16.mxu0 %v1075
    %2785 = vmatpush1.bf16.msra.mxu0 %v1074
    %2786 = vmatprep.subr.bf16.mxu0 %v1079
    %2787 = vmatpush1.bf16.msra.mxu0 %v1078
    %2788 = vmatprep.subr.bf16.mxu0 %v1083
    %2789 = vmatpush1.bf16.msra.mxu0 %v1082
    %2790 = vmatprep.subr.bf16.mxu0 %v1087
    %2791 = vmatpush1.bf16.msra.mxu0 %v1086
    %2792 = vmatprep.subr.bf16.mxu0 %v1091
    %2793 = vmatpush1.bf16.msra.mxu0 %v1090
    %2794 = vmatprep.subr.bf16.mxu0 %v1095
    %2795 = vmatpush1.bf16.msra.mxu0 %v1094
    %2796 = vmatprep.subr.bf16.mxu0 %v1099
    %2797 = vmatpush1.bf16.msra.mxu0 %v1098
    %2798 = vmatprep.subr.bf16.mxu0 %v1103
    %2799 = vmatpush1.bf16.msra.mxu0 %v1102
    %2800 = vmatprep.subr.bf16.mxu0 %v1107
    %2801 = vmatpush1.bf16.msra.mxu0 %v1106
    %2802 = vmatprep.subr.bf16.mxu0 %v1111
    %2803 = vmatpush1.bf16.msra.mxu0 %v1110
    %2804 = vmatprep.subr.bf16.mxu0 %v1115
    %2805 = vmatpush1.bf16.msra.mxu0 %v1114
    %2806 = vmatprep.mubr.bf16.mxu0 %v2522
    %2807 = vmatmul.mubr.bf16.gmra.mrb[0].mxu0 %v2732
    %v2808 = vpop.f32.mrb[0].mxu0
    %v2809 = vadd.f32 %v296, %v2808
    %v2810 = vpop.f32.mrb[0].mxu0
    %v2811 = vadd.f32 %v300, %v2810
    %v2812 = vpop.f32.mrb[0].mxu0
    %v2813 = vpop.f32.mrb[0].mxu0
    %2814 = vdwg.mxu0
    %v2815 = vmul.f32 %v2768, 0.5
    %v2816 = vtanh.pop %v2815
    %v2817 = vmul.f32 %v2816, 0.5
    %v2818 = vadd.f32 %v2817, 0.5
    %v2819 = vmul.f32 %v2770, 0.5
    %v2820 = vtanh.pop %v2819
    %v2821 = vmul.f32 %v2820, 0.5
    %v2822 = vadd.f32 %v2821, 0.5
    %v2823 = vtanh.pop %v2809
    %v2824 = vmul.f32 %v2811, 0.5
    %v2825 = vtanh.pop %v2824
    %v2826 = vmul.f32 %v2825, 0.5
    %v2827 = vadd.f32 %v2826, 0.5
    %v2828 = vmul.f32 %v2822, %v2519
    %v2829 = vmul.f32 %v2818, %v2823
    %v2830 = vadd.f32 %v2828, %v2829
    %v2831 = vtanh.pop %v2830
    %v2832 = vmul.f32 %v2827, %v2831
    %v2833 = vpack.c.bf16 %v2832, %v2832
    %v2834 = vld [vmem:[#allocation18 + $0x140] sm:$0xf]
    %v2835 = vld [vmem:[#allocation18 + $0x144] sm:$0xf]
    %v2836 = vld [vmem:[#allocation18 + $0x148] sm:$0xf]
    %v2837 = vld [vmem:[#allocation18 + $0x14c] sm:$0xf]
    %v2838 = vld [vmem:[#allocation18 + $0x150] sm:$0xf]
    %v2839 = vld [vmem:[#allocation18 + $0x154] sm:$0xf]
    %v2840 = vld [vmem:[#allocation18 + $0x158] sm:$0xf]
    %v2841 = vld [vmem:[#allocation18 + $0x15c] sm:$0xf]
    %v2842 = vld [vmem:[#allocation18 + $0x160] sm:$0xf]
    %v2843 = vld [vmem:[#allocation18 + $0x164] sm:$0xf]
    %v2844 = vld [vmem:[#allocation18 + $0x168] sm:$0xf]
    %v2845 = vld [vmem:[#allocation18 + $0x16c] sm:$0xf]
    %v2846 = vld [vmem:[#allocation18 + $0x170] sm:$0xf]
    %v2847 = vld [vmem:[#allocation18 + $0x174] sm:$0xf]
    %v2848 = vld [vmem:[#allocation18 + $0x178] sm:$0xf]
    %v2849 = vld [vmem:[#allocation18 + $0x17c] sm:$0xf]
    %v2866 = vunpack.c.l.b16 %v2834
    %v2867 = vunpack.c.l.b16 %v2835
    %v2868 = vunpack.c.l.b16 %v2836
    %v2869 = vunpack.c.l.b16 %v2837
    %v2870 = vunpack.c.l.b16 %v2838
    %v2871 = vunpack.c.l.b16 %v2839
    %v2872 = vunpack.c.l.b16 %v2840
    %v2873 = vunpack.c.l.b16 %v2841
    %v2874 = vunpack.c.l.b16 %v2842
    %v2875 = vunpack.c.l.b16 %v2843
    %v2876 = vunpack.c.l.b16 %v2844
    %v2877 = vunpack.c.l.b16 %v2845
    %v2878 = vunpack.c.l.b16 %v2846
    %v2879 = vunpack.c.l.b16 %v2847
    %v2880 = vunpack.c.l.b16 %v2848
    %v2881 = vunpack.c.l.b16 %v2849
    %v2882 = vpack.c.b16 %v2867, %v2866
    %v2883 = vpack.c.b16 %v2869, %v2868
    %v2884 = vpack.c.b16 %v2871, %v2870
    %v2885 = vpack.c.b16 %v2873, %v2872
    %v2886 = vpack.c.b16 %v2875, %v2874
    %v2887 = vpack.c.b16 %v2877, %v2876
    %v2888 = vpack.c.b16 %v2879, %v2878
    %v2889 = vpack.c.b16 %v2881, %v2880
    %2898 = vmatprep.subr.bf16.mxu0 0
    %2899 = vmatpush1.bf16.msra.mxu0 %v2882
    %2900 = vmatprep.subr.bf16.mxu0 0
    %2901 = vmatpush1.bf16.msra.mxu0 %v2883
    %2902 = vmatprep.subr.bf16.mxu0 0
    %2903 = vmatpush1.bf16.msra.mxu0 %v2884
    %2904 = vmatprep.subr.bf16.mxu0 0
    %2905 = vmatpush1.bf16.msra.mxu0 %v2885
    %2906 = vmatprep.subr.bf16.mxu0 0
    %2907 = vmatpush1.bf16.msra.mxu0 %v2886
    %2908 = vmatprep.subr.bf16.mxu0 0
    %2909 = vmatpush1.bf16.msra.mxu0 %v2887
    %2910 = vmatprep.subr.bf16.mxu0 0
    %2911 = vmatpush1.bf16.msra.mxu0 %v2888
    %2912 = vmatprep.subr.bf16.mxu0 0
    %2913 = vmatpush1.bf16.msra.mxu0 %v2889
    %2914 = vmatprep.subr.bf16.mxu0 0
    %2915 = vmatpush1.bf16.msra.mxu0 0
    %2916 = vmatprep.subr.bf16.mxu0 0
    %2917 = vmatpush1.bf16.msra.mxu0 0
    %2918 = vmatprep.subr.bf16.mxu0 0
    %2919 = vmatpush1.bf16.msra.mxu0 0
    %2920 = vmatprep.subr.bf16.mxu0 0
    %2921 = vmatpush1.bf16.msra.mxu0 0
    %2922 = vmatprep.subr.bf16.mxu0 0
    %2923 = vmatpush1.bf16.msra.mxu0 0
    %2924 = vmatprep.subr.bf16.mxu0 0
    %2925 = vmatpush1.bf16.msra.mxu0 0
    %2926 = vmatprep.subr.bf16.mxu0 0
    %2927 = vmatpush1.bf16.msra.mxu0 0
    %2928 = vmatprep.subr.bf16.mxu0 0
    %2929 = vmatpush1.bf16.msra.mxu0 0
    %2930 = vmatprep.mubr.bf16.mxu0 0
    %2931 = vmatmul.mubr.bf16.gmra.mrb[0].mxu0 %v2833
    %v2932 = vpop.f32.mrb[0].mxu0
    %v2933 = vadd.f32 0.0, %v2932
    %v2934 = vpop.f32.mrb[0].mxu0
    %v2935 = vpop.f32.mrb[0].mxu0
    %v2936 = vpop.f32.mrb[0].mxu0
    %2937 = vdwg.mxu0
    %v2938 = vadd.f32 %v2627, %v2933
    %v2939 = vld [vmem:[#allocation2 + $0xc0] sm:$0xff]
    %v2940 = vld [vmem:[#allocation2 + $0xc8] sm:$0xff]
    %v2941 = vld [vmem:[#allocation2 + $0xd0] sm:$0xff]
    %v2942 = vld [vmem:[#allocation2 + $0xd8] sm:$0xff]
    %2943 = vmatprep.subr.bf16.mxu0 %v631
    %2944 = vmatpush1.bf16.msra.mxu0 %v630
    %2945 = vmatprep.subr.bf16.mxu0 %v635
    %2946 = vmatpush1.bf16.msra.mxu0 %v634
    %2947 = vmatprep.subr.bf16.mxu0 %v639
    %2948 = vmatpush1.bf16.msra.mxu0 %v638
    %2949 = vmatprep.subr.bf16.mxu0 %v643
    %2950 = vmatpush1.bf16.msra.mxu0 %v642
    %2951 = vmatprep.subr.bf16.mxu0 %v647
    %2952 = vmatpush1.bf16.msra.mxu0 %v646
    %2953 = vmatprep.subr.bf16.mxu0 %v651
    %2954 = vmatpush1.bf16.msra.mxu0 %v650
    %2955 = vmatprep.subr.bf16.mxu0 %v655
    %2956 = vmatpush1.bf16.msra.mxu0 %v654
    %2957 = vmatprep.subr.bf16.mxu0 %v659
    %2958 = vmatpush1.bf16.msra.mxu0 %v658
    %2959 = vmatprep.subr.bf16.mxu0 0
    %2960 = vmatpush1.bf16.msra.mxu0 0
    %2961 = vmatprep.subr.bf16.mxu0 0
    %2962 = vmatpush1.bf16.msra.mxu0 0
    %2963 = vmatprep.subr.bf16.mxu0 0
    %2964 = vmatpush1.bf16.msra.mxu0 0
    %2965 = vmatprep.subr.bf16.mxu0 0
    %2966 = vmatpush1.bf16.msra.mxu0 0
    %2967 = vmatprep.subr.bf16.mxu0 0
    %2968 = vmatpush1.bf16.msra.mxu0 0
    %2969 = vmatprep.subr.bf16.mxu0 0
    %2970 = vmatpush1.bf16.msra.mxu0 0
    %2971 = vmatprep.subr.bf16.mxu0 0
    %2972 = vmatpush1.bf16.msra.mxu0 0
    %2973 = vmatprep.subr.bf16.mxu0 0
    %2974 = vmatpush1.bf16.msra.mxu0 0
    %2975 = vmatprep.mubr.bf16.mxu0 0
    %2976 = vmatmul.mubr.bf16.gmra.mrb[0].mxu0 %v2732
    %v2977 = vpop.f32.mrb[0].mxu0
    %v2978 = vadd.f32 %v2939, %v2977
    %v2979 = vpop.f32.mrb[0].mxu0
    %v2980 = vadd.f32 %v2940, %v2979
    %v2981 = vpop.f32.mrb[0].mxu0
    %v2982 = vpop.f32.mrb[0].mxu0
    %2983 = vdwg.mxu0
    %2984 = vmatprep.subr.bf16.mxu0 %v633
    %2985 = vmatpush1.bf16.msra.mxu0 %v632
    %2986 = vmatprep.subr.bf16.mxu0 %v637
    %2987 = vmatpush1.bf16.msra.mxu0 %v636
    %2988 = vmatprep.subr.bf16.mxu0 %v641
    %2989 = vmatpush1.bf16.msra.mxu0 %v640
    %2990 = vmatprep.subr.bf16.mxu0 %v645
    %2991 = vmatpush1.bf16.msra.mxu0 %v644
    %2992 = vmatprep.subr.bf16.mxu0 %v649
    %2993 = vmatpush1.bf16.msra.mxu0 %v648
    %2994 = vmatprep.subr.bf16.mxu0 %v653
    %2995 = vmatpush1.bf16.msra.mxu0 %v652
    %2996 = vmatprep.subr.bf16.mxu0 %v657
    %2997 = vmatpush1.bf16.msra.mxu0 %v656
    %2998 = vmatprep.subr.bf16.mxu0 %v661
    %2999 = vmatpush1.bf16.msra.mxu0 %v660
    %3000 = vmatprep.subr.bf16.mxu0 0
    %3001 = vmatpush1.bf16.msra.mxu0 0
    %3002 = vmatprep.subr.bf16.mxu0 0
    %3003 = vmatpush1.bf16.msra.mxu0 0
    %3004 = vmatprep.subr.bf16.mxu0 0
    %3005 = vmatpush1.bf16.msra.mxu0 0
    %3006 = vmatprep.subr.bf16.mxu0 0
    %3007 = vmatpush1.bf16.msra.mxu0 0
    %3008 = vmatprep.subr.bf16.mxu0 0
    %3009 = vmatpush1.bf16.msra.mxu0 0
    %3010 = vmatprep.subr.bf16.mxu0 0
    %3011 = vmatpush1.bf16.msra.mxu0 0
    %3012 = vmatprep.subr.bf16.mxu0 0
    %3013 = vmatpush1.bf16.msra.mxu0 0
    %3014 = vmatprep.subr.bf16.mxu0 0
    %3015 = vmatpush1.bf16.msra.mxu0 0
    %3016 = vmatprep.mubr.bf16.mxu0 0
    %3017 = vmatmul.mubr.bf16.gmra.mrb[0].mxu0 %v2732
    %v3018 = vpop.f32.mrb[0].mxu0
    %v3019 = vadd.f32 %v2941, %v3018
    %v3020 = vpop.f32.mrb[0].mxu0
    %v3021 = vadd.f32 %v2942, %v3020
    %v3022 = vpop.f32.mrb[0].mxu0
    %v3023 = vpop.f32.mrb[0].mxu0
    %3024 = vdwg.mxu0
    %v3025 = vmul.f32 %v2978, 0.5
    %v3026 = vtanh.pop %v3025
    %v3027 = vmul.f32 %v3026, 0.5
    %v3028 = vadd.f32 %v3027, 0.5
    %v3029 = vmul.f32 %v2980, 0.5
    %v3030 = vtanh.pop %v3029
    %v3031 = vmul.f32 %v3030, 0.5
    %v3032 = vadd.f32 %v3031, 0.5
    %v3033 = vtanh.pop %v3019
    %v3034 = vmul.f32 %v3021, 0.5
    %v3035 = vtanh.pop %v3034
    %v3036 = vmul.f32 %v3035, 0.5
    %v3037 = vadd.f32 %v3036, 0.5
    %v3038 = vmul.f32 %v3032, %v2729
    %v3039 = vmul.f32 %v3028, %v3033
    %v3040 = vadd.f32 %v3038, %v3039
    %v3041 = vtanh.pop %v3040
    %v3042 = vmul.f32 %v3037, %v3041
    %v3043 = vpack.c.bf16 %v3042, %v3042
    %3044 = vmatprep.subr.bf16.mxu0 %v1053
    %3045 = vmatpush1.bf16.msra.mxu0 %v1052
    %3046 = vmatprep.subr.bf16.mxu0 %v1057
    %3047 = vmatpush1.bf16.msra.mxu0 %v1056
    %3048 = vmatprep.subr.bf16.mxu0 %v1061
    %3049 = vmatpush1.bf16.msra.mxu0 %v1060
    %3050 = vmatprep.subr.bf16.mxu0 %v1065
    %3051 = vmatpush1.bf16.msra.mxu0 %v1064
    %3052 = vmatprep.subr.bf16.mxu0 %v1069
    %3053 = vmatpush1.bf16.msra.mxu0 %v1068
    %3054 = vmatprep.subr.bf16.mxu0 %v1073
    %3055 = vmatpush1.bf16.msra.mxu0 %v1072
    %3056 = vmatprep.subr.bf16.mxu0 %v1077
    %3057 = vmatpush1.bf16.msra.mxu0 %v1076
    %3058 = vmatprep.subr.bf16.mxu0 %v1081
    %3059 = vmatpush1.bf16.msra.mxu0 %v1080
    %3060 = vmatprep.subr.bf16.mxu0 %v1085
    %3061 = vmatpush1.bf16.msra.mxu0 %v1084
    %3062 = vmatprep.subr.bf16.mxu0 %v1089
    %3063 = vmatpush1.bf16.msra.mxu0 %v1088
    %3064 = vmatprep.subr.bf16.mxu0 %v1093
    %3065 = vmatpush1.bf16.msra.mxu0 %v1092
    %3066 = vmatprep.subr.bf16.mxu0 %v1097
    %3067 = vmatpush1.bf16.msra.mxu0 %v1096
    %3068 = vmatprep.subr.bf16.mxu0 %v1101
    %3069 = vmatpush1.bf16.msra.mxu0 %v1100
    %3070 = vmatprep.subr.bf16.mxu0 %v1105
    %3071 = vmatpush1.bf16.msra.mxu0 %v1104
    %3072 = vmatprep.subr.bf16.mxu0 %v1109
    %3073 = vmatpush1.bf16.msra.mxu0 %v1108
    %3074 = vmatprep.subr.bf16.mxu0 %v1113
    %3075 = vmatpush1.bf16.msra.mxu0 %v1112
    %3076 = vmatprep.mubr.bf16.mxu0 %v2833
    %3077 = vmatmul.mubr.bf16.gmra.mrb[0].mxu0 %v3043
    %v3078 = vpop.f32.mrb[0].mxu0
    %v3079 = vadd.f32 %v288, %v3078
    %v3080 = vpop.f32.mrb[0].mxu0
    %v3081 = vadd.f32 %v292, %v3080
    %v3082 = vpop.f32.mrb[0].mxu0
    %v3083 = vpop.f32.mrb[0].mxu0
    %3084 = vdwg.mxu0
    %3085 = vmatprep.subr.bf16.mxu0 %v1055
    %3086 = vmatpush1.bf16.msra.mxu0 %v1054
    %3087 = vmatprep.subr.bf16.mxu0 %v1059
    %3088 = vmatpush1.bf16.msra.mxu0 %v1058
    %3089 = vmatprep.subr.bf16.mxu0 %v1063
    %3090 = vmatpush1.bf16.msra.mxu0 %v1062
    %3091 = vmatprep.subr.bf16.mxu0 %v1067
    %3092 = vmatpush1.bf16.msra.mxu0 %v1066
    %3093 = vmatprep.subr.bf16.mxu0 %v1071
    %3094 = vmatpush1.bf16.msra.mxu0 %v1070
    %3095 = vmatprep.subr.bf16.mxu0 %v1075
    %3096 = vmatpush1.bf16.msra.mxu0 %v1074
    %3097 = vmatprep.subr.bf16.mxu0 %v1079
    %3098 = vmatpush1.bf16.msra.mxu0 %v1078
    %3099 = vmatprep.subr.bf16.mxu0 %v1083
    %3100 = vmatpush1.bf16.msra.mxu0 %v1082
    %3101 = vmatprep.subr.bf16.mxu0 %v1087
    %3102 = vmatpush1.bf16.msra.mxu0 %v1086
    %3103 = vmatprep.subr.bf16.mxu0 %v1091
    %3104 = vmatpush1.bf16.msra.mxu0 %v1090
    %3105 = vmatprep.subr.bf16.mxu0 %v1095
    %3106 = vmatpush1.bf16.msra.mxu0 %v1094
    %3107 = vmatprep.subr.bf16.mxu0 %v1099
    %3108 = vmatpush1.bf16.msra.mxu0 %v1098
    %3109 = vmatprep.subr.bf16.mxu0 %v1103
    %3110 = vmatpush1.bf16.msra.mxu0 %v1102
    %3111 = vmatprep.subr.bf16.mxu0 %v1107
    %3112 = vmatpush1.bf16.msra.mxu0 %v1106
    %3113 = vmatprep.subr.bf16.mxu0 %v1111
    %3114 = vmatpush1.bf16.msra.mxu0 %v1110
    %3115 = vmatprep.subr.bf16.mxu0 %v1115
    %3116 = vmatpush1.bf16.msra.mxu0 %v1114
    %3117 = vmatprep.mubr.bf16.mxu0 %v2833
    %3118 = vmatmul.mubr.bf16.gmra.mrb[0].mxu0 %v3043
    %v3119 = vpop.f32.mrb[0].mxu0
    %v3120 = vadd.f32 %v296, %v3119
    %v3121 = vpop.f32.mrb[0].mxu0
    %v3122 = vadd.f32 %v300, %v3121
    %v3123 = vpop.f32.mrb[0].mxu0
    %v3124 = vpop.f32.mrb[0].mxu0
    %3125 = vdwg.mxu0
    %v3126 = vmul.f32 %v3079, 0.5
    %v3127 = vtanh.pop %v3126
    %v3128 = vmul.f32 %v3127, 0.5
    %v3129 = vadd.f32 %v3128, 0.5
    %v3130 = vmul.f32 %v3081, 0.5
    %v3131 = vtanh.pop %v3130
    %v3132 = vmul.f32 %v3131, 0.5
    %v3133 = vadd.f32 %v3132, 0.5
    %v3134 = vtanh.pop %v3120
    %v3135 = vmul.f32 %v3122, 0.5
    %v3136 = vtanh.pop %v3135
    %v3137 = vmul.f32 %v3136, 0.5
    %v3138 = vadd.f32 %v3137, 0.5
    %v3139 = vmul.f32 %v3133, %v2830
    %v3140 = vmul.f32 %v3129, %v3134
    %v3141 = vadd.f32 %v3139, %v3140
    %v3142 = vtanh.pop %v3141
    %v3143 = vmul.f32 %v3138, %v3142
    %v3144 = vpack.c.bf16 %v3143, %v3143
    %v3145 = vld [vmem:[#allocation18 + $0x180] sm:$0xf]
    %v3146 = vld [vmem:[#allocation18 + $0x184] sm:$0xf]
    %v3147 = vld [vmem:[#allocation18 + $0x188] sm:$0xf]
    %v3148 = vld [vmem:[#allocation18 + $0x18c] sm:$0xf]
    %v3149 = vld [vmem:[#allocation18 + $0x190] sm:$0xf]
    %v3150 = vld [vmem:[#allocation18 + $0x194] sm:$0xf]
    %v3151 = vld [vmem:[#allocation18 + $0x198] sm:$0xf]
    %v3152 = vld [vmem:[#allocation18 + $0x19c] sm:$0xf]
    %v3153 = vld [vmem:[#allocation18 + $0x1a0] sm:$0xf]
    %v3154 = vld [vmem:[#allocation18 + $0x1a4] sm:$0xf]
    %v3155 = vld [vmem:[#allocation18 + $0x1a8] sm:$0xf]
    %v3156 = vld [vmem:[#allocation18 + $0x1ac] sm:$0xf]
    %v3157 = vld [vmem:[#allocation18 + $0x1b0] sm:$0xf]
    %v3158 = vld [vmem:[#allocation18 + $0x1b4] sm:$0xf]
    %v3159 = vld [vmem:[#allocation18 + $0x1b8] sm:$0xf]
    %v3160 = vld [vmem:[#allocation18 + $0x1bc] sm:$0xf]
    %v3177 = vunpack.c.l.b16 %v3145
    %v3178 = vunpack.c.l.b16 %v3146
    %v3179 = vunpack.c.l.b16 %v3147
    %v3180 = vunpack.c.l.b16 %v3148
    %v3181 = vunpack.c.l.b16 %v3149
    %v3182 = vunpack.c.l.b16 %v3150
    %v3183 = vunpack.c.l.b16 %v3151
    %v3184 = vunpack.c.l.b16 %v3152
    %v3185 = vunpack.c.l.b16 %v3153
    %v3186 = vunpack.c.l.b16 %v3154
    %v3187 = vunpack.c.l.b16 %v3155
    %v3188 = vunpack.c.l.b16 %v3156
    %v3189 = vunpack.c.l.b16 %v3157
    %v3190 = vunpack.c.l.b16 %v3158
    %v3191 = vunpack.c.l.b16 %v3159
    %v3192 = vunpack.c.l.b16 %v3160
    %v3193 = vpack.c.b16 %v3178, %v3177
    %v3194 = vpack.c.b16 %v3180, %v3179
    %v3195 = vpack.c.b16 %v3182, %v3181
    %v3196 = vpack.c.b16 %v3184, %v3183
    %v3197 = vpack.c.b16 %v3186, %v3185
    %v3198 = vpack.c.b16 %v3188, %v3187
    %v3199 = vpack.c.b16 %v3190, %v3189
    %v3200 = vpack.c.b16 %v3192, %v3191
    %3209 = vmatprep.subr.bf16.mxu0 0
    %3210 = vmatpush1.bf16.msra.mxu0 %v3193
    %3211 = vmatprep.subr.bf16.mxu0 0
    %3212 = vmatpush1.bf16.msra.mxu0 %v3194
    %3213 = vmatprep.subr.bf16.mxu0 0
    %3214 = vmatpush1.bf16.msra.mxu0 %v3195
    %3215 = vmatprep.subr.bf16.mxu0 0
    %3216 = vmatpush1.bf16.msra.mxu0 %v3196
    %3217 = vmatprep.subr.bf16.mxu0 0
    %3218 = vmatpush1.bf16.msra.mxu0 %v3197
    %3219 = vmatprep.subr.bf16.mxu0 0
    %3220 = vmatpush1.bf16.msra.mxu0 %v3198
    %3221 = vmatprep.subr.bf16.mxu0 0
    %3222 = vmatpush1.bf16.msra.mxu0 %v3199
    %3223 = vmatprep.subr.bf16.mxu0 0
    %3224 = vmatpush1.bf16.msra.mxu0 %v3200
    %3225 = vmatprep.subr.bf16.mxu0 0
    %3226 = vmatpush1.bf16.msra.mxu0 0
    %3227 = vmatprep.subr.bf16.mxu0 0
    %3228 = vmatpush1.bf16.msra.mxu0 0
    %3229 = vmatprep.subr.bf16.mxu0 0
    %3230 = vmatpush1.bf16.msra.mxu0 0
    %3231 = vmatprep.subr.bf16.mxu0 0
    %3232 = vmatpush1.bf16.msra.mxu0 0
    %3233 = vmatprep.subr.bf16.mxu0 0
    %3234 = vmatpush1.bf16.msra.mxu0 0
    %3235 = vmatprep.subr.bf16.mxu0 0
    %3236 = vmatpush1.bf16.msra.mxu0 0
    %3237 = vmatprep.subr.bf16.mxu0 0
    %3238 = vmatpush1.bf16.msra.mxu0 0
    %3239 = vmatprep.subr.bf16.mxu0 0
    %3240 = vmatpush1.bf16.msra.mxu0 0
    %3241 = vmatprep.mubr.bf16.mxu0 0
    %3242 = vmatmul.mubr.bf16.gmra.mrb[0].mxu0 %v3144
    %v3243 = vpop.f32.mrb[0].mxu0
    %v3244 = vadd.f32 0.0, %v3243
    %v3245 = vpop.f32.mrb[0].mxu0
    %v3246 = vpop.f32.mrb[0].mxu0
    %v3247 = vpop.f32.mrb[0].mxu0
    %3248 = vdwg.mxu0
    %v3249 = vadd.f32 %v2938, %v3244
    %v3250 = vld [vmem:[#allocation2 + $0xe0] sm:$0xff]
    %v3251 = vld [vmem:[#allocation2 + $0xe8] sm:$0xff]
    %v3252 = vld [vmem:[#allocation2 + $0xf0] sm:$0xff]
    %v3253 = vld [vmem:[#allocation2 + $0xf8] sm:$0xff]
    %3254 = vmatprep.subr.bf16.mxu0 %v631
    %3255 = vmatpush1.bf16.msra.mxu0 %v630
    %3256 = vmatprep.subr.bf16.mxu0 %v635
    %3257 = vmatpush1.bf16.msra.mxu0 %v634
    %3258 = vmatprep.subr.bf16.mxu0 %v639
    %3259 = vmatpush1.bf16.msra.mxu0 %v638
    %3260 = vmatprep.subr.bf16.mxu0 %v643
    %3261 = vmatpush1.bf16.msra.mxu0 %v642
    %3262 = vmatprep.subr.bf16.mxu0 %v647
    %3263 = vmatpush1.bf16.msra.mxu0 %v646
    %3264 = vmatprep.subr.bf16.mxu0 %v651
    %3265 = vmatpush1.bf16.msra.mxu0 %v650
    %3266 = vmatprep.subr.bf16.mxu0 %v655
    %3267 = vmatpush1.bf16.msra.mxu0 %v654
    %3268 = vmatprep.subr.bf16.mxu0 %v659
    %3269 = vmatpush1.bf16.msra.mxu0 %v658
    %3270 = vmatprep.subr.bf16.mxu0 0
    %3271 = vmatpush1.bf16.msra.mxu0 0
    %3272 = vmatprep.subr.bf16.mxu0 0
    %3273 = vmatpush1.bf16.msra.mxu0 0
    %3274 = vmatprep.subr.bf16.mxu0 0
    %3275 = vmatpush1.bf16.msra.mxu0 0
    %3276 = vmatprep.subr.bf16.mxu0 0
    %3277 = vmatpush1.bf16.msra.mxu0 0
    %3278 = vmatprep.subr.bf16.mxu0 0
    %3279 = vmatpush1.bf16.msra.mxu0 0
    %3280 = vmatprep.subr.bf16.mxu0 0
    %3281 = vmatpush1.bf16.msra.mxu0 0
    %3282 = vmatprep.subr.bf16.mxu0 0
    %3283 = vmatpush1.bf16.msra.mxu0 0
    %3284 = vmatprep.subr.bf16.mxu0 0
    %3285 = vmatpush1.bf16.msra.mxu0 0
    %3286 = vmatprep.mubr.bf16.mxu0 0
    %3287 = vmatmul.mubr.bf16.gmra.mrb[0].mxu0 %v3043
    %v3288 = vpop.f32.mrb[0].mxu0
    %v3289 = vadd.f32 %v3250, %v3288
    %v3290 = vpop.f32.mrb[0].mxu0
    %v3291 = vadd.f32 %v3251, %v3290
    %v3292 = vpop.f32.mrb[0].mxu0
    %v3293 = vpop.f32.mrb[0].mxu0
    %3294 = vdwg.mxu0
    %3295 = vmatprep.subr.bf16.mxu0 %v633
    %3296 = vmatpush1.bf16.msra.mxu0 %v632
    %3297 = vmatprep.subr.bf16.mxu0 %v637
    %3298 = vmatpush1.bf16.msra.mxu0 %v636
    %3299 = vmatprep.subr.bf16.mxu0 %v641
    %3300 = vmatpush1.bf16.msra.mxu0 %v640
    %3301 = vmatprep.subr.bf16.mxu0 %v645
    %3302 = vmatpush1.bf16.msra.mxu0 %v644
    %3303 = vmatprep.subr.bf16.mxu0 %v649
    %3304 = vmatpush1.bf16.msra.mxu0 %v648
    %3305 = vmatprep.subr.bf16.mxu0 %v653
    %3306 = vmatpush1.bf16.msra.mxu0 %v652
    %3307 = vmatprep.subr.bf16.mxu0 %v657
    %3308 = vmatpush1.bf16.msra.mxu0 %v656
    %3309 = vmatprep.subr.bf16.mxu0 %v661
    %3310 = vmatpush1.bf16.msra.mxu0 %v660
    %3311 = vmatprep.subr.bf16.mxu0 0
    %3312 = vmatpush1.bf16.msra.mxu0 0
    %3313 = vmatprep.subr.bf16.mxu0 0
    %3314 = vmatpush1.bf16.msra.mxu0 0
    %3315 = vmatprep.subr.bf16.mxu0 0
    %3316 = vmatpush1.bf16.msra.mxu0 0
    %3317 = vmatprep.subr.bf16.mxu0 0
    %3318 = vmatpush1.bf16.msra.mxu0 0
    %3319 = vmatprep.subr.bf16.mxu0 0
    %3320 = vmatpush1.bf16.msra.mxu0 0
    %3321 = vmatprep.subr.bf16.mxu0 0
    %3322 = vmatpush1.bf16.msra.mxu0 0
    %3323 = vmatprep.subr.bf16.mxu0 0
    %3324 = vmatpush1.bf16.msra.mxu0 0
    %3325 = vmatprep.subr.bf16.mxu0 0
    %3326 = vmatpush1.bf16.msra.mxu0 0
    %3327 = vmatprep.mubr.bf16.mxu0 0
    %3328 = vmatmul.mubr.bf16.gmra.mrb[0].mxu0 %v3043
    %v3329 = vpop.f32.mrb[0].mxu0
    %v3330 = vadd.f32 %v3252, %v3329
    %v3331 = vpop.f32.mrb[0].mxu0
    %v3332 = vadd.f32 %v3253, %v3331
    %v3333 = vpop.f32.mrb[0].mxu0
    %v3334 = vpop.f32.mrb[0].mxu0
    %3335 = vdwg.mxu0
    %v3336 = vmul.f32 %v3289, 0.5
    %v3337 = vtanh.pop %v3336
    %v3338 = vmul.f32 %v3337, 0.5
    %v3339 = vadd.f32 %v3338, 0.5
    %v3340 = vmul.f32 %v3291, 0.5
    %v3341 = vtanh.pop %v3340
    %v3342 = vmul.f32 %v3341, 0.5
    %v3343 = vadd.f32 %v3342, 0.5
    %v3344 = vtanh.pop %v3330
    %v3345 = vmul.f32 %v3332, 0.5
    %v3346 = vtanh.pop %v3345
    %v3347 = vmul.f32 %v3346, 0.5
    %v3348 = vadd.f32 %v3347, 0.5
    %v3349 = vmul.f32 %v3343, %v3040
    %v3350 = vmul.f32 %v3339, %v3344
    %v3351 = vadd.f32 %v3349, %v3350
    %v3352 = vtanh.pop %v3351
    %v3353 = vmul.f32 %v3348, %v3352
    %v3354 = vpack.c.bf16 %v3353, %v3353
    %3355 = vmatprep.subr.bf16.mxu0 %v1053
    %3356 = vmatpush1.bf16.msra.mxu0 %v1052
    %3357 = vmatprep.subr.bf16.mxu0 %v1057
    %3358 = vmatpush1.bf16.msra.mxu0 %v1056
    %3359 = vmatprep.subr.bf16.mxu0 %v1061
    %3360 = vmatpush1.bf16.msra.mxu0 %v1060
    %3361 = vmatprep.subr.bf16.mxu0 %v1065
    %3362 = vmatpush1.bf16.msra.mxu0 %v1064
    %3363 = vmatprep.subr.bf16.mxu0 %v1069
    %3364 = vmatpush1.bf16.msra.mxu0 %v1068
    %3365 = vmatprep.subr.bf16.mxu0 %v1073
    %3366 = vmatpush1.bf16.msra.mxu0 %v1072
    %3367 = vmatprep.subr.bf16.mxu0 %v1077
    %3368 = vmatpush1.bf16.msra.mxu0 %v1076
    %3369 = vmatprep.subr.bf16.mxu0 %v1081
    %3370 = vmatpush1.bf16.msra.mxu0 %v1080
    %3371 = vmatprep.subr.bf16.mxu0 %v1085
    %3372 = vmatpush1.bf16.msra.mxu0 %v1084
    %3373 = vmatprep.subr.bf16.mxu0 %v1089
    %3374 = vmatpush1.bf16.msra.mxu0 %v1088
    %3375 = vmatprep.subr.bf16.mxu0 %v1093
    %3376 = vmatpush1.bf16.msra.mxu0 %v1092
    %3377 = vmatprep.subr.bf16.mxu0 %v1097
    %3378 = vmatpush1.bf16.msra.mxu0 %v1096
    %3379 = vmatprep.subr.bf16.mxu0 %v1101
    %3380 = vmatpush1.bf16.msra.mxu0 %v1100
    %3381 = vmatprep.subr.bf16.mxu0 %v1105
    %3382 = vmatpush1.bf16.msra.mxu0 %v1104
    %3383 = vmatprep.subr.bf16.mxu0 %v1109
    %3384 = vmatpush1.bf16.msra.mxu0 %v1108
    %3385 = vmatprep.subr.bf16.mxu0 %v1113
    %3386 = vmatpush1.bf16.msra.mxu0 %v1112
    %3387 = vmatprep.mubr.bf16.mxu0 %v3144
    %3388 = vmatmul.mubr.bf16.gmra.mrb[0].mxu0 %v3354
    %v3389 = vpop.f32.mrb[0].mxu0
    %v3390 = vadd.f32 %v288, %v3389
    %v3391 = vpop.f32.mrb[0].mxu0
    %v3392 = vadd.f32 %v292, %v3391
    %v3393 = vpop.f32.mrb[0].mxu0
    %v3394 = vpop.f32.mrb[0].mxu0
    %3395 = vdwg.mxu0
    %3396 = vmatprep.subr.bf16.mxu0 %v1055
    %3397 = vmatpush1.bf16.msra.mxu0 %v1054
    %3398 = vmatprep.subr.bf16.mxu0 %v1059
    %3399 = vmatpush1.bf16.msra.mxu0 %v1058
    %3400 = vmatprep.subr.bf16.mxu0 %v1063
    %3401 = vmatpush1.bf16.msra.mxu0 %v1062
    %3402 = vmatprep.subr.bf16.mxu0 %v1067
    %3403 = vmatpush1.bf16.msra.mxu0 %v1066
    %3404 = vmatprep.subr.bf16.mxu0 %v1071
    %3405 = vmatpush1.bf16.msra.mxu0 %v1070
    %3406 = vmatprep.subr.bf16.mxu0 %v1075
    %3407 = vmatpush1.bf16.msra.mxu0 %v1074
    %3408 = vmatprep.subr.bf16.mxu0 %v1079
    %3409 = vmatpush1.bf16.msra.mxu0 %v1078
    %3410 = vmatprep.subr.bf16.mxu0 %v1083
    %3411 = vmatpush1.bf16.msra.mxu0 %v1082
    %3412 = vmatprep.subr.bf16.mxu0 %v1087
    %3413 = vmatpush1.bf16.msra.mxu0 %v1086
    %3414 = vmatprep.subr.bf16.mxu0 %v1091
    %3415 = vmatpush1.bf16.msra.mxu0 %v1090
    %3416 = vmatprep.subr.bf16.mxu0 %v1095
    %3417 = vmatpush1.bf16.msra.mxu0 %v1094
    %3418 = vmatprep.subr.bf16.mxu0 %v1099
    %3419 = vmatpush1.bf16.msra.mxu0 %v1098
    %3420 = vmatprep.subr.bf16.mxu0 %v1103
    %3421 = vmatpush1.bf16.msra.mxu0 %v1102
    %3422 = vmatprep.subr.bf16.mxu0 %v1107
    %3423 = vmatpush1.bf16.msra.mxu0 %v1106
    %3424 = vmatprep.subr.bf16.mxu0 %v1111
    %3425 = vmatpush1.bf16.msra.mxu0 %v1110
    %3426 = vmatprep.subr.bf16.mxu0 %v1115
    %3427 = vmatpush1.bf16.msra.mxu0 %v1114
    %3428 = vmatprep.mubr.bf16.mxu0 %v3144
    %3429 = vmatmul.mubr.bf16.gmra.mrb[0].mxu0 %v3354
    %v3430 = vpop.f32.mrb[0].mxu0
    %v3431 = vadd.f32 %v296, %v3430
    %v3432 = vpop.f32.mrb[0].mxu0
    %v3433 = vadd.f32 %v300, %v3432
    %v3434 = vpop.f32.mrb[0].mxu0
    %v3435 = vpop.f32.mrb[0].mxu0
    %3436 = vdwg.mxu0
    %v3437 = vmul.f32 %v3390, 0.5
    %v3438 = vtanh.pop %v3437
    %v3439 = vmul.f32 %v3438, 0.5
    %v3440 = vadd.f32 %v3439, 0.5
    %v3441 = vmul.f32 %v3392, 0.5
    %v3442 = vtanh.pop %v3441
    %v3443 = vmul.f32 %v3442, 0.5
    %v3444 = vadd.f32 %v3443, 0.5
    %v3445 = vtanh.pop %v3431
    %v3446 = vmul.f32 %v3433, 0.5
    %v3447 = vtanh.pop %v3446
    %v3448 = vmul.f32 %v3447, 0.5
    %v3449 = vadd.f32 %v3448, 0.5
    %v3450 = vmul.f32 %v3444, %v3141
    %v3451 = vmul.f32 %v3440, %v3445
    %v3452 = vadd.f32 %v3450, %v3451
    %v3453 = vtanh.pop %v3452
    %v3454 = vmul.f32 %v3449, %v3453
    %v3455 = vpack.c.bf16 %v3454, %v3454
    %v3456 = vld [vmem:[#allocation18 + $0x1c0] sm:$0xf]
    %v3457 = vld [vmem:[#allocation18 + $0x1c4] sm:$0xf]
    %v3458 = vld [vmem:[#allocation18 + $0x1c8] sm:$0xf]
    %v3459 = vld [vmem:[#allocation18 + $0x1cc] sm:$0xf]
    %v3460 = vld [vmem:[#allocation18 + $0x1d0] sm:$0xf]
    %v3461 = vld [vmem:[#allocation18 + $0x1d4] sm:$0xf]
    %v3462 = vld [vmem:[#allocation18 + $0x1d8] sm:$0xf]
    %v3463 = vld [vmem:[#allocation18 + $0x1dc] sm:$0xf]
    %v3464 = vld [vmem:[#allocation18 + $0x1e0] sm:$0xf]
    %v3465 = vld [vmem:[#allocation18 + $0x1e4] sm:$0xf]
    %v3466 = vld [vmem:[#allocation18 + $0x1e8] sm:$0xf]
    %v3467 = vld [vmem:[#allocation18 + $0x1ec] sm:$0xf]
    %v3468 = vld [vmem:[#allocation18 + $0x1f0] sm:$0xf]
    %v3469 = vld [vmem:[#allocation18 + $0x1f4] sm:$0xf]
    %v3470 = vld [vmem:[#allocation18 + $0x1f8] sm:$0xf]
    %v3471 = vld [vmem:[#allocation18 + $0x1fc] sm:$0xf]
    %v3488 = vunpack.c.l.b16 %v3456
    %v3489 = vunpack.c.l.b16 %v3457
    %v3490 = vunpack.c.l.b16 %v3458
    %v3491 = vunpack.c.l.b16 %v3459
    %v3492 = vunpack.c.l.b16 %v3460
    %v3493 = vunpack.c.l.b16 %v3461
    %v3494 = vunpack.c.l.b16 %v3462
    %v3495 = vunpack.c.l.b16 %v3463
    %v3496 = vunpack.c.l.b16 %v3464
    %v3497 = vunpack.c.l.b16 %v3465
    %v3498 = vunpack.c.l.b16 %v3466
    %v3499 = vunpack.c.l.b16 %v3467
    %v3500 = vunpack.c.l.b16 %v3468
    %v3501 = vunpack.c.l.b16 %v3469
    %v3502 = vunpack.c.l.b16 %v3470
    %v3503 = vunpack.c.l.b16 %v3471
    %v3504 = vpack.c.b16 %v3489, %v3488
    %v3505 = vpack.c.b16 %v3491, %v3490
    %v3506 = vpack.c.b16 %v3493, %v3492
    %v3507 = vpack.c.b16 %v3495, %v3494
    %v3508 = vpack.c.b16 %v3497, %v3496
    %v3509 = vpack.c.b16 %v3499, %v3498
    %v3510 = vpack.c.b16 %v3501, %v3500
    %v3511 = vpack.c.b16 %v3503, %v3502
    %3520 = vmatprep.subr.bf16.mxu0 0
    %3521 = vmatpush1.bf16.msra.mxu0 %v3504
    %3522 = vmatprep.subr.bf16.mxu0 0
    %3523 = vmatpush1.bf16.msra.mxu0 %v3505
    %3524 = vmatprep.subr.bf16.mxu0 0
    %3525 = vmatpush1.bf16.msra.mxu0 %v3506
    %3526 = vmatprep.subr.bf16.mxu0 0
    %3527 = vmatpush1.bf16.msra.mxu0 %v3507
    %3528 = vmatprep.subr.bf16.mxu0 0
    %3529 = vmatpush1.bf16.msra.mxu0 %v3508
    %3530 = vmatprep.subr.bf16.mxu0 0
    %3531 = vmatpush1.bf16.msra.mxu0 %v3509
    %3532 = vmatprep.subr.bf16.mxu0 0
    %3533 = vmatpush1.bf16.msra.mxu0 %v3510
    %3534 = vmatprep.subr.bf16.mxu0 0
    %3535 = vmatpush1.bf16.msra.mxu0 %v3511
    %3536 = vmatprep.subr.bf16.mxu0 0
    %3537 = vmatpush1.bf16.msra.mxu0 0
    %3538 = vmatprep.subr.bf16.mxu0 0
    %3539 = vmatpush1.bf16.msra.mxu0 0
    %3540 = vmatprep.subr.bf16.mxu0 0
    %3541 = vmatpush1.bf16.msra.mxu0 0
    %3542 = vmatprep.subr.bf16.mxu0 0
    %3543 = vmatpush1.bf16.msra.mxu0 0
    %3544 = vmatprep.subr.bf16.mxu0 0
    %3545 = vmatpush1.bf16.msra.mxu0 0
    %3546 = vmatprep.subr.bf16.mxu0 0
    %3547 = vmatpush1.bf16.msra.mxu0 0
    %3548 = vmatprep.subr.bf16.mxu0 0
    %3549 = vmatpush1.bf16.msra.mxu0 0
    %3550 = vmatprep.subr.bf16.mxu0 0
    %3551 = vmatpush1.bf16.msra.mxu0 0
    %3552 = vmatprep.mubr.bf16.mxu0 0
    %3553 = vmatmul.mubr.bf16.gmra.mrb[0].mxu0 %v3455
    %v3554 = vpop.f32.mrb[0].mxu0
    %v3555 = vadd.f32 0.0, %v3554
    %v3556 = vpop.f32.mrb[0].mxu0
    %v3557 = vpop.f32.mrb[0].mxu0
    %v3558 = vpop.f32.mrb[0].mxu0
    %3559 = vdwg.mxu0
    %v3560 = vadd.f32 %v3249, %v3555
    %v3561 = vld [vmem:[#allocation2 + $0x100] sm:$0xff]
    %v3562 = vld [vmem:[#allocation2 + $0x108] sm:$0xff]
    %v3563 = vld [vmem:[#allocation2 + $0x110] sm:$0xff]
    %v3564 = vld [vmem:[#allocation2 + $0x118] sm:$0xff]
    %3565 = vmatprep.subr.bf16.mxu0 %v631
    %3566 = vmatpush1.bf16.msra.mxu0 %v630
    %3567 = vmatprep.subr.bf16.mxu0 %v635
    %3568 = vmatpush1.bf16.msra.mxu0 %v634
    %3569 = vmatprep.subr.bf16.mxu0 %v639
    %3570 = vmatpush1.bf16.msra.mxu0 %v638
    %3571 = vmatprep.subr.bf16.mxu0 %v643
    %3572 = vmatpush1.bf16.msra.mxu0 %v642
    %3573 = vmatprep.subr.bf16.mxu0 %v647
    %3574 = vmatpush1.bf16.msra.mxu0 %v646
    %3575 = vmatprep.subr.bf16.mxu0 %v651
    %3576 = vmatpush1.bf16.msra.mxu0 %v650
    %3577 = vmatprep.subr.bf16.mxu0 %v655
    %3578 = vmatpush1.bf16.msra.mxu0 %v654
    %3579 = vmatprep.subr.bf16.mxu0 %v659
    %3580 = vmatpush1.bf16.msra.mxu0 %v658
    %3581 = vmatprep.subr.bf16.mxu0 0
    %3582 = vmatpush1.bf16.msra.mxu0 0
    %3583 = vmatprep.subr.bf16.mxu0 0
    %3584 = vmatpush1.bf16.msra.mxu0 0
    %3585 = vmatprep.subr.bf16.mxu0 0
    %3586 = vmatpush1.bf16.msra.mxu0 0
    %3587 = vmatprep.subr.bf16.mxu0 0
    %3588 = vmatpush1.bf16.msra.mxu0 0
    %3589 = vmatprep.subr.bf16.mxu0 0
    %3590 = vmatpush1.bf16.msra.mxu0 0
    %3591 = vmatprep.subr.bf16.mxu0 0
    %3592 = vmatpush1.bf16.msra.mxu0 0
    %3593 = vmatprep.subr.bf16.mxu0 0
    %3594 = vmatpush1.bf16.msra.mxu0 0
    %3595 = vmatprep.subr.bf16.mxu0 0
    %3596 = vmatpush1.bf16.msra.mxu0 0
    %3597 = vmatprep.mubr.bf16.mxu0 0
    %3598 = vmatmul.mubr.bf16.gmra.mrb[0].mxu0 %v3354
    %v3599 = vpop.f32.mrb[0].mxu0
    %v3600 = vadd.f32 %v3561, %v3599
    %v3601 = vpop.f32.mrb[0].mxu0
    %v3602 = vadd.f32 %v3562, %v3601
    %v3603 = vpop.f32.mrb[0].mxu0
    %v3604 = vpop.f32.mrb[0].mxu0
    %3605 = vdwg.mxu0
    %3606 = vmatprep.subr.bf16.mxu0 %v633
    %3607 = vmatpush1.bf16.msra.mxu0 %v632
    %3608 = vmatprep.subr.bf16.mxu0 %v637
    %3609 = vmatpush1.bf16.msra.mxu0 %v636
    %3610 = vmatprep.subr.bf16.mxu0 %v641
    %3611 = vmatpush1.bf16.msra.mxu0 %v640
    %3612 = vmatprep.subr.bf16.mxu0 %v645
    %3613 = vmatpush1.bf16.msra.mxu0 %v644
    %3614 = vmatprep.subr.bf16.mxu0 %v649
    %3615 = vmatpush1.bf16.msra.mxu0 %v648
    %3616 = vmatprep.subr.bf16.mxu0 %v653
    %3617 = vmatpush1.bf16.msra.mxu0 %v652
    %3618 = vmatprep.subr.bf16.mxu0 %v657
    %3619 = vmatpush1.bf16.msra.mxu0 %v656
    %3620 = vmatprep.subr.bf16.mxu0 %v661
    %3621 = vmatpush1.bf16.msra.mxu0 %v660
    %3622 = vmatprep.subr.bf16.mxu0 0
    %3623 = vmatpush1.bf16.msra.mxu0 0
    %3624 = vmatprep.subr.bf16.mxu0 0
    %3625 = vmatpush1.bf16.msra.mxu0 0
    %3626 = vmatprep.subr.bf16.mxu0 0
    %3627 = vmatpush1.bf16.msra.mxu0 0
    %3628 = vmatprep.subr.bf16.mxu0 0
    %3629 = vmatpush1.bf16.msra.mxu0 0
    %3630 = vmatprep.subr.bf16.mxu0 0
    %3631 = vmatpush1.bf16.msra.mxu0 0
    %3632 = vmatprep.subr.bf16.mxu0 0
    %3633 = vmatpush1.bf16.msra.mxu0 0
    %3634 = vmatprep.subr.bf16.mxu0 0
    %3635 = vmatpush1.bf16.msra.mxu0 0
    %3636 = vmatprep.subr.bf16.mxu0 0
    %3637 = vmatpush1.bf16.msra.mxu0 0
    %3638 = vmatprep.mubr.bf16.mxu0 0
    %3639 = vmatmul.mubr.bf16.gmra.mrb[0].mxu0 %v3354
    %v3640 = vpop.f32.mrb[0].mxu0
    %v3641 = vadd.f32 %v3563, %v3640
    %v3642 = vpop.f32.mrb[0].mxu0
    %v3643 = vadd.f32 %v3564, %v3642
    %v3644 = vpop.f32.mrb[0].mxu0
    %v3645 = vpop.f32.mrb[0].mxu0
    %3646 = vdwg.mxu0
    %v3647 = vmul.f32 %v3600, 0.5
    %v3648 = vtanh.pop %v3647
    %v3649 = vmul.f32 %v3648, 0.5
    %v3650 = vadd.f32 %v3649, 0.5
    %v3651 = vmul.f32 %v3602, 0.5
    %v3652 = vtanh.pop %v3651
    %v3653 = vmul.f32 %v3652, 0.5
    %v3654 = vadd.f32 %v3653, 0.5
    %v3655 = vtanh.pop %v3641
    %v3656 = vmul.f32 %v3643, 0.5
    %v3657 = vtanh.pop %v3656
    %v3658 = vmul.f32 %v3657, 0.5
    %v3659 = vadd.f32 %v3658, 0.5
    %v3660 = vmul.f32 %v3654, %v3351
    %v3661 = vmul.f32 %v3650, %v3655
    %v3662 = vadd.f32 %v3660, %v3661
    %v3663 = vtanh.pop %v3662
    %v3664 = vmul.f32 %v3659, %v3663
    %v3665 = vpack.c.bf16 %v3664, %v3664
    %3666 = vmatprep.subr.bf16.mxu0 %v1053
    %3667 = vmatpush1.bf16.msra.mxu0 %v1052
    %3668 = vmatprep.subr.bf16.mxu0 %v1057
    %3669 = vmatpush1.bf16.msra.mxu0 %v1056
    %3670 = vmatprep.subr.bf16.mxu0 %v1061
    %3671 = vmatpush1.bf16.msra.mxu0 %v1060
    %3672 = vmatprep.subr.bf16.mxu0 %v1065
    %3673 = vmatpush1.bf16.msra.mxu0 %v1064
    %3674 = vmatprep.subr.bf16.mxu0 %v1069
    %3675 = vmatpush1.bf16.msra.mxu0 %v1068
    %3676 = vmatprep.subr.bf16.mxu0 %v1073
    %3677 = vmatpush1.bf16.msra.mxu0 %v1072
    %3678 = vmatprep.subr.bf16.mxu0 %v1077
    %3679 = vmatpush1.bf16.msra.mxu0 %v1076
    %3680 = vmatprep.subr.bf16.mxu0 %v1081
    %3681 = vmatpush1.bf16.msra.mxu0 %v1080
    %3682 = vmatprep.subr.bf16.mxu0 %v1085
    %3683 = vmatpush1.bf16.msra.mxu0 %v1084
    %3684 = vmatprep.subr.bf16.mxu0 %v1089
    %3685 = vmatpush1.bf16.msra.mxu0 %v1088
    %3686 = vmatprep.subr.bf16.mxu0 %v1093
    %3687 = vmatpush1.bf16.msra.mxu0 %v1092
    %3688 = vmatprep.subr.bf16.mxu0 %v1097
    %3689 = vmatpush1.bf16.msra.mxu0 %v1096
    %3690 = vmatprep.subr.bf16.mxu0 %v1101
    %3691 = vmatpush1.bf16.msra.mxu0 %v1100
    %3692 = vmatprep.subr.bf16.mxu0 %v1105
    %3693 = vmatpush1.bf16.msra.mxu0 %v1104
    %3694 = vmatprep.subr.bf16.mxu0 %v1109
    %3695 = vmatpush1.bf16.msra.mxu0 %v1108
    %3696 = vmatprep.subr.bf16.mxu0 %v1113
    %3697 = vmatpush1.bf16.msra.mxu0 %v1112
    %3698 = vmatprep.mubr.bf16.mxu0 %v3455
    %3699 = vmatmul.mubr.bf16.gmra.mrb[0].mxu0 %v3665
    %v3700 = vpop.f32.mrb[0].mxu0
    %v3701 = vadd.f32 %v288, %v3700
    %v3702 = vpop.f32.mrb[0].mxu0
    %v3703 = vadd.f32 %v292, %v3702
    %v3704 = vpop.f32.mrb[0].mxu0
    %v3705 = vpop.f32.mrb[0].mxu0
    %3706 = vdwg.mxu0
    %3707 = vmatprep.subr.bf16.mxu0 %v1055
    %3708 = vmatpush1.bf16.msra.mxu0 %v1054
    %3709 = vmatprep.subr.bf16.mxu0 %v1059
    %3710 = vmatpush1.bf16.msra.mxu0 %v1058
    %3711 = vmatprep.subr.bf16.mxu0 %v1063
    %3712 = vmatpush1.bf16.msra.mxu0 %v1062
    %3713 = vmatprep.subr.bf16.mxu0 %v1067
    %3714 = vmatpush1.bf16.msra.mxu0 %v1066
    %3715 = vmatprep.subr.bf16.mxu0 %v1071
    %3716 = vmatpush1.bf16.msra.mxu0 %v1070
    %3717 = vmatprep.subr.bf16.mxu0 %v1075
    %3718 = vmatpush1.bf16.msra.mxu0 %v1074
    %3719 = vmatprep.subr.bf16.mxu0 %v1079
    %3720 = vmatpush1.bf16.msra.mxu0 %v1078
    %3721 = vmatprep.subr.bf16.mxu0 %v1083
    %3722 = vmatpush1.bf16.msra.mxu0 %v1082
    %3723 = vmatprep.subr.bf16.mxu0 %v1087
    %3724 = vmatpush1.bf16.msra.mxu0 %v1086
    %3725 = vmatprep.subr.bf16.mxu0 %v1091
    %3726 = vmatpush1.bf16.msra.mxu0 %v1090
    %3727 = vmatprep.subr.bf16.mxu0 %v1095
    %3728 = vmatpush1.bf16.msra.mxu0 %v1094
    %3729 = vmatprep.subr.bf16.mxu0 %v1099
    %3730 = vmatpush1.bf16.msra.mxu0 %v1098
    %3731 = vmatprep.subr.bf16.mxu0 %v1103
    %3732 = vmatpush1.bf16.msra.mxu0 %v1102
    %3733 = vmatprep.subr.bf16.mxu0 %v1107
    %3734 = vmatpush1.bf16.msra.mxu0 %v1106
    %3735 = vmatprep.subr.bf16.mxu0 %v1111
    %3736 = vmatpush1.bf16.msra.mxu0 %v1110
    %3737 = vmatprep.subr.bf16.mxu0 %v1115
    %3738 = vmatpush1.bf16.msra.mxu0 %v1114
    %3739 = vmatprep.mubr.bf16.mxu0 %v3455
    %3740 = vmatmul.mubr.bf16.gmra.mrb[0].mxu0 %v3665
    %v3741 = vpop.f32.mrb[0].mxu0
    %v3742 = vadd.f32 %v296, %v3741
    %v3743 = vpop.f32.mrb[0].mxu0
    %v3744 = vadd.f32 %v300, %v3743
    %v3745 = vpop.f32.mrb[0].mxu0
    %v3746 = vpop.f32.mrb[0].mxu0
    %3747 = vdwg.mxu0
    %v3748 = vmul.f32 %v3701, 0.5
    %v3749 = vtanh.pop %v3748
    %v3750 = vmul.f32 %v3749, 0.5
    %v3751 = vadd.f32 %v3750, 0.5
    %v3752 = vmul.f32 %v3703, 0.5
    %v3753 = vtanh.pop %v3752
    %v3754 = vmul.f32 %v3753, 0.5
    %v3755 = vadd.f32 %v3754, 0.5
    %v3756 = vtanh.pop %v3742
    %v3757 = vmul.f32 %v3744, 0.5
    %v3758 = vtanh.pop %v3757
    %v3759 = vmul.f32 %v3758, 0.5
    %v3760 = vadd.f32 %v3759, 0.5
    %v3761 = vmul.f32 %v3755, %v3452
    %v3762 = vmul.f32 %v3751, %v3756
    %v3763 = vadd.f32 %v3761, %v3762
    %v3764 = vtanh.pop %v3763
    %v3765 = vmul.f32 %v3760, %v3764
    %v3766 = vpack.c.bf16 %v3765, %v3765
    %v3767 = vld [vmem:[#allocation18 + $0x200] sm:$0xf]
    %v3768 = vld [vmem:[#allocation18 + $0x204] sm:$0xf]
    %v3769 = vld [vmem:[#allocation18 + $0x208] sm:$0xf]
    %v3770 = vld [vmem:[#allocation18 + $0x20c] sm:$0xf]
    %v3771 = vld [vmem:[#allocation18 + $0x210] sm:$0xf]
    %v3772 = vld [vmem:[#allocation18 + $0x214] sm:$0xf]
    %v3773 = vld [vmem:[#allocation18 + $0x218] sm:$0xf]
    %v3774 = vld [vmem:[#allocation18 + $0x21c] sm:$0xf]
    %v3775 = vld [vmem:[#allocation18 + $0x220] sm:$0xf]
    %v3776 = vld [vmem:[#allocation18 + $0x224] sm:$0xf]
    %v3777 = vld [vmem:[#allocation18 + $0x228] sm:$0xf]
    %v3778 = vld [vmem:[#allocation18 + $0x22c] sm:$0xf]
    %v3779 = vld [vmem:[#allocation18 + $0x230] sm:$0xf]
    %v3780 = vld [vmem:[#allocation18 + $0x234] sm:$0xf]
    %v3781 = vld [vmem:[#allocation18 + $0x238] sm:$0xf]
    %v3782 = vld [vmem:[#allocation18 + $0x23c] sm:$0xf]
    %v3799 = vunpack.c.l.b16 %v3767
    %v3800 = vunpack.c.l.b16 %v3768
    %v3801 = vunpack.c.l.b16 %v3769
    %v3802 = vunpack.c.l.b16 %v3770
    %v3803 = vunpack.c.l.b16 %v3771
    %v3804 = vunpack.c.l.b16 %v3772
    %v3805 = vunpack.c.l.b16 %v3773
    %v3806 = vunpack.c.l.b16 %v3774
    %v3807 = vunpack.c.l.b16 %v3775
    %v3808 = vunpack.c.l.b16 %v3776
    %v3809 = vunpack.c.l.b16 %v3777
    %v3810 = vunpack.c.l.b16 %v3778
    %v3811 = vunpack.c.l.b16 %v3779
    %v3812 = vunpack.c.l.b16 %v3780
    %v3813 = vunpack.c.l.b16 %v3781
    %v3814 = vunpack.c.l.b16 %v3782
    %v3815 = vpack.c.b16 %v3800, %v3799
    %v3816 = vpack.c.b16 %v3802, %v3801
    %v3817 = vpack.c.b16 %v3804, %v3803
    %v3818 = vpack.c.b16 %v3806, %v3805
    %v3819 = vpack.c.b16 %v3808, %v3807
    %v3820 = vpack.c.b16 %v3810, %v3809
    %v3821 = vpack.c.b16 %v3812, %v3811
    %v3822 = vpack.c.b16 %v3814, %v3813
    %3831 = vmatprep.subr.bf16.mxu0 0
    %3832 = vmatpush1.bf16.msra.mxu0 %v3815
    %3833 = vmatprep.subr.bf16.mxu0 0
    %3834 = vmatpush1.bf16.msra.mxu0 %v3816
    %3835 = vmatprep.subr.bf16.mxu0 0
    %3836 = vmatpush1.bf16.msra.mxu0 %v3817
    %3837 = vmatprep.subr.bf16.mxu0 0
    %3838 = vmatpush1.bf16.msra.mxu0 %v3818
    %3839 = vmatprep.subr.bf16.mxu0 0
    %3840 = vmatpush1.bf16.msra.mxu0 %v3819
    %3841 = vmatprep.subr.bf16.mxu0 0
    %3842 = vmatpush1.bf16.msra.mxu0 %v3820
    %3843 = vmatprep.subr.bf16.mxu0 0
    %3844 = vmatpush1.bf16.msra.mxu0 %v3821
    %3845 = vmatprep.subr.bf16.mxu0 0
    %3846 = vmatpush1.bf16.msra.mxu0 %v3822
    %3847 = vmatprep.subr.bf16.mxu0 0
    %3848 = vmatpush1.bf16.msra.mxu0 0
    %3849 = vmatprep.subr.bf16.mxu0 0
    %3850 = vmatpush1.bf16.msra.mxu0 0
    %3851 = vmatprep.subr.bf16.mxu0 0
    %3852 = vmatpush1.bf16.msra.mxu0 0
    %3853 = vmatprep.subr.bf16.mxu0 0
    %3854 = vmatpush1.bf16.msra.mxu0 0
    %3855 = vmatprep.subr.bf16.mxu0 0
    %3856 = vmatpush1.bf16.msra.mxu0 0
    %3857 = vmatprep.subr.bf16.mxu0 0
    %3858 = vmatpush1.bf16.msra.mxu0 0
    %3859 = vmatprep.subr.bf16.mxu0 0
    %3860 = vmatpush1.bf16.msra.mxu0 0
    %3861 = vmatprep.subr.bf16.mxu0 0
    %3862 = vmatpush1.bf16.msra.mxu0 0
    %3863 = vmatprep.mubr.bf16.mxu0 0
    %3864 = vmatmul.mubr.bf16.gmra.mrb[0].mxu0 %v3766
    %v3865 = vpop.f32.mrb[0].mxu0
    %v3866 = vadd.f32 0.0, %v3865
    %v3867 = vpop.f32.mrb[0].mxu0
    %v3868 = vpop.f32.mrb[0].mxu0
    %v3869 = vpop.f32.mrb[0].mxu0
    %3870 = vdwg.mxu0
    %v3871 = vadd.f32 %v3560, %v3866
    %v3872 = vld [vmem:[#allocation2 + $0x120] sm:$0xff]
    %v3873 = vld [vmem:[#allocation2 + $0x128] sm:$0xff]
    %v3874 = vld [vmem:[#allocation2 + $0x130] sm:$0xff]
    %v3875 = vld [vmem:[#allocation2 + $0x138] sm:$0xff]
    %3876 = vmatprep.subr.bf16.mxu0 %v631
    %3877 = vmatpush1.bf16.msra.mxu0 %v630
    %3878 = vmatprep.subr.bf16.mxu0 %v635
    %3879 = vmatpush1.bf16.msra.mxu0 %v634
    %3880 = vmatprep.subr.bf16.mxu0 %v639
    %3881 = vmatpush1.bf16.msra.mxu0 %v638
    %3882 = vmatprep.subr.bf16.mxu0 %v643
    %3883 = vmatpush1.bf16.msra.mxu0 %v642
    %3884 = vmatprep.subr.bf16.mxu0 %v647
    %3885 = vmatpush1.bf16.msra.mxu0 %v646
    %3886 = vmatprep.subr.bf16.mxu0 %v651
    %3887 = vmatpush1.bf16.msra.mxu0 %v650
    %3888 = vmatprep.subr.bf16.mxu0 %v655
    %3889 = vmatpush1.bf16.msra.mxu0 %v654
    %3890 = vmatprep.subr.bf16.mxu0 %v659
    %3891 = vmatpush1.bf16.msra.mxu0 %v658
    %3892 = vmatprep.subr.bf16.mxu0 0
    %3893 = vmatpush1.bf16.msra.mxu0 0
    %3894 = vmatprep.subr.bf16.mxu0 0
    %3895 = vmatpush1.bf16.msra.mxu0 0
    %3896 = vmatprep.subr.bf16.mxu0 0
    %3897 = vmatpush1.bf16.msra.mxu0 0
    %3898 = vmatprep.subr.bf16.mxu0 0
    %3899 = vmatpush1.bf16.msra.mxu0 0
    %3900 = vmatprep.subr.bf16.mxu0 0
    %3901 = vmatpush1.bf16.msra.mxu0 0
    %3902 = vmatprep.subr.bf16.mxu0 0
    %3903 = vmatpush1.bf16.msra.mxu0 0
    %3904 = vmatprep.subr.bf16.mxu0 0
    %3905 = vmatpush1.bf16.msra.mxu0 0
    %3906 = vmatprep.subr.bf16.mxu0 0
    %3907 = vmatpush1.bf16.msra.mxu0 0
    %3908 = vmatprep.mubr.bf16.mxu0 0
    %3909 = vmatmul.mubr.bf16.gmra.mrb[0].mxu0 %v3665
    %v3910 = vpop.f32.mrb[0].mxu0
    %v3911 = vadd.f32 %v3872, %v3910
    %v3912 = vpop.f32.mrb[0].mxu0
    %v3913 = vadd.f32 %v3873, %v3912
    %v3914 = vpop.f32.mrb[0].mxu0
    %v3915 = vpop.f32.mrb[0].mxu0
    %3916 = vdwg.mxu0
    %3917 = vmatprep.subr.bf16.mxu0 %v633
    %3918 = vmatpush1.bf16.msra.mxu0 %v632
    %3919 = vmatprep.subr.bf16.mxu0 %v637
    %3920 = vmatpush1.bf16.msra.mxu0 %v636
    %3921 = vmatprep.subr.bf16.mxu0 %v641
    %3922 = vmatpush1.bf16.msra.mxu0 %v640
    %3923 = vmatprep.subr.bf16.mxu0 %v645
    %3924 = vmatpush1.bf16.msra.mxu0 %v644
    %3925 = vmatprep.subr.bf16.mxu0 %v649
    %3926 = vmatpush1.bf16.msra.mxu0 %v648
    %3927 = vmatprep.subr.bf16.mxu0 %v653
    %3928 = vmatpush1.bf16.msra.mxu0 %v652
    %3929 = vmatprep.subr.bf16.mxu0 %v657
    %3930 = vmatpush1.bf16.msra.mxu0 %v656
    %3931 = vmatprep.subr.bf16.mxu0 %v661
    %3932 = vmatpush1.bf16.msra.mxu0 %v660
    %3933 = vmatprep.subr.bf16.mxu0 0
    %3934 = vmatpush1.bf16.msra.mxu0 0
    %3935 = vmatprep.subr.bf16.mxu0 0
    %3936 = vmatpush1.bf16.msra.mxu0 0
    %3937 = vmatprep.subr.bf16.mxu0 0
    %3938 = vmatpush1.bf16.msra.mxu0 0
    %3939 = vmatprep.subr.bf16.mxu0 0
    %3940 = vmatpush1.bf16.msra.mxu0 0
    %3941 = vmatprep.subr.bf16.mxu0 0
    %3942 = vmatpush1.bf16.msra.mxu0 0
    %3943 = vmatprep.subr.bf16.mxu0 0
    %3944 = vmatpush1.bf16.msra.mxu0 0
    %3945 = vmatprep.subr.bf16.mxu0 0
    %3946 = vmatpush1.bf16.msra.mxu0 0
    %3947 = vmatprep.subr.bf16.mxu0 0
    %3948 = vmatpush1.bf16.msra.mxu0 0
    %3949 = vmatprep.mubr.bf16.mxu0 0
    %3950 = vmatmul.mubr.bf16.gmra.mrb[0].mxu0 %v3665
    %v3951 = vpop.f32.mrb[0].mxu0
    %v3952 = vadd.f32 %v3874, %v3951
    %v3953 = vpop.f32.mrb[0].mxu0
    %v3954 = vadd.f32 %v3875, %v3953
    %v3955 = vpop.f32.mrb[0].mxu0
    %v3956 = vpop.f32.mrb[0].mxu0
    %3957 = vdwg.mxu0
    %v3958 = vmul.f32 %v3911, 0.5
    %v3959 = vtanh.pop %v3958
    %v3960 = vmul.f32 %v3959, 0.5
    %v3961 = vadd.f32 %v3960, 0.5
    %v3962 = vmul.f32 %v3913, 0.5
    %v3963 = vtanh.pop %v3962
    %v3964 = vmul.f32 %v3963, 0.5
    %v3965 = vadd.f32 %v3964, 0.5
    %v3966 = vtanh.pop %v3952
    %v3967 = vmul.f32 %v3954, 0.5
    %v3968 = vtanh.pop %v3967
    %v3969 = vmul.f32 %v3968, 0.5
    %v3970 = vadd.f32 %v3969, 0.5
    %v3971 = vmul.f32 %v3965, %v3662
    %v3972 = vmul.f32 %v3961, %v3966
    %v3973 = vadd.f32 %v3971, %v3972
    %v3974 = vtanh.pop %v3973
    %v3975 = vmul.f32 %v3970, %v3974
    %v3976 = vpack.c.bf16 %v3975, %v3975
    %3977 = vmatprep.subr.bf16.mxu0 %v1053
    %3978 = vmatpush1.bf16.msra.mxu0 %v1052
    %3979 = vmatprep.subr.bf16.mxu0 %v1057
    %3980 = vmatpush1.bf16.msra.mxu0 %v1056
    %3981 = vmatprep.subr.bf16.mxu0 %v1061
    %3982 = vmatpush1.bf16.msra.mxu0 %v1060
    %3983 = vmatprep.subr.bf16.mxu0 %v1065
    %3984 = vmatpush1.bf16.msra.mxu0 %v1064
    %3985 = vmatprep.subr.bf16.mxu0 %v1069
    %3986 = vmatpush1.bf16.msra.mxu0 %v1068
    %3987 = vmatprep.subr.bf16.mxu0 %v1073
    %3988 = vmatpush1.bf16.msra.mxu0 %v1072
    %3989 = vmatprep.subr.bf16.mxu0 %v1077
    %3990 = vmatpush1.bf16.msra.mxu0 %v1076
    %3991 = vmatprep.subr.bf16.mxu0 %v1081
    %3992 = vmatpush1.bf16.msra.mxu0 %v1080
    %3993 = vmatprep.subr.bf16.mxu0 %v1085
    %3994 = vmatpush1.bf16.msra.mxu0 %v1084
    %3995 = vmatprep.subr.bf16.mxu0 %v1089
    %3996 = vmatpush1.bf16.msra.mxu0 %v1088
    %3997 = vmatprep.subr.bf16.mxu0 %v1093
    %3998 = vmatpush1.bf16.msra.mxu0 %v1092
    %3999 = vmatprep.subr.bf16.mxu0 %v1097
    %4000 = vmatpush1.bf16.msra.mxu0 %v1096
    %4001 = vmatprep.subr.bf16.mxu0 %v1101
    %4002 = vmatpush1.bf16.msra.mxu0 %v1100
    %4003 = vmatprep.subr.bf16.mxu0 %v1105
    %4004 = vmatpush1.bf16.msra.mxu0 %v1104
    %4005 = vmatprep.subr.bf16.mxu0 %v1109
    %4006 = vmatpush1.bf16.msra.mxu0 %v1108
    %4007 = vmatprep.subr.bf16.mxu0 %v1113
    %4008 = vmatpush1.bf16.msra.mxu0 %v1112
    %4009 = vmatprep.mubr.bf16.mxu0 %v3766
    %4010 = vmatmul.mubr.bf16.gmra.mrb[0].mxu0 %v3976
    %v4011 = vpop.f32.mrb[0].mxu0
    %v4012 = vadd.f32 %v288, %v4011
    %v4013 = vpop.f32.mrb[0].mxu0
    %v4014 = vadd.f32 %v292, %v4013
    %v4015 = vpop.f32.mrb[0].mxu0
    %v4016 = vpop.f32.mrb[0].mxu0
    %4017 = vdwg.mxu0
    %4018 = vmatprep.subr.bf16.mxu0 %v1055
    %4019 = vmatpush1.bf16.msra.mxu0 %v1054
    %4020 = vmatprep.subr.bf16.mxu0 %v1059
    %4021 = vmatpush1.bf16.msra.mxu0 %v1058
    %4022 = vmatprep.subr.bf16.mxu0 %v1063
    %4023 = vmatpush1.bf16.msra.mxu0 %v1062
    %4024 = vmatprep.subr.bf16.mxu0 %v1067
    %4025 = vmatpush1.bf16.msra.mxu0 %v1066
    %4026 = vmatprep.subr.bf16.mxu0 %v1071
    %4027 = vmatpush1.bf16.msra.mxu0 %v1070
    %4028 = vmatprep.subr.bf16.mxu0 %v1075
    %4029 = vmatpush1.bf16.msra.mxu0 %v1074
    %4030 = vmatprep.subr.bf16.mxu0 %v1079
    %4031 = vmatpush1.bf16.msra.mxu0 %v1078
    %4032 = vmatprep.subr.bf16.mxu0 %v1083
    %4033 = vmatpush1.bf16.msra.mxu0 %v1082
    %4034 = vmatprep.subr.bf16.mxu0 %v1087
    %4035 = vmatpush1.bf16.msra.mxu0 %v1086
    %4036 = vmatprep.subr.bf16.mxu0 %v1091
    %4037 = vmatpush1.bf16.msra.mxu0 %v1090
    %4038 = vmatprep.subr.bf16.mxu0 %v1095
    %4039 = vmatpush1.bf16.msra.mxu0 %v1094
    %4040 = vmatprep.subr.bf16.mxu0 %v1099
    %4041 = vmatpush1.bf16.msra.mxu0 %v1098
    %4042 = vmatprep.subr.bf16.mxu0 %v1103
    %4043 = vmatpush1.bf16.msra.mxu0 %v1102
    %4044 = vmatprep.subr.bf16.mxu0 %v1107
    %4045 = vmatpush1.bf16.msra.mxu0 %v1106
    %4046 = vmatprep.subr.bf16.mxu0 %v1111
    %4047 = vmatpush1.bf16.msra.mxu0 %v1110
    %4048 = vmatprep.subr.bf16.mxu0 %v1115
    %4049 = vmatpush1.bf16.msra.mxu0 %v1114
    %4050 = vmatprep.mubr.bf16.mxu0 %v3766
    %4051 = vmatmul.mubr.bf16.gmra.mrb[0].mxu0 %v3976
    %v4052 = vpop.f32.mrb[0].mxu0
    %v4053 = vadd.f32 %v296, %v4052
    %v4054 = vpop.f32.mrb[0].mxu0
    %v4055 = vadd.f32 %v300, %v4054
    %v4056 = vpop.f32.mrb[0].mxu0
    %v4057 = vpop.f32.mrb[0].mxu0
    %4058 = vdwg.mxu0
    %v4059 = vmul.f32 %v4012, 0.5
    %v4060 = vtanh.pop %v4059
    %v4061 = vmul.f32 %v4060, 0.5
    %v4062 = vadd.f32 %v4061, 0.5
    %v4063 = vmul.f32 %v4014, 0.5
    %v4064 = vtanh.pop %v4063
    %v4065 = vmul.f32 %v4064, 0.5
    %v4066 = vadd.f32 %v4065, 0.5
    %v4067 = vtanh.pop %v4053
    %v4068 = vmul.f32 %v4055, 0.5
    %v4069 = vtanh.pop %v4068
    %v4070 = vmul.f32 %v4069, 0.5
    %v4071 = vadd.f32 %v4070, 0.5
    %v4072 = vmul.f32 %v4066, %v3763
    %v4073 = vmul.f32 %v4062, %v4067
    %v4074 = vadd.f32 %v4072, %v4073
    %v4075 = vtanh.pop %v4074
    %v4076 = vmul.f32 %v4071, %v4075
    %v4077 = vpack.c.bf16 %v4076, %v4076
    %v4078 = vld [vmem:[#allocation18 + $0x240] sm:$0xf]
    %v4079 = vld [vmem:[#allocation18 + $0x244] sm:$0xf]
    %v4080 = vld [vmem:[#allocation18 + $0x248] sm:$0xf]
    %v4081 = vld [vmem:[#allocation18 + $0x24c] sm:$0xf]
    %v4082 = vld [vmem:[#allocation18 + $0x250] sm:$0xf]
    %v4083 = vld [vmem:[#allocation18 + $0x254] sm:$0xf]
    %v4084 = vld [vmem:[#allocation18 + $0x258] sm:$0xf]
    %v4085 = vld [vmem:[#allocation18 + $0x25c] sm:$0xf]
    %v4086 = vld [vmem:[#allocation18 + $0x260] sm:$0xf]
    %v4087 = vld [vmem:[#allocation18 + $0x264] sm:$0xf]
    %v4088 = vld [vmem:[#allocation18 + $0x268] sm:$0xf]
    %v4089 = vld [vmem:[#allocation18 + $0x26c] sm:$0xf]
    %v4090 = vld [vmem:[#allocation18 + $0x270] sm:$0xf]
    %v4091 = vld [vmem:[#allocation18 + $0x274] sm:$0xf]
    %v4092 = vld [vmem:[#allocation18 + $0x278] sm:$0xf]
    %v4093 = vld [vmem:[#allocation18 + $0x27c] sm:$0xf]
    %v4110 = vunpack.c.l.b16 %v4078
    %v4111 = vunpack.c.l.b16 %v4079
    %v4112 = vunpack.c.l.b16 %v4080
    %v4113 = vunpack.c.l.b16 %v4081
    %v4114 = vunpack.c.l.b16 %v4082
    %v4115 = vunpack.c.l.b16 %v4083
    %v4116 = vunpack.c.l.b16 %v4084
    %v4117 = vunpack.c.l.b16 %v4085
    %v4118 = vunpack.c.l.b16 %v4086
    %v4119 = vunpack.c.l.b16 %v4087
    %v4120 = vunpack.c.l.b16 %v4088
    %v4121 = vunpack.c.l.b16 %v4089
    %v4122 = vunpack.c.l.b16 %v4090
    %v4123 = vunpack.c.l.b16 %v4091
    %v4124 = vunpack.c.l.b16 %v4092
    %v4125 = vunpack.c.l.b16 %v4093
    %v4126 = vpack.c.b16 %v4111, %v4110
    %v4127 = vpack.c.b16 %v4113, %v4112
    %v4128 = vpack.c.b16 %v4115, %v4114
    %v4129 = vpack.c.b16 %v4117, %v4116
    %v4130 = vpack.c.b16 %v4119, %v4118
    %v4131 = vpack.c.b16 %v4121, %v4120
    %v4132 = vpack.c.b16 %v4123, %v4122
    %v4133 = vpack.c.b16 %v4125, %v4124
    %4142 = vmatprep.subr.bf16.mxu0 0
    %4143 = vmatpush1.bf16.msra.mxu0 %v4126
    %4144 = vmatprep.subr.bf16.mxu0 0
    %4145 = vmatpush1.bf16.msra.mxu0 %v4127
    %4146 = vmatprep.subr.bf16.mxu0 0
    %4147 = vmatpush1.bf16.msra.mxu0 %v4128
    %4148 = vmatprep.subr.bf16.mxu0 0
    %4149 = vmatpush1.bf16.msra.mxu0 %v4129
    %4150 = vmatprep.subr.bf16.mxu0 0
    %4151 = vmatpush1.bf16.msra.mxu0 %v4130
    %4152 = vmatprep.subr.bf16.mxu0 0
    %4153 = vmatpush1.bf16.msra.mxu0 %v4131
    %4154 = vmatprep.subr.bf16.mxu0 0
    %4155 = vmatpush1.bf16.msra.mxu0 %v4132
    %4156 = vmatprep.subr.bf16.mxu0 0
    %4157 = vmatpush1.bf16.msra.mxu0 %v4133
    %4158 = vmatprep.subr.bf16.mxu0 0
    %4159 = vmatpush1.bf16.msra.mxu0 0
    %4160 = vmatprep.subr.bf16.mxu0 0
    %4161 = vmatpush1.bf16.msra.mxu0 0
    %4162 = vmatprep.subr.bf16.mxu0 0
    %4163 = vmatpush1.bf16.msra.mxu0 0
    %4164 = vmatprep.subr.bf16.mxu0 0
    %4165 = vmatpush1.bf16.msra.mxu0 0
    %4166 = vmatprep.subr.bf16.mxu0 0
    %4167 = vmatpush1.bf16.msra.mxu0 0
    %4168 = vmatprep.subr.bf16.mxu0 0
    %4169 = vmatpush1.bf16.msra.mxu0 0
    %4170 = vmatprep.subr.bf16.mxu0 0
    %4171 = vmatpush1.bf16.msra.mxu0 0
    %4172 = vmatprep.subr.bf16.mxu0 0
    %4173 = vmatpush1.bf16.msra.mxu0 0
    %4174 = vmatprep.mubr.bf16.mxu0 0
    %4175 = vmatmul.mubr.bf16.gmra.mrb[0].mxu0 %v4077
    %v4176 = vpop.f32.mrb[0].mxu0
    %v4177 = vadd.f32 0.0, %v4176
    %v4178 = vpop.f32.mrb[0].mxu0
    %v4179 = vpop.f32.mrb[0].mxu0
    %v4180 = vpop.f32.mrb[0].mxu0
    %4181 = vdwg.mxu0
    %v4182 = vadd.f32 %v3871, %v4177
    %v4183 = vld [vmem:[#allocation2 + $0x140] sm:$0xff]
    %v4184 = vld [vmem:[#allocation2 + $0x148] sm:$0xff]
    %v4185 = vld [vmem:[#allocation2 + $0x150] sm:$0xff]
    %v4186 = vld [vmem:[#allocation2 + $0x158] sm:$0xff]
    %4187 = vmatprep.subr.bf16.mxu0 %v631
    %4188 = vmatpush1.bf16.msra.mxu0 %v630
    %4189 = vmatprep.subr.bf16.mxu0 %v635
    %4190 = vmatpush1.bf16.msra.mxu0 %v634
    %4191 = vmatprep.subr.bf16.mxu0 %v639
    %4192 = vmatpush1.bf16.msra.mxu0 %v638
    %4193 = vmatprep.subr.bf16.mxu0 %v643
    %4194 = vmatpush1.bf16.msra.mxu0 %v642
    %4195 = vmatprep.subr.bf16.mxu0 %v647
    %4196 = vmatpush1.bf16.msra.mxu0 %v646
    %4197 = vmatprep.subr.bf16.mxu0 %v651
    %4198 = vmatpush1.bf16.msra.mxu0 %v650
    %4199 = vmatprep.subr.bf16.mxu0 %v655
    %4200 = vmatpush1.bf16.msra.mxu0 %v654
    %4201 = vmatprep.subr.bf16.mxu0 %v659
    %4202 = vmatpush1.bf16.msra.mxu0 %v658
    %4203 = vmatprep.subr.bf16.mxu0 0
    %4204 = vmatpush1.bf16.msra.mxu0 0
    %4205 = vmatprep.subr.bf16.mxu0 0
    %4206 = vmatpush1.bf16.msra.mxu0 0
    %4207 = vmatprep.subr.bf16.mxu0 0
    %4208 = vmatpush1.bf16.msra.mxu0 0
    %4209 = vmatprep.subr.bf16.mxu0 0
    %4210 = vmatpush1.bf16.msra.mxu0 0
    %4211 = vmatprep.subr.bf16.mxu0 0
    %4212 = vmatpush1.bf16.msra.mxu0 0
    %4213 = vmatprep.subr.bf16.mxu0 0
    %4214 = vmatpush1.bf16.msra.mxu0 0
    %4215 = vmatprep.subr.bf16.mxu0 0
    %4216 = vmatpush1.bf16.msra.mxu0 0
    %4217 = vmatprep.subr.bf16.mxu0 0
    %4218 = vmatpush1.bf16.msra.mxu0 0
    %4219 = vmatprep.mubr.bf16.mxu0 0
    %4220 = vmatmul.mubr.bf16.gmra.mrb[0].mxu0 %v3976
    %v4221 = vpop.f32.mrb[0].mxu0
    %v4222 = vadd.f32 %v4183, %v4221
    %v4223 = vpop.f32.mrb[0].mxu0
    %v4224 = vadd.f32 %v4184, %v4223
    %v4225 = vpop.f32.mrb[0].mxu0
    %v4226 = vpop.f32.mrb[0].mxu0
    %4227 = vdwg.mxu0
    %4228 = vmatprep.subr.bf16.mxu0 %v633
    %4229 = vmatpush1.bf16.msra.mxu0 %v632
    %4230 = vmatprep.subr.bf16.mxu0 %v637
    %4231 = vmatpush1.bf16.msra.mxu0 %v636
    %4232 = vmatprep.subr.bf16.mxu0 %v641
    %4233 = vmatpush1.bf16.msra.mxu0 %v640
    %4234 = vmatprep.subr.bf16.mxu0 %v645
    %4235 = vmatpush1.bf16.msra.mxu0 %v644
    %4236 = vmatprep.subr.bf16.mxu0 %v649
    %4237 = vmatpush1.bf16.msra.mxu0 %v648
    %4238 = vmatprep.subr.bf16.mxu0 %v653
    %4239 = vmatpush1.bf16.msra.mxu0 %v652
    %4240 = vmatprep.subr.bf16.mxu0 %v657
    %4241 = vmatpush1.bf16.msra.mxu0 %v656
    %4242 = vmatprep.subr.bf16.mxu0 %v661
    %4243 = vmatpush1.bf16.msra.mxu0 %v660
    %4244 = vmatprep.subr.bf16.mxu0 0
    %4245 = vmatpush1.bf16.msra.mxu0 0
    %4246 = vmatprep.subr.bf16.mxu0 0
    %4247 = vmatpush1.bf16.msra.mxu0 0
    %4248 = vmatprep.subr.bf16.mxu0 0
    %4249 = vmatpush1.bf16.msra.mxu0 0
    %4250 = vmatprep.subr.bf16.mxu0 0
    %4251 = vmatpush1.bf16.msra.mxu0 0
    %4252 = vmatprep.subr.bf16.mxu0 0
    %4253 = vmatpush1.bf16.msra.mxu0 0
    %4254 = vmatprep.subr.bf16.mxu0 0
    %4255 = vmatpush1.bf16.msra.mxu0 0
    %4256 = vmatprep.subr.bf16.mxu0 0
    %4257 = vmatpush1.bf16.msra.mxu0 0
    %4258 = vmatprep.subr.bf16.mxu0 0
    %4259 = vmatpush1.bf16.msra.mxu0 0
    %4260 = vmatprep.mubr.bf16.mxu0 0
    %4261 = vmatmul.mubr.bf16.gmra.mrb[0].mxu0 %v3976
    %v4262 = vpop.f32.mrb[0].mxu0
    %v4263 = vadd.f32 %v4185, %v4262
    %v4264 = vpop.f32.mrb[0].mxu0
    %v4265 = vadd.f32 %v4186, %v4264
    %v4266 = vpop.f32.mrb[0].mxu0
    %v4267 = vpop.f32.mrb[0].mxu0
    %4268 = vdwg.mxu0
    %v4269 = vmul.f32 %v4222, 0.5
    %v4270 = vtanh.pop %v4269
    %v4271 = vmul.f32 %v4270, 0.5
    %v4272 = vadd.f32 %v4271, 0.5
    %v4273 = vmul.f32 %v4224, 0.5
    %v4274 = vtanh.pop %v4273
    %v4275 = vmul.f32 %v4274, 0.5
    %v4276 = vadd.f32 %v4275, 0.5
    %v4277 = vtanh.pop %v4263
    %v4278 = vmul.f32 %v4265, 0.5
    %v4279 = vtanh.pop %v4278
    %v4280 = vmul.f32 %v4279, 0.5
    %v4281 = vadd.f32 %v4280, 0.5
    %v4282 = vmul.f32 %v4276, %v3973
    %v4283 = vmul.f32 %v4272, %v4277
    %v4284 = vadd.f32 %v4282, %v4283
    %v4285 = vtanh.pop %v4284
    %v4286 = vmul.f32 %v4281, %v4285
    %v4287 = vpack.c.bf16 %v4286, %v4286
    %4288 = vmatprep.subr.bf16.mxu0 %v1053
    %4289 = vmatpush1.bf16.msra.mxu0 %v1052
    %4290 = vmatprep.subr.bf16.mxu0 %v1057
    %4291 = vmatpush1.bf16.msra.mxu0 %v1056
    %4292 = vmatprep.subr.bf16.mxu0 %v1061
    %4293 = vmatpush1.bf16.msra.mxu0 %v1060
    %4294 = vmatprep.subr.bf16.mxu0 %v1065
    %4295 = vmatpush1.bf16.msra.mxu0 %v1064
    %4296 = vmatprep.subr.bf16.mxu0 %v1069
    %4297 = vmatpush1.bf16.msra.mxu0 %v1068
    %4298 = vmatprep.subr.bf16.mxu0 %v1073
    %4299 = vmatpush1.bf16.msra.mxu0 %v1072
    %4300 = vmatprep.subr.bf16.mxu0 %v1077
    %4301 = vmatpush1.bf16.msra.mxu0 %v1076
    %4302 = vmatprep.subr.bf16.mxu0 %v1081
    %4303 = vmatpush1.bf16.msra.mxu0 %v1080
    %4304 = vmatprep.subr.bf16.mxu0 %v1085
    %4305 = vmatpush1.bf16.msra.mxu0 %v1084
    %4306 = vmatprep.subr.bf16.mxu0 %v1089
    %4307 = vmatpush1.bf16.msra.mxu0 %v1088
    %4308 = vmatprep.subr.bf16.mxu0 %v1093
    %4309 = vmatpush1.bf16.msra.mxu0 %v1092
    %4310 = vmatprep.subr.bf16.mxu0 %v1097
    %4311 = vmatpush1.bf16.msra.mxu0 %v1096
    %4312 = vmatprep.subr.bf16.mxu0 %v1101
    %4313 = vmatpush1.bf16.msra.mxu0 %v1100
    %4314 = vmatprep.subr.bf16.mxu0 %v1105
    %4315 = vmatpush1.bf16.msra.mxu0 %v1104
    %4316 = vmatprep.subr.bf16.mxu0 %v1109
    %4317 = vmatpush1.bf16.msra.mxu0 %v1108
    %4318 = vmatprep.subr.bf16.mxu0 %v1113
    %4319 = vmatpush1.bf16.msra.mxu0 %v1112
    %4320 = vmatprep.mubr.bf16.mxu0 %v4077
    %4321 = vmatmul.mubr.bf16.gmra.mrb[0].mxu0 %v4287
    %v4322 = vpop.f32.mrb[0].mxu0
    %v4323 = vadd.f32 %v288, %v4322
    %v4324 = vpop.f32.mrb[0].mxu0
    %v4325 = vadd.f32 %v292, %v4324
    %v4326 = vpop.f32.mrb[0].mxu0
    %v4327 = vpop.f32.mrb[0].mxu0
    %4328 = vdwg.mxu0
    %4329 = vmatprep.subr.bf16.mxu0 %v1055
    %4330 = vmatpush1.bf16.msra.mxu0 %v1054
    %4331 = vmatprep.subr.bf16.mxu0 %v1059
    %4332 = vmatpush1.bf16.msra.mxu0 %v1058
    %4333 = vmatprep.subr.bf16.mxu0 %v1063
    %4334 = vmatpush1.bf16.msra.mxu0 %v1062
    %4335 = vmatprep.subr.bf16.mxu0 %v1067
    %4336 = vmatpush1.bf16.msra.mxu0 %v1066
    %4337 = vmatprep.subr.bf16.mxu0 %v1071
    %4338 = vmatpush1.bf16.msra.mxu0 %v1070
    %4339 = vmatprep.subr.bf16.mxu0 %v1075
    %4340 = vmatpush1.bf16.msra.mxu0 %v1074
    %4341 = vmatprep.subr.bf16.mxu0 %v1079
    %4342 = vmatpush1.bf16.msra.mxu0 %v1078
    %4343 = vmatprep.subr.bf16.mxu0 %v1083
    %4344 = vmatpush1.bf16.msra.mxu0 %v1082
    %4345 = vmatprep.subr.bf16.mxu0 %v1087
    %4346 = vmatpush1.bf16.msra.mxu0 %v1086
    %4347 = vmatprep.subr.bf16.mxu0 %v1091
    %4348 = vmatpush1.bf16.msra.mxu0 %v1090
    %4349 = vmatprep.subr.bf16.mxu0 %v1095
    %4350 = vmatpush1.bf16.msra.mxu0 %v1094
    %4351 = vmatprep.subr.bf16.mxu0 %v1099
    %4352 = vmatpush1.bf16.msra.mxu0 %v1098
    %4353 = vmatprep.subr.bf16.mxu0 %v1103
    %4354 = vmatpush1.bf16.msra.mxu0 %v1102
    %4355 = vmatprep.subr.bf16.mxu0 %v1107
    %4356 = vmatpush1.bf16.msra.mxu0 %v1106
    %4357 = vmatprep.subr.bf16.mxu0 %v1111
    %4358 = vmatpush1.bf16.msra.mxu0 %v1110
    %4359 = vmatprep.subr.bf16.mxu0 %v1115
    %4360 = vmatpush1.bf16.msra.mxu0 %v1114
    %4361 = vmatprep.mubr.bf16.mxu0 %v4077
    %4362 = vmatmul.mubr.bf16.gmra.mrb[0].mxu0 %v4287
    %v4363 = vpop.f32.mrb[0].mxu0
    %v4364 = vadd.f32 %v296, %v4363
    %v4365 = vpop.f32.mrb[0].mxu0
    %v4366 = vadd.f32 %v300, %v4365
    %v4367 = vpop.f32.mrb[0].mxu0
    %v4368 = vpop.f32.mrb[0].mxu0
    %4369 = vdwg.mxu0
    %v4370 = vmul.f32 %v4323, 0.5
    %v4371 = vtanh.pop %v4370
    %v4372 = vmul.f32 %v4371, 0.5
    %v4373 = vadd.f32 %v4372, 0.5
    %v4374 = vmul.f32 %v4325, 0.5
    %v4375 = vtanh.pop %v4374
    %v4376 = vmul.f32 %v4375, 0.5
    %v4377 = vadd.f32 %v4376, 0.5
    %v4378 = vtanh.pop %v4364
    %v4379 = vmul.f32 %v4366, 0.5
    %v4380 = vtanh.pop %v4379
    %v4381 = vmul.f32 %v4380, 0.5
    %v4382 = vadd.f32 %v4381, 0.5
    %v4383 = vmul.f32 %v4377, %v4074
    %v4384 = vmul.f32 %v4373, %v4378
    %v4385 = vadd.f32 %v4383, %v4384
    %v4386 = vtanh.pop %v4385
    %v4387 = vmul.f32 %v4382, %v4386
    %v4388 = vpack.c.bf16 %v4387, %v4387
    %v4389 = vld [vmem:[#allocation18 + $0x280] sm:$0xf]
    %v4390 = vld [vmem:[#allocation18 + $0x284] sm:$0xf]
    %v4391 = vld [vmem:[#allocation18 + $0x288] sm:$0xf]
    %v4392 = vld [vmem:[#allocation18 + $0x28c] sm:$0xf]
    %v4393 = vld [vmem:[#allocation18 + $0x290] sm:$0xf]
    %v4394 = vld [vmem:[#allocation18 + $0x294] sm:$0xf]
    %v4395 = vld [vmem:[#allocation18 + $0x298] sm:$0xf]
    %v4396 = vld [vmem:[#allocation18 + $0x29c] sm:$0xf]
    %v4397 = vld [vmem:[#allocation18 + $0x2a0] sm:$0xf]
    %v4398 = vld [vmem:[#allocation18 + $0x2a4] sm:$0xf]
    %v4399 = vld [vmem:[#allocation18 + $0x2a8] sm:$0xf]
    %v4400 = vld [vmem:[#allocation18 + $0x2ac] sm:$0xf]
    %v4401 = vld [vmem:[#allocation18 + $0x2b0] sm:$0xf]
    %v4402 = vld [vmem:[#allocation18 + $0x2b4] sm:$0xf]
    %v4403 = vld [vmem:[#allocation18 + $0x2b8] sm:$0xf]
    %v4404 = vld [vmem:[#allocation18 + $0x2bc] sm:$0xf]
    %v4421 = vunpack.c.l.b16 %v4389
    %v4422 = vunpack.c.l.b16 %v4390
    %v4423 = vunpack.c.l.b16 %v4391
    %v4424 = vunpack.c.l.b16 %v4392
    %v4425 = vunpack.c.l.b16 %v4393
    %v4426 = vunpack.c.l.b16 %v4394
    %v4427 = vunpack.c.l.b16 %v4395
    %v4428 = vunpack.c.l.b16 %v4396
    %v4429 = vunpack.c.l.b16 %v4397
    %v4430 = vunpack.c.l.b16 %v4398
    %v4431 = vunpack.c.l.b16 %v4399
    %v4432 = vunpack.c.l.b16 %v4400
    %v4433 = vunpack.c.l.b16 %v4401
    %v4434 = vunpack.c.l.b16 %v4402
    %v4435 = vunpack.c.l.b16 %v4403
    %v4436 = vunpack.c.l.b16 %v4404
    %v4437 = vpack.c.b16 %v4422, %v4421
    %v4438 = vpack.c.b16 %v4424, %v4423
    %v4439 = vpack.c.b16 %v4426, %v4425
    %v4440 = vpack.c.b16 %v4428, %v4427
    %v4441 = vpack.c.b16 %v4430, %v4429
    %v4442 = vpack.c.b16 %v4432, %v4431
    %v4443 = vpack.c.b16 %v4434, %v4433
    %v4444 = vpack.c.b16 %v4436, %v4435
    %4453 = vmatprep.subr.bf16.mxu0 0
    %4454 = vmatpush1.bf16.msra.mxu0 %v4437
    %4455 = vmatprep.subr.bf16.mxu0 0
    %4456 = vmatpush1.bf16.msra.mxu0 %v4438
    %4457 = vmatprep.subr.bf16.mxu0 0
    %4458 = vmatpush1.bf16.msra.mxu0 %v4439
    %4459 = vmatprep.subr.bf16.mxu0 0
    %4460 = vmatpush1.bf16.msra.mxu0 %v4440
    %4461 = vmatprep.subr.bf16.mxu0 0
    %4462 = vmatpush1.bf16.msra.mxu0 %v4441
    %4463 = vmatprep.subr.bf16.mxu0 0
    %4464 = vmatpush1.bf16.msra.mxu0 %v4442
    %4465 = vmatprep.subr.bf16.mxu0 0
    %4466 = vmatpush1.bf16.msra.mxu0 %v4443
    %4467 = vmatprep.subr.bf16.mxu0 0
    %4468 = vmatpush1.bf16.msra.mxu0 %v4444
    %4469 = vmatprep.subr.bf16.mxu0 0
    %4470 = vmatpush1.bf16.msra.mxu0 0
    %4471 = vmatprep.subr.bf16.mxu0 0
    %4472 = vmatpush1.bf16.msra.mxu0 0
    %4473 = vmatprep.subr.bf16.mxu0 0
    %4474 = vmatpush1.bf16.msra.mxu0 0
    %4475 = vmatprep.subr.bf16.mxu0 0
    %4476 = vmatpush1.bf16.msra.mxu0 0
    %4477 = vmatprep.subr.bf16.mxu0 0
    %4478 = vmatpush1.bf16.msra.mxu0 0
    %4479 = vmatprep.subr.bf16.mxu0 0
    %4480 = vmatpush1.bf16.msra.mxu0 0
    %4481 = vmatprep.subr.bf16.mxu0 0
    %4482 = vmatpush1.bf16.msra.mxu0 0
    %4483 = vmatprep.subr.bf16.mxu0 0
    %4484 = vmatpush1.bf16.msra.mxu0 0
    %4485 = vmatprep.mubr.bf16.mxu0 0
    %4486 = vmatmul.mubr.bf16.gmra.mrb[0].mxu0 %v4388
    %v4487 = vpop.f32.mrb[0].mxu0
    %v4488 = vadd.f32 0.0, %v4487
    %v4489 = vpop.f32.mrb[0].mxu0
    %v4490 = vpop.f32.mrb[0].mxu0
    %v4491 = vpop.f32.mrb[0].mxu0
    %4492 = vdwg.mxu0
    %v4493 = vadd.f32 %v4182, %v4488
    %v4494 = vld [vmem:[#allocation2 + $0x160] sm:$0xff]
    %v4495 = vld [vmem:[#allocation2 + $0x168] sm:$0xff]
    %v4496 = vld [vmem:[#allocation2 + $0x170] sm:$0xff]
    %v4497 = vld [vmem:[#allocation2 + $0x178] sm:$0xff]
    %4498 = vmatprep.subr.bf16.mxu0 %v631
    %4499 = vmatpush1.bf16.msra.mxu0 %v630
    %4500 = vmatprep.subr.bf16.mxu0 %v635
    %4501 = vmatpush1.bf16.msra.mxu0 %v634
    %4502 = vmatprep.subr.bf16.mxu0 %v639
    %4503 = vmatpush1.bf16.msra.mxu0 %v638
    %4504 = vmatprep.subr.bf16.mxu0 %v643
    %4505 = vmatpush1.bf16.msra.mxu0 %v642
    %4506 = vmatprep.subr.bf16.mxu0 %v647
    %4507 = vmatpush1.bf16.msra.mxu0 %v646
    %4508 = vmatprep.subr.bf16.mxu0 %v651
    %4509 = vmatpush1.bf16.msra.mxu0 %v650
    %4510 = vmatprep.subr.bf16.mxu0 %v655
    %4511 = vmatpush1.bf16.msra.mxu0 %v654
    %4512 = vmatprep.subr.bf16.mxu0 %v659
    %4513 = vmatpush1.bf16.msra.mxu0 %v658
    %4514 = vmatprep.subr.bf16.mxu0 0
    %4515 = vmatpush1.bf16.msra.mxu0 0
    %4516 = vmatprep.subr.bf16.mxu0 0
    %4517 = vmatpush1.bf16.msra.mxu0 0
    %4518 = vmatprep.subr.bf16.mxu0 0
    %4519 = vmatpush1.bf16.msra.mxu0 0
    %4520 = vmatprep.subr.bf16.mxu0 0
    %4521 = vmatpush1.bf16.msra.mxu0 0
    %4522 = vmatprep.subr.bf16.mxu0 0
    %4523 = vmatpush1.bf16.msra.mxu0 0
    %4524 = vmatprep.subr.bf16.mxu0 0
    %4525 = vmatpush1.bf16.msra.mxu0 0
    %4526 = vmatprep.subr.bf16.mxu0 0
    %4527 = vmatpush1.bf16.msra.mxu0 0
    %4528 = vmatprep.subr.bf16.mxu0 0
    %4529 = vmatpush1.bf16.msra.mxu0 0
    %4530 = vmatprep.mubr.bf16.mxu0 0
    %4531 = vmatmul.mubr.bf16.gmra.mrb[0].mxu0 %v4287
    %v4532 = vpop.f32.mrb[0].mxu0
    %v4533 = vadd.f32 %v4494, %v4532
    %v4534 = vpop.f32.mrb[0].mxu0
    %v4535 = vadd.f32 %v4495, %v4534
    %v4536 = vpop.f32.mrb[0].mxu0
    %v4537 = vpop.f32.mrb[0].mxu0
    %4538 = vdwg.mxu0
    %4539 = vmatprep.subr.bf16.mxu0 %v633
    %4540 = vmatpush1.bf16.msra.mxu0 %v632
    %4541 = vmatprep.subr.bf16.mxu0 %v637
    %4542 = vmatpush1.bf16.msra.mxu0 %v636
    %4543 = vmatprep.subr.bf16.mxu0 %v641
    %4544 = vmatpush1.bf16.msra.mxu0 %v640
    %4545 = vmatprep.subr.bf16.mxu0 %v645
    %4546 = vmatpush1.bf16.msra.mxu0 %v644
    %4547 = vmatprep.subr.bf16.mxu0 %v649
    %4548 = vmatpush1.bf16.msra.mxu0 %v648
    %4549 = vmatprep.subr.bf16.mxu0 %v653
    %4550 = vmatpush1.bf16.msra.mxu0 %v652
    %4551 = vmatprep.subr.bf16.mxu0 %v657
    %4552 = vmatpush1.bf16.msra.mxu0 %v656
    %4553 = vmatprep.subr.bf16.mxu0 %v661
    %4554 = vmatpush1.bf16.msra.mxu0 %v660
    %4555 = vmatprep.subr.bf16.mxu0 0
    %4556 = vmatpush1.bf16.msra.mxu0 0
    %4557 = vmatprep.subr.bf16.mxu0 0
    %4558 = vmatpush1.bf16.msra.mxu0 0
    %4559 = vmatprep.subr.bf16.mxu0 0
    %4560 = vmatpush1.bf16.msra.mxu0 0
    %4561 = vmatprep.subr.bf16.mxu0 0
    %4562 = vmatpush1.bf16.msra.mxu0 0
    %4563 = vmatprep.subr.bf16.mxu0 0
    %4564 = vmatpush1.bf16.msra.mxu0 0
    %4565 = vmatprep.subr.bf16.mxu0 0
    %4566 = vmatpush1.bf16.msra.mxu0 0
    %4567 = vmatprep.subr.bf16.mxu0 0
    %4568 = vmatpush1.bf16.msra.mxu0 0
    %4569 = vmatprep.subr.bf16.mxu0 0
    %4570 = vmatpush1.bf16.msra.mxu0 0
    %4571 = vmatprep.mubr.bf16.mxu0 0
    %4572 = vmatmul.mubr.bf16.gmra.mrb[0].mxu0 %v4287
    %v4573 = vpop.f32.mrb[0].mxu0
    %v4574 = vadd.f32 %v4496, %v4573
    %v4575 = vpop.f32.mrb[0].mxu0
    %v4576 = vadd.f32 %v4497, %v4575
    %v4577 = vpop.f32.mrb[0].mxu0
    %v4578 = vpop.f32.mrb[0].mxu0
    %4579 = vdwg.mxu0
    %v4580 = vmul.f32 %v4533, 0.5
    %v4581 = vtanh.pop %v4580
    %v4582 = vmul.f32 %v4581, 0.5
    %v4583 = vadd.f32 %v4582, 0.5
    %v4584 = vmul.f32 %v4535, 0.5
    %v4585 = vtanh.pop %v4584
    %v4586 = vmul.f32 %v4585, 0.5
    %v4587 = vadd.f32 %v4586, 0.5
    %v4588 = vtanh.pop %v4574
    %v4589 = vmul.f32 %v4576, 0.5
    %v4590 = vtanh.pop %v4589
    %v4591 = vmul.f32 %v4590, 0.5
    %v4592 = vadd.f32 %v4591, 0.5
    %v4593 = vmul.f32 %v4587, %v4284
    %v4594 = vmul.f32 %v4583, %v4588
    %v4595 = vadd.f32 %v4593, %v4594
    %v4596 = vtanh.pop %v4595
    %v4597 = vmul.f32 %v4592, %v4596
    %v4598 = vpack.c.bf16 %v4597, %v4597
    %4599 = vmatprep.subr.bf16.mxu0 %v1053
    %4600 = vmatpush1.bf16.msra.mxu0 %v1052
    %4601 = vmatprep.subr.bf16.mxu0 %v1057
    %4602 = vmatpush1.bf16.msra.mxu0 %v1056
    %4603 = vmatprep.subr.bf16.mxu0 %v1061
    %4604 = vmatpush1.bf16.msra.mxu0 %v1060
    %4605 = vmatprep.subr.bf16.mxu0 %v1065
    %4606 = vmatpush1.bf16.msra.mxu0 %v1064
    %4607 = vmatprep.subr.bf16.mxu0 %v1069
    %4608 = vmatpush1.bf16.msra.mxu0 %v1068
    %4609 = vmatprep.subr.bf16.mxu0 %v1073
    %4610 = vmatpush1.bf16.msra.mxu0 %v1072
    %4611 = vmatprep.subr.bf16.mxu0 %v1077
    %4612 = vmatpush1.bf16.msra.mxu0 %v1076
    %4613 = vmatprep.subr.bf16.mxu0 %v1081
    %4614 = vmatpush1.bf16.msra.mxu0 %v1080
    %4615 = vmatprep.subr.bf16.mxu0 %v1085
    %4616 = vmatpush1.bf16.msra.mxu0 %v1084
    %4617 = vmatprep.subr.bf16.mxu0 %v1089
    %4618 = vmatpush1.bf16.msra.mxu0 %v1088
    %4619 = vmatprep.subr.bf16.mxu0 %v1093
    %4620 = vmatpush1.bf16.msra.mxu0 %v1092
    %4621 = vmatprep.subr.bf16.mxu0 %v1097
    %4622 = vmatpush1.bf16.msra.mxu0 %v1096
    %4623 = vmatprep.subr.bf16.mxu0 %v1101
    %4624 = vmatpush1.bf16.msra.mxu0 %v1100
    %4625 = vmatprep.subr.bf16.mxu0 %v1105
    %4626 = vmatpush1.bf16.msra.mxu0 %v1104
    %4627 = vmatprep.subr.bf16.mxu0 %v1109
    %4628 = vmatpush1.bf16.msra.mxu0 %v1108
    %4629 = vmatprep.subr.bf16.mxu0 %v1113
    %4630 = vmatpush1.bf16.msra.mxu0 %v1112
    %4631 = vmatprep.mubr.bf16.mxu0 %v4388
    %4632 = vmatmul.mubr.bf16.gmra.mrb[0].mxu0 %v4598
    %v4633 = vpop.f32.mrb[0].mxu0
    %v4634 = vadd.f32 %v288, %v4633
    %v4635 = vpop.f32.mrb[0].mxu0
    %v4636 = vadd.f32 %v292, %v4635
    %v4637 = vpop.f32.mrb[0].mxu0
    %v4638 = vpop.f32.mrb[0].mxu0
    %4639 = vdwg.mxu0
    %4640 = vmatprep.subr.bf16.mxu0 %v1055
    %4641 = vmatpush1.bf16.msra.mxu0 %v1054
    %4642 = vmatprep.subr.bf16.mxu0 %v1059
    %4643 = vmatpush1.bf16.msra.mxu0 %v1058
    %4644 = vmatprep.subr.bf16.mxu0 %v1063
    %4645 = vmatpush1.bf16.msra.mxu0 %v1062
    %4646 = vmatprep.subr.bf16.mxu0 %v1067
    %4647 = vmatpush1.bf16.msra.mxu0 %v1066
    %4648 = vmatprep.subr.bf16.mxu0 %v1071
    %4649 = vmatpush1.bf16.msra.mxu0 %v1070
    %4650 = vmatprep.subr.bf16.mxu0 %v1075
    %4651 = vmatpush1.bf16.msra.mxu0 %v1074
    %4652 = vmatprep.subr.bf16.mxu0 %v1079
    %4653 = vmatpush1.bf16.msra.mxu0 %v1078
    %4654 = vmatprep.subr.bf16.mxu0 %v1083
    %4655 = vmatpush1.bf16.msra.mxu0 %v1082
    %4656 = vmatprep.subr.bf16.mxu0 %v1087
    %4657 = vmatpush1.bf16.msra.mxu0 %v1086
    %4658 = vmatprep.subr.bf16.mxu0 %v1091
    %4659 = vmatpush1.bf16.msra.mxu0 %v1090
    %4660 = vmatprep.subr.bf16.mxu0 %v1095
    %4661 = vmatpush1.bf16.msra.mxu0 %v1094
    %4662 = vmatprep.subr.bf16.mxu0 %v1099
    %4663 = vmatpush1.bf16.msra.mxu0 %v1098
    %4664 = vmatprep.subr.bf16.mxu0 %v1103
    %4665 = vmatpush1.bf16.msra.mxu0 %v1102
    %4666 = vmatprep.subr.bf16.mxu0 %v1107
    %4667 = vmatpush1.bf16.msra.mxu0 %v1106
    %4668 = vmatprep.subr.bf16.mxu0 %v1111
    %4669 = vmatpush1.bf16.msra.mxu0 %v1110
    %4670 = vmatprep.subr.bf16.mxu0 %v1115
    %4671 = vmatpush1.bf16.msra.mxu0 %v1114
    %4672 = vmatprep.mubr.bf16.mxu0 %v4388
    %4673 = vmatmul.mubr.bf16.gmra.mrb[0].mxu0 %v4598
    %v4674 = vpop.f32.mrb[0].mxu0
    %v4675 = vadd.f32 %v296, %v4674
    %v4676 = vpop.f32.mrb[0].mxu0
    %v4677 = vadd.f32 %v300, %v4676
    %v4678 = vpop.f32.mrb[0].mxu0
    %v4679 = vpop.f32.mrb[0].mxu0
    %4680 = vdwg.mxu0
    %v4681 = vmul.f32 %v4634, 0.5
    %v4682 = vtanh.pop %v4681
    %v4683 = vmul.f32 %v4682, 0.5
    %v4684 = vadd.f32 %v4683, 0.5
    %v4685 = vmul.f32 %v4636, 0.5
    %v4686 = vtanh.pop %v4685
    %v4687 = vmul.f32 %v4686, 0.5
    %v4688 = vadd.f32 %v4687, 0.5
    %v4689 = vtanh.pop %v4675
    %v4690 = vmul.f32 %v4677, 0.5
    %v4691 = vtanh.pop %v4690
    %v4692 = vmul.f32 %v4691, 0.5
    %v4693 = vadd.f32 %v4692, 0.5
    %v4694 = vmul.f32 %v4688, %v4385
    %v4695 = vmul.f32 %v4684, %v4689
    %v4696 = vadd.f32 %v4694, %v4695
    %v4697 = vtanh.pop %v4696
    %v4698 = vmul.f32 %v4693, %v4697
    %v4699 = vpack.c.bf16 %v4698, %v4698
    %v4700 = vld [vmem:[#allocation18 + $0x2c0] sm:$0xf]
    %v4701 = vld [vmem:[#allocation18 + $0x2c4] sm:$0xf]
    %v4702 = vld [vmem:[#allocation18 + $0x2c8] sm:$0xf]
    %v4703 = vld [vmem:[#allocation18 + $0x2cc] sm:$0xf]
    %v4704 = vld [vmem:[#allocation18 + $0x2d0] sm:$0xf]
    %v4705 = vld [vmem:[#allocation18 + $0x2d4] sm:$0xf]
    %v4706 = vld [vmem:[#allocation18 + $0x2d8] sm:$0xf]
    %v4707 = vld [vmem:[#allocation18 + $0x2dc] sm:$0xf]
    %v4708 = vld [vmem:[#allocation18 + $0x2e0] sm:$0xf]
    %v4709 = vld [vmem:[#allocation18 + $0x2e4] sm:$0xf]
    %v4710 = vld [vmem:[#allocation18 + $0x2e8] sm:$0xf]
    %v4711 = vld [vmem:[#allocation18 + $0x2ec] sm:$0xf]
    %v4712 = vld [vmem:[#allocation18 + $0x2f0] sm:$0xf]
    %v4713 = vld [vmem:[#allocation18 + $0x2f4] sm:$0xf]
    %v4714 = vld [vmem:[#allocation18 + $0x2f8] sm:$0xf]
    %v4715 = vld [vmem:[#allocation18 + $0x2fc] sm:$0xf]
    %v4732 = vunpack.c.l.b16 %v4700
    %v4733 = vunpack.c.l.b16 %v4701
    %v4734 = vunpack.c.l.b16 %v4702
    %v4735 = vunpack.c.l.b16 %v4703
    %v4736 = vunpack.c.l.b16 %v4704
    %v4737 = vunpack.c.l.b16 %v4705
    %v4738 = vunpack.c.l.b16 %v4706
    %v4739 = vunpack.c.l.b16 %v4707
    %v4740 = vunpack.c.l.b16 %v4708
    %v4741 = vunpack.c.l.b16 %v4709
    %v4742 = vunpack.c.l.b16 %v4710
    %v4743 = vunpack.c.l.b16 %v4711
    %v4744 = vunpack.c.l.b16 %v4712
    %v4745 = vunpack.c.l.b16 %v4713
    %v4746 = vunpack.c.l.b16 %v4714
    %v4747 = vunpack.c.l.b16 %v4715
    %v4748 = vpack.c.b16 %v4733, %v4732
    %v4749 = vpack.c.b16 %v4735, %v4734
    %v4750 = vpack.c.b16 %v4737, %v4736
    %v4751 = vpack.c.b16 %v4739, %v4738
    %v4752 = vpack.c.b16 %v4741, %v4740
    %v4753 = vpack.c.b16 %v4743, %v4742
    %v4754 = vpack.c.b16 %v4745, %v4744
    %v4755 = vpack.c.b16 %v4747, %v4746
    %4764 = vmatprep.subr.bf16.mxu0 0
    %4765 = vmatpush1.bf16.msra.mxu0 %v4748
    %4766 = vmatprep.subr.bf16.mxu0 0
    %4767 = vmatpush1.bf16.msra.mxu0 %v4749
    %4768 = vmatprep.subr.bf16.mxu0 0
    %4769 = vmatpush1.bf16.msra.mxu0 %v4750
    %4770 = vmatprep.subr.bf16.mxu0 0
    %4771 = vmatpush1.bf16.msra.mxu0 %v4751
    %4772 = vmatprep.subr.bf16.mxu0 0
    %4773 = vmatpush1.bf16.msra.mxu0 %v4752
    %4774 = vmatprep.subr.bf16.mxu0 0
    %4775 = vmatpush1.bf16.msra.mxu0 %v4753
    %4776 = vmatprep.subr.bf16.mxu0 0
    %4777 = vmatpush1.bf16.msra.mxu0 %v4754
    %4778 = vmatprep.subr.bf16.mxu0 0
    %4779 = vmatpush1.bf16.msra.mxu0 %v4755
    %4780 = vmatprep.subr.bf16.mxu0 0
    %4781 = vmatpush1.bf16.msra.mxu0 0
    %4782 = vmatprep.subr.bf16.mxu0 0
    %4783 = vmatpush1.bf16.msra.mxu0 0
    %4784 = vmatprep.subr.bf16.mxu0 0
    %4785 = vmatpush1.bf16.msra.mxu0 0
    %4786 = vmatprep.subr.bf16.mxu0 0
    %4787 = vmatpush1.bf16.msra.mxu0 0
    %4788 = vmatprep.subr.bf16.mxu0 0
    %4789 = vmatpush1.bf16.msra.mxu0 0
    %4790 = vmatprep.subr.bf16.mxu0 0
    %4791 = vmatpush1.bf16.msra.mxu0 0
    %4792 = vmatprep.subr.bf16.mxu0 0
    %4793 = vmatpush1.bf16.msra.mxu0 0
    %4794 = vmatprep.subr.bf16.mxu0 0
    %4795 = vmatpush1.bf16.msra.mxu0 0
    %4796 = vmatprep.mubr.bf16.mxu0 0
    %4797 = vmatmul.mubr.bf16.gmra.mrb[0].mxu0 %v4699
    %v4798 = vpop.f32.mrb[0].mxu0
    %v4799 = vadd.f32 0.0, %v4798
    %v4800 = vpop.f32.mrb[0].mxu0
    %v4801 = vpop.f32.mrb[0].mxu0
    %v4802 = vpop.f32.mrb[0].mxu0
    %4803 = vdwg.mxu0
    %v4804 = vadd.f32 %v4493, %v4799
    %v4805 = vld [vmem:[#allocation19] sm:$0x1]
    %v4807 = vlaneseq
    %v4808 = vshrl.u32 %v4807, 7
    %v4809 = vsub.s32 0, %v4808
    %v4810 = vrot.slane %v4805, %v4809
    %v4812 = vadd.f32 %v4804, %v4810
    %4813 = vadd.xlane.f32.xlu0 %v4812
    %v4814 = vpop.xlane.xlu0 %4813
    %v4815 = vrcp.pop 128.0
    %v4816 = vmul.f32 %v4814, %v4815
    %v4817 = vsub.f32 %v4812, %v4816
    %v4818 = vmul.f32 %v4817, %v4817
    %4819 = vadd.xlane.f32.xlu0 %v4818
    %v4820 = vpop.xlane.xlu0 %4819
    %v4821 = vmul.f32 %v4820, %v4815
    %v4822 = vadd.f32 %v4821, 1e-05
    %v4823 = vrsqrt.pop %v4822
    %v4824 = vmul.f32 %v4817, %v4823
    %v4825 = vld [vmem:[#allocation21] sm:$0x1]
    %v4827 = vlaneseq
    %v4828 = vshrl.u32 %v4827, 7
    %v4829 = vsub.s32 0, %v4828
    %v4830 = vrot.slane %v4825, %v4829
    %v4832 = vmul.f32 %v4824, %v4830
    %v4833 = vld [vmem:[#allocation22] sm:$0x1]
    %v4835 = vlaneseq
    %v4836 = vshrl.u32 %v4835, 7
    %v4837 = vsub.s32 0, %v4836
    %v4838 = vrot.slane %v4833, %v4837
    %v4840 = vadd.f32 %v4832, %v4838
    %v4841 = vmax.f32 %v4840, 0.0
    %v4842 = vld [vmem:[#allocation24] sm:$0x1]
    %v4844 = vlaneseq
    %v4845 = vshrl.u32 %v4844, 7
    %v4846 = vsub.s32 0, %v4845
    %v4847 = vrot.slane %v4842, %v4846
    %v4849 = vmul.f32 %v4841, %v4847
    %4850 = vadd.xlane.f32.xlu0 %v4849
    %v4851 = vpop.xlane.xlu0 %4850
    %v4852 = vld [vmem:[#allocation3] sm:$0x1]
    %v4854 = vlaneseq
    %v4855 = vshrl.u32 %v4854, 7
    %v4856 = vsub.s32 0, %v4855
    %v4857 = vrot.slane %v4852, %v4856
    %v4859 = vadd.f32 %v4851, %v4857
    %vm4860 = vcmask 7168
    %4861 = vst.msk [vmem:[#allocation25] sm:$0xff] %vm4860, %v4859
    // Predicated region
    $region110: #{forward.1} parent=1 // pred_check
      _
    $region111: #{forward.1} parent=1 // pred_check_branch
      %4863 = sbr.rel (0) target = $region113
    $region112: #{forward.1} parent=1 // pred_region
      %s4865 = ssub.s32 128, 128
      %4866 = vsyncadd [#allocation6], %s4865
      %s4868 = sshll.u32 [#allocation25], 4
      %s4869 = int_to_ptr.vmem [resolvable:$true] %s4868
      %4871 = dma.vmem_to_hbm [thread:$0]  %s4869, 128, %s14, [#allocation6]
    $region113: #{forward.1} parent=1 // pred_fallthru
      _
    // Predicated region
    $region114: #{forward.1} parent=1 // pred_check
      _
    $region115: #{forward.1} parent=1 // pred_check_branch
      %4873 = sbr.rel (0) target = $region117
    $region116: #{forward.1} parent=1 // pred_region
      %4874 = dma.done [#allocation6], 128
    $region117: #{forward.1} parent=1 // pred_fallthru
      _
    %4875 = vsyncpa [#allocation5], 1
    %4876 = vsyncpa [#allocation8], 1
    %4877 = vsyncpa [#allocation11], 1
    %4878 = vsyncpa [#allocation14], 1
    %4879 = vsyncpa [#allocation17], 1
    %4880 = vsyncpa [#allocation20], 1
    %4881 = vsyncpa [#allocation23], 1
    %4882 = vsyncpa [#allocation6], 1

</llo_original>
